<compile_context>
chip_gen: v7x
topology: tpu7x:2x2x1
jax: 0.10.0
libtpu: 0.0.40
codegen_flags: <defaults>
</compile_context>

<pallas_src>
import numpy as np
import jax
import jax.numpy as jnp
from jax import lax
from jax.experimental import pallas as pl
from jax.experimental.pallas import tpu as pltpu

C = 128                                   # padded channel / hidden width (lane-dense)
POOL_OFFSETS = ((0, 0), (0, 1), (1, 0), (1, 1))


# ---------------------------------------------------------------------------
# Wrapper glue: pooled "parity" im2col for conv1 (input is only 28x28x1).
# Row order  : (pool_offset[4], b, row_parity[2], col_parity[2],
#               row_half[6], col_half[6 padded to 8])
# Lane order : (ky, kx)  -> 25
# The two padded col_half rows are never read downstream.
# ---------------------------------------------------------------------------
def _pooled_parity_im2col(x2d):
    B = x2d.shape[0]
    dy = np.arange(2).reshape(2, 1, 1, 1, 1, 1, 1, 1)
    dx = np.arange(2).reshape(1, 2, 1, 1, 1, 1, 1, 1)
    p = np.arange(2).reshape(1, 1, 2, 1, 1, 1, 1, 1)
    q = np.arange(2).reshape(1, 1, 1, 2, 1, 1, 1, 1)
    ih = np.arange(6).reshape(1, 1, 1, 1, 6, 1, 1, 1)
    jh = np.arange(6).reshape(1, 1, 1, 1, 1, 6, 1, 1)
    ky = np.arange(5).reshape(1, 1, 1, 1, 1, 1, 5, 1)
    kx = np.arange(5).reshape(1, 1, 1, 1, 1, 1, 1, 5)
    rows = 2 * (2 * ih + p) + dy + ky
    cols = 2 * (2 * jh + q) + dx + kx
    rows, cols = np.broadcast_arrays(rows, cols)            # (2,2,2,2,6,6,5,5)
    patches = x2d[:, rows, cols]                            # (B,2,2,2,2,6,6,5,5)
    patches = jnp.transpose(patches, (1, 2, 0, 3, 4, 5, 6, 7, 8))
    patches = jnp.pad(patches, ((0, 0),) * 6 + ((0, 2), (0, 0), (0, 0)))
    return patches.reshape(4 * B * 2 * 2 * 6 * 8, 25)       # (4*B*192, 25)


# ---------------------------------------------------------------------------
# Single fused kernel: conv1+pool -> conv2+pool -> flatten -> fc1 -> fc2.
# ---------------------------------------------------------------------------
def _fused_kernel(p1_ref, w1_ref, b1_ref, w2_ref, b2_ref,
                  wf1_ref, bf1_ref, wf2_ref, bf2_ref,
                  o_ref, patch_ref, feat_ref):
    f32 = jnp.float32
    B = o_ref.shape[0]
    m16 = B * 16

    # ---- conv1 + 2x2 maxpool (+bias, relu hoisted after the max) ----------
    # One tall MXU matmul over all (pool offset, batch, spatial) rows.
    z1 = jnp.dot(p1_ref[...], w1_ref[...], preferred_element_type=f32)  # (4*B*192, C)
    z1 = z1.reshape(4, B * 192, C)
    y1 = jnp.maximum(jnp.max(z1, axis=0) + b1_ref[...], 0.0)            # (B*192, C)
    # Parity layout: y1p[b, p*2+q, i, j, c] == pooled conv1 out at (2i+p, 2j+q)
    y1p = y1.reshape(B, 4, 6, 8, C)

    # ---- conv2 + 2x2 maxpool ----------------------------------------------
    # Build the pooled im2col of y1 entirely in VMEM (no HBM round trip),
    # then one (4*B*16, 25*C) @ (25*C, C) matmul.
    sl = {}
    for t in range(6):
        for u in range(6):
            blk = y1p[:, (t % 2) * 2 + (u % 2),
                      t // 2:t // 2 + 4, u // 2:u // 2 + 4, :]           # (B,4,4,C)
            sl[(t, u)] = blk.reshape(m16, C)   # sl[t,u][b*16+a*4+c] = y1[b, t+2a, u+2c]
    for j, (dy, dx) in enumerate(POOL_OFFSETS):
        for ky in range(5):
            for kx in range(5):
                kk = ky * 5 + kx
                patch_ref[j * m16:(j + 1) * m16, kk * C:(kk + 1) * C] = \
                    sl[(ky + dy, kx + dx)]
    z2 = jnp.dot(patch_ref[...], w2_ref[...], preferred_element_type=f32)  # (4*m16, C)
    z2 = z2.reshape(4, m16, C)
    y2 = jnp.maximum(jnp.max(z2, axis=0) + b2_ref[...], 0.0)               # (B*16, C)

    # ---- flatten + fc1 + relu + fc2 ----------------------------------------
    # PyTorch's channel-major flatten order is absorbed into the pre-permuted
    # fc1 weight, so we only lay spatial positions along lanes here.
    y2r = y2.reshape(B, 16, C)
    for s in range(16):
        feat_ref[:, s * C:(s + 1) * C] = y2r[:, s, :]
    h1 = jnp.dot(feat_ref[...], wf1_ref[...], preferred_element_type=f32) + bf1_ref[...]
    h1 = jnp.maximum(h1, 0.0)                                              # (B, C)
    out = jnp.dot(h1, wf2_ref[...], preferred_element_type=f32) + bf2_ref[...]
    o_ref[...] = out.astype(o_ref.dtype)


# ---------------------------------------------------------------------------
# Full forward pass (accepts PyTorch-style NCHW input).
# ---------------------------------------------------------------------------
def class_net_forward(x_nchw, params):
    B = x_nchw.shape[0]
    assert x_nchw.shape[1:] == (1, 28, 28)
    x2d = x_nchw.reshape(B, 28, 28).astype(jnp.float32)

    # conv1 weights -> (25, C), bias -> (1, C); zero pad to 128 channels.
    w1m = jnp.transpose(params["conv1_w"], (2, 3, 1, 0)).reshape(25, 32)
    w1m = jnp.pad(w1m, ((0, 0), (0, C - 32)))
    b1 = jnp.pad(params["conv1_b"], (0, C - 32)).reshape(1, C)

    # conv2 weights laid out to match the in-kernel im2col: row = kk*C + cin.
    w2m = jnp.transpose(params["conv2_w"], (2, 3, 1, 0))                 # (5,5,32,32)
    w2m = jnp.pad(w2m, ((0, 0), (0, 0), (0, C - 32), (0, C - 32))).reshape(25 * C, C)
    b2 = jnp.pad(params["conv2_b"], (0, C - 32)).reshape(1, C)

    # fc1 weight re-indexed from torch (c*16 + s) order to (s*C + c) rows,
    # hidden padded 80 -> 128.
    wf1 = jnp.transpose(params["fc1_w"].reshape(80, 32, 16), (2, 1, 0))  # (s, c, h)
    wf1 = jnp.pad(wf1, ((0, 0), (0, C - 32), (0, C - 80))).reshape(16 * C, C)
    bf1 = jnp.pad(params["fc1_b"], (0, C - 80)).reshape(1, C)

    wf2 = jnp.pad(params["fc2_w"].T, ((0, C - 80), (0, 0)))              # (C, 10)
    bf2 = params["fc2_b"].reshape(1, 10)

    p1 = _pooled_parity_im2col(x2d)                                      # (4*B*192, 25)

    def full(shape):
        n = len(shape)
        return pl.BlockSpec(shape, lambda i: (0,) * n)

    return pl.pallas_call(
        _fused_kernel,
        out_shape=jax.ShapeDtypeStruct((B, 10), jnp.float32),
        grid=(1,),
        in_specs=[
            full(p1.shape), full(w1m.shape), full(b1.shape),
            full(w2m.shape), full(b2.shape),
            full(wf1.shape), full(bf1.shape),
            full(wf2.shape), full(bf2.shape),
        ],
        out_specs=full((B, 10)),
        scratch_shapes=[
            pltpu.VMEM((4 * B * 16, 25 * C), jnp.float32),   # in-kernel conv2 im2col
            pltpu.VMEM((B, 16 * C), jnp.float32),            # flattened features
        ],
        compiler_params=pltpu.CompilerParams(
            dimension_semantics=("arbitrary",),
            vmem_limit_bytes=32 * 1024 * 1024),
    )(p1, w1m, b1, w2m, b2, wf1, bf1, wf2, bf2)


# ---------------------------------------------------------------------------
# Parameters / reference / driver
# ---------------------------------------------------------------------------
def init_params(key):
    ks = jax.random.split(key, 8)
    f32 = jnp.float32
    return {
        "conv1_w": 0.1 * jax.random.normal(ks[0], (32, 1, 5, 5), f32),
        "conv1_b": 0.1 * jax.random.normal(ks[1], (32,), f32),
        "conv2_w": 0.05 * jax.random.normal(ks[2], (32, 32, 5, 5), f32),
        "conv2_b": 0.1 * jax.random.normal(ks[3], (32,), f32),
        "fc1_w": 0.05 * jax.random.normal(ks[4], (80, 32 * 4 * 4), f32),
        "fc1_b": 0.1 * jax.random.normal(ks[5], (80,), f32),
        "fc2_w": 0.05 * jax.random.normal(ks[6], (10, 80), f32),
        "fc2_b": 0.1 * jax.random.normal(ks[7], (10,), f32),
    }


def reference_forward(x_nchw, params):
    dn = ("NCHW", "OIHW", "NCHW")
    y = lax.conv_general_dilated(x_nchw, params["conv1_w"], (1, 1), "VALID",
                                 dimension_numbers=dn)
    y = jnp.maximum(y + params["conv1_b"].reshape(1, -1, 1, 1), 0.0)
    y = lax.reduce_window(y, -jnp.inf, lax.max, (1, 1, 2, 2), (1, 1, 2, 2), "VALID")
    y = lax.conv_general_dilated(y, params["conv2_w"], (1, 1), "VALID",
                                 dimension_numbers=dn)
    y = jnp.maximum(y + params["conv2_b"].reshape(1, -1, 1, 1), 0.0)
    y = lax.reduce_window(y, -jnp.inf, lax.max, (1, 1, 2, 2), (1, 1, 2, 2), "VALID")
    feat = y.reshape(y.shape[0], -1)
    h = jnp.maximum(feat @ params["fc1_w"].T + params["fc1_b"], 0.0)
    return h @ params["fc2_w"].T + params["fc2_b"]


if __name__ == "__main__":
    root = jax.random.PRNGKey(0)
    k_params, k_x = jax.random.split(root)
    params = init_params(k_params)

    # 1 input channel, 28x28 spatial (the only size consistent with the
    # 32*4*4 flatten in the module), small batch of 2.
    x = jax.random.normal(k_x, (2, 1, 28, 28), jnp.float32)

    fwd = jax.jit(lambda xx: class_net_forward(xx, params))
    out = fwd(x)
    jax.block_until_ready(out)
    assert out.shape == (2, 10) and out.dtype == jnp.float32

    ref = jax.jit(lambda xx: reference_forward(xx, params))(x)
    jax.block_until_ready(ref)
    max_err = float(jnp.max(jnp.abs(out - ref)))
    assert max_err < 5e-2, f"mismatch vs reference: {max_err}"

    print("KERNEL_OK")
</pallas_src>

<mosaic_0001>
module attributes {stable_mosaic.version = 11 : i64} {
  func.func @_fused_kernel(%arg0: i32, %arg1: memref<1536x25xf32, #tpu.memory_space<vmem>>, %arg2: memref<25x128xf32, #tpu.memory_space<vmem>>, %arg3: memref<1x128xf32, #tpu.memory_space<vmem>>, %arg4: memref<3200x128xf32, #tpu.memory_space<vmem>>, %arg5: memref<1x128xf32, #tpu.memory_space<vmem>>, %arg6: memref<2048x128xf32, #tpu.memory_space<vmem>>, %arg7: memref<1x128xf32, #tpu.memory_space<vmem>>, %arg8: memref<128x10xf32, #tpu.memory_space<vmem>>, %arg9: memref<1x10xf32, #tpu.memory_space<vmem>>, %arg10: memref<2x10xf32, #tpu.memory_space<vmem>>, %arg11: memref<128x3200xf32, #tpu.memory_space<vmem>>, %arg12: memref<2x2048xf32, #tpu.memory_space<vmem>>) attributes {dimension_semantics = [#tpu.dimension_semantics<arbitrary>], iteration_bounds = array<i64: 1>, scalar_prefetch = 0 : i64, scratch_operands = 2 : i64, tpu.core_type = #tpu.core_type<tc>, window_params = [{pipeline_mode = #tpu.pipeline_mode<synchronous>, transform_indices = @transform_0, window_bounds = array<i64: 1536, 25>}, {pipeline_mode = #tpu.pipeline_mode<synchronous>, transform_indices = @transform_1, window_bounds = array<i64: 25, 128>}, {pipeline_mode = #tpu.pipeline_mode<synchronous>, transform_indices = @transform_2, window_bounds = array<i64: 1, 128>}, {pipeline_mode = #tpu.pipeline_mode<synchronous>, transform_indices = @transform_3, window_bounds = array<i64: 3200, 128>}, {pipeline_mode = #tpu.pipeline_mode<synchronous>, transform_indices = @transform_4, window_bounds = array<i64: 1, 128>}, {pipeline_mode = #tpu.pipeline_mode<synchronous>, transform_indices = @transform_5, window_bounds = array<i64: 2048, 128>}, {pipeline_mode = #tpu.pipeline_mode<synchronous>, transform_indices = @transform_6, window_bounds = array<i64: 1, 128>}, {pipeline_mode = #tpu.pipeline_mode<synchronous>, transform_indices = @transform_7, window_bounds = array<i64: 128, 10>}, {pipeline_mode = #tpu.pipeline_mode<synchronous>, transform_indices = @transform_8, window_bounds = array<i64: 1, 10>}, {pipeline_mode = #tpu.pipeline_mode<synchronous>, transform_indices = @transform_9, window_bounds = array<i64: 2, 10>}]} {
    %c0 = arith.constant 0 : index
    %c0_0 = arith.constant 0 : index
    %0 = vector.load %arg1[%c0, %c0_0] : memref<1536x25xf32, #tpu.memory_space<vmem>>, vector<1536x25xf32>
    %c0_1 = arith.constant 0 : index
    %c0_2 = arith.constant 0 : index
    %1 = vector.load %arg2[%c0_1, %c0_2] : memref<25x128xf32, #tpu.memory_space<vmem>>, vector<25x128xf32>
    %cst = arith.constant dense<0.000000e+00> : vector<1536x128xf32>
    %2 = tpu.matmul %0, %1, %cst {dimension_numbers = #tpu.dot_dimension_numbers<[1], [0], [0], [1], [0, 0, 1, 1], [], []>} : vector<1536x25xf32>, vector<25x128xf32>, vector<1536x128xf32> -> vector<1536x128xf32>
    %3 = vector.shape_cast %2 : vector<1536x128xf32> to vector<4x384x128xf32>
    %cst_3 = arith.constant dense<0xFF800000> : vector<384x128xf32>
    %4 = vector.multi_reduction <maximumf>, %3, %cst_3 [0] : vector<4x384x128xf32> to vector<384x128xf32>
    %c0_4 = arith.constant 0 : index
    %c0_5 = arith.constant 0 : index
    %5 = vector.load %arg3[%c0_4, %c0_5] : memref<1x128xf32, #tpu.memory_space<vmem>>, vector<1x128xf32>
    %6 = vector.broadcast %5 : vector<1x128xf32> to vector<384x128xf32>
    %7 = arith.addf %4, %6 : vector<384x128xf32>
    %cst_6 = arith.constant 0.000000e+00 : f32
    %8 = vector.broadcast %cst_6 : f32 to vector<384x128xf32>
    %9 = arith.maximumf %7, %8 : vector<384x128xf32>
    %10 = vector.shape_cast %9 : vector<384x128xf32> to vector<2x4x6x8x128xf32>
    %11 = vector.extract_strided_slice %10 {offsets = [0, 0, 0, 0, 0], sizes = [2, 1, 4, 4, 128], strides = [1, 1, 1, 1, 1]} : vector<2x4x6x8x128xf32> to vector<2x1x4x4x128xf32>
    %12 = vector.shape_cast %11 : vector<2x1x4x4x128xf32> to vector<2x4x4x128xf32>
    %13 = vector.shape_cast %12 : vector<2x4x4x128xf32> to vector<32x128xf32>
    %14 = vector.extract_strided_slice %10 {offsets = [0, 1, 0, 0, 0], sizes = [2, 1, 4, 4, 128], strides = [1, 1, 1, 1, 1]} : vector<2x4x6x8x128xf32> to vector<2x1x4x4x128xf32>
    %15 = vector.shape_cast %14 : vector<2x1x4x4x128xf32> to vector<2x4x4x128xf32>
    %16 = vector.shape_cast %15 : vector<2x4x4x128xf32> to vector<32x128xf32>
    %17 = vector.extract_strided_slice %10 {offsets = [0, 0, 0, 1, 0], sizes = [2, 1, 4, 4, 128], strides = [1, 1, 1, 1, 1]} : vector<2x4x6x8x128xf32> to vector<2x1x4x4x128xf32>
    %18 = vector.shape_cast %17 : vector<2x1x4x4x128xf32> to vector<2x4x4x128xf32>
    %19 = vector.shape_cast %18 : vector<2x4x4x128xf32> to vector<32x128xf32>
    %20 = vector.extract_strided_slice %10 {offsets = [0, 1, 0, 1, 0], sizes = [2, 1, 4, 4, 128], strides = [1, 1, 1, 1, 1]} : vector<2x4x6x8x128xf32> to vector<2x1x4x4x128xf32>
    %21 = vector.shape_cast %20 : vector<2x1x4x4x128xf32> to vector<2x4x4x128xf32>
    %22 = vector.shape_cast %21 : vector<2x4x4x128xf32> to vector<32x128xf32>
    %23 = vector.extract_strided_slice %10 {offsets = [0, 0, 0, 2, 0], sizes = [2, 1, 4, 4, 128], strides = [1, 1, 1, 1, 1]} : vector<2x4x6x8x128xf32> to vector<2x1x4x4x128xf32>
    %24 = vector.shape_cast %23 : vector<2x1x4x4x128xf32> to vector<2x4x4x128xf32>
    %25 = vector.shape_cast %24 : vector<2x4x4x128xf32> to vector<32x128xf32>
    %26 = vector.extract_strided_slice %10 {offsets = [0, 1, 0, 2, 0], sizes = [2, 1, 4, 4, 128], strides = [1, 1, 1, 1, 1]} : vector<2x4x6x8x128xf32> to vector<2x1x4x4x128xf32>
    %27 = vector.shape_cast %26 : vector<2x1x4x4x128xf32> to vector<2x4x4x128xf32>
    %28 = vector.shape_cast %27 : vector<2x4x4x128xf32> to vector<32x128xf32>
    %29 = vector.extract_strided_slice %10 {offsets = [0, 2, 0, 0, 0], sizes = [2, 1, 4, 4, 128], strides = [1, 1, 1, 1, 1]} : vector<2x4x6x8x128xf32> to vector<2x1x4x4x128xf32>
    %30 = vector.shape_cast %29 : vector<2x1x4x4x128xf32> to vector<2x4x4x128xf32>
    %31 = vector.shape_cast %30 : vector<2x4x4x128xf32> to vector<32x128xf32>
    %32 = vector.extract_strided_slice %10 {offsets = [0, 3, 0, 0, 0], sizes = [2, 1, 4, 4, 128], strides = [1, 1, 1, 1, 1]} : vector<2x4x6x8x128xf32> to vector<2x1x4x4x128xf32>
    %33 = vector.shape_cast %32 : vector<2x1x4x4x128xf32> to vector<2x4x4x128xf32>
    %34 = vector.shape_cast %33 : vector<2x4x4x128xf32> to vector<32x128xf32>
    %35 = vector.extract_strided_slice %10 {offsets = [0, 2, 0, 1, 0], sizes = [2, 1, 4, 4, 128], strides = [1, 1, 1, 1, 1]} : vector<2x4x6x8x128xf32> to vector<2x1x4x4x128xf32>
    %36 = vector.shape_cast %35 : vector<2x1x4x4x128xf32> to vector<2x4x4x128xf32>
    %37 = vector.shape_cast %36 : vector<2x4x4x128xf32> to vector<32x128xf32>
    %38 = vector.extract_strided_slice %10 {offsets = [0, 3, 0, 1, 0], sizes = [2, 1, 4, 4, 128], strides = [1, 1, 1, 1, 1]} : vector<2x4x6x8x128xf32> to vector<2x1x4x4x128xf32>
    %39 = vector.shape_cast %38 : vector<2x1x4x4x128xf32> to vector<2x4x4x128xf32>
    %40 = vector.shape_cast %39 : vector<2x4x4x128xf32> to vector<32x128xf32>
    %41 = vector.extract_strided_slice %10 {offsets = [0, 2, 0, 2, 0], sizes = [2, 1, 4, 4, 128], strides = [1, 1, 1, 1, 1]} : vector<2x4x6x8x128xf32> to vector<2x1x4x4x128xf32>
    %42 = vector.shape_cast %41 : vector<2x1x4x4x128xf32> to vector<2x4x4x128xf32>
    %43 = vector.shape_cast %42 : vector<2x4x4x128xf32> to vector<32x128xf32>
    %44 = vector.extract_strided_slice %10 {offsets = [0, 3, 0, 2, 0], sizes = [2, 1, 4, 4, 128], strides = [1, 1, 1, 1, 1]} : vector<2x4x6x8x128xf32> to vector<2x1x4x4x128xf32>
    %45 = vector.shape_cast %44 : vector<2x1x4x4x128xf32> to vector<2x4x4x128xf32>
    %46 = vector.shape_cast %45 : vector<2x4x4x128xf32> to vector<32x128xf32>
    %47 = vector.extract_strided_slice %10 {offsets = [0, 0, 1, 0, 0], sizes = [2, 1, 4, 4, 128], strides = [1, 1, 1, 1, 1]} : vector<2x4x6x8x128xf32> to vector<2x1x4x4x128xf32>
    %48 = vector.shape_cast %47 : vector<2x1x4x4x128xf32> to vector<2x4x4x128xf32>
    %49 = vector.shape_cast %48 : vector<2x4x4x128xf32> to vector<32x128xf32>
    %50 = vector.extract_strided_slice %10 {offsets = [0, 1, 1, 0, 0], sizes = [2, 1, 4, 4, 128], strides = [1, 1, 1, 1, 1]} : vector<2x4x6x8x128xf32> to vector<2x1x4x4x128xf32>
    %51 = vector.shape_cast %50 : vector<2x1x4x4x128xf32> to vector<2x4x4x128xf32>
    %52 = vector.shape_cast %51 : vector<2x4x4x128xf32> to vector<32x128xf32>
    %53 = vector.extract_strided_slice %10 {offsets = [0, 0, 1, 1, 0], sizes = [2, 1, 4, 4, 128], strides = [1, 1, 1, 1, 1]} : vector<2x4x6x8x128xf32> to vector<2x1x4x4x128xf32>
    %54 = vector.shape_cast %53 : vector<2x1x4x4x128xf32> to vector<2x4x4x128xf32>
    %55 = vector.shape_cast %54 : vector<2x4x4x128xf32> to vector<32x128xf32>
    %56 = vector.extract_strided_slice %10 {offsets = [0, 1, 1, 1, 0], sizes = [2, 1, 4, 4, 128], strides = [1, 1, 1, 1, 1]} : vector<2x4x6x8x128xf32> to vector<2x1x4x4x128xf32>
    %57 = vector.shape_cast %56 : vector<2x1x4x4x128xf32> to vector<2x4x4x128xf32>
    %58 = vector.shape_cast %57 : vector<2x4x4x128xf32> to vector<32x128xf32>
    %59 = vector.extract_strided_slice %10 {offsets = [0, 0, 1, 2, 0], sizes = [2, 1, 4, 4, 128], strides = [1, 1, 1, 1, 1]} : vector<2x4x6x8x128xf32> to vector<2x1x4x4x128xf32>
    %60 = vector.shape_cast %59 : vector<2x1x4x4x128xf32> to vector<2x4x4x128xf32>
    %61 = vector.shape_cast %60 : vector<2x4x4x128xf32> to vector<32x128xf32>
    %62 = vector.extract_strided_slice %10 {offsets = [0, 1, 1, 2, 0], sizes = [2, 1, 4, 4, 128], strides = [1, 1, 1, 1, 1]} : vector<2x4x6x8x128xf32> to vector<2x1x4x4x128xf32>
    %63 = vector.shape_cast %62 : vector<2x1x4x4x128xf32> to vector<2x4x4x128xf32>
    %64 = vector.shape_cast %63 : vector<2x4x4x128xf32> to vector<32x128xf32>
    %65 = vector.extract_strided_slice %10 {offsets = [0, 2, 1, 0, 0], sizes = [2, 1, 4, 4, 128], strides = [1, 1, 1, 1, 1]} : vector<2x4x6x8x128xf32> to vector<2x1x4x4x128xf32>
    %66 = vector.shape_cast %65 : vector<2x1x4x4x128xf32> to vector<2x4x4x128xf32>
    %67 = vector.shape_cast %66 : vector<2x4x4x128xf32> to vector<32x128xf32>
    %68 = vector.extract_strided_slice %10 {offsets = [0, 3, 1, 0, 0], sizes = [2, 1, 4, 4, 128], strides = [1, 1, 1, 1, 1]} : vector<2x4x6x8x128xf32> to vector<2x1x4x4x128xf32>
    %69 = vector.shape_cast %68 : vector<2x1x4x4x128xf32> to vector<2x4x4x128xf32>
    %70 = vector.shape_cast %69 : vector<2x4x4x128xf32> to vector<32x128xf32>
    %71 = vector.extract_strided_slice %10 {offsets = [0, 2, 1, 1, 0], sizes = [2, 1, 4, 4, 128], strides = [1, 1, 1, 1, 1]} : vector<2x4x6x8x128xf32> to vector<2x1x4x4x128xf32>
    %72 = vector.shape_cast %71 : vector<2x1x4x4x128xf32> to vector<2x4x4x128xf32>
    %73 = vector.shape_cast %72 : vector<2x4x4x128xf32> to vector<32x128xf32>
    %74 = vector.extract_strided_slice %10 {offsets = [0, 3, 1, 1, 0], sizes = [2, 1, 4, 4, 128], strides = [1, 1, 1, 1, 1]} : vector<2x4x6x8x128xf32> to vector<2x1x4x4x128xf32>
    %75 = vector.shape_cast %74 : vector<2x1x4x4x128xf32> to vector<2x4x4x128xf32>
    %76 = vector.shape_cast %75 : vector<2x4x4x128xf32> to vector<32x128xf32>
    %77 = vector.extract_strided_slice %10 {offsets = [0, 2, 1, 2, 0], sizes = [2, 1, 4, 4, 128], strides = [1, 1, 1, 1, 1]} : vector<2x4x6x8x128xf32> to vector<2x1x4x4x128xf32>
    %78 = vector.shape_cast %77 : vector<2x1x4x4x128xf32> to vector<2x4x4x128xf32>
    %79 = vector.shape_cast %78 : vector<2x4x4x128xf32> to vector<32x128xf32>
    %80 = vector.extract_strided_slice %10 {offsets = [0, 3, 1, 2, 0], sizes = [2, 1, 4, 4, 128], strides = [1, 1, 1, 1, 1]} : vector<2x4x6x8x128xf32> to vector<2x1x4x4x128xf32>
    %81 = vector.shape_cast %80 : vector<2x1x4x4x128xf32> to vector<2x4x4x128xf32>
    %82 = vector.shape_cast %81 : vector<2x4x4x128xf32> to vector<32x128xf32>
    %83 = vector.extract_strided_slice %10 {offsets = [0, 0, 2, 0, 0], sizes = [2, 1, 4, 4, 128], strides = [1, 1, 1, 1, 1]} : vector<2x4x6x8x128xf32> to vector<2x1x4x4x128xf32>
    %84 = vector.shape_cast %83 : vector<2x1x4x4x128xf32> to vector<2x4x4x128xf32>
    %85 = vector.shape_cast %84 : vector<2x4x4x128xf32> to vector<32x128xf32>
    %86 = vector.extract_strided_slice %10 {offsets = [0, 1, 2, 0, 0], sizes = [2, 1, 4, 4, 128], strides = [1, 1, 1, 1, 1]} : vector<2x4x6x8x128xf32> to vector<2x1x4x4x128xf32>
    %87 = vector.shape_cast %86 : vector<2x1x4x4x128xf32> to vector<2x4x4x128xf32>
    %88 = vector.shape_cast %87 : vector<2x4x4x128xf32> to vector<32x128xf32>
    %89 = vector.extract_strided_slice %10 {offsets = [0, 0, 2, 1, 0], sizes = [2, 1, 4, 4, 128], strides = [1, 1, 1, 1, 1]} : vector<2x4x6x8x128xf32> to vector<2x1x4x4x128xf32>
    %90 = vector.shape_cast %89 : vector<2x1x4x4x128xf32> to vector<2x4x4x128xf32>
    %91 = vector.shape_cast %90 : vector<2x4x4x128xf32> to vector<32x128xf32>
    %92 = vector.extract_strided_slice %10 {offsets = [0, 1, 2, 1, 0], sizes = [2, 1, 4, 4, 128], strides = [1, 1, 1, 1, 1]} : vector<2x4x6x8x128xf32> to vector<2x1x4x4x128xf32>
    %93 = vector.shape_cast %92 : vector<2x1x4x4x128xf32> to vector<2x4x4x128xf32>
    %94 = vector.shape_cast %93 : vector<2x4x4x128xf32> to vector<32x128xf32>
    %95 = vector.extract_strided_slice %10 {offsets = [0, 0, 2, 2, 0], sizes = [2, 1, 4, 4, 128], strides = [1, 1, 1, 1, 1]} : vector<2x4x6x8x128xf32> to vector<2x1x4x4x128xf32>
    %96 = vector.shape_cast %95 : vector<2x1x4x4x128xf32> to vector<2x4x4x128xf32>
    %97 = vector.shape_cast %96 : vector<2x4x4x128xf32> to vector<32x128xf32>
    %98 = vector.extract_strided_slice %10 {offsets = [0, 1, 2, 2, 0], sizes = [2, 1, 4, 4, 128], strides = [1, 1, 1, 1, 1]} : vector<2x4x6x8x128xf32> to vector<2x1x4x4x128xf32>
    %99 = vector.shape_cast %98 : vector<2x1x4x4x128xf32> to vector<2x4x4x128xf32>
    %100 = vector.shape_cast %99 : vector<2x4x4x128xf32> to vector<32x128xf32>
    %101 = vector.extract_strided_slice %10 {offsets = [0, 2, 2, 0, 0], sizes = [2, 1, 4, 4, 128], strides = [1, 1, 1, 1, 1]} : vector<2x4x6x8x128xf32> to vector<2x1x4x4x128xf32>
    %102 = vector.shape_cast %101 : vector<2x1x4x4x128xf32> to vector<2x4x4x128xf32>
    %103 = vector.shape_cast %102 : vector<2x4x4x128xf32> to vector<32x128xf32>
    %104 = vector.extract_strided_slice %10 {offsets = [0, 3, 2, 0, 0], sizes = [2, 1, 4, 4, 128], strides = [1, 1, 1, 1, 1]} : vector<2x4x6x8x128xf32> to vector<2x1x4x4x128xf32>
    %105 = vector.shape_cast %104 : vector<2x1x4x4x128xf32> to vector<2x4x4x128xf32>
    %106 = vector.shape_cast %105 : vector<2x4x4x128xf32> to vector<32x128xf32>
    %107 = vector.extract_strided_slice %10 {offsets = [0, 2, 2, 1, 0], sizes = [2, 1, 4, 4, 128], strides = [1, 1, 1, 1, 1]} : vector<2x4x6x8x128xf32> to vector<2x1x4x4x128xf32>
    %108 = vector.shape_cast %107 : vector<2x1x4x4x128xf32> to vector<2x4x4x128xf32>
    %109 = vector.shape_cast %108 : vector<2x4x4x128xf32> to vector<32x128xf32>
    %110 = vector.extract_strided_slice %10 {offsets = [0, 3, 2, 1, 0], sizes = [2, 1, 4, 4, 128], strides = [1, 1, 1, 1, 1]} : vector<2x4x6x8x128xf32> to vector<2x1x4x4x128xf32>
    %111 = vector.shape_cast %110 : vector<2x1x4x4x128xf32> to vector<2x4x4x128xf32>
    %112 = vector.shape_cast %111 : vector<2x4x4x128xf32> to vector<32x128xf32>
    %113 = vector.extract_strided_slice %10 {offsets = [0, 2, 2, 2, 0], sizes = [2, 1, 4, 4, 128], strides = [1, 1, 1, 1, 1]} : vector<2x4x6x8x128xf32> to vector<2x1x4x4x128xf32>
    %114 = vector.shape_cast %113 : vector<2x1x4x4x128xf32> to vector<2x4x4x128xf32>
    %115 = vector.shape_cast %114 : vector<2x4x4x128xf32> to vector<32x128xf32>
    %116 = vector.extract_strided_slice %10 {offsets = [0, 3, 2, 2, 0], sizes = [2, 1, 4, 4, 128], strides = [1, 1, 1, 1, 1]} : vector<2x4x6x8x128xf32> to vector<2x1x4x4x128xf32>
    %117 = vector.shape_cast %116 : vector<2x1x4x4x128xf32> to vector<2x4x4x128xf32>
    %118 = vector.shape_cast %117 : vector<2x4x4x128xf32> to vector<32x128xf32>
    %c0_7 = arith.constant 0 : index
    %c0_8 = arith.constant 0 : index
    %119 = vector.load %arg11[%c0_7, %c0_8] : memref<128x3200xf32, #tpu.memory_space<vmem>>, vector<32x128xf32>
    tpu.vector_store %arg11[%c0_7, %c0_8], %13 {strides = array<i32>} : memref<128x3200xf32, #tpu.memory_space<vmem>>, vector<32x128xf32>,
    %c0_9 = arith.constant 0 : index
    %c128 = arith.constant 128 : index
    %120 = vector.load %arg11[%c0_9, %c128] : memref<128x3200xf32, #tpu.memory_space<vmem>>, vector<32x128xf32>
    tpu.vector_store %arg11[%c0_9, %c128], %16 {strides = array<i32>} : memref<128x3200xf32, #tpu.memory_space<vmem>>, vector<32x128xf32>,
    %c0_10 = arith.constant 0 : index
    %c256 = arith.constant 256 : index
    %121 = vector.load %arg11[%c0_10, %c256] : memref<128x3200xf32, #tpu.memory_space<vmem>>, vector<32x128xf32>
    tpu.vector_store %arg11[%c0_10, %c256], %19 {strides = array<i32>} : memref<128x3200xf32, #tpu.memory_space<vmem>>, vector<32x128xf32>,
    %c0_11 = arith.constant 0 : index
    %c384 = arith.constant 384 : index
    %122 = vector.load %arg11[%c0_11, %c384] : memref<128x3200xf32, #tpu.memory_space<vmem>>, vector<32x128xf32>
    tpu.vector_store %arg11[%c0_11, %c384], %22 {strides = array<i32>} : memref<128x3200xf32, #tpu.memory_space<vmem>>, vector<32x128xf32>,
    %c0_12 = arith.constant 0 : index
    %c512 = arith.constant 512 : index
    %123 = vector.load %arg11[%c0_12, %c512] : memref<128x3200xf32, #tpu.memory_space<vmem>>, vector<32x128xf32>
    tpu.vector_store %arg11[%c0_12, %c512], %25 {strides = array<i32>} : memref<128x3200xf32, #tpu.memory_space<vmem>>, vector<32x128xf32>,
    %c0_13 = arith.constant 0 : index
    %c640 = arith.constant 640 : index
    %124 = vector.load %arg11[%c0_13, %c640] : memref<128x3200xf32, #tpu.memory_space<vmem>>, vector<32x128xf32>
    tpu.vector_store %arg11[%c0_13, %c640], %31 {strides = array<i32>} : memref<128x3200xf32, #tpu.memory_space<vmem>>, vector<32x128xf32>,
    %c0_14 = arith.constant 0 : index
    %c768 = arith.constant 768 : index
    %125 = vector.load %arg11[%c0_14, %c768] : memref<128x3200xf32, #tpu.memory_space<vmem>>, vector<32x128xf32>
    tpu.vector_store %arg11[%c0_14, %c768], %34 {strides = array<i32>} : memref<128x3200xf32, #tpu.memory_space<vmem>>, vector<32x128xf32>,
    %c0_15 = arith.constant 0 : index
    %c896 = arith.constant 896 : index
    %126 = vector.load %arg11[%c0_15, %c896] : memref<128x3200xf32, #tpu.memory_space<vmem>>, vector<32x128xf32>
    tpu.vector_store %arg11[%c0_15, %c896], %37 {strides = array<i32>} : memref<128x3200xf32, #tpu.memory_space<vmem>>, vector<32x128xf32>,
    %c0_16 = arith.constant 0 : index
    %c1024 = arith.constant 1024 : index
    %127 = vector.load %arg11[%c0_16, %c1024] : memref<128x3200xf32, #tpu.memory_space<vmem>>, vector<32x128xf32>
    tpu.vector_store %arg11[%c0_16, %c1024], %40 {strides = array<i32>} : memref<128x3200xf32, #tpu.memory_space<vmem>>, vector<32x128xf32>,
    %c0_17 = arith.constant 0 : index
    %c1152 = arith.constant 1152 : index
    %128 = vector.load %arg11[%c0_17, %c1152] : memref<128x3200xf32, #tpu.memory_space<vmem>>, vector<32x128xf32>
    tpu.vector_store %arg11[%c0_17, %c1152], %43 {strides = array<i32>} : memref<128x3200xf32, #tpu.memory_space<vmem>>, vector<32x128xf32>,
    %c0_18 = arith.constant 0 : index
    %c1280 = arith.constant 1280 : index
    %129 = vector.load %arg11[%c0_18, %c1280] : memref<128x3200xf32, #tpu.memory_space<vmem>>, vector<32x128xf32>
    tpu.vector_store %arg11[%c0_18, %c1280], %49 {strides = array<i32>} : memref<128x3200xf32, #tpu.memory_space<vmem>>, vector<32x128xf32>,
    %c0_19 = arith.constant 0 : index
    %c1408 = arith.constant 1408 : index
    %130 = vector.load %arg11[%c0_19, %c1408] : memref<128x3200xf32, #tpu.memory_space<vmem>>, vector<32x128xf32>
    tpu.vector_store %arg11[%c0_19, %c1408], %52 {strides = array<i32>} : memref<128x3200xf32, #tpu.memory_space<vmem>>, vector<32x128xf32>,
    %c0_20 = arith.constant 0 : index
    %c1536 = arith.constant 1536 : index
    %131 = vector.load %arg11[%c0_20, %c1536] : memref<128x3200xf32, #tpu.memory_space<vmem>>, vector<32x128xf32>
    tpu.vector_store %arg11[%c0_20, %c1536], %55 {strides = array<i32>} : memref<128x3200xf32, #tpu.memory_space<vmem>>, vector<32x128xf32>,
    %c0_21 = arith.constant 0 : index
    %c1664 = arith.constant 1664 : index
    %132 = vector.load %arg11[%c0_21, %c1664] : memref<128x3200xf32, #tpu.memory_space<vmem>>, vector<32x128xf32>
    tpu.vector_store %arg11[%c0_21, %c1664], %58 {strides = array<i32>} : memref<128x3200xf32, #tpu.memory_space<vmem>>, vector<32x128xf32>,
    %c0_22 = arith.constant 0 : index
    %c1792 = arith.constant 1792 : index
    %133 = vector.load %arg11[%c0_22, %c1792] : memref<128x3200xf32, #tpu.memory_space<vmem>>, vector<32x128xf32>
    tpu.vector_store %arg11[%c0_22, %c1792], %61 {strides = array<i32>} : memref<128x3200xf32, #tpu.memory_space<vmem>>, vector<32x128xf32>,
    %c0_23 = arith.constant 0 : index
    %c1920 = arith.constant 1920 : index
    %134 = vector.load %arg11[%c0_23, %c1920] : memref<128x3200xf32, #tpu.memory_space<vmem>>, vector<32x128xf32>
    tpu.vector_store %arg11[%c0_23, %c1920], %67 {strides = array<i32>} : memref<128x3200xf32, #tpu.memory_space<vmem>>, vector<32x128xf32>,
    %c0_24 = arith.constant 0 : index
    %c2048 = arith.constant 2048 : index
    %135 = vector.load %arg11[%c0_24, %c2048] : memref<128x3200xf32, #tpu.memory_space<vmem>>, vector<32x128xf32>
    tpu.vector_store %arg11[%c0_24, %c2048], %70 {strides = array<i32>} : memref<128x3200xf32, #tpu.memory_space<vmem>>, vector<32x128xf32>,
    %c0_25 = arith.constant 0 : index
    %c2176 = arith.constant 2176 : index
    %136 = vector.load %arg11[%c0_25, %c2176] : memref<128x3200xf32, #tpu.memory_space<vmem>>, vector<32x128xf32>
    tpu.vector_store %arg11[%c0_25, %c2176], %73 {strides = array<i32>} : memref<128x3200xf32, #tpu.memory_space<vmem>>, vector<32x128xf32>,
    %c0_26 = arith.constant 0 : index
    %c2304 = arith.constant 2304 : index
    %137 = vector.load %arg11[%c0_26, %c2304] : memref<128x3200xf32, #tpu.memory_space<vmem>>, vector<32x128xf32>
    tpu.vector_store %arg11[%c0_26, %c2304], %76 {strides = array<i32>} : memref<128x3200xf32, #tpu.memory_space<vmem>>, vector<32x128xf32>,
    %c0_27 = arith.constant 0 : index
    %c2432 = arith.constant 2432 : index
    %138 = vector.load %arg11[%c0_27, %c2432] : memref<128x3200xf32, #tpu.memory_space<vmem>>, vector<32x128xf32>
    tpu.vector_store %arg11[%c0_27, %c2432], %79 {strides = array<i32>} : memref<128x3200xf32, #tpu.memory_space<vmem>>, vector<32x128xf32>,
    %c0_28 = arith.constant 0 : index
    %c2560 = arith.constant 2560 : index
    %139 = vector.load %arg11[%c0_28, %c2560] : memref<128x3200xf32, #tpu.memory_space<vmem>>, vector<32x128xf32>
    tpu.vector_store %arg11[%c0_28, %c2560], %85 {strides = array<i32>} : memref<128x3200xf32, #tpu.memory_space<vmem>>, vector<32x128xf32>,
    %c0_29 = arith.constant 0 : index
    %c2688 = arith.constant 2688 : index
    %140 = vector.load %arg11[%c0_29, %c2688] : memref<128x3200xf32, #tpu.memory_space<vmem>>, vector<32x128xf32>
    tpu.vector_store %arg11[%c0_29, %c2688], %88 {strides = array<i32>} : memref<128x3200xf32, #tpu.memory_space<vmem>>, vector<32x128xf32>,
    %c0_30 = arith.constant 0 : index
    %c2816 = arith.constant 2816 : index
    %141 = vector.load %arg11[%c0_30, %c2816] : memref<128x3200xf32, #tpu.memory_space<vmem>>, vector<32x128xf32>
    tpu.vector_store %arg11[%c0_30, %c2816], %91 {strides = array<i32>} : memref<128x3200xf32, #tpu.memory_space<vmem>>, vector<32x128xf32>,
    %c0_31 = arith.constant 0 : index
    %c2944 = arith.constant 2944 : index
    %142 = vector.load %arg11[%c0_31, %c2944] : memref<128x3200xf32, #tpu.memory_space<vmem>>, vector<32x128xf32>
    tpu.vector_store %arg11[%c0_31, %c2944], %94 {strides = array<i32>} : memref<128x3200xf32, #tpu.memory_space<vmem>>, vector<32x128xf32>,
    %c0_32 = arith.constant 0 : index
    %c3072 = arith.constant 3072 : index
    %143 = vector.load %arg11[%c0_32, %c3072] : memref<128x3200xf32, #tpu.memory_space<vmem>>, vector<32x128xf32>
    tpu.vector_store %arg11[%c0_32, %c3072], %97 {strides = array<i32>} : memref<128x3200xf32, #tpu.memory_space<vmem>>, vector<32x128xf32>,
    %c32 = arith.constant 32 : index
    %c0_33 = arith.constant 0 : index
    %144 = vector.load %arg11[%c32, %c0_33] : memref<128x3200xf32, #tpu.memory_space<vmem>>, vector<32x128xf32>
    tpu.vector_store %arg11[%c32, %c0_33], %16 {strides = array<i32>} : memref<128x3200xf32, #tpu.memory_space<vmem>>, vector<32x128xf32>,
    %c32_34 = arith.constant 32 : index
    %c128_35 = arith.constant 128 : index
    %145 = vector.load %arg11[%c32_34, %c128_35] : memref<128x3200xf32, #tpu.memory_space<vmem>>, vector<32x128xf32>
    tpu.vector_store %arg11[%c32_34, %c128_35], %19 {strides = array<i32>} : memref<128x3200xf32, #tpu.memory_space<vmem>>, vector<32x128xf32>,
    %c32_36 = arith.constant 32 : index
    %c256_37 = arith.constant 256 : index
    %146 = vector.load %arg11[%c32_36, %c256_37] : memref<128x3200xf32, #tpu.memory_space<vmem>>, vector<32x128xf32>
    tpu.vector_store %arg11[%c32_36, %c256_37], %22 {strides = array<i32>} : memref<128x3200xf32, #tpu.memory_space<vmem>>, vector<32x128xf32>,
    %c32_38 = arith.constant 32 : index
    %c384_39 = arith.constant 384 : index
    %147 = vector.load %arg11[%c32_38, %c384_39] : memref<128x3200xf32, #tpu.memory_space<vmem>>, vector<32x128xf32>
    tpu.vector_store %arg11[%c32_38, %c384_39], %25 {strides = array<i32>} : memref<128x3200xf32, #tpu.memory_space<vmem>>, vector<32x128xf32>,
    %c32_40 = arith.constant 32 : index
    %c512_41 = arith.constant 512 : index
    %148 = vector.load %arg11[%c32_40, %c512_41] : memref<128x3200xf32, #tpu.memory_space<vmem>>, vector<32x128xf32>
    tpu.vector_store %arg11[%c32_40, %c512_41], %28 {strides = array<i32>} : memref<128x3200xf32, #tpu.memory_space<vmem>>, vector<32x128xf32>,
    %c32_42 = arith.constant 32 : index
    %c640_43 = arith.constant 640 : index
    %149 = vector.load %arg11[%c32_42, %c640_43] : memref<128x3200xf32, #tpu.memory_space<vmem>>, vector<32x128xf32>
    tpu.vector_store %arg11[%c32_42, %c640_43], %34 {strides = array<i32>} : memref<128x3200xf32, #tpu.memory_space<vmem>>, vector<32x128xf32>,
    %c32_44 = arith.constant 32 : index
    %c768_45 = arith.constant 768 : index
    %150 = vector.load %arg11[%c32_44, %c768_45] : memref<128x3200xf32, #tpu.memory_space<vmem>>, vector<32x128xf32>
    tpu.vector_store %arg11[%c32_44, %c768_45], %37 {strides = array<i32>} : memref<128x3200xf32, #tpu.memory_space<vmem>>, vector<32x128xf32>,
    %c32_46 = arith.constant 32 : index
    %c896_47 = arith.constant 896 : index
    %151 = vector.load %arg11[%c32_46, %c896_47] : memref<128x3200xf32, #tpu.memory_space<vmem>>, vector<32x128xf32>
    tpu.vector_store %arg11[%c32_46, %c896_47], %40 {strides = array<i32>} : memref<128x3200xf32, #tpu.memory_space<vmem>>, vector<32x128xf32>,
    %c32_48 = arith.constant 32 : index
    %c1024_49 = arith.constant 1024 : index
    %152 = vector.load %arg11[%c32_48, %c1024_49] : memref<128x3200xf32, #tpu.memory_space<vmem>>, vector<32x128xf32>
    tpu.vector_store %arg11[%c32_48, %c1024_49], %43 {strides = array<i32>} : memref<128x3200xf32, #tpu.memory_space<vmem>>, vector<32x128xf32>,
    %c32_50 = arith.constant 32 : index
    %c1152_51 = arith.constant 1152 : index
    %153 = vector.load %arg11[%c32_50, %c1152_51] : memref<128x3200xf32, #tpu.memory_space<vmem>>, vector<32x128xf32>
    tpu.vector_store %arg11[%c32_50, %c1152_51], %46 {strides = array<i32>} : memref<128x3200xf32, #tpu.memory_space<vmem>>, vector<32x128xf32>,
    %c32_52 = arith.constant 32 : index
    %c1280_53 = arith.constant 1280 : index
    %154 = vector.load %arg11[%c32_52, %c1280_53] : memref<128x3200xf32, #tpu.memory_space<vmem>>, vector<32x128xf32>
    tpu.vector_store %arg11[%c32_52, %c1280_53], %52 {strides = array<i32>} : memref<128x3200xf32, #tpu.memory_space<vmem>>, vector<32x128xf32>,
    %c32_54 = arith.constant 32 : index
    %c1408_55 = arith.constant 1408 : index
    %155 = vector.load %arg11[%c32_54, %c1408_55] : memref<128x3200xf32, #tpu.memory_space<vmem>>, vector<32x128xf32>
    tpu.vector_store %arg11[%c32_54, %c1408_55], %55 {strides = array<i32>} : memref<128x3200xf32, #tpu.memory_space<vmem>>, vector<32x128xf32>,
    %c32_56 = arith.constant 32 : index
    %c1536_57 = arith.constant 1536 : index
    %156 = vector.load %arg11[%c32_56, %c1536_57] : memref<128x3200xf32, #tpu.memory_space<vmem>>, vector<32x128xf32>
    tpu.vector_store %arg11[%c32_56, %c1536_57], %58 {strides = array<i32>} : memref<128x3200xf32, #tpu.memory_space<vmem>>, vector<32x128xf32>,
    %c32_58 = arith.constant 32 : index
    %c1664_59 = arith.constant 1664 : index
    %157 = vector.load %arg11[%c32_58, %c1664_59] : memref<128x3200xf32, #tpu.memory_space<vmem>>, vector<32x128xf32>
    tpu.vector_store %arg11[%c32_58, %c1664_59], %61 {strides = array<i32>} : memref<128x3200xf32, #tpu.memory_space<vmem>>, vector<32x128xf32>,
    %c32_60 = arith.constant 32 : index
    %c1792_61 = arith.constant 1792 : index
    %158 = vector.load %arg11[%c32_60, %c1792_61] : memref<128x3200xf32, #tpu.memory_space<vmem>>, vector<32x128xf32>
    tpu.vector_store %arg11[%c32_60, %c1792_61], %64 {strides = array<i32>} : memref<128x3200xf32, #tpu.memory_space<vmem>>, vector<32x128xf32>,
    %c32_62 = arith.constant 32 : index
    %c1920_63 = arith.constant 1920 : index
    %159 = vector.load %arg11[%c32_62, %c1920_63] : memref<128x3200xf32, #tpu.memory_space<vmem>>, vector<32x128xf32>
    tpu.vector_store %arg11[%c32_62, %c1920_63], %70 {strides = array<i32>} : memref<128x3200xf32, #tpu.memory_space<vmem>>, vector<32x128xf32>,
    %c32_64 = arith.constant 32 : index
    %c2048_65 = arith.constant 2048 : index
    %160 = vector.load %arg11[%c32_64, %c2048_65] : memref<128x3200xf32, #tpu.memory_space<vmem>>, vector<32x128xf32>
    tpu.vector_store %arg11[%c32_64, %c2048_65], %73 {strides = array<i32>} : memref<128x3200xf32, #tpu.memory_space<vmem>>, vector<32x128xf32>,
    %c32_66 = arith.constant 32 : index
    %c2176_67 = arith.constant 2176 : index
    %161 = vector.load %arg11[%c32_66, %c2176_67] : memref<128x3200xf32, #tpu.memory_space<vmem>>, vector<32x128xf32>
    tpu.vector_store %arg11[%c32_66, %c2176_67], %76 {strides = array<i32>} : memref<128x3200xf32, #tpu.memory_space<vmem>>, vector<32x128xf32>,
    %c32_68 = arith.constant 32 : index
    %c2304_69 = arith.constant 2304 : index
    %162 = vector.load %arg11[%c32_68, %c2304_69] : memref<128x3200xf32, #tpu.memory_space<vmem>>, vector<32x128xf32>
    tpu.vector_store %arg11[%c32_68, %c2304_69], %79 {strides = array<i32>} : memref<128x3200xf32, #tpu.memory_space<vmem>>, vector<32x128xf32>,
    %c32_70 = arith.constant 32 : index
    %c2432_71 = arith.constant 2432 : index
    %163 = vector.load %arg11[%c32_70, %c2432_71] : memref<128x3200xf32, #tpu.memory_space<vmem>>, vector<32x128xf32>
    tpu.vector_store %arg11[%c32_70, %c2432_71], %82 {strides = array<i32>} : memref<128x3200xf32, #tpu.memory_space<vmem>>, vector<32x128xf32>,
    %c32_72 = arith.constant 32 : index
    %c2560_73 = arith.constant 2560 : index
    %164 = vector.load %arg11[%c32_72, %c2560_73] : memref<128x3200xf32, #tpu.memory_space<vmem>>, vector<32x128xf32>
    tpu.vector_store %arg11[%c32_72, %c2560_73], %88 {strides = array<i32>} : memref<128x3200xf32, #tpu.memory_space<vmem>>, vector<32x128xf32>,
    %c32_74 = arith.constant 32 : index
    %c2688_75 = arith.constant 2688 : index
    %165 = vector.load %arg11[%c32_74, %c2688_75] : memref<128x3200xf32, #tpu.memory_space<vmem>>, vector<32x128xf32>
    tpu.vector_store %arg11[%c32_74, %c2688_75], %91 {strides = array<i32>} : memref<128x3200xf32, #tpu.memory_space<vmem>>, vector<32x128xf32>,
    %c32_76 = arith.constant 32 : index
    %c2816_77 = arith.constant 2816 : index
    %166 = vector.load %arg11[%c32_76, %c2816_77] : memref<128x3200xf32, #tpu.memory_space<vmem>>, vector<32x128xf32>
    tpu.vector_store %arg11[%c32_76, %c2816_77], %94 {strides = array<i32>} : memref<128x3200xf32, #tpu.memory_space<vmem>>, vector<32x128xf32>,
    %c32_78 = arith.constant 32 : index
    %c2944_79 = arith.constant 2944 : index
    %167 = vector.load %arg11[%c32_78, %c2944_79] : memref<128x3200xf32, #tpu.memory_space<vmem>>, vector<32x128xf32>
    tpu.vector_store %arg11[%c32_78, %c2944_79], %97 {strides = array<i32>} : memref<128x3200xf32, #tpu.memory_space<vmem>>, vector<32x128xf32>,
    %c32_80 = arith.constant 32 : index
    %c3072_81 = arith.constant 3072 : index
    %168 = vector.load %arg11[%c32_80, %c3072_81] : memref<128x3200xf32, #tpu.memory_space<vmem>>, vector<32x128xf32>
    tpu.vector_store %arg11[%c32_80, %c3072_81], %100 {strides = array<i32>} : memref<128x3200xf32, #tpu.memory_space<vmem>>, vector<32x128xf32>,
    %c64 = arith.constant 64 : index
    %c0_82 = arith.constant 0 : index
    %169 = vector.load %arg11[%c64, %c0_82] : memref<128x3200xf32, #tpu.memory_space<vmem>>, vector<32x128xf32>
    tpu.vector_store %arg11[%c64, %c0_82], %31 {strides = array<i32>} : memref<128x3200xf32, #tpu.memory_space<vmem>>, vector<32x128xf32>,
    %c64_83 = arith.constant 64 : index
    %c128_84 = arith.constant 128 : index
    %170 = vector.load %arg11[%c64_83, %c128_84] : memref<128x3200xf32, #tpu.memory_space<vmem>>, vector<32x128xf32>
    tpu.vector_store %arg11[%c64_83, %c128_84], %34 {strides = array<i32>} : memref<128x3200xf32, #tpu.memory_space<vmem>>, vector<32x128xf32>,
    %c64_85 = arith.constant 64 : index
    %c256_86 = arith.constant 256 : index
    %171 = vector.load %arg11[%c64_85, %c256_86] : memref<128x3200xf32, #tpu.memory_space<vmem>>, vector<32x128xf32>
    tpu.vector_store %arg11[%c64_85, %c256_86], %37 {strides = array<i32>} : memref<128x3200xf32, #tpu.memory_space<vmem>>, vector<32x128xf32>,
    %c64_87 = arith.constant 64 : index
    %c384_88 = arith.constant 384 : index
    %172 = vector.load %arg11[%c64_87, %c384_88] : memref<128x3200xf32, #tpu.memory_space<vmem>>, vector<32x128xf32>
    tpu.vector_store %arg11[%c64_87, %c384_88], %40 {strides = array<i32>} : memref<128x3200xf32, #tpu.memory_space<vmem>>, vector<32x128xf32>,
    %c64_89 = arith.constant 64 : index
    %c512_90 = arith.constant 512 : index
    %173 = vector.load %arg11[%c64_89, %c512_90] : memref<128x3200xf32, #tpu.memory_space<vmem>>, vector<32x128xf32>
    tpu.vector_store %arg11[%c64_89, %c512_90], %43 {strides = array<i32>} : memref<128x3200xf32, #tpu.memory_space<vmem>>, vector<32x128xf32>,
    %c64_91 = arith.constant 64 : index
    %c640_92 = arith.constant 640 : index
    %174 = vector.load %arg11[%c64_91, %c640_92] : memref<128x3200xf32, #tpu.memory_space<vmem>>, vector<32x128xf32>
    tpu.vector_store %arg11[%c64_91, %c640_92], %49 {strides = array<i32>} : memref<128x3200xf32, #tpu.memory_space<vmem>>, vector<32x128xf32>,
    %c64_93 = arith.constant 64 : index
    %c768_94 = arith.constant 768 : index
    %175 = vector.load %arg11[%c64_93, %c768_94] : memref<128x3200xf32, #tpu.memory_space<vmem>>, vector<32x128xf32>
    tpu.vector_store %arg11[%c64_93, %c768_94], %52 {strides = array<i32>} : memref<128x3200xf32, #tpu.memory_space<vmem>>, vector<32x128xf32>,
    %c64_95 = arith.constant 64 : index
    %c896_96 = arith.constant 896 : index
    %176 = vector.load %arg11[%c64_95, %c896_96] : memref<128x3200xf32, #tpu.memory_space<vmem>>, vector<32x128xf32>
    tpu.vector_store %arg11[%c64_95, %c896_96], %55 {strides = array<i32>} : memref<128x3200xf32, #tpu.memory_space<vmem>>, vector<32x128xf32>,
    %c64_97 = arith.constant 64 : index
    %c1024_98 = arith.constant 1024 : index
    %177 = vector.load %arg11[%c64_97, %c1024_98] : memref<128x3200xf32, #tpu.memory_space<vmem>>, vector<32x128xf32>
    tpu.vector_store %arg11[%c64_97, %c1024_98], %58 {strides = array<i32>} : memref<128x3200xf32, #tpu.memory_space<vmem>>, vector<32x128xf32>,
    %c64_99 = arith.constant 64 : index
    %c1152_100 = arith.constant 1152 : index
    %178 = vector.load %arg11[%c64_99, %c1152_100] : memref<128x3200xf32, #tpu.memory_space<vmem>>, vector<32x128xf32>
    tpu.vector_store %arg11[%c64_99, %c1152_100], %61 {strides = array<i32>} : memref<128x3200xf32, #tpu.memory_space<vmem>>, vector<32x128xf32>,
    %c64_101 = arith.constant 64 : index
    %c1280_102 = arith.constant 1280 : index
    %179 = vector.load %arg11[%c64_101, %c1280_102] : memref<128x3200xf32, #tpu.memory_space<vmem>>, vector<32x128xf32>
    tpu.vector_store %arg11[%c64_101, %c1280_102], %67 {strides = array<i32>} : memref<128x3200xf32, #tpu.memory_space<vmem>>, vector<32x128xf32>,
    %c64_103 = arith.constant 64 : index
    %c1408_104 = arith.constant 1408 : index
    %180 = vector.load %arg11[%c64_103, %c1408_104] : memref<128x3200xf32, #tpu.memory_space<vmem>>, vector<32x128xf32>
    tpu.vector_store %arg11[%c64_103, %c1408_104], %70 {strides = array<i32>} : memref<128x3200xf32, #tpu.memory_space<vmem>>, vector<32x128xf32>,
    %c64_105 = arith.constant 64 : index
    %c1536_106 = arith.constant 1536 : index
    %181 = vector.load %arg11[%c64_105, %c1536_106] : memref<128x3200xf32, #tpu.memory_space<vmem>>, vector<32x128xf32>
    tpu.vector_store %arg11[%c64_105, %c1536_106], %73 {strides = array<i32>} : memref<128x3200xf32, #tpu.memory_space<vmem>>, vector<32x128xf32>,
    %c64_107 = arith.constant 64 : index
    %c1664_108 = arith.constant 1664 : index
    %182 = vector.load %arg11[%c64_107, %c1664_108] : memref<128x3200xf32, #tpu.memory_space<vmem>>, vector<32x128xf32>
    tpu.vector_store %arg11[%c64_107, %c1664_108], %76 {strides = array<i32>} : memref<128x3200xf32, #tpu.memory_space<vmem>>, vector<32x128xf32>,
    %c64_109 = arith.constant 64 : index
    %c1792_110 = arith.constant 1792 : index
    %183 = vector.load %arg11[%c64_109, %c1792_110] : memref<128x3200xf32, #tpu.memory_space<vmem>>, vector<32x128xf32>
    tpu.vector_store %arg11[%c64_109, %c1792_110], %79 {strides = array<i32>} : memref<128x3200xf32, #tpu.memory_space<vmem>>, vector<32x128xf32>,
    %c64_111 = arith.constant 64 : index
    %c1920_112 = arith.constant 1920 : index
    %184 = vector.load %arg11[%c64_111, %c1920_112] : memref<128x3200xf32, #tpu.memory_space<vmem>>, vector<32x128xf32>
    tpu.vector_store %arg11[%c64_111, %c1920_112], %85 {strides = array<i32>} : memref<128x3200xf32, #tpu.memory_space<vmem>>, vector<32x128xf32>,
    %c64_113 = arith.constant 64 : index
    %c2048_114 = arith.constant 2048 : index
    %185 = vector.load %arg11[%c64_113, %c2048_114] : memref<128x3200xf32, #tpu.memory_space<vmem>>, vector<32x128xf32>
    tpu.vector_store %arg11[%c64_113, %c2048_114], %88 {strides = array<i32>} : memref<128x3200xf32, #tpu.memory_space<vmem>>, vector<32x128xf32>,
    %c64_115 = arith.constant 64 : index
    %c2176_116 = arith.constant 2176 : index
    %186 = vector.load %arg11[%c64_115, %c2176_116] : memref<128x3200xf32, #tpu.memory_space<vmem>>, vector<32x128xf32>
    tpu.vector_store %arg11[%c64_115, %c2176_116], %91 {strides = array<i32>} : memref<128x3200xf32, #tpu.memory_space<vmem>>, vector<32x128xf32>,
    %c64_117 = arith.constant 64 : index
    %c2304_118 = arith.constant 2304 : index
    %187 = vector.load %arg11[%c64_117, %c2304_118] : memref<128x3200xf32, #tpu.memory_space<vmem>>, vector<32x128xf32>
    tpu.vector_store %arg11[%c64_117, %c2304_118], %94 {strides = array<i32>} : memref<128x3200xf32, #tpu.memory_space<vmem>>, vector<32x128xf32>,
    %c64_119 = arith.constant 64 : index
    %c2432_120 = arith.constant 2432 : index
    %188 = vector.load %arg11[%c64_119, %c2432_120] : memref<128x3200xf32, #tpu.memory_space<vmem>>, vector<32x128xf32>
    tpu.vector_store %arg11[%c64_119, %c2432_120], %97 {strides = array<i32>} : memref<128x3200xf32, #tpu.memory_space<vmem>>, vector<32x128xf32>,
    %c64_121 = arith.constant 64 : index
    %c2560_122 = arith.constant 2560 : index
    %189 = vector.load %arg11[%c64_121, %c2560_122] : memref<128x3200xf32, #tpu.memory_space<vmem>>, vector<32x128xf32>
    tpu.vector_store %arg11[%c64_121, %c2560_122], %103 {strides = array<i32>} : memref<128x3200xf32, #tpu.memory_space<vmem>>, vector<32x128xf32>,
    %c64_123 = arith.constant 64 : index
    %c2688_124 = arith.constant 2688 : index
    %190 = vector.load %arg11[%c64_123, %c2688_124] : memref<128x3200xf32, #tpu.memory_space<vmem>>, vector<32x128xf32>
    tpu.vector_store %arg11[%c64_123, %c2688_124], %106 {strides = array<i32>} : memref<128x3200xf32, #tpu.memory_space<vmem>>, vector<32x128xf32>,
    %c64_125 = arith.constant 64 : index
    %c2816_126 = arith.constant 2816 : index
    %191 = vector.load %arg11[%c64_125, %c2816_126] : memref<128x3200xf32, #tpu.memory_space<vmem>>, vector<32x128xf32>
    tpu.vector_store %arg11[%c64_125, %c2816_126], %109 {strides = array<i32>} : memref<128x3200xf32, #tpu.memory_space<vmem>>, vector<32x128xf32>,
    %c64_127 = arith.constant 64 : index
    %c2944_128 = arith.constant 2944 : index
    %192 = vector.load %arg11[%c64_127, %c2944_128] : memref<128x3200xf32, #tpu.memory_space<vmem>>, vector<32x128xf32>
    tpu.vector_store %arg11[%c64_127, %c2944_128], %112 {strides = array<i32>} : memref<128x3200xf32, #tpu.memory_space<vmem>>, vector<32x128xf32>,
    %c64_129 = arith.constant 64 : index
    %c3072_130 = arith.constant 3072 : index
    %193 = vector.load %arg11[%c64_129, %c3072_130] : memref<128x3200xf32, #tpu.memory_space<vmem>>, vector<32x128xf32>
    tpu.vector_store %arg11[%c64_129, %c3072_130], %115 {strides = array<i32>} : memref<128x3200xf32, #tpu.memory_space<vmem>>, vector<32x128xf32>,
    %c96 = arith.constant 96 : index
    %c0_131 = arith.constant 0 : index
    %194 = vector.load %arg11[%c96, %c0_131] : memref<128x3200xf32, #tpu.memory_space<vmem>>, vector<32x128xf32>
    tpu.vector_store %arg11[%c96, %c0_131], %34 {strides = array<i32>} : memref<128x3200xf32, #tpu.memory_space<vmem>>, vector<32x128xf32>,
    %c96_132 = arith.constant 96 : index
    %c128_133 = arith.constant 128 : index
    %195 = vector.load %arg11[%c96_132, %c128_133] : memref<128x3200xf32, #tpu.memory_space<vmem>>, vector<32x128xf32>
    tpu.vector_store %arg11[%c96_132, %c128_133], %37 {strides = array<i32>} : memref<128x3200xf32, #tpu.memory_space<vmem>>, vector<32x128xf32>,
    %c96_134 = arith.constant 96 : index
    %c256_135 = arith.constant 256 : index
    %196 = vector.load %arg11[%c96_134, %c256_135] : memref<128x3200xf32, #tpu.memory_space<vmem>>, vector<32x128xf32>
    tpu.vector_store %arg11[%c96_134, %c256_135], %40 {strides = array<i32>} : memref<128x3200xf32, #tpu.memory_space<vmem>>, vector<32x128xf32>,
    %c96_136 = arith.constant 96 : index
    %c384_137 = arith.constant 384 : index
    %197 = vector.load %arg11[%c96_136, %c384_137] : memref<128x3200xf32, #tpu.memory_space<vmem>>, vector<32x128xf32>
    tpu.vector_store %arg11[%c96_136, %c384_137], %43 {strides = array<i32>} : memref<128x3200xf32, #tpu.memory_space<vmem>>, vector<32x128xf32>,
    %c96_138 = arith.constant 96 : index
    %c512_139 = arith.constant 512 : index
    %198 = vector.load %arg11[%c96_138, %c512_139] : memref<128x3200xf32, #tpu.memory_space<vmem>>, vector<32x128xf32>
    tpu.vector_store %arg11[%c96_138, %c512_139], %46 {strides = array<i32>} : memref<128x3200xf32, #tpu.memory_space<vmem>>, vector<32x128xf32>,
    %c96_140 = arith.constant 96 : index
    %c640_141 = arith.constant 640 : index
    %199 = vector.load %arg11[%c96_140, %c640_141] : memref<128x3200xf32, #tpu.memory_space<vmem>>, vector<32x128xf32>
    tpu.vector_store %arg11[%c96_140, %c640_141], %52 {strides = array<i32>} : memref<128x3200xf32, #tpu.memory_space<vmem>>, vector<32x128xf32>,
    %c96_142 = arith.constant 96 : index
    %c768_143 = arith.constant 768 : index
    %200 = vector.load %arg11[%c96_142, %c768_143] : memref<128x3200xf32, #tpu.memory_space<vmem>>, vector<32x128xf32>
    tpu.vector_store %arg11[%c96_142, %c768_143], %55 {strides = array<i32>} : memref<128x3200xf32, #tpu.memory_space<vmem>>, vector<32x128xf32>,
    %c96_144 = arith.constant 96 : index
    %c896_145 = arith.constant 896 : index
    %201 = vector.load %arg11[%c96_144, %c896_145] : memref<128x3200xf32, #tpu.memory_space<vmem>>, vector<32x128xf32>
    tpu.vector_store %arg11[%c96_144, %c896_145], %58 {strides = array<i32>} : memref<128x3200xf32, #tpu.memory_space<vmem>>, vector<32x128xf32>,
    %c96_146 = arith.constant 96 : index
    %c1024_147 = arith.constant 1024 : index
    %202 = vector.load %arg11[%c96_146, %c1024_147] : memref<128x3200xf32, #tpu.memory_space<vmem>>, vector<32x128xf32>
    tpu.vector_store %arg11[%c96_146, %c1024_147], %61 {strides = array<i32>} : memref<128x3200xf32, #tpu.memory_space<vmem>>, vector<32x128xf32>,
    %c96_148 = arith.constant 96 : index
    %c1152_149 = arith.constant 1152 : index
    %203 = vector.load %arg11[%c96_148, %c1152_149] : memref<128x3200xf32, #tpu.memory_space<vmem>>, vector<32x128xf32>
    tpu.vector_store %arg11[%c96_148, %c1152_149], %64 {strides = array<i32>} : memref<128x3200xf32, #tpu.memory_space<vmem>>, vector<32x128xf32>,
    %c96_150 = arith.constant 96 : index
    %c1280_151 = arith.constant 1280 : index
    %204 = vector.load %arg11[%c96_150, %c1280_151] : memref<128x3200xf32, #tpu.memory_space<vmem>>, vector<32x128xf32>
    tpu.vector_store %arg11[%c96_150, %c1280_151], %70 {strides = array<i32>} : memref<128x3200xf32, #tpu.memory_space<vmem>>, vector<32x128xf32>,
    %c96_152 = arith.constant 96 : index
    %c1408_153 = arith.constant 1408 : index
    %205 = vector.load %arg11[%c96_152, %c1408_153] : memref<128x3200xf32, #tpu.memory_space<vmem>>, vector<32x128xf32>
    tpu.vector_store %arg11[%c96_152, %c1408_153], %73 {strides = array<i32>} : memref<128x3200xf32, #tpu.memory_space<vmem>>, vector<32x128xf32>,
    %c96_154 = arith.constant 96 : index
    %c1536_155 = arith.constant 1536 : index
    %206 = vector.load %arg11[%c96_154, %c1536_155] : memref<128x3200xf32, #tpu.memory_space<vmem>>, vector<32x128xf32>
    tpu.vector_store %arg11[%c96_154, %c1536_155], %76 {strides = array<i32>} : memref<128x3200xf32, #tpu.memory_space<vmem>>, vector<32x128xf32>,
    %c96_156 = arith.constant 96 : index
    %c1664_157 = arith.constant 1664 : index
    %207 = vector.load %arg11[%c96_156, %c1664_157] : memref<128x3200xf32, #tpu.memory_space<vmem>>, vector<32x128xf32>
    tpu.vector_store %arg11[%c96_156, %c1664_157], %79 {strides = array<i32>} : memref<128x3200xf32, #tpu.memory_space<vmem>>, vector<32x128xf32>,
    %c96_158 = arith.constant 96 : index
    %c1792_159 = arith.constant 1792 : index
    %208 = vector.load %arg11[%c96_158, %c1792_159] : memref<128x3200xf32, #tpu.memory_space<vmem>>, vector<32x128xf32>
    tpu.vector_store %arg11[%c96_158, %c1792_159], %82 {strides = array<i32>} : memref<128x3200xf32, #tpu.memory_space<vmem>>, vector<32x128xf32>,
    %c96_160 = arith.constant 96 : index
    %c1920_161 = arith.constant 1920 : index
    %209 = vector.load %arg11[%c96_160, %c1920_161] : memref<128x3200xf32, #tpu.memory_space<vmem>>, vector<32x128xf32>
    tpu.vector_store %arg11[%c96_160, %c1920_161], %88 {strides = array<i32>} : memref<128x3200xf32, #tpu.memory_space<vmem>>, vector<32x128xf32>,
    %c96_162 = arith.constant 96 : index
    %c2048_163 = arith.constant 2048 : index
    %210 = vector.load %arg11[%c96_162, %c2048_163] : memref<128x3200xf32, #tpu.memory_space<vmem>>, vector<32x128xf32>
    tpu.vector_store %arg11[%c96_162, %c2048_163], %91 {strides = array<i32>} : memref<128x3200xf32, #tpu.memory_space<vmem>>, vector<32x128xf32>,
    %c96_164 = arith.constant 96 : index
    %c2176_165 = arith.constant 2176 : index
    %211 = vector.load %arg11[%c96_164, %c2176_165] : memref<128x3200xf32, #tpu.memory_space<vmem>>, vector<32x128xf32>
    tpu.vector_store %arg11[%c96_164, %c2176_165], %94 {strides = array<i32>} : memref<128x3200xf32, #tpu.memory_space<vmem>>, vector<32x128xf32>,
    %c96_166 = arith.constant 96 : index
    %c2304_167 = arith.constant 2304 : index
    %212 = vector.load %arg11[%c96_166, %c2304_167] : memref<128x3200xf32, #tpu.memory_space<vmem>>, vector<32x128xf32>
    tpu.vector_store %arg11[%c96_166, %c2304_167], %97 {strides = array<i32>} : memref<128x3200xf32, #tpu.memory_space<vmem>>, vector<32x128xf32>,
    %c96_168 = arith.constant 96 : index
    %c2432_169 = arith.constant 2432 : index
    %213 = vector.load %arg11[%c96_168, %c2432_169] : memref<128x3200xf32, #tpu.memory_space<vmem>>, vector<32x128xf32>
    tpu.vector_store %arg11[%c96_168, %c2432_169], %100 {strides = array<i32>} : memref<128x3200xf32, #tpu.memory_space<vmem>>, vector<32x128xf32>,
    %c96_170 = arith.constant 96 : index
    %c2560_171 = arith.constant 2560 : index
    %214 = vector.load %arg11[%c96_170, %c2560_171] : memref<128x3200xf32, #tpu.memory_space<vmem>>, vector<32x128xf32>
    tpu.vector_store %arg11[%c96_170, %c2560_171], %106 {strides = array<i32>} : memref<128x3200xf32, #tpu.memory_space<vmem>>, vector<32x128xf32>,
    %c96_172 = arith.constant 96 : index
    %c2688_173 = arith.constant 2688 : index
    %215 = vector.load %arg11[%c96_172, %c2688_173] : memref<128x3200xf32, #tpu.memory_space<vmem>>, vector<32x128xf32>
    tpu.vector_store %arg11[%c96_172, %c2688_173], %109 {strides = array<i32>} : memref<128x3200xf32, #tpu.memory_space<vmem>>, vector<32x128xf32>,
    %c96_174 = arith.constant 96 : index
    %c2816_175 = arith.constant 2816 : index
    %216 = vector.load %arg11[%c96_174, %c2816_175] : memref<128x3200xf32, #tpu.memory_space<vmem>>, vector<32x128xf32>
    tpu.vector_store %arg11[%c96_174, %c2816_175], %112 {strides = array<i32>} : memref<128x3200xf32, #tpu.memory_space<vmem>>, vector<32x128xf32>,
    %c96_176 = arith.constant 96 : index
    %c2944_177 = arith.constant 2944 : index
    %217 = vector.load %arg11[%c96_176, %c2944_177] : memref<128x3200xf32, #tpu.memory_space<vmem>>, vector<32x128xf32>
    tpu.vector_store %arg11[%c96_176, %c2944_177], %115 {strides = array<i32>} : memref<128x3200xf32, #tpu.memory_space<vmem>>, vector<32x128xf32>,
    %c96_178 = arith.constant 96 : index
    %c3072_179 = arith.constant 3072 : index
    %218 = vector.load %arg11[%c96_178, %c3072_179] : memref<128x3200xf32, #tpu.memory_space<vmem>>, vector<32x128xf32>
    tpu.vector_store %arg11[%c96_178, %c3072_179], %118 {strides = array<i32>} : memref<128x3200xf32, #tpu.memory_space<vmem>>, vector<32x128xf32>,
    %c0_180 = arith.constant 0 : index
    %c0_181 = arith.constant 0 : index
    %219 = vector.load %arg11[%c0_180, %c0_181] : memref<128x3200xf32, #tpu.memory_space<vmem>>, vector<128x3200xf32>
    %c0_182 = arith.constant 0 : index
    %c0_183 = arith.constant 0 : index
    %220 = vector.load %arg4[%c0_182, %c0_183] : memref<3200x128xf32, #tpu.memory_space<vmem>>, vector<3200x128xf32>
    %cst_184 = arith.constant dense<0.000000e+00> : vector<128x128xf32>
    %221 = tpu.matmul %219, %220, %cst_184 {dimension_numbers = #tpu.dot_dimension_numbers<[1], [0], [0], [1], [0, 0, 1, 1], [], []>} : vector<128x3200xf32>, vector<3200x128xf32>, vector<128x128xf32> -> vector<128x128xf32>
    %222 = vector.shape_cast %221 : vector<128x128xf32> to vector<4x32x128xf32>
    %cst_185 = arith.constant dense<0xFF800000> : vector<32x128xf32>
    %223 = vector.multi_reduction <maximumf>, %222, %cst_185 [0] : vector<4x32x128xf32> to vector<32x128xf32>
    %c0_186 = arith.constant 0 : index
    %c0_187 = arith.constant 0 : index
    %224 = vector.load %arg5[%c0_186, %c0_187] : memref<1x128xf32, #tpu.memory_space<vmem>>, vector<1x128xf32>
    %225 = vector.broadcast %224 : vector<1x128xf32> to vector<32x128xf32>
    %226 = arith.addf %223, %225 : vector<32x128xf32>
    %cst_188 = arith.constant 0.000000e+00 : f32
    %227 = vector.broadcast %cst_188 : f32 to vector<32x128xf32>
    %228 = arith.maximumf %226, %227 : vector<32x128xf32>
    %229 = vector.shape_cast %228 : vector<32x128xf32> to vector<2x16x128xf32>
    %230 = vector.extract_strided_slice %229 {offsets = [0, 0, 0], sizes = [2, 1, 128], strides = [1, 1, 1]} : vector<2x16x128xf32> to vector<2x1x128xf32>
    %231 = vector.shape_cast %230 : vector<2x1x128xf32> to vector<2x128xf32>
    %c0_189 = arith.constant 0 : index
    %c0_190 = arith.constant 0 : index
    %232 = vector.load %arg12[%c0_189, %c0_190] : memref<2x2048xf32, #tpu.memory_space<vmem>>, vector<2x128xf32>
    tpu.vector_store %arg12[%c0_189, %c0_190], %231 {strides = array<i32>} : memref<2x2048xf32, #tpu.memory_space<vmem>>, vector<2x128xf32>,
    %233 = vector.extract_strided_slice %229 {offsets = [0, 1, 0], sizes = [2, 1, 128], strides = [1, 1, 1]} : vector<2x16x128xf32> to vector<2x1x128xf32>
    %234 = vector.shape_cast %233 : vector<2x1x128xf32> to vector<2x128xf32>
    %c0_191 = arith.constant 0 : index
    %c128_192 = arith.constant 128 : index
    %235 = vector.load %arg12[%c0_191, %c128_192] : memref<2x2048xf32, #tpu.memory_space<vmem>>, vector<2x128xf32>
    tpu.vector_store %arg12[%c0_191, %c128_192], %234 {strides = array<i32>} : memref<2x2048xf32, #tpu.memory_space<vmem>>, vector<2x128xf32>,
    %236 = vector.extract_strided_slice %229 {offsets = [0, 2, 0], sizes = [2, 1, 128], strides = [1, 1, 1]} : vector<2x16x128xf32> to vector<2x1x128xf32>
    %237 = vector.shape_cast %236 : vector<2x1x128xf32> to vector<2x128xf32>
    %c0_193 = arith.constant 0 : index
    %c256_194 = arith.constant 256 : index
    %238 = vector.load %arg12[%c0_193, %c256_194] : memref<2x2048xf32, #tpu.memory_space<vmem>>, vector<2x128xf32>
    tpu.vector_store %arg12[%c0_193, %c256_194], %237 {strides = array<i32>} : memref<2x2048xf32, #tpu.memory_space<vmem>>, vector<2x128xf32>,
    %239 = vector.extract_strided_slice %229 {offsets = [0, 3, 0], sizes = [2, 1, 128], strides = [1, 1, 1]} : vector<2x16x128xf32> to vector<2x1x128xf32>
    %240 = vector.shape_cast %239 : vector<2x1x128xf32> to vector<2x128xf32>
    %c0_195 = arith.constant 0 : index
    %c384_196 = arith.constant 384 : index
    %241 = vector.load %arg12[%c0_195, %c384_196] : memref<2x2048xf32, #tpu.memory_space<vmem>>, vector<2x128xf32>
    tpu.vector_store %arg12[%c0_195, %c384_196], %240 {strides = array<i32>} : memref<2x2048xf32, #tpu.memory_space<vmem>>, vector<2x128xf32>,
    %242 = vector.extract_strided_slice %229 {offsets = [0, 4, 0], sizes = [2, 1, 128], strides = [1, 1, 1]} : vector<2x16x128xf32> to vector<2x1x128xf32>
    %243 = vector.shape_cast %242 : vector<2x1x128xf32> to vector<2x128xf32>
    %c0_197 = arith.constant 0 : index
    %c512_198 = arith.constant 512 : index
    %244 = vector.load %arg12[%c0_197, %c512_198] : memref<2x2048xf32, #tpu.memory_space<vmem>>, vector<2x128xf32>
    tpu.vector_store %arg12[%c0_197, %c512_198], %243 {strides = array<i32>} : memref<2x2048xf32, #tpu.memory_space<vmem>>, vector<2x128xf32>,
    %245 = vector.extract_strided_slice %229 {offsets = [0, 5, 0], sizes = [2, 1, 128], strides = [1, 1, 1]} : vector<2x16x128xf32> to vector<2x1x128xf32>
    %246 = vector.shape_cast %245 : vector<2x1x128xf32> to vector<2x128xf32>
    %c0_199 = arith.constant 0 : index
    %c640_200 = arith.constant 640 : index
    %247 = vector.load %arg12[%c0_199, %c640_200] : memref<2x2048xf32, #tpu.memory_space<vmem>>, vector<2x128xf32>
    tpu.vector_store %arg12[%c0_199, %c640_200], %246 {strides = array<i32>} : memref<2x2048xf32, #tpu.memory_space<vmem>>, vector<2x128xf32>,
    %248 = vector.extract_strided_slice %229 {offsets = [0, 6, 0], sizes = [2, 1, 128], strides = [1, 1, 1]} : vector<2x16x128xf32> to vector<2x1x128xf32>
    %249 = vector.shape_cast %248 : vector<2x1x128xf32> to vector<2x128xf32>
    %c0_201 = arith.constant 0 : index
    %c768_202 = arith.constant 768 : index
    %250 = vector.load %arg12[%c0_201, %c768_202] : memref<2x2048xf32, #tpu.memory_space<vmem>>, vector<2x128xf32>
    tpu.vector_store %arg12[%c0_201, %c768_202], %249 {strides = array<i32>} : memref<2x2048xf32, #tpu.memory_space<vmem>>, vector<2x128xf32>,
    %251 = vector.extract_strided_slice %229 {offsets = [0, 7, 0], sizes = [2, 1, 128], strides = [1, 1, 1]} : vector<2x16x128xf32> to vector<2x1x128xf32>
    %252 = vector.shape_cast %251 : vector<2x1x128xf32> to vector<2x128xf32>
    %c0_203 = arith.constant 0 : index
    %c896_204 = arith.constant 896 : index
    %253 = vector.load %arg12[%c0_203, %c896_204] : memref<2x2048xf32, #tpu.memory_space<vmem>>, vector<2x128xf32>
    tpu.vector_store %arg12[%c0_203, %c896_204], %252 {strides = array<i32>} : memref<2x2048xf32, #tpu.memory_space<vmem>>, vector<2x128xf32>,
    %254 = vector.extract_strided_slice %229 {offsets = [0, 8, 0], sizes = [2, 1, 128], strides = [1, 1, 1]} : vector<2x16x128xf32> to vector<2x1x128xf32>
    %255 = vector.shape_cast %254 : vector<2x1x128xf32> to vector<2x128xf32>
    %c0_205 = arith.constant 0 : index
    %c1024_206 = arith.constant 1024 : index
    %256 = vector.load %arg12[%c0_205, %c1024_206] : memref<2x2048xf32, #tpu.memory_space<vmem>>, vector<2x128xf32>
    tpu.vector_store %arg12[%c0_205, %c1024_206], %255 {strides = array<i32>} : memref<2x2048xf32, #tpu.memory_space<vmem>>, vector<2x128xf32>,
    %257 = vector.extract_strided_slice %229 {offsets = [0, 9, 0], sizes = [2, 1, 128], strides = [1, 1, 1]} : vector<2x16x128xf32> to vector<2x1x128xf32>
    %258 = vector.shape_cast %257 : vector<2x1x128xf32> to vector<2x128xf32>
    %c0_207 = arith.constant 0 : index
    %c1152_208 = arith.constant 1152 : index
    %259 = vector.load %arg12[%c0_207, %c1152_208] : memref<2x2048xf32, #tpu.memory_space<vmem>>, vector<2x128xf32>
    tpu.vector_store %arg12[%c0_207, %c1152_208], %258 {strides = array<i32>} : memref<2x2048xf32, #tpu.memory_space<vmem>>, vector<2x128xf32>,
    %260 = vector.extract_strided_slice %229 {offsets = [0, 10, 0], sizes = [2, 1, 128], strides = [1, 1, 1]} : vector<2x16x128xf32> to vector<2x1x128xf32>
    %261 = vector.shape_cast %260 : vector<2x1x128xf32> to vector<2x128xf32>
    %c0_209 = arith.constant 0 : index
    %c1280_210 = arith.constant 1280 : index
    %262 = vector.load %arg12[%c0_209, %c1280_210] : memref<2x2048xf32, #tpu.memory_space<vmem>>, vector<2x128xf32>
    tpu.vector_store %arg12[%c0_209, %c1280_210], %261 {strides = array<i32>} : memref<2x2048xf32, #tpu.memory_space<vmem>>, vector<2x128xf32>,
    %263 = vector.extract_strided_slice %229 {offsets = [0, 11, 0], sizes = [2, 1, 128], strides = [1, 1, 1]} : vector<2x16x128xf32> to vector<2x1x128xf32>
    %264 = vector.shape_cast %263 : vector<2x1x128xf32> to vector<2x128xf32>
    %c0_211 = arith.constant 0 : index
    %c1408_212 = arith.constant 1408 : index
    %265 = vector.load %arg12[%c0_211, %c1408_212] : memref<2x2048xf32, #tpu.memory_space<vmem>>, vector<2x128xf32>
    tpu.vector_store %arg12[%c0_211, %c1408_212], %264 {strides = array<i32>} : memref<2x2048xf32, #tpu.memory_space<vmem>>, vector<2x128xf32>,
    %266 = vector.extract_strided_slice %229 {offsets = [0, 12, 0], sizes = [2, 1, 128], strides = [1, 1, 1]} : vector<2x16x128xf32> to vector<2x1x128xf32>
    %267 = vector.shape_cast %266 : vector<2x1x128xf32> to vector<2x128xf32>
    %c0_213 = arith.constant 0 : index
    %c1536_214 = arith.constant 1536 : index
    %268 = vector.load %arg12[%c0_213, %c1536_214] : memref<2x2048xf32, #tpu.memory_space<vmem>>, vector<2x128xf32>
    tpu.vector_store %arg12[%c0_213, %c1536_214], %267 {strides = array<i32>} : memref<2x2048xf32, #tpu.memory_space<vmem>>, vector<2x128xf32>,
    %269 = vector.extract_strided_slice %229 {offsets = [0, 13, 0], sizes = [2, 1, 128], strides = [1, 1, 1]} : vector<2x16x128xf32> to vector<2x1x128xf32>
    %270 = vector.shape_cast %269 : vector<2x1x128xf32> to vector<2x128xf32>
    %c0_215 = arith.constant 0 : index
    %c1664_216 = arith.constant 1664 : index
    %271 = vector.load %arg12[%c0_215, %c1664_216] : memref<2x2048xf32, #tpu.memory_space<vmem>>, vector<2x128xf32>
    tpu.vector_store %arg12[%c0_215, %c1664_216], %270 {strides = array<i32>} : memref<2x2048xf32, #tpu.memory_space<vmem>>, vector<2x128xf32>,
    %272 = vector.extract_strided_slice %229 {offsets = [0, 14, 0], sizes = [2, 1, 128], strides = [1, 1, 1]} : vector<2x16x128xf32> to vector<2x1x128xf32>
    %273 = vector.shape_cast %272 : vector<2x1x128xf32> to vector<2x128xf32>
    %c0_217 = arith.constant 0 : index
    %c1792_218 = arith.constant 1792 : index
    %274 = vector.load %arg12[%c0_217, %c1792_218] : memref<2x2048xf32, #tpu.memory_space<vmem>>, vector<2x128xf32>
    tpu.vector_store %arg12[%c0_217, %c1792_218], %273 {strides = array<i32>} : memref<2x2048xf32, #tpu.memory_space<vmem>>, vector<2x128xf32>,
    %275 = vector.extract_strided_slice %229 {offsets = [0, 15, 0], sizes = [2, 1, 128], strides = [1, 1, 1]} : vector<2x16x128xf32> to vector<2x1x128xf32>
    %276 = vector.shape_cast %275 : vector<2x1x128xf32> to vector<2x128xf32>
    %c0_219 = arith.constant 0 : index
    %c1920_220 = arith.constant 1920 : index
    %277 = vector.load %arg12[%c0_219, %c1920_220] : memref<2x2048xf32, #tpu.memory_space<vmem>>, vector<2x128xf32>
    tpu.vector_store %arg12[%c0_219, %c1920_220], %276 {strides = array<i32>} : memref<2x2048xf32, #tpu.memory_space<vmem>>, vector<2x128xf32>,
    %c0_221 = arith.constant 0 : index
    %c0_222 = arith.constant 0 : index
    %278 = vector.load %arg12[%c0_221, %c0_222] : memref<2x2048xf32, #tpu.memory_space<vmem>>, vector<2x2048xf32>
    %c0_223 = arith.constant 0 : index
    %c0_224 = arith.constant 0 : index
    %279 = vector.load %arg6[%c0_223, %c0_224] : memref<2048x128xf32, #tpu.memory_space<vmem>>, vector<2048x128xf32>
    %cst_225 = arith.constant dense<0.000000e+00> : vector<2x128xf32>
    %280 = tpu.matmul %278, %279, %cst_225 {dimension_numbers = #tpu.dot_dimension_numbers<[1], [0], [0], [1], [0, 0, 1, 1], [], []>} : vector<2x2048xf32>, vector<2048x128xf32>, vector<2x128xf32> -> vector<2x128xf32>
    %c0_226 = arith.constant 0 : index
    %c0_227 = arith.constant 0 : index
    %281 = vector.load %arg7[%c0_226, %c0_227] : memref<1x128xf32, #tpu.memory_space<vmem>>, vector<1x128xf32>
    %282 = vector.broadcast %281 : vector<1x128xf32> to vector<2x128xf32>
    %283 = arith.addf %280, %282 : vector<2x128xf32>
    %cst_228 = arith.constant 0.000000e+00 : f32
    %284 = vector.broadcast %cst_228 : f32 to vector<2x128xf32>
    %285 = arith.maximumf %283, %284 : vector<2x128xf32>
    %c0_229 = arith.constant 0 : index
    %c0_230 = arith.constant 0 : index
    %286 = vector.load %arg8[%c0_229, %c0_230] : memref<128x10xf32, #tpu.memory_space<vmem>>, vector<128x10xf32>
    %cst_231 = arith.constant dense<0.000000e+00> : vector<2x10xf32>
    %287 = tpu.matmul %285, %286, %cst_231 {dimension_numbers = #tpu.dot_dimension_numbers<[1], [0], [0], [1], [0, 0, 1, 1], [], []>} : vector<2x128xf32>, vector<128x10xf32>, vector<2x10xf32> -> vector<2x10xf32>
    %c0_232 = arith.constant 0 : index
    %c0_233 = arith.constant 0 : index
    %288 = vector.load %arg9[%c0_232, %c0_233] : memref<1x10xf32, #tpu.memory_space<vmem>>, vector<1x10xf32>
    %289 = vector.broadcast %288 : vector<1x10xf32> to vector<2x10xf32>
    %290 = arith.addf %287, %289 : vector<2x10xf32>
    %c0_234 = arith.constant 0 : index
    %c0_235 = arith.constant 0 : index
    %291 = vector.load %arg10[%c0_234, %c0_235] : memref<2x10xf32, #tpu.memory_space<vmem>>, vector<2x10xf32>
    tpu.vector_store %arg10[%c0_234, %c0_235], %290 {strides = array<i32>} : memref<2x10xf32, #tpu.memory_space<vmem>>, vector<2x10xf32>,
    return
  }
  func.func @transform_0(%arg0: i32) -> (i32, i32) {
    %c0_i32 = arith.constant 0 : i32
    %c0_i32_0 = arith.constant 0 : i32
    %c0_i32_1 = arith.constant 0 : i32
    return %c0_i32, %c0_i32_0 : i32, i32
  }
  func.func @transform_1(%arg0: i32) -> (i32, i32) {
    %c0_i32 = arith.constant 0 : i32
    %c0_i32_0 = arith.constant 0 : i32
    %c0_i32_1 = arith.constant 0 : i32
    return %c0_i32, %c0_i32_0 : i32, i32
  }
  func.func @transform_2(%arg0: i32) -> (i32, i32) {
    %c0_i32 = arith.constant 0 : i32
    %c0_i32_0 = arith.constant 0 : i32
    %c0_i32_1 = arith.constant 0 : i32
    return %c0_i32, %c0_i32_0 : i32, i32
  }
  func.func @transform_3(%arg0: i32) -> (i32, i32) {
    %c0_i32 = arith.constant 0 : i32
    %c0_i32_0 = arith.constant 0 : i32
    %c0_i32_1 = arith.constant 0 : i32
    return %c0_i32, %c0_i32_0 : i32, i32
  }
  func.func @transform_4(%arg0: i32) -> (i32, i32) {
    %c0_i32 = arith.constant 0 : i32
    %c0_i32_0 = arith.constant 0 : i32
    %c0_i32_1 = arith.constant 0 : i32
    return %c0_i32, %c0_i32_0 : i32, i32
  }
  func.func @transform_5(%arg0: i32) -> (i32, i32) {
    %c0_i32 = arith.constant 0 : i32
    %c0_i32_0 = arith.constant 0 : i32
    %c0_i32_1 = arith.constant 0 : i32
    return %c0_i32, %c0_i32_0 : i32, i32
  }
  func.func @transform_6(%arg0: i32) -> (i32, i32) {
    %c0_i32 = arith.constant 0 : i32
    %c0_i32_0 = arith.constant 0 : i32
    %c0_i32_1 = arith.constant 0 : i32
    return %c0_i32, %c0_i32_0 : i32, i32
  }
  func.func @transform_7(%arg0: i32) -> (i32, i32) {
    %c0_i32 = arith.constant 0 : i32
    %c0_i32_0 = arith.constant 0 : i32
    %c0_i32_1 = arith.constant 0 : i32
    return %c0_i32, %c0_i32_0 : i32, i32
  }
  func.func @transform_8(%arg0: i32) -> (i32, i32) {
    %c0_i32 = arith.constant 0 : i32
    %c0_i32_0 = arith.constant 0 : i32
    %c0_i32_1 = arith.constant 0 : i32
    return %c0_i32, %c0_i32_0 : i32, i32
  }
  func.func @transform_9(%arg0: i32) -> (i32, i32) {
    %c0_i32 = arith.constant 0 : i32
    %c0_i32_0 = arith.constant 0 : i32
    %c0_i32_1 = arith.constant 0 : i32
    return %c0_i32, %c0_i32_0 : i32, i32
  }
}

</mosaic_0001>

<llo_original>
// kernel: _lambda_.1
$region0: #{_lambda_.1}
  #allocation0 [shape = 'u32[]', space=smem, size = 0x4, offset = 0x4, fixed_abs, tag = 'smem constant byte address 0x4 - core index']
  #allocation1 [shape = 'u32[144,128]{1,0:T(1,128)}', space=vmem, size = 0x12000, scoped, tag = 'internal scratch']
  #allocation2 [shape = 'f32[128,3200]{1,0:T(8,128)}', space=vmem, size = 0x190000, scoped, tag = 'scratch operand']
  #allocation3 [shape = 'f32[2,2048]{1,0:T(2,128)}', space=vmem, size = 0x4000, scoped, tag = 'scratch operand']
  %s0 = inlined_call_operand.vmem [shape: f32[1536,25], index: 0, kind: input, shape index: {}]
  %s1 = inlined_call_operand.vmem [shape: f32[25,128], index: 1, kind: input, shape index: {}]
  %s2 = inlined_call_operand.vmem [shape: f32[1,128], index: 2, kind: input, shape index: {}]
  %s3 = inlined_call_operand.vmem [shape: f32[3200,128], index: 3, kind: input, shape index: {}]
  %s4 = inlined_call_operand.vmem [shape: f32[1,128], index: 4, kind: input, shape index: {}]
  %s5 = inlined_call_operand.vmem [shape: f32[2048,128], index: 5, kind: input, shape index: {}]
  %s6 = inlined_call_operand.vmem [shape: f32[1,128], index: 6, kind: input, shape index: {}]
  %s7 = inlined_call_operand.vmem [shape: f32[128,10], index: 7, kind: input, shape index: {}]
  %s8 = inlined_call_operand.vmem [shape: f32[1,10], index: 8, kind: input, shape index: {}]
  %s9 = inlined_call_operand.hbm [shape: f32[2,10], index: 9, kind: output, shape index: {}]
  %s10 = sld [smem:[#allocation0]]
  $region46: #{_lambda_.1} parent=0
    _
  %s12 = ssub.s32 1, %s10
  %s13 = scalar_select 0, %s12, %s10
  $region1: #{_lambda_.1} parent=0
    #allocation4 [shape = 'u8[1024]{0}', space=vmem, size = 0x400, scoped, tag = 'output window, operand 0, single buffered']
    #allocation5 [shape = 's32[1]{0}', space=sflag, size = 0x4, scoped, tag = 'scoped memory for _lambda_.1']
    %14 = vsyncpa [#allocation5], 0
    // Predicated region
    $region2: #{_lambda_.1} parent=1 // pred_check
      _
    $region3: #{_lambda_.1} parent=1 // pred_check_branch
      %16 = sbr.rel (0) target = $region5
    $region4: #{_lambda_.1} parent=1 // pred_region
      _
    $region5: #{_lambda_.1} parent=1 // pred_fallthru
      _
    // Predicated region
    $region6: #{_lambda_.1} parent=1 // pred_check
      _
    $region7: #{_lambda_.1} parent=1 // pred_check_branch
      %18 = sbr.rel (0) target = $region9
    $region8: #{_lambda_.1} parent=1 // pred_region
      _
    $region9: #{_lambda_.1} parent=1 // pred_fallthru
      _
    // Predicated region
    $region10: #{_lambda_.1} parent=1 // pred_check
      _
    $region11: #{_lambda_.1} parent=1 // pred_check_branch
      %20 = sbr.rel (0) target = $region13
    $region12: #{_lambda_.1} parent=1 // pred_region
      _
    $region13: #{_lambda_.1} parent=1 // pred_fallthru
      _
    // Predicated region
    $region14: #{_lambda_.1} parent=1 // pred_check
      _
    $region15: #{_lambda_.1} parent=1 // pred_check_branch
      %22 = sbr.rel (0) target = $region17
    $region16: #{_lambda_.1} parent=1 // pred_region
      _
    $region17: #{_lambda_.1} parent=1 // pred_fallthru
      _
    // Predicated region
    $region18: #{_lambda_.1} parent=1 // pred_check
      _
    $region19: #{_lambda_.1} parent=1 // pred_check_branch
      %24 = sbr.rel (0) target = $region21
    $region20: #{_lambda_.1} parent=1 // pred_region
      _
    $region21: #{_lambda_.1} parent=1 // pred_fallthru
      _
    // Predicated region
    $region22: #{_lambda_.1} parent=1 // pred_check
      _
    $region23: #{_lambda_.1} parent=1 // pred_check_branch
      %26 = sbr.rel (0) target = $region25
    $region24: #{_lambda_.1} parent=1 // pred_region
      _
    $region25: #{_lambda_.1} parent=1 // pred_fallthru
      _
    // Predicated region
    $region26: #{_lambda_.1} parent=1 // pred_check
      _
    $region27: #{_lambda_.1} parent=1 // pred_check_branch
      %28 = sbr.rel (0) target = $region29
    $region28: #{_lambda_.1} parent=1 // pred_region
      _
    $region29: #{_lambda_.1} parent=1 // pred_fallthru
      _
    // Predicated region
    $region30: #{_lambda_.1} parent=1 // pred_check
      _
    $region31: #{_lambda_.1} parent=1 // pred_check_branch
      %30 = sbr.rel (0) target = $region33
    $region32: #{_lambda_.1} parent=1 // pred_region
      _
    $region33: #{_lambda_.1} parent=1 // pred_fallthru
      _
    // Predicated region
    $region34: #{_lambda_.1} parent=1 // pred_check
      _
    $region35: #{_lambda_.1} parent=1 // pred_check_branch
      %32 = sbr.rel (0) target = $region37
    $region36: #{_lambda_.1} parent=1 // pred_region
      _
    $region37: #{_lambda_.1} parent=1 // pred_fallthru
      _
    %v33 = vld [vmem:[%s0] sm:$0xff]
    %v34 = vld [vmem:[%s0 + $0x8] sm:$0xff]
    %v35 = vld [vmem:[%s0 + $0x10] sm:$0xff]
    %v36 = vld [vmem:[%s0 + $0x18] sm:$0xff]
    %v37 = vld [vmem:[%s0 + $0x20] sm:$0xff]
    %v38 = vld [vmem:[%s0 + $0x28] sm:$0xff]
    %v39 = vld [vmem:[%s0 + $0x30] sm:$0xff]
    %v40 = vld [vmem:[%s0 + $0x38] sm:$0xff]
    %v41 = vld [vmem:[%s0 + $0x40] sm:$0xff]
    %v42 = vld [vmem:[%s0 + $0x48] sm:$0xff]
    %v43 = vld [vmem:[%s0 + $0x50] sm:$0xff]
    %v44 = vld [vmem:[%s0 + $0x58] sm:$0xff]
    %v45 = vld [vmem:[%s0 + $0x60] sm:$0xff]
    %v46 = vld [vmem:[%s0 + $0x68] sm:$0xff]
    %v47 = vld [vmem:[%s0 + $0x70] sm:$0xff]
    %v48 = vld [vmem:[%s0 + $0x78] sm:$0xff]
    %v49 = vld [vmem:[%s0 + $0x80] sm:$0xff]
    %v50 = vld [vmem:[%s0 + $0x88] sm:$0xff]
    %v51 = vld [vmem:[%s0 + $0x90] sm:$0xff]
    %v52 = vld [vmem:[%s0 + $0x98] sm:$0xff]
    %v53 = vld [vmem:[%s0 + $0xa0] sm:$0xff]
    %v54 = vld [vmem:[%s0 + $0xa8] sm:$0xff]
    %v55 = vld [vmem:[%s0 + $0xb0] sm:$0xff]
    %v56 = vld [vmem:[%s0 + $0xb8] sm:$0xff]
    %v57 = vld [vmem:[%s0 + $0xc0] sm:$0xff]
    %v58 = vld [vmem:[%s0 + $0xc8] sm:$0xff]
    %v59 = vld [vmem:[%s0 + $0xd0] sm:$0xff]
    %v60 = vld [vmem:[%s0 + $0xd8] sm:$0xff]
    %v61 = vld [vmem:[%s0 + $0xe0] sm:$0xff]
    %v62 = vld [vmem:[%s0 + $0xe8] sm:$0xff]
    %v63 = vld [vmem:[%s0 + $0xf0] sm:$0xff]
    %v64 = vld [vmem:[%s0 + $0xf8] sm:$0xff]
    %v65 = vld [vmem:[%s0 + $0x100] sm:$0xff]
    %v66 = vld [vmem:[%s0 + $0x108] sm:$0xff]
    %v67 = vld [vmem:[%s0 + $0x110] sm:$0xff]
    %v68 = vld [vmem:[%s0 + $0x118] sm:$0xff]
    %v69 = vld [vmem:[%s0 + $0x120] sm:$0xff]
    %v70 = vld [vmem:[%s0 + $0x128] sm:$0xff]
    %v71 = vld [vmem:[%s0 + $0x130] sm:$0xff]
    %v72 = vld [vmem:[%s0 + $0x138] sm:$0xff]
    %v73 = vld [vmem:[%s0 + $0x140] sm:$0xff]
    %v74 = vld [vmem:[%s0 + $0x148] sm:$0xff]
    %v75 = vld [vmem:[%s0 + $0x150] sm:$0xff]
    %v76 = vld [vmem:[%s0 + $0x158] sm:$0xff]
    %v77 = vld [vmem:[%s0 + $0x160] sm:$0xff]
    %v78 = vld [vmem:[%s0 + $0x168] sm:$0xff]
    %v79 = vld [vmem:[%s0 + $0x170] sm:$0xff]
    %v80 = vld [vmem:[%s0 + $0x178] sm:$0xff]
    %v81 = vld [vmem:[%s0 + $0x180] sm:$0xff]
    %v82 = vld [vmem:[%s0 + $0x188] sm:$0xff]
    %v83 = vld [vmem:[%s0 + $0x190] sm:$0xff]
    %v84 = vld [vmem:[%s0 + $0x198] sm:$0xff]
    %v85 = vld [vmem:[%s0 + $0x1a0] sm:$0xff]
    %v86 = vld [vmem:[%s0 + $0x1a8] sm:$0xff]
    %v87 = vld [vmem:[%s0 + $0x1b0] sm:$0xff]
    %v88 = vld [vmem:[%s0 + $0x1b8] sm:$0xff]
    %v89 = vld [vmem:[%s0 + $0x1c0] sm:$0xff]
    %v90 = vld [vmem:[%s0 + $0x1c8] sm:$0xff]
    %v91 = vld [vmem:[%s0 + $0x1d0] sm:$0xff]
    %v92 = vld [vmem:[%s0 + $0x1d8] sm:$0xff]
    %v93 = vld [vmem:[%s0 + $0x1e0] sm:$0xff]
    %v94 = vld [vmem:[%s0 + $0x1e8] sm:$0xff]
    %v95 = vld [vmem:[%s0 + $0x1f0] sm:$0xff]
    %v96 = vld [vmem:[%s0 + $0x1f8] sm:$0xff]
    %v97 = vld [vmem:[%s0 + $0x200] sm:$0xff]
    %v98 = vld [vmem:[%s0 + $0x208] sm:$0xff]
    %v99 = vld [vmem:[%s0 + $0x210] sm:$0xff]
    %v100 = vld [vmem:[%s0 + $0x218] sm:$0xff]
    %v101 = vld [vmem:[%s0 + $0x220] sm:$0xff]
    %v102 = vld [vmem:[%s0 + $0x228] sm:$0xff]
    %v103 = vld [vmem:[%s0 + $0x230] sm:$0xff]
    %v104 = vld [vmem:[%s0 + $0x238] sm:$0xff]
    %v105 = vld [vmem:[%s0 + $0x240] sm:$0xff]
    %v106 = vld [vmem:[%s0 + $0x248] sm:$0xff]
    %v107 = vld [vmem:[%s0 + $0x250] sm:$0xff]
    %v108 = vld [vmem:[%s0 + $0x258] sm:$0xff]
    %v109 = vld [vmem:[%s0 + $0x260] sm:$0xff]
    %v110 = vld [vmem:[%s0 + $0x268] sm:$0xff]
    %v111 = vld [vmem:[%s0 + $0x270] sm:$0xff]
    %v112 = vld [vmem:[%s0 + $0x278] sm:$0xff]
    %v113 = vld [vmem:[%s0 + $0x280] sm:$0xff]
    %v114 = vld [vmem:[%s0 + $0x288] sm:$0xff]
    %v115 = vld [vmem:[%s0 + $0x290] sm:$0xff]
    %v116 = vld [vmem:[%s0 + $0x298] sm:$0xff]
    %v117 = vld [vmem:[%s0 + $0x2a0] sm:$0xff]
    %v118 = vld [vmem:[%s0 + $0x2a8] sm:$0xff]
    %v119 = vld [vmem:[%s0 + $0x2b0] sm:$0xff]
    %v120 = vld [vmem:[%s0 + $0x2b8] sm:$0xff]
    %v121 = vld [vmem:[%s0 + $0x2c0] sm:$0xff]
    %v122 = vld [vmem:[%s0 + $0x2c8] sm:$0xff]
    %v123 = vld [vmem:[%s0 + $0x2d0] sm:$0xff]
    %v124 = vld [vmem:[%s0 + $0x2d8] sm:$0xff]
    %v125 = vld [vmem:[%s0 + $0x2e0] sm:$0xff]
    %v126 = vld [vmem:[%s0 + $0x2e8] sm:$0xff]
    %v127 = vld [vmem:[%s0 + $0x2f0] sm:$0xff]
    %v128 = vld [vmem:[%s0 + $0x2f8] sm:$0xff]
    %v129 = vld [vmem:[%s0 + $0x300] sm:$0xff]
    %v130 = vld [vmem:[%s0 + $0x308] sm:$0xff]
    %v131 = vld [vmem:[%s0 + $0x310] sm:$0xff]
    %v132 = vld [vmem:[%s0 + $0x318] sm:$0xff]
    %v133 = vld [vmem:[%s0 + $0x320] sm:$0xff]
    %v134 = vld [vmem:[%s0 + $0x328] sm:$0xff]
    %v135 = vld [vmem:[%s0 + $0x330] sm:$0xff]
    %v136 = vld [vmem:[%s0 + $0x338] sm:$0xff]
    %v137 = vld [vmem:[%s0 + $0x340] sm:$0xff]
    %v138 = vld [vmem:[%s0 + $0x348] sm:$0xff]
    %v139 = vld [vmem:[%s0 + $0x350] sm:$0xff]
    %v140 = vld [vmem:[%s0 + $0x358] sm:$0xff]
    %v141 = vld [vmem:[%s0 + $0x360] sm:$0xff]
    %v142 = vld [vmem:[%s0 + $0x368] sm:$0xff]
    %v143 = vld [vmem:[%s0 + $0x370] sm:$0xff]
    %v144 = vld [vmem:[%s0 + $0x378] sm:$0xff]
    %v145 = vld [vmem:[%s0 + $0x380] sm:$0xff]
    %v146 = vld [vmem:[%s0 + $0x388] sm:$0xff]
    %v147 = vld [vmem:[%s0 + $0x390] sm:$0xff]
    %v148 = vld [vmem:[%s0 + $0x398] sm:$0xff]
    %v149 = vld [vmem:[%s0 + $0x3a0] sm:$0xff]
    %v150 = vld [vmem:[%s0 + $0x3a8] sm:$0xff]
    %v151 = vld [vmem:[%s0 + $0x3b0] sm:$0xff]
    %v152 = vld [vmem:[%s0 + $0x3b8] sm:$0xff]
    %v153 = vld [vmem:[%s0 + $0x3c0] sm:$0xff]
    %v154 = vld [vmem:[%s0 + $0x3c8] sm:$0xff]
    %v155 = vld [vmem:[%s0 + $0x3d0] sm:$0xff]
    %v156 = vld [vmem:[%s0 + $0x3d8] sm:$0xff]
    %v157 = vld [vmem:[%s0 + $0x3e0] sm:$0xff]
    %v158 = vld [vmem:[%s0 + $0x3e8] sm:$0xff]
    %v159 = vld [vmem:[%s0 + $0x3f0] sm:$0xff]
    %v160 = vld [vmem:[%s0 + $0x3f8] sm:$0xff]
    %v161 = vld [vmem:[%s0 + $0x400] sm:$0xff]
    %v162 = vld [vmem:[%s0 + $0x408] sm:$0xff]
    %v163 = vld [vmem:[%s0 + $0x410] sm:$0xff]
    %v164 = vld [vmem:[%s0 + $0x418] sm:$0xff]
    %v165 = vld [vmem:[%s0 + $0x420] sm:$0xff]
    %v166 = vld [vmem:[%s0 + $0x428] sm:$0xff]
    %v167 = vld [vmem:[%s0 + $0x430] sm:$0xff]
    %v168 = vld [vmem:[%s0 + $0x438] sm:$0xff]
    %v169 = vld [vmem:[%s0 + $0x440] sm:$0xff]
    %v170 = vld [vmem:[%s0 + $0x448] sm:$0xff]
    %v171 = vld [vmem:[%s0 + $0x450] sm:$0xff]
    %v172 = vld [vmem:[%s0 + $0x458] sm:$0xff]
    %v173 = vld [vmem:[%s0 + $0x460] sm:$0xff]
    %v174 = vld [vmem:[%s0 + $0x468] sm:$0xff]
    %v175 = vld [vmem:[%s0 + $0x470] sm:$0xff]
    %v176 = vld [vmem:[%s0 + $0x478] sm:$0xff]
    %v177 = vld [vmem:[%s0 + $0x480] sm:$0xff]
    %v178 = vld [vmem:[%s0 + $0x488] sm:$0xff]
    %v179 = vld [vmem:[%s0 + $0x490] sm:$0xff]
    %v180 = vld [vmem:[%s0 + $0x498] sm:$0xff]
    %v181 = vld [vmem:[%s0 + $0x4a0] sm:$0xff]
    %v182 = vld [vmem:[%s0 + $0x4a8] sm:$0xff]
    %v183 = vld [vmem:[%s0 + $0x4b0] sm:$0xff]
    %v184 = vld [vmem:[%s0 + $0x4b8] sm:$0xff]
    %v185 = vld [vmem:[%s0 + $0x4c0] sm:$0xff]
    %v186 = vld [vmem:[%s0 + $0x4c8] sm:$0xff]
    %v187 = vld [vmem:[%s0 + $0x4d0] sm:$0xff]
    %v188 = vld [vmem:[%s0 + $0x4d8] sm:$0xff]
    %v189 = vld [vmem:[%s0 + $0x4e0] sm:$0xff]
    %v190 = vld [vmem:[%s0 + $0x4e8] sm:$0xff]
    %v191 = vld [vmem:[%s0 + $0x4f0] sm:$0xff]
    %v192 = vld [vmem:[%s0 + $0x4f8] sm:$0xff]
    %v193 = vld [vmem:[%s0 + $0x500] sm:$0xff]
    %v194 = vld [vmem:[%s0 + $0x508] sm:$0xff]
    %v195 = vld [vmem:[%s0 + $0x510] sm:$0xff]
    %v196 = vld [vmem:[%s0 + $0x518] sm:$0xff]
    %v197 = vld [vmem:[%s0 + $0x520] sm:$0xff]
    %v198 = vld [vmem:[%s0 + $0x528] sm:$0xff]
    %v199 = vld [vmem:[%s0 + $0x530] sm:$0xff]
    %v200 = vld [vmem:[%s0 + $0x538] sm:$0xff]
    %v201 = vld [vmem:[%s0 + $0x540] sm:$0xff]
    %v202 = vld [vmem:[%s0 + $0x548] sm:$0xff]
    %v203 = vld [vmem:[%s0 + $0x550] sm:$0xff]
    %v204 = vld [vmem:[%s0 + $0x558] sm:$0xff]
    %v205 = vld [vmem:[%s0 + $0x560] sm:$0xff]
    %v206 = vld [vmem:[%s0 + $0x568] sm:$0xff]
    %v207 = vld [vmem:[%s0 + $0x570] sm:$0xff]
    %v208 = vld [vmem:[%s0 + $0x578] sm:$0xff]
    %v209 = vld [vmem:[%s0 + $0x580] sm:$0xff]
    %v210 = vld [vmem:[%s0 + $0x588] sm:$0xff]
    %v211 = vld [vmem:[%s0 + $0x590] sm:$0xff]
    %v212 = vld [vmem:[%s0 + $0x598] sm:$0xff]
    %v213 = vld [vmem:[%s0 + $0x5a0] sm:$0xff]
    %v214 = vld [vmem:[%s0 + $0x5a8] sm:$0xff]
    %v215 = vld [vmem:[%s0 + $0x5b0] sm:$0xff]
    %v216 = vld [vmem:[%s0 + $0x5b8] sm:$0xff]
    %v217 = vld [vmem:[%s0 + $0x5c0] sm:$0xff]
    %v218 = vld [vmem:[%s0 + $0x5c8] sm:$0xff]
    %v219 = vld [vmem:[%s0 + $0x5d0] sm:$0xff]
    %v220 = vld [vmem:[%s0 + $0x5d8] sm:$0xff]
    %v221 = vld [vmem:[%s0 + $0x5e0] sm:$0xff]
    %v222 = vld [vmem:[%s0 + $0x5e8] sm:$0xff]
    %v223 = vld [vmem:[%s0 + $0x5f0] sm:$0xff]
    %v224 = vld [vmem:[%s0 + $0x5f8] sm:$0xff]
    %v225 = vld [vmem:[%s1] sm:$0xff]
    %v226 = vld [vmem:[%s1 + $0x8] sm:$0xff]
    %v227 = vld [vmem:[%s1 + $0x10] sm:$0xff]
    %v228 = vld [vmem:[%s1 + $0x18] sm:$0x1]
    %vm229 = vcmask 203776
    %v231 = vsel %vm229, %v33, 0
    %v234 = vsel %vm229, %v34, 0
    %v237 = vsel %vm229, %v35, 0
    %v240 = vsel %vm229, %v36, 0
    %v243 = vsel %vm229, %v37, 0
    %v246 = vsel %vm229, %v38, 0
    %v249 = vsel %vm229, %v39, 0
    %v252 = vsel %vm229, %v40, 0
    %v255 = vsel %vm229, %v41, 0
    %v258 = vsel %vm229, %v42, 0
    %v261 = vsel %vm229, %v43, 0
    %v264 = vsel %vm229, %v44, 0
    %v267 = vsel %vm229, %v45, 0
    %v270 = vsel %vm229, %v46, 0
    %v273 = vsel %vm229, %v47, 0
    %v276 = vsel %vm229, %v48, 0
    %v279 = vsel %vm229, %v49, 0
    %v282 = vsel %vm229, %v50, 0
    %v285 = vsel %vm229, %v51, 0
    %v288 = vsel %vm229, %v52, 0
    %v291 = vsel %vm229, %v53, 0
    %v294 = vsel %vm229, %v54, 0
    %v297 = vsel %vm229, %v55, 0
    %v300 = vsel %vm229, %v56, 0
    %v303 = vsel %vm229, %v57, 0
    %v306 = vsel %vm229, %v58, 0
    %v309 = vsel %vm229, %v59, 0
    %v312 = vsel %vm229, %v60, 0
    %v315 = vsel %vm229, %v61, 0
    %v318 = vsel %vm229, %v62, 0
    %v321 = vsel %vm229, %v63, 0
    %v324 = vsel %vm229, %v64, 0
    %v327 = vsel %vm229, %v65, 0
    %v330 = vsel %vm229, %v66, 0
    %v333 = vsel %vm229, %v67, 0
    %v336 = vsel %vm229, %v68, 0
    %v339 = vsel %vm229, %v69, 0
    %v342 = vsel %vm229, %v70, 0
    %v345 = vsel %vm229, %v71, 0
    %v348 = vsel %vm229, %v72, 0
    %v351 = vsel %vm229, %v73, 0
    %v354 = vsel %vm229, %v74, 0
    %v357 = vsel %vm229, %v75, 0
    %v360 = vsel %vm229, %v76, 0
    %v363 = vsel %vm229, %v77, 0
    %v366 = vsel %vm229, %v78, 0
    %v369 = vsel %vm229, %v79, 0
    %v372 = vsel %vm229, %v80, 0
    %v375 = vsel %vm229, %v81, 0
    %v378 = vsel %vm229, %v82, 0
    %v381 = vsel %vm229, %v83, 0
    %v384 = vsel %vm229, %v84, 0
    %v387 = vsel %vm229, %v85, 0
    %v390 = vsel %vm229, %v86, 0
    %v393 = vsel %vm229, %v87, 0
    %v396 = vsel %vm229, %v88, 0
    %v399 = vsel %vm229, %v89, 0
    %v402 = vsel %vm229, %v90, 0
    %v405 = vsel %vm229, %v91, 0
    %v408 = vsel %vm229, %v92, 0
    %v411 = vsel %vm229, %v93, 0
    %v414 = vsel %vm229, %v94, 0
    %v417 = vsel %vm229, %v95, 0
    %v420 = vsel %vm229, %v96, 0
    %v423 = vsel %vm229, %v97, 0
    %v426 = vsel %vm229, %v98, 0
    %v429 = vsel %vm229, %v99, 0
    %v432 = vsel %vm229, %v100, 0
    %v435 = vsel %vm229, %v101, 0
    %v438 = vsel %vm229, %v102, 0
    %v441 = vsel %vm229, %v103, 0
    %v444 = vsel %vm229, %v104, 0
    %v447 = vsel %vm229, %v105, 0
    %v450 = vsel %vm229, %v106, 0
    %v453 = vsel %vm229, %v107, 0
    %v456 = vsel %vm229, %v108, 0
    %v459 = vsel %vm229, %v109, 0
    %v462 = vsel %vm229, %v110, 0
    %v465 = vsel %vm229, %v111, 0
    %v468 = vsel %vm229, %v112, 0
    %v471 = vsel %vm229, %v113, 0
    %v474 = vsel %vm229, %v114, 0
    %v477 = vsel %vm229, %v115, 0
    %v480 = vsel %vm229, %v116, 0
    %v483 = vsel %vm229, %v117, 0
    %v486 = vsel %vm229, %v118, 0
    %v489 = vsel %vm229, %v119, 0
    %v492 = vsel %vm229, %v120, 0
    %v495 = vsel %vm229, %v121, 0
    %v498 = vsel %vm229, %v122, 0
    %v501 = vsel %vm229, %v123, 0
    %v504 = vsel %vm229, %v124, 0
    %v507 = vsel %vm229, %v125, 0
    %v510 = vsel %vm229, %v126, 0
    %v513 = vsel %vm229, %v127, 0
    %v516 = vsel %vm229, %v128, 0
    %v519 = vsel %vm229, %v129, 0
    %v522 = vsel %vm229, %v130, 0
    %v525 = vsel %vm229, %v131, 0
    %v528 = vsel %vm229, %v132, 0
    %v531 = vsel %vm229, %v133, 0
    %v534 = vsel %vm229, %v134, 0
    %v537 = vsel %vm229, %v135, 0
    %v540 = vsel %vm229, %v136, 0
    %v543 = vsel %vm229, %v137, 0
    %v546 = vsel %vm229, %v138, 0
    %v549 = vsel %vm229, %v139, 0
    %v552 = vsel %vm229, %v140, 0
    %v555 = vsel %vm229, %v141, 0
    %v558 = vsel %vm229, %v142, 0
    %v561 = vsel %vm229, %v143, 0
    %v564 = vsel %vm229, %v144, 0
    %v567 = vsel %vm229, %v145, 0
    %v570 = vsel %vm229, %v146, 0
    %v573 = vsel %vm229, %v147, 0
    %v576 = vsel %vm229, %v148, 0
    %v579 = vsel %vm229, %v149, 0
    %v582 = vsel %vm229, %v150, 0
    %v585 = vsel %vm229, %v151, 0
    %v588 = vsel %vm229, %v152, 0
    %v591 = vsel %vm229, %v153, 0
    %v594 = vsel %vm229, %v154, 0
    %v597 = vsel %vm229, %v155, 0
    %v600 = vsel %vm229, %v156, 0
    %v603 = vsel %vm229, %v157, 0
    %v606 = vsel %vm229, %v158, 0
    %v609 = vsel %vm229, %v159, 0
    %v612 = vsel %vm229, %v160, 0
    %v615 = vsel %vm229, %v161, 0
    %v618 = vsel %vm229, %v162, 0
    %v621 = vsel %vm229, %v163, 0
    %v624 = vsel %vm229, %v164, 0
    %v627 = vsel %vm229, %v165, 0
    %v630 = vsel %vm229, %v166, 0
    %v633 = vsel %vm229, %v167, 0
    %v636 = vsel %vm229, %v168, 0
    %v639 = vsel %vm229, %v169, 0
    %v642 = vsel %vm229, %v170, 0
    %v645 = vsel %vm229, %v171, 0
    %v648 = vsel %vm229, %v172, 0
    %v651 = vsel %vm229, %v173, 0
    %v654 = vsel %vm229, %v174, 0
    %v657 = vsel %vm229, %v175, 0
    %v660 = vsel %vm229, %v176, 0
    %v663 = vsel %vm229, %v177, 0
    %v666 = vsel %vm229, %v178, 0
    %v669 = vsel %vm229, %v179, 0
    %v672 = vsel %vm229, %v180, 0
    %v675 = vsel %vm229, %v181, 0
    %v678 = vsel %vm229, %v182, 0
    %v681 = vsel %vm229, %v183, 0
    %v684 = vsel %vm229, %v184, 0
    %v687 = vsel %vm229, %v185, 0
    %v690 = vsel %vm229, %v186, 0
    %v693 = vsel %vm229, %v187, 0
    %v696 = vsel %vm229, %v188, 0
    %v699 = vsel %vm229, %v189, 0
    %v702 = vsel %vm229, %v190, 0
    %v705 = vsel %vm229, %v191, 0
    %v708 = vsel %vm229, %v192, 0
    %v711 = vsel %vm229, %v193, 0
    %v714 = vsel %vm229, %v194, 0
    %v717 = vsel %vm229, %v195, 0
    %v720 = vsel %vm229, %v196, 0
    %v723 = vsel %vm229, %v197, 0
    %v726 = vsel %vm229, %v198, 0
    %v729 = vsel %vm229, %v199, 0
    %v732 = vsel %vm229, %v200, 0
    %v735 = vsel %vm229, %v201, 0
    %v738 = vsel %vm229, %v202, 0
    %v741 = vsel %vm229, %v203, 0
    %v744 = vsel %vm229, %v204, 0
    %v747 = vsel %vm229, %v205, 0
    %v750 = vsel %vm229, %v206, 0
    %v753 = vsel %vm229, %v207, 0
    %v756 = vsel %vm229, %v208, 0
    %v759 = vsel %vm229, %v209, 0
    %v762 = vsel %vm229, %v210, 0
    %v765 = vsel %vm229, %v211, 0
    %v768 = vsel %vm229, %v212, 0
    %v771 = vsel %vm229, %v213, 0
    %v774 = vsel %vm229, %v214, 0
    %v777 = vsel %vm229, %v215, 0
    %v780 = vsel %vm229, %v216, 0
    %v783 = vsel %vm229, %v217, 0
    %v786 = vsel %vm229, %v218, 0
    %v789 = vsel %vm229, %v219, 0
    %v792 = vsel %vm229, %v220, 0
    %v795 = vsel %vm229, %v221, 0
    %v798 = vsel %vm229, %v222, 0
    %v801 = vsel %vm229, %v223, 0
    %v804 = vsel %vm229, %v224, 0
    %vm806 = vcmask 1040384
    %v808 = vsel %vm806, %v228, 0
    %810 = vmatprep.subr.mxu0 0.0
    %811 = vmatpush1.msra.mxu0 %v225
    %812 = vmatprep.subr.mxu0 0.0
    %813 = vmatpush1.msra.mxu0 %v226
    %814 = vmatprep.subr.mxu0 0.0
    %815 = vmatpush1.msra.mxu0 %v227
    %816 = vmatprep.subr.mxu0 0.0
    %817 = vmatpush1.msra.mxu0 %v808
    %818 = vmatprep.subr.mxu0 0.0
    %819 = vmatpush1.msra.mxu0 0.0
    %820 = vmatprep.subr.mxu0 0.0
    %821 = vmatpush1.msra.mxu0 0.0
    %822 = vmatprep.subr.mxu0 0.0
    %823 = vmatpush1.msra.mxu0 0.0
    %824 = vmatprep.subr.mxu0 0.0
    %825 = vmatpush1.msra.mxu0 0.0
    %826 = vmatprep.subr.mxu0 0.0
    %827 = vmatpush1.msra.mxu0 0.0
    %828 = vmatprep.subr.mxu0 0.0
    %829 = vmatpush1.msra.mxu0 0.0
    %830 = vmatprep.subr.mxu0 0.0
    %831 = vmatpush1.msra.mxu0 0.0
    %832 = vmatprep.subr.mxu0 0.0
    %833 = vmatpush1.msra.mxu0 0.0
    %834 = vmatprep.subr.mxu0 0.0
    %835 = vmatpush1.msra.mxu0 0.0
    %836 = vmatprep.subr.mxu0 0.0
    %837 = vmatpush1.msra.mxu0 0.0
    %838 = vmatprep.subr.mxu0 0.0
    %839 = vmatpush1.msra.mxu0 0.0
    %840 = vmatprep.subr.mxu0 0.0
    %841 = vmatpush1.msra.mxu0 0.0
    %842 = vmatprep.subr.mxu0 0.0
    %843 = vmatpush1.msra.mxu0 0.0
    %844 = vmatprep.subr.mxu0 0.0
    %845 = vmatpush1.msra.mxu0 0.0
    %846 = vmatprep.subr.mxu0 0.0
    %847 = vmatpush1.msra.mxu0 0.0
    %848 = vmatprep.subr.mxu0 0.0
    %849 = vmatpush1.msra.mxu0 0.0
    %850 = vmatprep.subr.mxu0 0.0
    %851 = vmatpush1.msra.mxu0 0.0
    %852 = vmatprep.subr.mxu0 0.0
    %853 = vmatpush1.msra.mxu0 0.0
    %854 = vmatprep.subr.mxu0 0.0
    %855 = vmatpush1.msra.mxu0 0.0
    %856 = vmatprep.subr.mxu0 0.0
    %857 = vmatpush1.msra.mxu0 0.0
    %858 = vmatprep.subr.mxu0 0.0
    %859 = vmatpush1.msra.mxu0 0.0
    %860 = vmatprep.subr.mxu0 0.0
    %861 = vmatpush1.msra.mxu0 0.0
    %862 = vmatprep.subr.mxu0 0.0
    %863 = vmatpush1.msra.mxu0 0.0
    %864 = vmatprep.subr.mxu0 0.0
    %865 = vmatpush1.msra.mxu0 0.0
    %866 = vmatprep.subr.mxu0 0.0
    %867 = vmatpush1.msra.mxu0 0.0
    %868 = vmatprep.subr.mxu0 0.0
    %869 = vmatpush1.msra.mxu0 0.0
    %870 = vmatprep.subr.mxu0 0.0
    %871 = vmatpush1.msra.mxu0 0.0
    %872 = vmatprep.subr.mxu0 0.0
    %873 = vmatpush1.msra.mxu0 0.0
    %874 = vmatprep.mubr.f32.mxu0 0.0
    %875 = vmatmul.mubr.f32.gmra.mrb[0].mxu0 %v231
    %v876 = vpop.f32.mrb[0].mxu0
    %v877 = vadd.f32 0.0, %v876
    %v878 = vpop.f32.mrb[0].mxu0
    %879 = vmatprep.mubr.f32.mxu0 0.0
    %880 = vmatmul.mubr.f32.gmra.mrb[0].mxu0 %v234
    %v881 = vpop.f32.mrb[0].mxu0
    %v882 = vadd.f32 0.0, %v881
    %v883 = vpop.f32.mrb[0].mxu0
    %884 = vmatprep.mubr.f32.mxu0 0.0
    %885 = vmatmul.mubr.f32.gmra.mrb[0].mxu0 %v237
    %v886 = vpop.f32.mrb[0].mxu0
    %v887 = vadd.f32 0.0, %v886
    %v888 = vpop.f32.mrb[0].mxu0
    %889 = vmatprep.mubr.f32.mxu0 0.0
    %890 = vmatmul.mubr.f32.gmra.mrb[0].mxu0 %v240
    %v891 = vpop.f32.mrb[0].mxu0
    %v892 = vadd.f32 0.0, %v891
    %v893 = vpop.f32.mrb[0].mxu0
    %894 = vmatprep.mubr.f32.mxu0 0.0
    %895 = vmatmul.mubr.f32.gmra.mrb[0].mxu0 %v243
    %v896 = vpop.f32.mrb[0].mxu0
    %v897 = vadd.f32 0.0, %v896
    %v898 = vpop.f32.mrb[0].mxu0
    %899 = vmatprep.mubr.f32.mxu0 0.0
    %900 = vmatmul.mubr.f32.gmra.mrb[0].mxu0 %v246
    %v901 = vpop.f32.mrb[0].mxu0
    %v902 = vadd.f32 0.0, %v901
    %v903 = vpop.f32.mrb[0].mxu0
    %904 = vmatprep.mubr.f32.mxu0 0.0
    %905 = vmatmul.mubr.f32.gmra.mrb[0].mxu0 %v249
    %v906 = vpop.f32.mrb[0].mxu0
    %v907 = vadd.f32 0.0, %v906
    %v908 = vpop.f32.mrb[0].mxu0
    %909 = vmatprep.mubr.f32.mxu0 0.0
    %910 = vmatmul.mubr.f32.gmra.mrb[0].mxu0 %v252
    %v911 = vpop.f32.mrb[0].mxu0
    %v912 = vadd.f32 0.0, %v911
    %v913 = vpop.f32.mrb[0].mxu0
    %914 = vmatprep.mubr.f32.mxu0 0.0
    %915 = vmatmul.mubr.f32.gmra.mrb[0].mxu0 %v255
    %v916 = vpop.f32.mrb[0].mxu0
    %v917 = vadd.f32 0.0, %v916
    %v918 = vpop.f32.mrb[0].mxu0
    %919 = vmatprep.mubr.f32.mxu0 0.0
    %920 = vmatmul.mubr.f32.gmra.mrb[0].mxu0 %v258
    %v921 = vpop.f32.mrb[0].mxu0
    %v922 = vadd.f32 0.0, %v921
    %v923 = vpop.f32.mrb[0].mxu0
    %924 = vmatprep.mubr.f32.mxu0 0.0
    %925 = vmatmul.mubr.f32.gmra.mrb[0].mxu0 %v261
    %v926 = vpop.f32.mrb[0].mxu0
    %v927 = vadd.f32 0.0, %v926
    %v928 = vpop.f32.mrb[0].mxu0
    %929 = vmatprep.mubr.f32.mxu0 0.0
    %930 = vmatmul.mubr.f32.gmra.mrb[0].mxu0 %v264
    %v931 = vpop.f32.mrb[0].mxu0
    %v932 = vadd.f32 0.0, %v931
    %v933 = vpop.f32.mrb[0].mxu0
    %934 = vmatprep.mubr.f32.mxu0 0.0
    %935 = vmatmul.mubr.f32.gmra.mrb[0].mxu0 %v267
    %v936 = vpop.f32.mrb[0].mxu0
    %v937 = vadd.f32 0.0, %v936
    %v938 = vpop.f32.mrb[0].mxu0
    %939 = vmatprep.mubr.f32.mxu0 0.0
    %940 = vmatmul.mubr.f32.gmra.mrb[0].mxu0 %v270
    %v941 = vpop.f32.mrb[0].mxu0
    %v942 = vadd.f32 0.0, %v941
    %v943 = vpop.f32.mrb[0].mxu0
    %944 = vmatprep.mubr.f32.mxu0 0.0
    %945 = vmatmul.mubr.f32.gmra.mrb[0].mxu0 %v273
    %v946 = vpop.f32.mrb[0].mxu0
    %v947 = vadd.f32 0.0, %v946
    %v948 = vpop.f32.mrb[0].mxu0
    %949 = vmatprep.mubr.f32.mxu0 0.0
    %950 = vmatmul.mubr.f32.gmra.mrb[0].mxu0 %v276
    %v951 = vpop.f32.mrb[0].mxu0
    %v952 = vadd.f32 0.0, %v951
    %v953 = vpop.f32.mrb[0].mxu0
    %954 = vmatprep.mubr.f32.mxu0 0.0
    %955 = vmatmul.mubr.f32.gmra.mrb[0].mxu0 %v279
    %v956 = vpop.f32.mrb[0].mxu0
    %v957 = vadd.f32 0.0, %v956
    %v958 = vpop.f32.mrb[0].mxu0
    %959 = vmatprep.mubr.f32.mxu0 0.0
    %960 = vmatmul.mubr.f32.gmra.mrb[0].mxu0 %v282
    %v961 = vpop.f32.mrb[0].mxu0
    %v962 = vadd.f32 0.0, %v961
    %v963 = vpop.f32.mrb[0].mxu0
    %964 = vmatprep.mubr.f32.mxu0 0.0
    %965 = vmatmul.mubr.f32.gmra.mrb[0].mxu0 %v285
    %v966 = vpop.f32.mrb[0].mxu0
    %v967 = vadd.f32 0.0, %v966
    %v968 = vpop.f32.mrb[0].mxu0
    %969 = vmatprep.mubr.f32.mxu0 0.0
    %970 = vmatmul.mubr.f32.gmra.mrb[0].mxu0 %v288
    %v971 = vpop.f32.mrb[0].mxu0
    %v972 = vadd.f32 0.0, %v971
    %v973 = vpop.f32.mrb[0].mxu0
    %974 = vmatprep.mubr.f32.mxu0 0.0
    %975 = vmatmul.mubr.f32.gmra.mrb[0].mxu0 %v291
    %v976 = vpop.f32.mrb[0].mxu0
    %v977 = vadd.f32 0.0, %v976
    %v978 = vpop.f32.mrb[0].mxu0
    %979 = vmatprep.mubr.f32.mxu0 0.0
    %980 = vmatmul.mubr.f32.gmra.mrb[0].mxu0 %v294
    %v981 = vpop.f32.mrb[0].mxu0
    %v982 = vadd.f32 0.0, %v981
    %v983 = vpop.f32.mrb[0].mxu0
    %984 = vmatprep.mubr.f32.mxu0 0.0
    %985 = vmatmul.mubr.f32.gmra.mrb[0].mxu0 %v297
    %v986 = vpop.f32.mrb[0].mxu0
    %v987 = vadd.f32 0.0, %v986
    %v988 = vpop.f32.mrb[0].mxu0
    %989 = vmatprep.mubr.f32.mxu0 0.0
    %990 = vmatmul.mubr.f32.gmra.mrb[0].mxu0 %v300
    %v991 = vpop.f32.mrb[0].mxu0
    %v992 = vadd.f32 0.0, %v991
    %v993 = vpop.f32.mrb[0].mxu0
    %994 = vmatprep.mubr.f32.mxu0 0.0
    %995 = vmatmul.mubr.f32.gmra.mrb[0].mxu0 %v303
    %v996 = vpop.f32.mrb[0].mxu0
    %v997 = vadd.f32 0.0, %v996
    %v998 = vpop.f32.mrb[0].mxu0
    %999 = vmatprep.mubr.f32.mxu0 0.0
    %1000 = vmatmul.mubr.f32.gmra.mrb[0].mxu0 %v306
    %v1001 = vpop.f32.mrb[0].mxu0
    %v1002 = vadd.f32 0.0, %v1001
    %v1003 = vpop.f32.mrb[0].mxu0
    %1004 = vmatprep.mubr.f32.mxu0 0.0
    %1005 = vmatmul.mubr.f32.gmra.mrb[0].mxu0 %v309
    %v1006 = vpop.f32.mrb[0].mxu0
    %v1007 = vadd.f32 0.0, %v1006
    %v1008 = vpop.f32.mrb[0].mxu0
    %1009 = vmatprep.mubr.f32.mxu0 0.0
    %1010 = vmatmul.mubr.f32.gmra.mrb[0].mxu0 %v312
    %v1011 = vpop.f32.mrb[0].mxu0
    %v1012 = vadd.f32 0.0, %v1011
    %v1013 = vpop.f32.mrb[0].mxu0
    %1014 = vmatprep.mubr.f32.mxu0 0.0
    %1015 = vmatmul.mubr.f32.gmra.mrb[0].mxu0 %v315
    %v1016 = vpop.f32.mrb[0].mxu0
    %v1017 = vadd.f32 0.0, %v1016
    %v1018 = vpop.f32.mrb[0].mxu0
    %1019 = vmatprep.mubr.f32.mxu0 0.0
    %1020 = vmatmul.mubr.f32.gmra.mrb[0].mxu0 %v318
    %v1021 = vpop.f32.mrb[0].mxu0
    %v1022 = vadd.f32 0.0, %v1021
    %v1023 = vpop.f32.mrb[0].mxu0
    %1024 = vmatprep.mubr.f32.mxu0 0.0
    %1025 = vmatmul.mubr.f32.gmra.mrb[0].mxu0 %v321
    %v1026 = vpop.f32.mrb[0].mxu0
    %v1027 = vadd.f32 0.0, %v1026
    %v1028 = vpop.f32.mrb[0].mxu0
    %1029 = vmatprep.mubr.f32.mxu0 0.0
    %1030 = vmatmul.mubr.f32.gmra.mrb[0].mxu0 %v324
    %v1031 = vpop.f32.mrb[0].mxu0
    %v1032 = vadd.f32 0.0, %v1031
    %v1033 = vpop.f32.mrb[0].mxu0
    %1034 = vmatprep.mubr.f32.mxu0 0.0
    %1035 = vmatmul.mubr.f32.gmra.mrb[0].mxu0 %v327
    %v1036 = vpop.f32.mrb[0].mxu0
    %v1037 = vadd.f32 0.0, %v1036
    %v1038 = vpop.f32.mrb[0].mxu0
    %1039 = vmatprep.mubr.f32.mxu0 0.0
    %1040 = vmatmul.mubr.f32.gmra.mrb[0].mxu0 %v330
    %v1041 = vpop.f32.mrb[0].mxu0
    %v1042 = vadd.f32 0.0, %v1041
    %v1043 = vpop.f32.mrb[0].mxu0
    %1044 = vmatprep.mubr.f32.mxu0 0.0
    %1045 = vmatmul.mubr.f32.gmra.mrb[0].mxu0 %v333
    %v1046 = vpop.f32.mrb[0].mxu0
    %v1047 = vadd.f32 0.0, %v1046
    %v1048 = vpop.f32.mrb[0].mxu0
    %1049 = vmatprep.mubr.f32.mxu0 0.0
    %1050 = vmatmul.mubr.f32.gmra.mrb[0].mxu0 %v336
    %v1051 = vpop.f32.mrb[0].mxu0
    %v1052 = vadd.f32 0.0, %v1051
    %v1053 = vpop.f32.mrb[0].mxu0
    %1054 = vmatprep.mubr.f32.mxu0 0.0
    %1055 = vmatmul.mubr.f32.gmra.mrb[0].mxu0 %v339
    %v1056 = vpop.f32.mrb[0].mxu0
    %v1057 = vadd.f32 0.0, %v1056
    %v1058 = vpop.f32.mrb[0].mxu0
    %1059 = vmatprep.mubr.f32.mxu0 0.0
    %1060 = vmatmul.mubr.f32.gmra.mrb[0].mxu0 %v342
    %v1061 = vpop.f32.mrb[0].mxu0
    %v1062 = vadd.f32 0.0, %v1061
    %v1063 = vpop.f32.mrb[0].mxu0
    %1064 = vmatprep.mubr.f32.mxu0 0.0
    %1065 = vmatmul.mubr.f32.gmra.mrb[0].mxu0 %v345
    %v1066 = vpop.f32.mrb[0].mxu0
    %v1067 = vadd.f32 0.0, %v1066
    %v1068 = vpop.f32.mrb[0].mxu0
    %1069 = vmatprep.mubr.f32.mxu0 0.0
    %1070 = vmatmul.mubr.f32.gmra.mrb[0].mxu0 %v348
    %v1071 = vpop.f32.mrb[0].mxu0
    %v1072 = vadd.f32 0.0, %v1071
    %v1073 = vpop.f32.mrb[0].mxu0
    %1074 = vmatprep.mubr.f32.mxu0 0.0
    %1075 = vmatmul.mubr.f32.gmra.mrb[0].mxu0 %v351
    %v1076 = vpop.f32.mrb[0].mxu0
    %v1077 = vadd.f32 0.0, %v1076
    %v1078 = vpop.f32.mrb[0].mxu0
    %1079 = vmatprep.mubr.f32.mxu0 0.0
    %1080 = vmatmul.mubr.f32.gmra.mrb[0].mxu0 %v354
    %v1081 = vpop.f32.mrb[0].mxu0
    %v1082 = vadd.f32 0.0, %v1081
    %v1083 = vpop.f32.mrb[0].mxu0
    %1084 = vmatprep.mubr.f32.mxu0 0.0
    %1085 = vmatmul.mubr.f32.gmra.mrb[0].mxu0 %v357
    %v1086 = vpop.f32.mrb[0].mxu0
    %v1087 = vadd.f32 0.0, %v1086
    %v1088 = vpop.f32.mrb[0].mxu0
    %1089 = vmatprep.mubr.f32.mxu0 0.0
    %1090 = vmatmul.mubr.f32.gmra.mrb[0].mxu0 %v360
    %v1091 = vpop.f32.mrb[0].mxu0
    %v1092 = vadd.f32 0.0, %v1091
    %v1093 = vpop.f32.mrb[0].mxu0
    %1094 = vmatprep.mubr.f32.mxu0 0.0
    %1095 = vmatmul.mubr.f32.gmra.mrb[0].mxu0 %v363
    %v1096 = vpop.f32.mrb[0].mxu0
    %v1097 = vadd.f32 0.0, %v1096
    %v1098 = vpop.f32.mrb[0].mxu0
    %1099 = vmatprep.mubr.f32.mxu0 0.0
    %1100 = vmatmul.mubr.f32.gmra.mrb[0].mxu0 %v366
    %v1101 = vpop.f32.mrb[0].mxu0
    %v1102 = vadd.f32 0.0, %v1101
    %v1103 = vpop.f32.mrb[0].mxu0
    %1104 = vmatprep.mubr.f32.mxu0 0.0
    %1105 = vmatmul.mubr.f32.gmra.mrb[0].mxu0 %v369
    %v1106 = vpop.f32.mrb[0].mxu0
    %v1107 = vadd.f32 0.0, %v1106
    %v1108 = vpop.f32.mrb[0].mxu0
    %1109 = vmatprep.mubr.f32.mxu0 0.0
    %1110 = vmatmul.mubr.f32.gmra.mrb[0].mxu0 %v372
    %v1111 = vpop.f32.mrb[0].mxu0
    %v1112 = vadd.f32 0.0, %v1111
    %v1113 = vpop.f32.mrb[0].mxu0
    %1114 = vmatprep.mubr.f32.mxu0 0.0
    %1115 = vmatmul.mubr.f32.gmra.mrb[0].mxu0 %v375
    %v1116 = vpop.f32.mrb[0].mxu0
    %v1117 = vadd.f32 0.0, %v1116
    %v1118 = vpop.f32.mrb[0].mxu0
    %1119 = vmatprep.mubr.f32.mxu0 0.0
    %1120 = vmatmul.mubr.f32.gmra.mrb[0].mxu0 %v378
    %v1121 = vpop.f32.mrb[0].mxu0
    %v1122 = vadd.f32 0.0, %v1121
    %v1123 = vpop.f32.mrb[0].mxu0
    %1124 = vmatprep.mubr.f32.mxu0 0.0
    %1125 = vmatmul.mubr.f32.gmra.mrb[0].mxu0 %v381
    %v1126 = vpop.f32.mrb[0].mxu0
    %v1127 = vadd.f32 0.0, %v1126
    %v1128 = vpop.f32.mrb[0].mxu0
    %1129 = vmatprep.mubr.f32.mxu0 0.0
    %1130 = vmatmul.mubr.f32.gmra.mrb[0].mxu0 %v384
    %v1131 = vpop.f32.mrb[0].mxu0
    %v1132 = vadd.f32 0.0, %v1131
    %v1133 = vpop.f32.mrb[0].mxu0
    %1134 = vmatprep.mubr.f32.mxu0 0.0
    %1135 = vmatmul.mubr.f32.gmra.mrb[0].mxu0 %v387
    %v1136 = vpop.f32.mrb[0].mxu0
    %v1137 = vadd.f32 0.0, %v1136
    %v1138 = vpop.f32.mrb[0].mxu0
    %1139 = vmatprep.mubr.f32.mxu0 0.0
    %1140 = vmatmul.mubr.f32.gmra.mrb[0].mxu0 %v390
    %v1141 = vpop.f32.mrb[0].mxu0
    %v1142 = vadd.f32 0.0, %v1141
    %v1143 = vpop.f32.mrb[0].mxu0
    %1144 = vmatprep.mubr.f32.mxu0 0.0
    %1145 = vmatmul.mubr.f32.gmra.mrb[0].mxu0 %v393
    %v1146 = vpop.f32.mrb[0].mxu0
    %v1147 = vadd.f32 0.0, %v1146
    %v1148 = vpop.f32.mrb[0].mxu0
    %1149 = vmatprep.mubr.f32.mxu0 0.0
    %1150 = vmatmul.mubr.f32.gmra.mrb[0].mxu0 %v396
    %v1151 = vpop.f32.mrb[0].mxu0
    %v1152 = vadd.f32 0.0, %v1151
    %v1153 = vpop.f32.mrb[0].mxu0
    %1154 = vmatprep.mubr.f32.mxu0 0.0
    %1155 = vmatmul.mubr.f32.gmra.mrb[0].mxu0 %v399
    %v1156 = vpop.f32.mrb[0].mxu0
    %v1157 = vadd.f32 0.0, %v1156
    %v1158 = vpop.f32.mrb[0].mxu0
    %1159 = vmatprep.mubr.f32.mxu0 0.0
    %1160 = vmatmul.mubr.f32.gmra.mrb[0].mxu0 %v402
    %v1161 = vpop.f32.mrb[0].mxu0
    %v1162 = vadd.f32 0.0, %v1161
    %v1163 = vpop.f32.mrb[0].mxu0
    %1164 = vmatprep.mubr.f32.mxu0 0.0
    %1165 = vmatmul.mubr.f32.gmra.mrb[0].mxu0 %v405
    %v1166 = vpop.f32.mrb[0].mxu0
    %v1167 = vadd.f32 0.0, %v1166
    %v1168 = vpop.f32.mrb[0].mxu0
    %1169 = vmatprep.mubr.f32.mxu0 0.0
    %1170 = vmatmul.mubr.f32.gmra.mrb[0].mxu0 %v408
    %v1171 = vpop.f32.mrb[0].mxu0
    %v1172 = vadd.f32 0.0, %v1171
    %v1173 = vpop.f32.mrb[0].mxu0
    %1174 = vmatprep.mubr.f32.mxu0 0.0
    %1175 = vmatmul.mubr.f32.gmra.mrb[0].mxu0 %v411
    %v1176 = vpop.f32.mrb[0].mxu0
    %v1177 = vadd.f32 0.0, %v1176
    %v1178 = vpop.f32.mrb[0].mxu0
    %1179 = vmatprep.mubr.f32.mxu0 0.0
    %1180 = vmatmul.mubr.f32.gmra.mrb[0].mxu0 %v414
    %v1181 = vpop.f32.mrb[0].mxu0
    %v1182 = vadd.f32 0.0, %v1181
    %v1183 = vpop.f32.mrb[0].mxu0
    %1184 = vmatprep.mubr.f32.mxu0 0.0
    %1185 = vmatmul.mubr.f32.gmra.mrb[0].mxu0 %v417
    %v1186 = vpop.f32.mrb[0].mxu0
    %v1187 = vadd.f32 0.0, %v1186
    %v1188 = vpop.f32.mrb[0].mxu0
    %1189 = vmatprep.mubr.f32.mxu0 0.0
    %1190 = vmatmul.mubr.f32.gmra.mrb[0].mxu0 %v420
    %v1191 = vpop.f32.mrb[0].mxu0
    %v1192 = vadd.f32 0.0, %v1191
    %v1193 = vpop.f32.mrb[0].mxu0
    %1194 = vmatprep.mubr.f32.mxu0 0.0
    %1195 = vmatmul.mubr.f32.gmra.mrb[0].mxu0 %v423
    %v1196 = vpop.f32.mrb[0].mxu0
    %v1197 = vadd.f32 0.0, %v1196
    %v1198 = vpop.f32.mrb[0].mxu0
    %1199 = vmatprep.mubr.f32.mxu0 0.0
    %1200 = vmatmul.mubr.f32.gmra.mrb[0].mxu0 %v426
    %v1201 = vpop.f32.mrb[0].mxu0
    %v1202 = vadd.f32 0.0, %v1201
    %v1203 = vpop.f32.mrb[0].mxu0
    %1204 = vmatprep.mubr.f32.mxu0 0.0
    %1205 = vmatmul.mubr.f32.gmra.mrb[0].mxu0 %v429
    %v1206 = vpop.f32.mrb[0].mxu0
    %v1207 = vadd.f32 0.0, %v1206
    %v1208 = vpop.f32.mrb[0].mxu0
    %1209 = vmatprep.mubr.f32.mxu0 0.0
    %1210 = vmatmul.mubr.f32.gmra.mrb[0].mxu0 %v432
    %v1211 = vpop.f32.mrb[0].mxu0
    %v1212 = vadd.f32 0.0, %v1211
    %v1213 = vpop.f32.mrb[0].mxu0
    %1214 = vmatprep.mubr.f32.mxu0 0.0
    %1215 = vmatmul.mubr.f32.gmra.mrb[0].mxu0 %v435
    %v1216 = vpop.f32.mrb[0].mxu0
    %v1217 = vadd.f32 0.0, %v1216
    %v1218 = vpop.f32.mrb[0].mxu0
    %1219 = vmatprep.mubr.f32.mxu0 0.0
    %1220 = vmatmul.mubr.f32.gmra.mrb[0].mxu0 %v438
    %v1221 = vpop.f32.mrb[0].mxu0
    %v1222 = vadd.f32 0.0, %v1221
    %v1223 = vpop.f32.mrb[0].mxu0
    %1224 = vmatprep.mubr.f32.mxu0 0.0
    %1225 = vmatmul.mubr.f32.gmra.mrb[0].mxu0 %v441
    %v1226 = vpop.f32.mrb[0].mxu0
    %v1227 = vadd.f32 0.0, %v1226
    %v1228 = vpop.f32.mrb[0].mxu0
    %1229 = vmatprep.mubr.f32.mxu0 0.0
    %1230 = vmatmul.mubr.f32.gmra.mrb[0].mxu0 %v444
    %v1231 = vpop.f32.mrb[0].mxu0
    %v1232 = vadd.f32 0.0, %v1231
    %v1233 = vpop.f32.mrb[0].mxu0
    %1234 = vmatprep.mubr.f32.mxu0 0.0
    %1235 = vmatmul.mubr.f32.gmra.mrb[0].mxu0 %v447
    %v1236 = vpop.f32.mrb[0].mxu0
    %v1237 = vadd.f32 0.0, %v1236
    %v1238 = vpop.f32.mrb[0].mxu0
    %1239 = vmatprep.mubr.f32.mxu0 0.0
    %1240 = vmatmul.mubr.f32.gmra.mrb[0].mxu0 %v450
    %v1241 = vpop.f32.mrb[0].mxu0
    %v1242 = vadd.f32 0.0, %v1241
    %v1243 = vpop.f32.mrb[0].mxu0
    %1244 = vmatprep.mubr.f32.mxu0 0.0
    %1245 = vmatmul.mubr.f32.gmra.mrb[0].mxu0 %v453
    %v1246 = vpop.f32.mrb[0].mxu0
    %v1247 = vadd.f32 0.0, %v1246
    %v1248 = vpop.f32.mrb[0].mxu0
    %1249 = vmatprep.mubr.f32.mxu0 0.0
    %1250 = vmatmul.mubr.f32.gmra.mrb[0].mxu0 %v456
    %v1251 = vpop.f32.mrb[0].mxu0
    %v1252 = vadd.f32 0.0, %v1251
    %v1253 = vpop.f32.mrb[0].mxu0
    %1254 = vmatprep.mubr.f32.mxu0 0.0
    %1255 = vmatmul.mubr.f32.gmra.mrb[0].mxu0 %v459
    %v1256 = vpop.f32.mrb[0].mxu0
    %v1257 = vadd.f32 0.0, %v1256
    %v1258 = vpop.f32.mrb[0].mxu0
    %1259 = vmatprep.mubr.f32.mxu0 0.0
    %1260 = vmatmul.mubr.f32.gmra.mrb[0].mxu0 %v462
    %v1261 = vpop.f32.mrb[0].mxu0
    %v1262 = vadd.f32 0.0, %v1261
    %v1263 = vpop.f32.mrb[0].mxu0
    %1264 = vmatprep.mubr.f32.mxu0 0.0
    %1265 = vmatmul.mubr.f32.gmra.mrb[0].mxu0 %v465
    %v1266 = vpop.f32.mrb[0].mxu0
    %v1267 = vadd.f32 0.0, %v1266
    %v1268 = vpop.f32.mrb[0].mxu0
    %1269 = vmatprep.mubr.f32.mxu0 0.0
    %1270 = vmatmul.mubr.f32.gmra.mrb[0].mxu0 %v468
    %v1271 = vpop.f32.mrb[0].mxu0
    %v1272 = vadd.f32 0.0, %v1271
    %v1273 = vpop.f32.mrb[0].mxu0
    %1274 = vmatprep.mubr.f32.mxu0 0.0
    %1275 = vmatmul.mubr.f32.gmra.mrb[0].mxu0 %v471
    %v1276 = vpop.f32.mrb[0].mxu0
    %v1277 = vadd.f32 0.0, %v1276
    %v1278 = vpop.f32.mrb[0].mxu0
    %1279 = vmatprep.mubr.f32.mxu0 0.0
    %1280 = vmatmul.mubr.f32.gmra.mrb[0].mxu0 %v474
    %v1281 = vpop.f32.mrb[0].mxu0
    %v1282 = vadd.f32 0.0, %v1281
    %v1283 = vpop.f32.mrb[0].mxu0
    %1284 = vmatprep.mubr.f32.mxu0 0.0
    %1285 = vmatmul.mubr.f32.gmra.mrb[0].mxu0 %v477
    %v1286 = vpop.f32.mrb[0].mxu0
    %v1287 = vadd.f32 0.0, %v1286
    %v1288 = vpop.f32.mrb[0].mxu0
    %1289 = vmatprep.mubr.f32.mxu0 0.0
    %1290 = vmatmul.mubr.f32.gmra.mrb[0].mxu0 %v480
    %v1291 = vpop.f32.mrb[0].mxu0
    %v1292 = vadd.f32 0.0, %v1291
    %v1293 = vpop.f32.mrb[0].mxu0
    %1294 = vmatprep.mubr.f32.mxu0 0.0
    %1295 = vmatmul.mubr.f32.gmra.mrb[0].mxu0 %v483
    %v1296 = vpop.f32.mrb[0].mxu0
    %v1297 = vadd.f32 0.0, %v1296
    %v1298 = vpop.f32.mrb[0].mxu0
    %1299 = vmatprep.mubr.f32.mxu0 0.0
    %1300 = vmatmul.mubr.f32.gmra.mrb[0].mxu0 %v486
    %v1301 = vpop.f32.mrb[0].mxu0
    %v1302 = vadd.f32 0.0, %v1301
    %v1303 = vpop.f32.mrb[0].mxu0
    %1304 = vmatprep.mubr.f32.mxu0 0.0
    %1305 = vmatmul.mubr.f32.gmra.mrb[0].mxu0 %v489
    %v1306 = vpop.f32.mrb[0].mxu0
    %v1307 = vadd.f32 0.0, %v1306
    %v1308 = vpop.f32.mrb[0].mxu0
    %1309 = vmatprep.mubr.f32.mxu0 0.0
    %1310 = vmatmul.mubr.f32.gmra.mrb[0].mxu0 %v492
    %v1311 = vpop.f32.mrb[0].mxu0
    %v1312 = vadd.f32 0.0, %v1311
    %v1313 = vpop.f32.mrb[0].mxu0
    %1314 = vmatprep.mubr.f32.mxu0 0.0
    %1315 = vmatmul.mubr.f32.gmra.mrb[0].mxu0 %v495
    %v1316 = vpop.f32.mrb[0].mxu0
    %v1317 = vadd.f32 0.0, %v1316
    %v1318 = vpop.f32.mrb[0].mxu0
    %1319 = vmatprep.mubr.f32.mxu0 0.0
    %1320 = vmatmul.mubr.f32.gmra.mrb[0].mxu0 %v498
    %v1321 = vpop.f32.mrb[0].mxu0
    %v1322 = vadd.f32 0.0, %v1321
    %v1323 = vpop.f32.mrb[0].mxu0
    %1324 = vmatprep.mubr.f32.mxu0 0.0
    %1325 = vmatmul.mubr.f32.gmra.mrb[0].mxu0 %v501
    %v1326 = vpop.f32.mrb[0].mxu0
    %v1327 = vadd.f32 0.0, %v1326
    %v1328 = vpop.f32.mrb[0].mxu0
    %1329 = vmatprep.mubr.f32.mxu0 0.0
    %1330 = vmatmul.mubr.f32.gmra.mrb[0].mxu0 %v504
    %v1331 = vpop.f32.mrb[0].mxu0
    %v1332 = vadd.f32 0.0, %v1331
    %v1333 = vpop.f32.mrb[0].mxu0
    %1334 = vmatprep.mubr.f32.mxu0 0.0
    %1335 = vmatmul.mubr.f32.gmra.mrb[0].mxu0 %v507
    %v1336 = vpop.f32.mrb[0].mxu0
    %v1337 = vadd.f32 0.0, %v1336
    %v1338 = vpop.f32.mrb[0].mxu0
    %1339 = vmatprep.mubr.f32.mxu0 0.0
    %1340 = vmatmul.mubr.f32.gmra.mrb[0].mxu0 %v510
    %v1341 = vpop.f32.mrb[0].mxu0
    %v1342 = vadd.f32 0.0, %v1341
    %v1343 = vpop.f32.mrb[0].mxu0
    %1344 = vmatprep.mubr.f32.mxu0 0.0
    %1345 = vmatmul.mubr.f32.gmra.mrb[0].mxu0 %v513
    %v1346 = vpop.f32.mrb[0].mxu0
    %v1347 = vadd.f32 0.0, %v1346
    %v1348 = vpop.f32.mrb[0].mxu0
    %1349 = vmatprep.mubr.f32.mxu0 0.0
    %1350 = vmatmul.mubr.f32.gmra.mrb[0].mxu0 %v516
    %v1351 = vpop.f32.mrb[0].mxu0
    %v1352 = vadd.f32 0.0, %v1351
    %v1353 = vpop.f32.mrb[0].mxu0
    %1354 = vmatprep.mubr.f32.mxu0 0.0
    %1355 = vmatmul.mubr.f32.gmra.mrb[0].mxu0 %v519
    %v1356 = vpop.f32.mrb[0].mxu0
    %v1357 = vadd.f32 0.0, %v1356
    %v1358 = vpop.f32.mrb[0].mxu0
    %1359 = vmatprep.mubr.f32.mxu0 0.0
    %1360 = vmatmul.mubr.f32.gmra.mrb[0].mxu0 %v522
    %v1361 = vpop.f32.mrb[0].mxu0
    %v1362 = vadd.f32 0.0, %v1361
    %v1363 = vpop.f32.mrb[0].mxu0
    %1364 = vmatprep.mubr.f32.mxu0 0.0
    %1365 = vmatmul.mubr.f32.gmra.mrb[0].mxu0 %v525
    %v1366 = vpop.f32.mrb[0].mxu0
    %v1367 = vadd.f32 0.0, %v1366
    %v1368 = vpop.f32.mrb[0].mxu0
    %1369 = vmatprep.mubr.f32.mxu0 0.0
    %1370 = vmatmul.mubr.f32.gmra.mrb[0].mxu0 %v528
    %v1371 = vpop.f32.mrb[0].mxu0
    %v1372 = vadd.f32 0.0, %v1371
    %v1373 = vpop.f32.mrb[0].mxu0
    %1374 = vmatprep.mubr.f32.mxu0 0.0
    %1375 = vmatmul.mubr.f32.gmra.mrb[0].mxu0 %v531
    %v1376 = vpop.f32.mrb[0].mxu0
    %v1377 = vadd.f32 0.0, %v1376
    %v1378 = vpop.f32.mrb[0].mxu0
    %1379 = vmatprep.mubr.f32.mxu0 0.0
    %1380 = vmatmul.mubr.f32.gmra.mrb[0].mxu0 %v534
    %v1381 = vpop.f32.mrb[0].mxu0
    %v1382 = vadd.f32 0.0, %v1381
    %v1383 = vpop.f32.mrb[0].mxu0
    %1384 = vmatprep.mubr.f32.mxu0 0.0
    %1385 = vmatmul.mubr.f32.gmra.mrb[0].mxu0 %v537
    %v1386 = vpop.f32.mrb[0].mxu0
    %v1387 = vadd.f32 0.0, %v1386
    %v1388 = vpop.f32.mrb[0].mxu0
    %1389 = vmatprep.mubr.f32.mxu0 0.0
    %1390 = vmatmul.mubr.f32.gmra.mrb[0].mxu0 %v540
    %v1391 = vpop.f32.mrb[0].mxu0
    %v1392 = vadd.f32 0.0, %v1391
    %v1393 = vpop.f32.mrb[0].mxu0
    %1394 = vmatprep.mubr.f32.mxu0 0.0
    %1395 = vmatmul.mubr.f32.gmra.mrb[0].mxu0 %v543
    %v1396 = vpop.f32.mrb[0].mxu0
    %v1397 = vadd.f32 0.0, %v1396
    %v1398 = vpop.f32.mrb[0].mxu0
    %1399 = vmatprep.mubr.f32.mxu0 0.0
    %1400 = vmatmul.mubr.f32.gmra.mrb[0].mxu0 %v546
    %v1401 = vpop.f32.mrb[0].mxu0
    %v1402 = vadd.f32 0.0, %v1401
    %v1403 = vpop.f32.mrb[0].mxu0
    %1404 = vmatprep.mubr.f32.mxu0 0.0
    %1405 = vmatmul.mubr.f32.gmra.mrb[0].mxu0 %v549
    %v1406 = vpop.f32.mrb[0].mxu0
    %v1407 = vadd.f32 0.0, %v1406
    %v1408 = vpop.f32.mrb[0].mxu0
    %1409 = vmatprep.mubr.f32.mxu0 0.0
    %1410 = vmatmul.mubr.f32.gmra.mrb[0].mxu0 %v552
    %v1411 = vpop.f32.mrb[0].mxu0
    %v1412 = vadd.f32 0.0, %v1411
    %v1413 = vpop.f32.mrb[0].mxu0
    %1414 = vmatprep.mubr.f32.mxu0 0.0
    %1415 = vmatmul.mubr.f32.gmra.mrb[0].mxu0 %v555
    %v1416 = vpop.f32.mrb[0].mxu0
    %v1417 = vadd.f32 0.0, %v1416
    %v1418 = vpop.f32.mrb[0].mxu0
    %1419 = vmatprep.mubr.f32.mxu0 0.0
    %1420 = vmatmul.mubr.f32.gmra.mrb[0].mxu0 %v558
    %v1421 = vpop.f32.mrb[0].mxu0
    %v1422 = vadd.f32 0.0, %v1421
    %v1423 = vpop.f32.mrb[0].mxu0
    %1424 = vmatprep.mubr.f32.mxu0 0.0
    %1425 = vmatmul.mubr.f32.gmra.mrb[0].mxu0 %v561
    %v1426 = vpop.f32.mrb[0].mxu0
    %v1427 = vadd.f32 0.0, %v1426
    %v1428 = vpop.f32.mrb[0].mxu0
    %1429 = vmatprep.mubr.f32.mxu0 0.0
    %1430 = vmatmul.mubr.f32.gmra.mrb[0].mxu0 %v564
    %v1431 = vpop.f32.mrb[0].mxu0
    %v1432 = vadd.f32 0.0, %v1431
    %v1433 = vpop.f32.mrb[0].mxu0
    %1434 = vmatprep.mubr.f32.mxu0 0.0
    %1435 = vmatmul.mubr.f32.gmra.mrb[0].mxu0 %v567
    %v1436 = vpop.f32.mrb[0].mxu0
    %v1437 = vadd.f32 0.0, %v1436
    %v1438 = vpop.f32.mrb[0].mxu0
    %1439 = vmatprep.mubr.f32.mxu0 0.0
    %1440 = vmatmul.mubr.f32.gmra.mrb[0].mxu0 %v570
    %v1441 = vpop.f32.mrb[0].mxu0
    %v1442 = vadd.f32 0.0, %v1441
    %v1443 = vpop.f32.mrb[0].mxu0
    %1444 = vmatprep.mubr.f32.mxu0 0.0
    %1445 = vmatmul.mubr.f32.gmra.mrb[0].mxu0 %v573
    %v1446 = vpop.f32.mrb[0].mxu0
    %v1447 = vadd.f32 0.0, %v1446
    %v1448 = vpop.f32.mrb[0].mxu0
    %1449 = vmatprep.mubr.f32.mxu0 0.0
    %1450 = vmatmul.mubr.f32.gmra.mrb[0].mxu0 %v576
    %v1451 = vpop.f32.mrb[0].mxu0
    %v1452 = vadd.f32 0.0, %v1451
    %v1453 = vpop.f32.mrb[0].mxu0
    %1454 = vmatprep.mubr.f32.mxu0 0.0
    %1455 = vmatmul.mubr.f32.gmra.mrb[0].mxu0 %v579
    %v1456 = vpop.f32.mrb[0].mxu0
    %v1457 = vadd.f32 0.0, %v1456
    %v1458 = vpop.f32.mrb[0].mxu0
    %1459 = vmatprep.mubr.f32.mxu0 0.0
    %1460 = vmatmul.mubr.f32.gmra.mrb[0].mxu0 %v582
    %v1461 = vpop.f32.mrb[0].mxu0
    %v1462 = vadd.f32 0.0, %v1461
    %v1463 = vpop.f32.mrb[0].mxu0
    %1464 = vmatprep.mubr.f32.mxu0 0.0
    %1465 = vmatmul.mubr.f32.gmra.mrb[0].mxu0 %v585
    %v1466 = vpop.f32.mrb[0].mxu0
    %v1467 = vadd.f32 0.0, %v1466
    %v1468 = vpop.f32.mrb[0].mxu0
    %1469 = vmatprep.mubr.f32.mxu0 0.0
    %1470 = vmatmul.mubr.f32.gmra.mrb[0].mxu0 %v588
    %v1471 = vpop.f32.mrb[0].mxu0
    %v1472 = vadd.f32 0.0, %v1471
    %v1473 = vpop.f32.mrb[0].mxu0
    %1474 = vmatprep.mubr.f32.mxu0 0.0
    %1475 = vmatmul.mubr.f32.gmra.mrb[0].mxu0 %v591
    %v1476 = vpop.f32.mrb[0].mxu0
    %v1477 = vadd.f32 0.0, %v1476
    %v1478 = vpop.f32.mrb[0].mxu0
    %1479 = vmatprep.mubr.f32.mxu0 0.0
    %1480 = vmatmul.mubr.f32.gmra.mrb[0].mxu0 %v594
    %v1481 = vpop.f32.mrb[0].mxu0
    %v1482 = vadd.f32 0.0, %v1481
    %v1483 = vpop.f32.mrb[0].mxu0
    %1484 = vmatprep.mubr.f32.mxu0 0.0
    %1485 = vmatmul.mubr.f32.gmra.mrb[0].mxu0 %v597
    %v1486 = vpop.f32.mrb[0].mxu0
    %v1487 = vadd.f32 0.0, %v1486
    %v1488 = vpop.f32.mrb[0].mxu0
    %1489 = vmatprep.mubr.f32.mxu0 0.0
    %1490 = vmatmul.mubr.f32.gmra.mrb[0].mxu0 %v600
    %v1491 = vpop.f32.mrb[0].mxu0
    %v1492 = vadd.f32 0.0, %v1491
    %v1493 = vpop.f32.mrb[0].mxu0
    %1494 = vmatprep.mubr.f32.mxu0 0.0
    %1495 = vmatmul.mubr.f32.gmra.mrb[0].mxu0 %v603
    %v1496 = vpop.f32.mrb[0].mxu0
    %v1497 = vadd.f32 0.0, %v1496
    %v1498 = vpop.f32.mrb[0].mxu0
    %1499 = vmatprep.mubr.f32.mxu0 0.0
    %1500 = vmatmul.mubr.f32.gmra.mrb[0].mxu0 %v606
    %v1501 = vpop.f32.mrb[0].mxu0
    %v1502 = vadd.f32 0.0, %v1501
    %v1503 = vpop.f32.mrb[0].mxu0
    %1504 = vmatprep.mubr.f32.mxu0 0.0
    %1505 = vmatmul.mubr.f32.gmra.mrb[0].mxu0 %v609
    %v1506 = vpop.f32.mrb[0].mxu0
    %v1507 = vadd.f32 0.0, %v1506
    %v1508 = vpop.f32.mrb[0].mxu0
    %1509 = vmatprep.mubr.f32.mxu0 0.0
    %1510 = vmatmul.mubr.f32.gmra.mrb[0].mxu0 %v612
    %v1511 = vpop.f32.mrb[0].mxu0
    %v1512 = vadd.f32 0.0, %v1511
    %v1513 = vpop.f32.mrb[0].mxu0
    %1514 = vmatprep.mubr.f32.mxu0 0.0
    %1515 = vmatmul.mubr.f32.gmra.mrb[0].mxu0 %v615
    %v1516 = vpop.f32.mrb[0].mxu0
    %v1517 = vadd.f32 0.0, %v1516
    %v1518 = vpop.f32.mrb[0].mxu0
    %1519 = vmatprep.mubr.f32.mxu0 0.0
    %1520 = vmatmul.mubr.f32.gmra.mrb[0].mxu0 %v618
    %v1521 = vpop.f32.mrb[0].mxu0
    %v1522 = vadd.f32 0.0, %v1521
    %v1523 = vpop.f32.mrb[0].mxu0
    %1524 = vmatprep.mubr.f32.mxu0 0.0
    %1525 = vmatmul.mubr.f32.gmra.mrb[0].mxu0 %v621
    %v1526 = vpop.f32.mrb[0].mxu0
    %v1527 = vadd.f32 0.0, %v1526
    %v1528 = vpop.f32.mrb[0].mxu0
    %1529 = vmatprep.mubr.f32.mxu0 0.0
    %1530 = vmatmul.mubr.f32.gmra.mrb[0].mxu0 %v624
    %v1531 = vpop.f32.mrb[0].mxu0
    %v1532 = vadd.f32 0.0, %v1531
    %v1533 = vpop.f32.mrb[0].mxu0
    %1534 = vmatprep.mubr.f32.mxu0 0.0
    %1535 = vmatmul.mubr.f32.gmra.mrb[0].mxu0 %v627
    %v1536 = vpop.f32.mrb[0].mxu0
    %v1537 = vadd.f32 0.0, %v1536
    %v1538 = vpop.f32.mrb[0].mxu0
    %1539 = vmatprep.mubr.f32.mxu0 0.0
    %1540 = vmatmul.mubr.f32.gmra.mrb[0].mxu0 %v630
    %v1541 = vpop.f32.mrb[0].mxu0
    %v1542 = vadd.f32 0.0, %v1541
    %v1543 = vpop.f32.mrb[0].mxu0
    %1544 = vmatprep.mubr.f32.mxu0 0.0
    %1545 = vmatmul.mubr.f32.gmra.mrb[0].mxu0 %v633
    %v1546 = vpop.f32.mrb[0].mxu0
    %v1547 = vadd.f32 0.0, %v1546
    %v1548 = vpop.f32.mrb[0].mxu0
    %1549 = vmatprep.mubr.f32.mxu0 0.0
    %1550 = vmatmul.mubr.f32.gmra.mrb[0].mxu0 %v636
    %v1551 = vpop.f32.mrb[0].mxu0
    %v1552 = vadd.f32 0.0, %v1551
    %v1553 = vpop.f32.mrb[0].mxu0
    %1554 = vmatprep.mubr.f32.mxu0 0.0
    %1555 = vmatmul.mubr.f32.gmra.mrb[0].mxu0 %v639
    %v1556 = vpop.f32.mrb[0].mxu0
    %v1557 = vadd.f32 0.0, %v1556
    %v1558 = vpop.f32.mrb[0].mxu0
    %1559 = vmatprep.mubr.f32.mxu0 0.0
    %1560 = vmatmul.mubr.f32.gmra.mrb[0].mxu0 %v642
    %v1561 = vpop.f32.mrb[0].mxu0
    %v1562 = vadd.f32 0.0, %v1561
    %v1563 = vpop.f32.mrb[0].mxu0
    %1564 = vmatprep.mubr.f32.mxu0 0.0
    %1565 = vmatmul.mubr.f32.gmra.mrb[0].mxu0 %v645
    %v1566 = vpop.f32.mrb[0].mxu0
    %v1567 = vadd.f32 0.0, %v1566
    %v1568 = vpop.f32.mrb[0].mxu0
    %1569 = vmatprep.mubr.f32.mxu0 0.0
    %1570 = vmatmul.mubr.f32.gmra.mrb[0].mxu0 %v648
    %v1571 = vpop.f32.mrb[0].mxu0
    %v1572 = vadd.f32 0.0, %v1571
    %v1573 = vpop.f32.mrb[0].mxu0
    %1574 = vmatprep.mubr.f32.mxu0 0.0
    %1575 = vmatmul.mubr.f32.gmra.mrb[0].mxu0 %v651
    %v1576 = vpop.f32.mrb[0].mxu0
    %v1577 = vadd.f32 0.0, %v1576
    %v1578 = vpop.f32.mrb[0].mxu0
    %1579 = vmatprep.mubr.f32.mxu0 0.0
    %1580 = vmatmul.mubr.f32.gmra.mrb[0].mxu0 %v654
    %v1581 = vpop.f32.mrb[0].mxu0
    %v1582 = vadd.f32 0.0, %v1581
    %v1583 = vpop.f32.mrb[0].mxu0
    %1584 = vmatprep.mubr.f32.mxu0 0.0
    %1585 = vmatmul.mubr.f32.gmra.mrb[0].mxu0 %v657
    %v1586 = vpop.f32.mrb[0].mxu0
    %v1587 = vadd.f32 0.0, %v1586
    %v1588 = vpop.f32.mrb[0].mxu0
    %1589 = vmatprep.mubr.f32.mxu0 0.0
    %1590 = vmatmul.mubr.f32.gmra.mrb[0].mxu0 %v660
    %v1591 = vpop.f32.mrb[0].mxu0
    %v1592 = vadd.f32 0.0, %v1591
    %v1593 = vpop.f32.mrb[0].mxu0
    %1594 = vmatprep.mubr.f32.mxu0 0.0
    %1595 = vmatmul.mubr.f32.gmra.mrb[0].mxu0 %v663
    %v1596 = vpop.f32.mrb[0].mxu0
    %v1597 = vadd.f32 0.0, %v1596
    %v1598 = vpop.f32.mrb[0].mxu0
    %1599 = vmatprep.mubr.f32.mxu0 0.0
    %1600 = vmatmul.mubr.f32.gmra.mrb[0].mxu0 %v666
    %v1601 = vpop.f32.mrb[0].mxu0
    %v1602 = vadd.f32 0.0, %v1601
    %v1603 = vpop.f32.mrb[0].mxu0
    %1604 = vmatprep.mubr.f32.mxu0 0.0
    %1605 = vmatmul.mubr.f32.gmra.mrb[0].mxu0 %v669
    %v1606 = vpop.f32.mrb[0].mxu0
    %v1607 = vadd.f32 0.0, %v1606
    %v1608 = vpop.f32.mrb[0].mxu0
    %1609 = vmatprep.mubr.f32.mxu0 0.0
    %1610 = vmatmul.mubr.f32.gmra.mrb[0].mxu0 %v672
    %v1611 = vpop.f32.mrb[0].mxu0
    %v1612 = vadd.f32 0.0, %v1611
    %v1613 = vpop.f32.mrb[0].mxu0
    %1614 = vmatprep.mubr.f32.mxu0 0.0
    %1615 = vmatmul.mubr.f32.gmra.mrb[0].mxu0 %v675
    %v1616 = vpop.f32.mrb[0].mxu0
    %v1617 = vadd.f32 0.0, %v1616
    %v1618 = vpop.f32.mrb[0].mxu0
    %1619 = vmatprep.mubr.f32.mxu0 0.0
    %1620 = vmatmul.mubr.f32.gmra.mrb[0].mxu0 %v678
    %v1621 = vpop.f32.mrb[0].mxu0
    %v1622 = vadd.f32 0.0, %v1621
    %v1623 = vpop.f32.mrb[0].mxu0
    %1624 = vmatprep.mubr.f32.mxu0 0.0
    %1625 = vmatmul.mubr.f32.gmra.mrb[0].mxu0 %v681
    %v1626 = vpop.f32.mrb[0].mxu0
    %v1627 = vadd.f32 0.0, %v1626
    %v1628 = vpop.f32.mrb[0].mxu0
    %1629 = vmatprep.mubr.f32.mxu0 0.0
    %1630 = vmatmul.mubr.f32.gmra.mrb[0].mxu0 %v684
    %v1631 = vpop.f32.mrb[0].mxu0
    %v1632 = vadd.f32 0.0, %v1631
    %v1633 = vpop.f32.mrb[0].mxu0
    %1634 = vmatprep.mubr.f32.mxu0 0.0
    %1635 = vmatmul.mubr.f32.gmra.mrb[0].mxu0 %v687
    %v1636 = vpop.f32.mrb[0].mxu0
    %v1637 = vadd.f32 0.0, %v1636
    %v1638 = vpop.f32.mrb[0].mxu0
    %1639 = vmatprep.mubr.f32.mxu0 0.0
    %1640 = vmatmul.mubr.f32.gmra.mrb[0].mxu0 %v690
    %v1641 = vpop.f32.mrb[0].mxu0
    %v1642 = vadd.f32 0.0, %v1641
    %v1643 = vpop.f32.mrb[0].mxu0
    %1644 = vmatprep.mubr.f32.mxu0 0.0
    %1645 = vmatmul.mubr.f32.gmra.mrb[0].mxu0 %v693
    %v1646 = vpop.f32.mrb[0].mxu0
    %v1647 = vadd.f32 0.0, %v1646
    %v1648 = vpop.f32.mrb[0].mxu0
    %1649 = vmatprep.mubr.f32.mxu0 0.0
    %1650 = vmatmul.mubr.f32.gmra.mrb[0].mxu0 %v696
    %v1651 = vpop.f32.mrb[0].mxu0
    %v1652 = vadd.f32 0.0, %v1651
    %v1653 = vpop.f32.mrb[0].mxu0
    %1654 = vmatprep.mubr.f32.mxu0 0.0
    %1655 = vmatmul.mubr.f32.gmra.mrb[0].mxu0 %v699
    %v1656 = vpop.f32.mrb[0].mxu0
    %v1657 = vadd.f32 0.0, %v1656
    %v1658 = vpop.f32.mrb[0].mxu0
    %1659 = vmatprep.mubr.f32.mxu0 0.0
    %1660 = vmatmul.mubr.f32.gmra.mrb[0].mxu0 %v702
    %v1661 = vpop.f32.mrb[0].mxu0
    %v1662 = vadd.f32 0.0, %v1661
    %v1663 = vpop.f32.mrb[0].mxu0
    %1664 = vmatprep.mubr.f32.mxu0 0.0
    %1665 = vmatmul.mubr.f32.gmra.mrb[0].mxu0 %v705
    %v1666 = vpop.f32.mrb[0].mxu0
    %v1667 = vadd.f32 0.0, %v1666
    %v1668 = vpop.f32.mrb[0].mxu0
    %1669 = vmatprep.mubr.f32.mxu0 0.0
    %1670 = vmatmul.mubr.f32.gmra.mrb[0].mxu0 %v708
    %v1671 = vpop.f32.mrb[0].mxu0
    %v1672 = vadd.f32 0.0, %v1671
    %v1673 = vpop.f32.mrb[0].mxu0
    %1674 = vmatprep.mubr.f32.mxu0 0.0
    %1675 = vmatmul.mubr.f32.gmra.mrb[0].mxu0 %v711
    %v1676 = vpop.f32.mrb[0].mxu0
    %v1677 = vadd.f32 0.0, %v1676
    %v1678 = vpop.f32.mrb[0].mxu0
    %1679 = vmatprep.mubr.f32.mxu0 0.0
    %1680 = vmatmul.mubr.f32.gmra.mrb[0].mxu0 %v714
    %v1681 = vpop.f32.mrb[0].mxu0
    %v1682 = vadd.f32 0.0, %v1681
    %v1683 = vpop.f32.mrb[0].mxu0
    %1684 = vmatprep.mubr.f32.mxu0 0.0
    %1685 = vmatmul.mubr.f32.gmra.mrb[0].mxu0 %v717
    %v1686 = vpop.f32.mrb[0].mxu0
    %v1687 = vadd.f32 0.0, %v1686
    %v1688 = vpop.f32.mrb[0].mxu0
    %1689 = vmatprep.mubr.f32.mxu0 0.0
    %1690 = vmatmul.mubr.f32.gmra.mrb[0].mxu0 %v720
    %v1691 = vpop.f32.mrb[0].mxu0
    %v1692 = vadd.f32 0.0, %v1691
    %v1693 = vpop.f32.mrb[0].mxu0
    %1694 = vmatprep.mubr.f32.mxu0 0.0
    %1695 = vmatmul.mubr.f32.gmra.mrb[0].mxu0 %v723
    %v1696 = vpop.f32.mrb[0].mxu0
    %v1697 = vadd.f32 0.0, %v1696
    %v1698 = vpop.f32.mrb[0].mxu0
    %1699 = vmatprep.mubr.f32.mxu0 0.0
    %1700 = vmatmul.mubr.f32.gmra.mrb[0].mxu0 %v726
    %v1701 = vpop.f32.mrb[0].mxu0
    %v1702 = vadd.f32 0.0, %v1701
    %v1703 = vpop.f32.mrb[0].mxu0
    %1704 = vmatprep.mubr.f32.mxu0 0.0
    %1705 = vmatmul.mubr.f32.gmra.mrb[0].mxu0 %v729
    %v1706 = vpop.f32.mrb[0].mxu0
    %v1707 = vadd.f32 0.0, %v1706
    %v1708 = vpop.f32.mrb[0].mxu0
    %1709 = vmatprep.mubr.f32.mxu0 0.0
    %1710 = vmatmul.mubr.f32.gmra.mrb[0].mxu0 %v732
    %v1711 = vpop.f32.mrb[0].mxu0
    %v1712 = vadd.f32 0.0, %v1711
    %v1713 = vpop.f32.mrb[0].mxu0
    %1714 = vmatprep.mubr.f32.mxu0 0.0
    %1715 = vmatmul.mubr.f32.gmra.mrb[0].mxu0 %v735
    %v1716 = vpop.f32.mrb[0].mxu0
    %v1717 = vadd.f32 0.0, %v1716
    %v1718 = vpop.f32.mrb[0].mxu0
    %1719 = vmatprep.mubr.f32.mxu0 0.0
    %1720 = vmatmul.mubr.f32.gmra.mrb[0].mxu0 %v738
    %v1721 = vpop.f32.mrb[0].mxu0
    %v1722 = vadd.f32 0.0, %v1721
    %v1723 = vpop.f32.mrb[0].mxu0
    %1724 = vmatprep.mubr.f32.mxu0 0.0
    %1725 = vmatmul.mubr.f32.gmra.mrb[0].mxu0 %v741
    %v1726 = vpop.f32.mrb[0].mxu0
    %v1727 = vadd.f32 0.0, %v1726
    %v1728 = vpop.f32.mrb[0].mxu0
    %1729 = vmatprep.mubr.f32.mxu0 0.0
    %1730 = vmatmul.mubr.f32.gmra.mrb[0].mxu0 %v744
    %v1731 = vpop.f32.mrb[0].mxu0
    %v1732 = vadd.f32 0.0, %v1731
    %v1733 = vpop.f32.mrb[0].mxu0
    %1734 = vmatprep.mubr.f32.mxu0 0.0
    %1735 = vmatmul.mubr.f32.gmra.mrb[0].mxu0 %v747
    %v1736 = vpop.f32.mrb[0].mxu0
    %v1737 = vadd.f32 0.0, %v1736
    %v1738 = vpop.f32.mrb[0].mxu0
    %1739 = vmatprep.mubr.f32.mxu0 0.0
    %1740 = vmatmul.mubr.f32.gmra.mrb[0].mxu0 %v750
    %v1741 = vpop.f32.mrb[0].mxu0
    %v1742 = vadd.f32 0.0, %v1741
    %v1743 = vpop.f32.mrb[0].mxu0
    %1744 = vmatprep.mubr.f32.mxu0 0.0
    %1745 = vmatmul.mubr.f32.gmra.mrb[0].mxu0 %v753
    %v1746 = vpop.f32.mrb[0].mxu0
    %v1747 = vadd.f32 0.0, %v1746
    %v1748 = vpop.f32.mrb[0].mxu0
    %1749 = vmatprep.mubr.f32.mxu0 0.0
    %1750 = vmatmul.mubr.f32.gmra.mrb[0].mxu0 %v756
    %v1751 = vpop.f32.mrb[0].mxu0
    %v1752 = vadd.f32 0.0, %v1751
    %v1753 = vpop.f32.mrb[0].mxu0
    %1754 = vmatprep.mubr.f32.mxu0 0.0
    %1755 = vmatmul.mubr.f32.gmra.mrb[0].mxu0 %v759
    %v1756 = vpop.f32.mrb[0].mxu0
    %v1757 = vadd.f32 0.0, %v1756
    %v1758 = vpop.f32.mrb[0].mxu0
    %1759 = vmatprep.mubr.f32.mxu0 0.0
    %1760 = vmatmul.mubr.f32.gmra.mrb[0].mxu0 %v762
    %v1761 = vpop.f32.mrb[0].mxu0
    %v1762 = vadd.f32 0.0, %v1761
    %v1763 = vpop.f32.mrb[0].mxu0
    %1764 = vmatprep.mubr.f32.mxu0 0.0
    %1765 = vmatmul.mubr.f32.gmra.mrb[0].mxu0 %v765
    %v1766 = vpop.f32.mrb[0].mxu0
    %v1767 = vadd.f32 0.0, %v1766
    %v1768 = vpop.f32.mrb[0].mxu0
    %1769 = vmatprep.mubr.f32.mxu0 0.0
    %1770 = vmatmul.mubr.f32.gmra.mrb[0].mxu0 %v768
    %v1771 = vpop.f32.mrb[0].mxu0
    %v1772 = vadd.f32 0.0, %v1771
    %v1773 = vpop.f32.mrb[0].mxu0
    %1774 = vmatprep.mubr.f32.mxu0 0.0
    %1775 = vmatmul.mubr.f32.gmra.mrb[0].mxu0 %v771
    %v1776 = vpop.f32.mrb[0].mxu0
    %v1777 = vadd.f32 0.0, %v1776
    %v1778 = vpop.f32.mrb[0].mxu0
    %1779 = vmatprep.mubr.f32.mxu0 0.0
    %1780 = vmatmul.mubr.f32.gmra.mrb[0].mxu0 %v774
    %v1781 = vpop.f32.mrb[0].mxu0
    %v1782 = vadd.f32 0.0, %v1781
    %v1783 = vpop.f32.mrb[0].mxu0
    %1784 = vmatprep.mubr.f32.mxu0 0.0
    %1785 = vmatmul.mubr.f32.gmra.mrb[0].mxu0 %v777
    %v1786 = vpop.f32.mrb[0].mxu0
    %v1787 = vadd.f32 0.0, %v1786
    %v1788 = vpop.f32.mrb[0].mxu0
    %1789 = vmatprep.mubr.f32.mxu0 0.0
    %1790 = vmatmul.mubr.f32.gmra.mrb[0].mxu0 %v780
    %v1791 = vpop.f32.mrb[0].mxu0
    %v1792 = vadd.f32 0.0, %v1791
    %v1793 = vpop.f32.mrb[0].mxu0
    %1794 = vmatprep.mubr.f32.mxu0 0.0
    %1795 = vmatmul.mubr.f32.gmra.mrb[0].mxu0 %v783
    %v1796 = vpop.f32.mrb[0].mxu0
    %v1797 = vadd.f32 0.0, %v1796
    %v1798 = vpop.f32.mrb[0].mxu0
    %1799 = vmatprep.mubr.f32.mxu0 0.0
    %1800 = vmatmul.mubr.f32.gmra.mrb[0].mxu0 %v786
    %v1801 = vpop.f32.mrb[0].mxu0
    %v1802 = vadd.f32 0.0, %v1801
    %v1803 = vpop.f32.mrb[0].mxu0
    %1804 = vmatprep.mubr.f32.mxu0 0.0
    %1805 = vmatmul.mubr.f32.gmra.mrb[0].mxu0 %v789
    %v1806 = vpop.f32.mrb[0].mxu0
    %v1807 = vadd.f32 0.0, %v1806
    %v1808 = vpop.f32.mrb[0].mxu0
    %1809 = vmatprep.mubr.f32.mxu0 0.0
    %1810 = vmatmul.mubr.f32.gmra.mrb[0].mxu0 %v792
    %v1811 = vpop.f32.mrb[0].mxu0
    %v1812 = vadd.f32 0.0, %v1811
    %v1813 = vpop.f32.mrb[0].mxu0
    %1814 = vmatprep.mubr.f32.mxu0 0.0
    %1815 = vmatmul.mubr.f32.gmra.mrb[0].mxu0 %v795
    %v1816 = vpop.f32.mrb[0].mxu0
    %v1817 = vadd.f32 0.0, %v1816
    %v1818 = vpop.f32.mrb[0].mxu0
    %1819 = vmatprep.mubr.f32.mxu0 0.0
    %1820 = vmatmul.mubr.f32.gmra.mrb[0].mxu0 %v798
    %v1821 = vpop.f32.mrb[0].mxu0
    %v1822 = vadd.f32 0.0, %v1821
    %v1823 = vpop.f32.mrb[0].mxu0
    %1824 = vmatprep.mubr.f32.mxu0 0.0
    %1825 = vmatmul.mubr.f32.gmra.mrb[0].mxu0 %v801
    %v1826 = vpop.f32.mrb[0].mxu0
    %v1827 = vadd.f32 0.0, %v1826
    %v1828 = vpop.f32.mrb[0].mxu0
    %1829 = vmatprep.mubr.f32.mxu0 0.0
    %1830 = vmatmul.mubr.f32.gmra.mrb[0].mxu0 %v804
    %v1831 = vpop.f32.mrb[0].mxu0
    %v1832 = vadd.f32 0.0, %v1831
    %v1833 = vpop.f32.mrb[0].mxu0
    %1834 = vdwg.mxu0
    %v1835 = vmax.f32 %v877, %v1117
    %v1836 = vmax.f32 %v1835, %v1357
    %v1837 = vmax.f32 %v1836, %v1597
    %v1838 = vmax.f32 %v882, %v1122
    %v1839 = vmax.f32 %v1838, %v1362
    %v1840 = vmax.f32 %v1839, %v1602
    %v1841 = vmax.f32 %v887, %v1127
    %v1842 = vmax.f32 %v1841, %v1367
    %v1843 = vmax.f32 %v1842, %v1607
    %v1844 = vmax.f32 %v892, %v1132
    %v1845 = vmax.f32 %v1844, %v1372
    %v1846 = vmax.f32 %v1845, %v1612
    %v1847 = vmax.f32 %v897, %v1137
    %v1848 = vmax.f32 %v1847, %v1377
    %v1849 = vmax.f32 %v1848, %v1617
    %v1850 = vmax.f32 %v902, %v1142
    %v1851 = vmax.f32 %v1850, %v1382
    %v1852 = vmax.f32 %v1851, %v1622
    %v1853 = vmax.f32 %v907, %v1147
    %v1854 = vmax.f32 %v1853, %v1387
    %v1855 = vmax.f32 %v1854, %v1627
    %v1856 = vmax.f32 %v912, %v1152
    %v1857 = vmax.f32 %v1856, %v1392
    %v1858 = vmax.f32 %v1857, %v1632
    %v1859 = vmax.f32 %v917, %v1157
    %v1860 = vmax.f32 %v1859, %v1397
    %v1861 = vmax.f32 %v1860, %v1637
    %v1862 = vmax.f32 %v922, %v1162
    %v1863 = vmax.f32 %v1862, %v1402
    %v1864 = vmax.f32 %v1863, %v1642
    %v1865 = vmax.f32 %v927, %v1167
    %v1866 = vmax.f32 %v1865, %v1407
    %v1867 = vmax.f32 %v1866, %v1647
    %v1868 = vmax.f32 %v932, %v1172
    %v1869 = vmax.f32 %v1868, %v1412
    %v1870 = vmax.f32 %v1869, %v1652
    %v1871 = vmax.f32 %v937, %v1177
    %v1872 = vmax.f32 %v1871, %v1417
    %v1873 = vmax.f32 %v1872, %v1657
    %v1874 = vmax.f32 %v942, %v1182
    %v1875 = vmax.f32 %v1874, %v1422
    %v1876 = vmax.f32 %v1875, %v1662
    %v1877 = vmax.f32 %v947, %v1187
    %v1878 = vmax.f32 %v1877, %v1427
    %v1879 = vmax.f32 %v1878, %v1667
    %v1880 = vmax.f32 %v952, %v1192
    %v1881 = vmax.f32 %v1880, %v1432
    %v1882 = vmax.f32 %v1881, %v1672
    %v1883 = vmax.f32 %v957, %v1197
    %v1884 = vmax.f32 %v1883, %v1437
    %v1885 = vmax.f32 %v1884, %v1677
    %v1886 = vmax.f32 %v962, %v1202
    %v1887 = vmax.f32 %v1886, %v1442
    %v1888 = vmax.f32 %v1887, %v1682
    %v1889 = vmax.f32 %v967, %v1207
    %v1890 = vmax.f32 %v1889, %v1447
    %v1891 = vmax.f32 %v1890, %v1687
    %v1892 = vmax.f32 %v972, %v1212
    %v1893 = vmax.f32 %v1892, %v1452
    %v1894 = vmax.f32 %v1893, %v1692
    %v1895 = vmax.f32 %v977, %v1217
    %v1896 = vmax.f32 %v1895, %v1457
    %v1897 = vmax.f32 %v1896, %v1697
    %v1898 = vmax.f32 %v982, %v1222
    %v1899 = vmax.f32 %v1898, %v1462
    %v1900 = vmax.f32 %v1899, %v1702
    %v1901 = vmax.f32 %v987, %v1227
    %v1902 = vmax.f32 %v1901, %v1467
    %v1903 = vmax.f32 %v1902, %v1707
    %v1904 = vmax.f32 %v992, %v1232
    %v1905 = vmax.f32 %v1904, %v1472
    %v1906 = vmax.f32 %v1905, %v1712
    %v1907 = vmax.f32 %v997, %v1237
    %v1908 = vmax.f32 %v1907, %v1477
    %v1909 = vmax.f32 %v1908, %v1717
    %v1910 = vmax.f32 %v1002, %v1242
    %v1911 = vmax.f32 %v1910, %v1482
    %v1912 = vmax.f32 %v1911, %v1722
    %v1913 = vmax.f32 %v1007, %v1247
    %v1914 = vmax.f32 %v1913, %v1487
    %v1915 = vmax.f32 %v1914, %v1727
    %v1916 = vmax.f32 %v1012, %v1252
    %v1917 = vmax.f32 %v1916, %v1492
    %v1918 = vmax.f32 %v1917, %v1732
    %v1919 = vmax.f32 %v1017, %v1257
    %v1920 = vmax.f32 %v1919, %v1497
    %v1921 = vmax.f32 %v1920, %v1737
    %v1922 = vmax.f32 %v1022, %v1262
    %v1923 = vmax.f32 %v1922, %v1502
    %v1924 = vmax.f32 %v1923, %v1742
    %v1925 = vmax.f32 %v1027, %v1267
    %v1926 = vmax.f32 %v1925, %v1507
    %v1927 = vmax.f32 %v1926, %v1747
    %v1928 = vmax.f32 %v1032, %v1272
    %v1929 = vmax.f32 %v1928, %v1512
    %v1930 = vmax.f32 %v1929, %v1752
    %v1931 = vmax.f32 %v1037, %v1277
    %v1932 = vmax.f32 %v1931, %v1517
    %v1933 = vmax.f32 %v1932, %v1757
    %v1934 = vmax.f32 %v1042, %v1282
    %v1935 = vmax.f32 %v1934, %v1522
    %v1936 = vmax.f32 %v1935, %v1762
    %v1937 = vmax.f32 %v1047, %v1287
    %v1938 = vmax.f32 %v1937, %v1527
    %v1939 = vmax.f32 %v1938, %v1767
    %v1940 = vmax.f32 %v1052, %v1292
    %v1941 = vmax.f32 %v1940, %v1532
    %v1942 = vmax.f32 %v1941, %v1772
    %v1943 = vmax.f32 %v1057, %v1297
    %v1944 = vmax.f32 %v1943, %v1537
    %v1945 = vmax.f32 %v1944, %v1777
    %v1946 = vmax.f32 %v1062, %v1302
    %v1947 = vmax.f32 %v1946, %v1542
    %v1948 = vmax.f32 %v1947, %v1782
    %v1949 = vmax.f32 %v1067, %v1307
    %v1950 = vmax.f32 %v1949, %v1547
    %v1951 = vmax.f32 %v1950, %v1787
    %v1952 = vmax.f32 %v1072, %v1312
    %v1953 = vmax.f32 %v1952, %v1552
    %v1954 = vmax.f32 %v1953, %v1792
    %v1955 = vmax.f32 %v1077, %v1317
    %v1956 = vmax.f32 %v1955, %v1557
    %v1957 = vmax.f32 %v1956, %v1797
    %v1958 = vmax.f32 %v1082, %v1322
    %v1959 = vmax.f32 %v1958, %v1562
    %v1960 = vmax.f32 %v1959, %v1802
    %v1961 = vmax.f32 %v1087, %v1327
    %v1962 = vmax.f32 %v1961, %v1567
    %v1963 = vmax.f32 %v1962, %v1807
    %v1964 = vmax.f32 %v1092, %v1332
    %v1965 = vmax.f32 %v1964, %v1572
    %v1966 = vmax.f32 %v1965, %v1812
    %v1967 = vmax.f32 %v1097, %v1337
    %v1968 = vmax.f32 %v1967, %v1577
    %v1969 = vmax.f32 %v1968, %v1817
    %v1970 = vmax.f32 %v1102, %v1342
    %v1971 = vmax.f32 %v1970, %v1582
    %v1972 = vmax.f32 %v1971, %v1822
    %v1973 = vmax.f32 %v1107, %v1347
    %v1974 = vmax.f32 %v1973, %v1587
    %v1975 = vmax.f32 %v1974, %v1827
    %v1976 = vmax.f32 %v1112, %v1352
    %v1977 = vmax.f32 %v1976, %v1592
    %v1978 = vmax.f32 %v1977, %v1832
    %v1979 = vld [vmem:[%s2] sm:$0x1]
    %v1981 = vlaneseq
    %v1982 = vshrl.u32 %v1981, 7
    %v1983 = vsub.s32 0, %v1982
    %v1984 = vrot.slane %v1979, %v1983
    %v1986 = vadd.f32 %v1837, %v1984
    %v1987 = vadd.f32 %v1840, %v1984
    %v1988 = vadd.f32 %v1843, %v1984
    %v1989 = vadd.f32 %v1846, %v1984
    %v1990 = vadd.f32 %v1849, %v1984
    %v1991 = vadd.f32 %v1852, %v1984
    %v1992 = vadd.f32 %v1855, %v1984
    %v1993 = vadd.f32 %v1858, %v1984
    %v1994 = vadd.f32 %v1861, %v1984
    %v1995 = vadd.f32 %v1864, %v1984
    %v1996 = vadd.f32 %v1867, %v1984
    %v1997 = vadd.f32 %v1870, %v1984
    %v1998 = vadd.f32 %v1873, %v1984
    %v1999 = vadd.f32 %v1876, %v1984
    %v2000 = vadd.f32 %v1879, %v1984
    %v2001 = vadd.f32 %v1882, %v1984
    %v2002 = vadd.f32 %v1885, %v1984
    %v2003 = vadd.f32 %v1888, %v1984
    %v2004 = vadd.f32 %v1891, %v1984
    %v2005 = vadd.f32 %v1894, %v1984
    %v2006 = vadd.f32 %v1897, %v1984
    %v2007 = vadd.f32 %v1900, %v1984
    %v2008 = vadd.f32 %v1903, %v1984
    %v2009 = vadd.f32 %v1906, %v1984
    %v2010 = vadd.f32 %v1909, %v1984
    %v2011 = vadd.f32 %v1912, %v1984
    %v2012 = vadd.f32 %v1915, %v1984
    %v2013 = vadd.f32 %v1918, %v1984
    %v2014 = vadd.f32 %v1921, %v1984
    %v2015 = vadd.f32 %v1924, %v1984
    %v2016 = vadd.f32 %v1927, %v1984
    %v2017 = vadd.f32 %v1930, %v1984
    %v2018 = vadd.f32 %v1933, %v1984
    %v2019 = vadd.f32 %v1936, %v1984
    %v2020 = vadd.f32 %v1939, %v1984
    %v2021 = vadd.f32 %v1942, %v1984
    %v2022 = vadd.f32 %v1945, %v1984
    %v2023 = vadd.f32 %v1948, %v1984
    %v2024 = vadd.f32 %v1951, %v1984
    %v2025 = vadd.f32 %v1954, %v1984
    %v2026 = vadd.f32 %v1957, %v1984
    %v2027 = vadd.f32 %v1960, %v1984
    %v2028 = vadd.f32 %v1963, %v1984
    %v2029 = vadd.f32 %v1966, %v1984
    %v2030 = vadd.f32 %v1969, %v1984
    %v2031 = vadd.f32 %v1972, %v1984
    %v2032 = vadd.f32 %v1975, %v1984
    %v2033 = vadd.f32 %v1978, %v1984
    %v2034 = vmax.f32 %v1986, 0.0
    %v2035 = vmax.f32 %v1987, 0.0
    %v2036 = vmax.f32 %v1988, 0.0
    %v2037 = vmax.f32 %v1989, 0.0
    %v2038 = vmax.f32 %v1990, 0.0
    %v2039 = vmax.f32 %v1991, 0.0
    %v2040 = vmax.f32 %v1992, 0.0
    %v2041 = vmax.f32 %v1993, 0.0
    %v2042 = vmax.f32 %v1994, 0.0
    %v2043 = vmax.f32 %v1995, 0.0
    %v2044 = vmax.f32 %v1996, 0.0
    %v2045 = vmax.f32 %v1997, 0.0
    %v2046 = vmax.f32 %v1998, 0.0
    %v2047 = vmax.f32 %v1999, 0.0
    %v2048 = vmax.f32 %v2000, 0.0
    %v2049 = vmax.f32 %v2001, 0.0
    %v2050 = vmax.f32 %v2002, 0.0
    %v2051 = vmax.f32 %v2003, 0.0
    %v2052 = vmax.f32 %v2004, 0.0
    %v2053 = vmax.f32 %v2005, 0.0
    %v2054 = vmax.f32 %v2006, 0.0
    %v2055 = vmax.f32 %v2007, 0.0
    %v2056 = vmax.f32 %v2008, 0.0
    %v2057 = vmax.f32 %v2009, 0.0
    %v2058 = vmax.f32 %v2010, 0.0
    %v2059 = vmax.f32 %v2011, 0.0
    %v2060 = vmax.f32 %v2012, 0.0
    %v2061 = vmax.f32 %v2013, 0.0
    %v2062 = vmax.f32 %v2014, 0.0
    %v2063 = vmax.f32 %v2015, 0.0
    %v2064 = vmax.f32 %v2016, 0.0
    %v2065 = vmax.f32 %v2017, 0.0
    %v2066 = vmax.f32 %v2018, 0.0
    %v2067 = vmax.f32 %v2019, 0.0
    %v2068 = vmax.f32 %v2020, 0.0
    %v2069 = vmax.f32 %v2021, 0.0
    %v2070 = vmax.f32 %v2022, 0.0
    %v2071 = vmax.f32 %v2023, 0.0
    %v2072 = vmax.f32 %v2024, 0.0
    %v2073 = vmax.f32 %v2025, 0.0
    %v2074 = vmax.f32 %v2026, 0.0
    %v2075 = vmax.f32 %v2027, 0.0
    %v2076 = vmax.f32 %v2028, 0.0
    %v2077 = vmax.f32 %v2029, 0.0
    %v2078 = vmax.f32 %v2030, 0.0
    %v2079 = vmax.f32 %v2031, 0.0
    %v2080 = vmax.f32 %v2032, 0.0
    %v2081 = vmax.f32 %v2033, 0.0
    %v2090 = vcombine.high %v2034, %v2034
    %v2091 = vcombine.high %v2035, %v2035
    %v2092 = vcombine.high %v2036, %v2036
    %v2093 = vcombine.high %v2037, %v2037
    %v2094 = vcombine.high %v2058, %v2058
    %v2095 = vcombine.high %v2059, %v2059
    %v2096 = vcombine.high %v2060, %v2060
    %v2097 = vcombine.high %v2061, %v2061
    %vm2098 = vcmask 1042432
    %vm2099 = vcmask 1046532
    %vm2100 = vmor %vm2098, %vm2099
    %v2101 = vrot.slane %v2034, 5
    %v2102 = vrot.slane %v2101, 4
    %v2103 = vrot.slane %v2090, 5
    %v2104 = vsel %vm2100, %v2102, %v2103
    %v2105 = vrot.slane %v2035, 5
    %v2106 = vrot.slane %v2105, 4
    %v2107 = vrot.slane %v2091, 5
    %v2108 = vsel %vm2100, %v2106, %v2107
    %v2109 = vrot.slane %v2036, 5
    %v2110 = vrot.slane %v2109, 4
    %v2111 = vrot.slane %v2092, 5
    %v2112 = vsel %vm2100, %v2110, %v2111
    %v2113 = vrot.slane %v2037, 5
    %v2114 = vrot.slane %v2113, 4
    %v2115 = vrot.slane %v2093, 5
    %v2116 = vsel %vm2100, %v2114, %v2115
    %v2117 = vrot.slane %v2058, 5
    %v2118 = vrot.slane %v2117, 4
    %v2119 = vrot.slane %v2094, 5
    %v2120 = vsel %vm2100, %v2118, %v2119
    %v2121 = vrot.slane %v2059, 5
    %v2122 = vrot.slane %v2121, 4
    %v2123 = vrot.slane %v2095, 5
    %v2124 = vsel %vm2100, %v2122, %v2123
    %v2125 = vrot.slane %v2060, 5
    %v2126 = vrot.slane %v2125, 4
    %v2127 = vrot.slane %v2096, 5
    %v2128 = vsel %vm2100, %v2126, %v2127
    %v2129 = vrot.slane %v2061, 5
    %v2130 = vrot.slane %v2129, 4
    %v2131 = vrot.slane %v2097, 5
    %v2132 = vsel %vm2100, %v2130, %v2131
    %v2141 = vcombine.high %v2040, %v2040
    %v2142 = vcombine.high %v2041, %v2041
    %v2143 = vcombine.high %v2042, %v2042
    %v2144 = vcombine.high %v2043, %v2043
    %v2145 = vcombine.high %v2064, %v2064
    %v2146 = vcombine.high %v2065, %v2065
    %v2147 = vcombine.high %v2066, %v2066
    %v2148 = vcombine.high %v2067, %v2067
    %v2149 = vrot.slane %v2040, 5
    %v2150 = vrot.slane %v2149, 4
    %v2151 = vrot.slane %v2141, 5
    %v2152 = vsel %vm2100, %v2150, %v2151
    %v2153 = vrot.slane %v2041, 5
    %v2154 = vrot.slane %v2153, 4
    %v2155 = vrot.slane %v2142, 5
    %v2156 = vsel %vm2100, %v2154, %v2155
    %v2157 = vrot.slane %v2042, 5
    %v2158 = vrot.slane %v2157, 4
    %v2159 = vrot.slane %v2143, 5
    %v2160 = vsel %vm2100, %v2158, %v2159
    %v2161 = vrot.slane %v2043, 5
    %v2162 = vrot.slane %v2161, 4
    %v2163 = vrot.slane %v2144, 5
    %v2164 = vsel %vm2100, %v2162, %v2163
    %v2165 = vrot.slane %v2064, 5
    %v2166 = vrot.slane %v2165, 4
    %v2167 = vrot.slane %v2145, 5
    %v2168 = vsel %vm2100, %v2166, %v2167
    %v2169 = vrot.slane %v2065, 5
    %v2170 = vrot.slane %v2169, 4
    %v2171 = vrot.slane %v2146, 5
    %v2172 = vsel %vm2100, %v2170, %v2171
    %v2173 = vrot.slane %v2066, 5
    %v2174 = vrot.slane %v2173, 4
    %v2175 = vrot.slane %v2147, 5
    %v2176 = vsel %vm2100, %v2174, %v2175
    %v2177 = vrot.slane %v2067, 5
    %v2178 = vrot.slane %v2177, 4
    %v2179 = vrot.slane %v2148, 5
    %v2180 = vsel %vm2100, %v2178, %v2179
    %vm2181 = vcmask 1041408
    %vm2182 = vcmask 1045508
    %vm2183 = vmor %vm2181, %vm2182
    %v2184 = vrot.slane %v2034, 6
    %v2185 = vrot.slane %v2184, 4
    %v2186 = vrot.slane %v2090, 6
    %v2187 = vsel %vm2183, %v2185, %v2186
    %v2188 = vrot.slane %v2035, 6
    %v2189 = vrot.slane %v2188, 4
    %v2190 = vrot.slane %v2091, 6
    %v2191 = vsel %vm2183, %v2189, %v2190
    %v2192 = vrot.slane %v2036, 6
    %v2193 = vrot.slane %v2192, 4
    %v2194 = vrot.slane %v2092, 6
    %v2195 = vsel %vm2183, %v2193, %v2194
    %v2196 = vrot.slane %v2037, 6
    %v2197 = vrot.slane %v2196, 4
    %v2198 = vrot.slane %v2093, 6
    %v2199 = vsel %vm2183, %v2197, %v2198
    %v2200 = vrot.slane %v2058, 6
    %v2201 = vrot.slane %v2200, 4
    %v2202 = vrot.slane %v2094, 6
    %v2203 = vsel %vm2183, %v2201, %v2202
    %v2204 = vrot.slane %v2059, 6
    %v2205 = vrot.slane %v2204, 4
    %v2206 = vrot.slane %v2095, 6
    %v2207 = vsel %vm2183, %v2205, %v2206
    %v2208 = vrot.slane %v2060, 6
    %v2209 = vrot.slane %v2208, 4
    %v2210 = vrot.slane %v2096, 6
    %v2211 = vsel %vm2183, %v2209, %v2210
    %v2212 = vrot.slane %v2061, 6
    %v2213 = vrot.slane %v2212, 4
    %v2214 = vrot.slane %v2097, 6
    %v2215 = vsel %vm2183, %v2213, %v2214
    %v2216 = vrot.slane %v2040, 6
    %v2217 = vrot.slane %v2216, 4
    %v2218 = vrot.slane %v2141, 6
    %v2219 = vsel %vm2183, %v2217, %v2218
    %v2220 = vrot.slane %v2041, 6
    %v2221 = vrot.slane %v2220, 4
    %v2222 = vrot.slane %v2142, 6
    %v2223 = vsel %vm2183, %v2221, %v2222
    %v2224 = vrot.slane %v2042, 6
    %v2225 = vrot.slane %v2224, 4
    %v2226 = vrot.slane %v2143, 6
    %v2227 = vsel %vm2183, %v2225, %v2226
    %v2228 = vrot.slane %v2043, 6
    %v2229 = vrot.slane %v2228, 4
    %v2230 = vrot.slane %v2144, 6
    %v2231 = vsel %vm2183, %v2229, %v2230
    %v2232 = vrot.slane %v2064, 6
    %v2233 = vrot.slane %v2232, 4
    %v2234 = vrot.slane %v2145, 6
    %v2235 = vsel %vm2183, %v2233, %v2234
    %v2236 = vrot.slane %v2065, 6
    %v2237 = vrot.slane %v2236, 4
    %v2238 = vrot.slane %v2146, 6
    %v2239 = vsel %vm2183, %v2237, %v2238
    %v2240 = vrot.slane %v2066, 6
    %v2241 = vrot.slane %v2240, 4
    %v2242 = vrot.slane %v2147, 6
    %v2243 = vsel %vm2183, %v2241, %v2242
    %v2244 = vrot.slane %v2067, 6
    %v2245 = vrot.slane %v2244, 4
    %v2246 = vrot.slane %v2148, 6
    %v2247 = vsel %vm2183, %v2245, %v2246
    %v2256 = vcombine.high %v2046, %v2046
    %v2257 = vcombine.high %v2047, %v2047
    %v2258 = vcombine.high %v2048, %v2048
    %v2259 = vcombine.high %v2049, %v2049
    %v2260 = vcombine.high %v2070, %v2070
    %v2261 = vcombine.high %v2071, %v2071
    %v2262 = vcombine.high %v2072, %v2072
    %v2263 = vcombine.high %v2073, %v2073
    %v2264 = vrot.slane %v2046, 5
    %v2265 = vrot.slane %v2264, 4
    %v2266 = vrot.slane %v2256, 5
    %v2267 = vsel %vm2100, %v2265, %v2266
    %v2268 = vrot.slane %v2047, 5
    %v2269 = vrot.slane %v2268, 4
    %v2270 = vrot.slane %v2257, 5
    %v2271 = vsel %vm2100, %v2269, %v2270
    %v2272 = vrot.slane %v2048, 5
    %v2273 = vrot.slane %v2272, 4
    %v2274 = vrot.slane %v2258, 5
    %v2275 = vsel %vm2100, %v2273, %v2274
    %v2276 = vrot.slane %v2049, 5
    %v2277 = vrot.slane %v2276, 4
    %v2278 = vrot.slane %v2259, 5
    %v2279 = vsel %vm2100, %v2277, %v2278
    %v2280 = vrot.slane %v2070, 5
    %v2281 = vrot.slane %v2280, 4
    %v2282 = vrot.slane %v2260, 5
    %v2283 = vsel %vm2100, %v2281, %v2282
    %v2284 = vrot.slane %v2071, 5
    %v2285 = vrot.slane %v2284, 4
    %v2286 = vrot.slane %v2261, 5
    %v2287 = vsel %vm2100, %v2285, %v2286
    %v2288 = vrot.slane %v2072, 5
    %v2289 = vrot.slane %v2288, 4
    %v2290 = vrot.slane %v2262, 5
    %v2291 = vsel %vm2100, %v2289, %v2290
    %v2292 = vrot.slane %v2073, 5
    %v2293 = vrot.slane %v2292, 4
    %v2294 = vrot.slane %v2263, 5
    %v2295 = vsel %vm2100, %v2293, %v2294
    %v2304 = vcombine.high %v2052, %v2052
    %v2305 = vcombine.high %v2053, %v2053
    %v2306 = vcombine.high %v2054, %v2054
    %v2307 = vcombine.high %v2055, %v2055
    %v2308 = vcombine.high %v2076, %v2076
    %v2309 = vcombine.high %v2077, %v2077
    %v2310 = vcombine.high %v2078, %v2078
    %v2311 = vcombine.high %v2079, %v2079
    %v2312 = vrot.slane %v2052, 5
    %v2313 = vrot.slane %v2312, 4
    %v2314 = vrot.slane %v2304, 5
    %v2315 = vsel %vm2100, %v2313, %v2314
    %v2316 = vrot.slane %v2053, 5
    %v2317 = vrot.slane %v2316, 4
    %v2318 = vrot.slane %v2305, 5
    %v2319 = vsel %vm2100, %v2317, %v2318
    %v2320 = vrot.slane %v2054, 5
    %v2321 = vrot.slane %v2320, 4
    %v2322 = vrot.slane %v2306, 5
    %v2323 = vsel %vm2100, %v2321, %v2322
    %v2324 = vrot.slane %v2055, 5
    %v2325 = vrot.slane %v2324, 4
    %v2326 = vrot.slane %v2307, 5
    %v2327 = vsel %vm2100, %v2325, %v2326
    %v2328 = vrot.slane %v2076, 5
    %v2329 = vrot.slane %v2328, 4
    %v2330 = vrot.slane %v2308, 5
    %v2331 = vsel %vm2100, %v2329, %v2330
    %v2332 = vrot.slane %v2077, 5
    %v2333 = vrot.slane %v2332, 4
    %v2334 = vrot.slane %v2309, 5
    %v2335 = vsel %vm2100, %v2333, %v2334
    %v2336 = vrot.slane %v2078, 5
    %v2337 = vrot.slane %v2336, 4
    %v2338 = vrot.slane %v2310, 5
    %v2339 = vsel %vm2100, %v2337, %v2338
    %v2340 = vrot.slane %v2079, 5
    %v2341 = vrot.slane %v2340, 4
    %v2342 = vrot.slane %v2311, 5
    %v2343 = vsel %vm2100, %v2341, %v2342
    %v2344 = vrot.slane %v2046, 6
    %v2345 = vrot.slane %v2344, 4
    %v2346 = vrot.slane %v2256, 6
    %v2347 = vsel %vm2183, %v2345, %v2346
    %v2348 = vrot.slane %v2047, 6
    %v2349 = vrot.slane %v2348, 4
    %v2350 = vrot.slane %v2257, 6
    %v2351 = vsel %vm2183, %v2349, %v2350
    %v2352 = vrot.slane %v2048, 6
    %v2353 = vrot.slane %v2352, 4
    %v2354 = vrot.slane %v2258, 6
    %v2355 = vsel %vm2183, %v2353, %v2354
    %v2356 = vrot.slane %v2049, 6
    %v2357 = vrot.slane %v2356, 4
    %v2358 = vrot.slane %v2259, 6
    %v2359 = vsel %vm2183, %v2357, %v2358
    %v2360 = vrot.slane %v2070, 6
    %v2361 = vrot.slane %v2360, 4
    %v2362 = vrot.slane %v2260, 6
    %v2363 = vsel %vm2183, %v2361, %v2362
    %v2364 = vrot.slane %v2071, 6
    %v2365 = vrot.slane %v2364, 4
    %v2366 = vrot.slane %v2261, 6
    %v2367 = vsel %vm2183, %v2365, %v2366
    %v2368 = vrot.slane %v2072, 6
    %v2369 = vrot.slane %v2368, 4
    %v2370 = vrot.slane %v2262, 6
    %v2371 = vsel %vm2183, %v2369, %v2370
    %v2372 = vrot.slane %v2073, 6
    %v2373 = vrot.slane %v2372, 4
    %v2374 = vrot.slane %v2263, 6
    %v2375 = vsel %vm2183, %v2373, %v2374
    %v2376 = vrot.slane %v2052, 6
    %v2377 = vrot.slane %v2376, 4
    %v2378 = vrot.slane %v2304, 6
    %v2379 = vsel %vm2183, %v2377, %v2378
    %v2380 = vrot.slane %v2053, 6
    %v2381 = vrot.slane %v2380, 4
    %v2382 = vrot.slane %v2305, 6
    %v2383 = vsel %vm2183, %v2381, %v2382
    %v2384 = vrot.slane %v2054, 6
    %v2385 = vrot.slane %v2384, 4
    %v2386 = vrot.slane %v2306, 6
    %v2387 = vsel %vm2183, %v2385, %v2386
    %v2388 = vrot.slane %v2055, 6
    %v2389 = vrot.slane %v2388, 4
    %v2390 = vrot.slane %v2307, 6
    %v2391 = vsel %vm2183, %v2389, %v2390
    %v2392 = vrot.slane %v2076, 6
    %v2393 = vrot.slane %v2392, 4
    %v2394 = vrot.slane %v2308, 6
    %v2395 = vsel %vm2183, %v2393, %v2394
    %v2396 = vrot.slane %v2077, 6
    %v2397 = vrot.slane %v2396, 4
    %v2398 = vrot.slane %v2309, 6
    %v2399 = vsel %vm2183, %v2397, %v2398
    %v2400 = vrot.slane %v2078, 6
    %v2401 = vrot.slane %v2400, 4
    %v2402 = vrot.slane %v2310, 6
    %v2403 = vsel %vm2183, %v2401, %v2402
    %v2404 = vrot.slane %v2079, 6
    %v2405 = vrot.slane %v2404, 4
    %v2406 = vrot.slane %v2311, 6
    %v2407 = vsel %vm2183, %v2405, %v2406
    %v2410 = vcombine.high %v2038, %v2038
    %v2411 = vcombine.high %v2062, %v2062
    %v2412 = vrot.slane %v2038, 5
    %v2413 = vrot.slane %v2412, 4
    %v2414 = vrot.slane %v2410, 5
    %v2415 = vsel %vm2100, %v2413, %v2414
    %v2416 = vrot.slane %v2062, 5
    %v2417 = vrot.slane %v2416, 4
    %v2418 = vrot.slane %v2411, 5
    %v2419 = vsel %vm2100, %v2417, %v2418
    %v2422 = vcombine.high %v2044, %v2044
    %v2423 = vcombine.high %v2068, %v2068
    %v2424 = vrot.slane %v2044, 5
    %v2425 = vrot.slane %v2424, 4
    %v2426 = vrot.slane %v2422, 5
    %v2427 = vsel %vm2100, %v2425, %v2426
    %v2428 = vrot.slane %v2068, 5
    %v2429 = vrot.slane %v2428, 4
    %v2430 = vrot.slane %v2423, 5
    %v2431 = vsel %vm2100, %v2429, %v2430
    %v2432 = vrot.slane %v2038, 6
    %v2433 = vrot.slane %v2432, 4
    %v2434 = vrot.slane %v2410, 6
    %v2435 = vsel %vm2183, %v2433, %v2434
    %v2436 = vrot.slane %v2062, 6
    %v2437 = vrot.slane %v2436, 4
    %v2438 = vrot.slane %v2411, 6
    %v2439 = vsel %vm2183, %v2437, %v2438
    %v2440 = vrot.slane %v2044, 6
    %v2441 = vrot.slane %v2440, 4
    %v2442 = vrot.slane %v2422, 6
    %v2443 = vsel %vm2183, %v2441, %v2442
    %v2444 = vrot.slane %v2068, 6
    %v2445 = vrot.slane %v2444, 4
    %v2446 = vrot.slane %v2423, 6
    %v2447 = vsel %vm2183, %v2445, %v2446
    %v2450 = vcombine.high %v2050, %v2050
    %v2451 = vcombine.high %v2074, %v2074
    %v2452 = vrot.slane %v2050, 5
    %v2453 = vrot.slane %v2452, 4
    %v2454 = vrot.slane %v2450, 5
    %v2455 = vsel %vm2100, %v2453, %v2454
    %v2456 = vrot.slane %v2074, 5
    %v2457 = vrot.slane %v2456, 4
    %v2458 = vrot.slane %v2451, 5
    %v2459 = vsel %vm2100, %v2457, %v2458
    %v2462 = vcombine.high %v2056, %v2056
    %v2463 = vcombine.high %v2080, %v2080
    %v2464 = vrot.slane %v2056, 5
    %v2465 = vrot.slane %v2464, 4
    %v2466 = vrot.slane %v2462, 5
    %v2467 = vsel %vm2100, %v2465, %v2466
    %v2468 = vrot.slane %v2080, 5
    %v2469 = vrot.slane %v2468, 4
    %v2470 = vrot.slane %v2463, 5
    %v2471 = vsel %vm2100, %v2469, %v2470
    %v2472 = vrot.slane %v2050, 6
    %v2473 = vrot.slane %v2472, 4
    %v2474 = vrot.slane %v2450, 6
    %v2475 = vsel %vm2183, %v2473, %v2474
    %v2476 = vrot.slane %v2074, 6
    %v2477 = vrot.slane %v2476, 4
    %v2478 = vrot.slane %v2451, 6
    %v2479 = vsel %vm2183, %v2477, %v2478
    %v2480 = vrot.slane %v2056, 6
    %v2481 = vrot.slane %v2480, 4
    %v2482 = vrot.slane %v2462, 6
    %v2483 = vsel %vm2183, %v2481, %v2482
    %v2484 = vrot.slane %v2080, 6
    %v2485 = vrot.slane %v2484, 4
    %v2486 = vrot.slane %v2463, 6
    %v2487 = vsel %vm2183, %v2485, %v2486
    %v2490 = vcombine.high %v2039, %v2039
    %v2491 = vcombine.high %v2063, %v2063
    %v2492 = vrot.slane %v2039, 5
    %v2493 = vrot.slane %v2492, 4
    %v2494 = vrot.slane %v2490, 5
    %v2495 = vsel %vm2100, %v2493, %v2494
    %v2496 = vrot.slane %v2063, 5
    %v2497 = vrot.slane %v2496, 4
    %v2498 = vrot.slane %v2491, 5
    %v2499 = vsel %vm2100, %v2497, %v2498
    %v2502 = vcombine.high %v2045, %v2045
    %v2503 = vcombine.high %v2069, %v2069
    %v2504 = vrot.slane %v2045, 5
    %v2505 = vrot.slane %v2504, 4
    %v2506 = vrot.slane %v2502, 5
    %v2507 = vsel %vm2100, %v2505, %v2506
    %v2508 = vrot.slane %v2069, 5
    %v2509 = vrot.slane %v2508, 4
    %v2510 = vrot.slane %v2503, 5
    %v2511 = vsel %vm2100, %v2509, %v2510
    %v2512 = vrot.slane %v2039, 6
    %v2513 = vrot.slane %v2512, 4
    %v2514 = vrot.slane %v2490, 6
    %v2515 = vsel %vm2183, %v2513, %v2514
    %v2516 = vrot.slane %v2063, 6
    %v2517 = vrot.slane %v2516, 4
    %v2518 = vrot.slane %v2491, 6
    %v2519 = vsel %vm2183, %v2517, %v2518
    %v2520 = vrot.slane %v2045, 6
    %v2521 = vrot.slane %v2520, 4
    %v2522 = vrot.slane %v2502, 6
    %v2523 = vsel %vm2183, %v2521, %v2522
    %v2524 = vrot.slane %v2069, 6
    %v2525 = vrot.slane %v2524, 4
    %v2526 = vrot.slane %v2503, 6
    %v2527 = vsel %vm2183, %v2525, %v2526
    %v2530 = vcombine.high %v2051, %v2051
    %v2531 = vcombine.high %v2075, %v2075
    %v2532 = vrot.slane %v2051, 5
    %v2533 = vrot.slane %v2532, 4
    %v2534 = vrot.slane %v2530, 5
    %v2535 = vsel %vm2100, %v2533, %v2534
    %v2536 = vrot.slane %v2075, 5
    %v2537 = vrot.slane %v2536, 4
    %v2538 = vrot.slane %v2531, 5
    %v2539 = vsel %vm2100, %v2537, %v2538
    %v2542 = vcombine.high %v2057, %v2057
    %v2543 = vcombine.high %v2081, %v2081
    %v2544 = vrot.slane %v2057, 5
    %v2545 = vrot.slane %v2544, 4
    %v2546 = vrot.slane %v2542, 5
    %v2547 = vsel %vm2100, %v2545, %v2546
    %v2548 = vrot.slane %v2081, 5
    %v2549 = vrot.slane %v2548, 4
    %v2550 = vrot.slane %v2543, 5
    %v2551 = vsel %vm2100, %v2549, %v2550
    %v2552 = vrot.slane %v2051, 6
    %v2553 = vrot.slane %v2552, 4
    %v2554 = vrot.slane %v2530, 6
    %v2555 = vsel %vm2183, %v2553, %v2554
    %v2556 = vrot.slane %v2075, 6
    %v2557 = vrot.slane %v2556, 4
    %v2558 = vrot.slane %v2531, 6
    %v2559 = vsel %vm2183, %v2557, %v2558
    %v2560 = vrot.slane %v2057, 6
    %v2561 = vrot.slane %v2560, 4
    %v2562 = vrot.slane %v2542, 6
    %v2563 = vsel %vm2183, %v2561, %v2562
    %v2564 = vrot.slane %v2081, 6
    %v2565 = vrot.slane %v2564, 4
    %v2566 = vrot.slane %v2543, 6
    %v2567 = vsel %vm2183, %v2565, %v2566
    %v2568 = vcombine.low %v2034, %v2035
    %v2569 = vcombine.low %v2036, %v2037
    %v2570 = vcombine.low %v2058, %v2059
    %v2571 = vcombine.low %v2060, %v2061
    %2576 = vst [vmem:[#allocation2] sm:$0xff] %v2568
    %2577 = vst [vmem:[#allocation2 + $0xc8] sm:$0xff] %v2569
    %2578 = vst [vmem:[#allocation2 + $0x190] sm:$0xff] %v2570
    %2579 = vst [vmem:[#allocation2 + $0x258] sm:$0xff] %v2571
    %v2580 = vcombine.low %v2040, %v2041
    %v2581 = vcombine.low %v2042, %v2043
    %v2582 = vcombine.low %v2064, %v2065
    %v2583 = vcombine.low %v2066, %v2067
    %2588 = vst [vmem:[#allocation2 + $0x8] sm:$0xff] %v2580
    %2589 = vst [vmem:[#allocation2 + $0xd0] sm:$0xff] %v2581
    %2590 = vst [vmem:[#allocation2 + $0x198] sm:$0xff] %v2582
    %2591 = vst [vmem:[#allocation2 + $0x260] sm:$0xff] %v2583
    %v2592 = vcombine.low %v2104, %v2108
    %v2593 = vcombine.low %v2112, %v2116
    %v2594 = vcombine.low %v2120, %v2124
    %v2595 = vcombine.low %v2128, %v2132
    %2600 = vst [vmem:[#allocation2 + $0x10] sm:$0xff] %v2592
    %2601 = vst [vmem:[#allocation2 + $0xd8] sm:$0xff] %v2593
    %2602 = vst [vmem:[#allocation2 + $0x1a0] sm:$0xff] %v2594
    %2603 = vst [vmem:[#allocation2 + $0x268] sm:$0xff] %v2595
    %v2604 = vcombine.low %v2152, %v2156
    %v2605 = vcombine.low %v2160, %v2164
    %v2606 = vcombine.low %v2168, %v2172
    %v2607 = vcombine.low %v2176, %v2180
    %2612 = vst [vmem:[#allocation2 + $0x18] sm:$0xff] %v2604
    %2613 = vst [vmem:[#allocation2 + $0xe0] sm:$0xff] %v2605
    %2614 = vst [vmem:[#allocation2 + $0x1a8] sm:$0xff] %v2606
    %2615 = vst [vmem:[#allocation2 + $0x270] sm:$0xff] %v2607
    %v2616 = vcombine.low %v2187, %v2191
    %v2617 = vcombine.low %v2195, %v2199
    %v2618 = vcombine.low %v2203, %v2207
    %v2619 = vcombine.low %v2211, %v2215
    %2624 = vst [vmem:[#allocation2 + $0x20] sm:$0xff] %v2616
    %2625 = vst [vmem:[#allocation2 + $0xe8] sm:$0xff] %v2617
    %2626 = vst [vmem:[#allocation2 + $0x1b0] sm:$0xff] %v2618
    %2627 = vst [vmem:[#allocation2 + $0x278] sm:$0xff] %v2619
    %v2628 = vcombine.low %v2046, %v2047
    %v2629 = vcombine.low %v2048, %v2049
    %v2630 = vcombine.low %v2070, %v2071
    %v2631 = vcombine.low %v2072, %v2073
    %2636 = vst [vmem:[#allocation2 + $0x28] sm:$0xff] %v2628
    %2637 = vst [vmem:[#allocation2 + $0xf0] sm:$0xff] %v2629
    %2638 = vst [vmem:[#allocation2 + $0x1b8] sm:$0xff] %v2630
    %2639 = vst [vmem:[#allocation2 + $0x280] sm:$0xff] %v2631
    %v2640 = vcombine.low %v2052, %v2053
    %v2641 = vcombine.low %v2054, %v2055
    %v2642 = vcombine.low %v2076, %v2077
    %v2643 = vcombine.low %v2078, %v2079
    %2648 = vst [vmem:[#allocation2 + $0x30] sm:$0xff] %v2640
    %2649 = vst [vmem:[#allocation2 + $0xf8] sm:$0xff] %v2641
    %2650 = vst [vmem:[#allocation2 + $0x1c0] sm:$0xff] %v2642
    %2651 = vst [vmem:[#allocation2 + $0x288] sm:$0xff] %v2643
    %v2652 = vcombine.low %v2267, %v2271
    %v2653 = vcombine.low %v2275, %v2279
    %v2654 = vcombine.low %v2283, %v2287
    %v2655 = vcombine.low %v2291, %v2295
    %2660 = vst [vmem:[#allocation2 + $0x38] sm:$0xff] %v2652
    %2661 = vst [vmem:[#allocation2 + $0x100] sm:$0xff] %v2653
    %2662 = vst [vmem:[#allocation2 + $0x1c8] sm:$0xff] %v2654
    %2663 = vst [vmem:[#allocation2 + $0x290] sm:$0xff] %v2655
    %v2664 = vcombine.low %v2315, %v2319
    %v2665 = vcombine.low %v2323, %v2327
    %v2666 = vcombine.low %v2331, %v2335
    %v2667 = vcombine.low %v2339, %v2343
    %2672 = vst [vmem:[#allocation2 + $0x40] sm:$0xff] %v2664
    %2673 = vst [vmem:[#allocation2 + $0x108] sm:$0xff] %v2665
    %2674 = vst [vmem:[#allocation2 + $0x1d0] sm:$0xff] %v2666
    %2675 = vst [vmem:[#allocation2 + $0x298] sm:$0xff] %v2667
    %v2676 = vcombine.low %v2347, %v2351
    %v2677 = vcombine.low %v2355, %v2359
    %v2678 = vcombine.low %v2363, %v2367
    %v2679 = vcombine.low %v2371, %v2375
    %2684 = vst [vmem:[#allocation2 + $0x48] sm:$0xff] %v2676
    %2685 = vst [vmem:[#allocation2 + $0x110] sm:$0xff] %v2677
    %2686 = vst [vmem:[#allocation2 + $0x1d8] sm:$0xff] %v2678
    %2687 = vst [vmem:[#allocation2 + $0x2a0] sm:$0xff] %v2679
    %v2688 = vcombine.low %v2035, %v2036
    %v2689 = vcombine.low %v2037, %v2038
    %v2690 = vcombine.low %v2059, %v2060
    %v2691 = vcombine.low %v2061, %v2062
    %2696 = vst [vmem:[#allocation2 + $0x50] sm:$0xff] %v2688
    %2697 = vst [vmem:[#allocation2 + $0x118] sm:$0xff] %v2689
    %2698 = vst [vmem:[#allocation2 + $0x1e0] sm:$0xff] %v2690
    %2699 = vst [vmem:[#allocation2 + $0x2a8] sm:$0xff] %v2691
    %v2700 = vcombine.low %v2041, %v2042
    %v2701 = vcombine.low %v2043, %v2044
    %v2702 = vcombine.low %v2065, %v2066
    %v2703 = vcombine.low %v2067, %v2068
    %2708 = vst [vmem:[#allocation2 + $0x58] sm:$0xff] %v2700
    %2709 = vst [vmem:[#allocation2 + $0x120] sm:$0xff] %v2701
    %2710 = vst [vmem:[#allocation2 + $0x1e8] sm:$0xff] %v2702
    %2711 = vst [vmem:[#allocation2 + $0x2b0] sm:$0xff] %v2703
    %v2712 = vcombine.low %v2108, %v2112
    %v2713 = vcombine.low %v2116, %v2415
    %v2714 = vcombine.low %v2124, %v2128
    %v2715 = vcombine.low %v2132, %v2419
    %2720 = vst [vmem:[#allocation2 + $0x60] sm:$0xff] %v2712
    %2721 = vst [vmem:[#allocation2 + $0x128] sm:$0xff] %v2713
    %2722 = vst [vmem:[#allocation2 + $0x1f0] sm:$0xff] %v2714
    %2723 = vst [vmem:[#allocation2 + $0x2b8] sm:$0xff] %v2715
    %v2724 = vcombine.low %v2156, %v2160
    %v2725 = vcombine.low %v2164, %v2427
    %v2726 = vcombine.low %v2172, %v2176
    %v2727 = vcombine.low %v2180, %v2431
    %2732 = vst [vmem:[#allocation2 + $0x68] sm:$0xff] %v2724
    %2733 = vst [vmem:[#allocation2 + $0x130] sm:$0xff] %v2725
    %2734 = vst [vmem:[#allocation2 + $0x1f8] sm:$0xff] %v2726
    %2735 = vst [vmem:[#allocation2 + $0x2c0] sm:$0xff] %v2727
    %v2736 = vcombine.low %v2191, %v2195
    %v2737 = vcombine.low %v2199, %v2435
    %v2738 = vcombine.low %v2207, %v2211
    %v2739 = vcombine.low %v2215, %v2439
    %2744 = vst [vmem:[#allocation2 + $0x70] sm:$0xff] %v2736
    %2745 = vst [vmem:[#allocation2 + $0x138] sm:$0xff] %v2737
    %2746 = vst [vmem:[#allocation2 + $0x200] sm:$0xff] %v2738
    %2747 = vst [vmem:[#allocation2 + $0x2c8] sm:$0xff] %v2739
    %v2748 = vcombine.low %v2047, %v2048
    %v2749 = vcombine.low %v2049, %v2050
    %v2750 = vcombine.low %v2071, %v2072
    %v2751 = vcombine.low %v2073, %v2074
    %2756 = vst [vmem:[#allocation2 + $0x78] sm:$0xff] %v2748
    %2757 = vst [vmem:[#allocation2 + $0x140] sm:$0xff] %v2749
    %2758 = vst [vmem:[#allocation2 + $0x208] sm:$0xff] %v2750
    %2759 = vst [vmem:[#allocation2 + $0x2d0] sm:$0xff] %v2751
    %v2760 = vcombine.low %v2053, %v2054
    %v2761 = vcombine.low %v2055, %v2056
    %v2762 = vcombine.low %v2077, %v2078
    %v2763 = vcombine.low %v2079, %v2080
    %2768 = vst [vmem:[#allocation2 + $0x80] sm:$0xff] %v2760
    %2769 = vst [vmem:[#allocation2 + $0x148] sm:$0xff] %v2761
    %2770 = vst [vmem:[#allocation2 + $0x210] sm:$0xff] %v2762
    %2771 = vst [vmem:[#allocation2 + $0x2d8] sm:$0xff] %v2763
    %v2772 = vcombine.low %v2271, %v2275
    %v2773 = vcombine.low %v2279, %v2455
    %v2774 = vcombine.low %v2287, %v2291
    %v2775 = vcombine.low %v2295, %v2459
    %2780 = vst [vmem:[#allocation2 + $0x88] sm:$0xff] %v2772
    %2781 = vst [vmem:[#allocation2 + $0x150] sm:$0xff] %v2773
    %2782 = vst [vmem:[#allocation2 + $0x218] sm:$0xff] %v2774
    %2783 = vst [vmem:[#allocation2 + $0x2e0] sm:$0xff] %v2775
    %v2784 = vcombine.low %v2319, %v2323
    %v2785 = vcombine.low %v2327, %v2467
    %v2786 = vcombine.low %v2335, %v2339
    %v2787 = vcombine.low %v2343, %v2471
    %2792 = vst [vmem:[#allocation2 + $0x90] sm:$0xff] %v2784
    %2793 = vst [vmem:[#allocation2 + $0x158] sm:$0xff] %v2785
    %2794 = vst [vmem:[#allocation2 + $0x220] sm:$0xff] %v2786
    %2795 = vst [vmem:[#allocation2 + $0x2e8] sm:$0xff] %v2787
    %v2796 = vcombine.low %v2351, %v2355
    %v2797 = vcombine.low %v2359, %v2475
    %v2798 = vcombine.low %v2367, %v2371
    %v2799 = vcombine.low %v2375, %v2479
    %2804 = vst [vmem:[#allocation2 + $0x98] sm:$0xff] %v2796
    %2805 = vst [vmem:[#allocation2 + $0x160] sm:$0xff] %v2797
    %2806 = vst [vmem:[#allocation2 + $0x228] sm:$0xff] %v2798
    %2807 = vst [vmem:[#allocation2 + $0x2f0] sm:$0xff] %v2799
    %v2808 = vcombine.low %v2038, %v2039
    %v2809 = vcombine.low %v2062, %v2063
    %2812 = vst [vmem:[#allocation2 + $0xa0] sm:$0xff] %v2569
    %2813 = vst [vmem:[#allocation2 + $0x168] sm:$0xff] %v2808
    %2814 = vst [vmem:[#allocation2 + $0x230] sm:$0xff] %v2571
    %2815 = vst [vmem:[#allocation2 + $0x2f8] sm:$0xff] %v2809
    %v2816 = vcombine.low %v2044, %v2045
    %v2817 = vcombine.low %v2068, %v2069
    %2820 = vst [vmem:[#allocation2 + $0xa8] sm:$0xff] %v2581
    %2821 = vst [vmem:[#allocation2 + $0x170] sm:$0xff] %v2816
    %2822 = vst [vmem:[#allocation2 + $0x238] sm:$0xff] %v2583
    %2823 = vst [vmem:[#allocation2 + $0x300] sm:$0xff] %v2817
    %v2824 = vcombine.low %v2415, %v2495
    %v2825 = vcombine.low %v2419, %v2499
    %2828 = vst [vmem:[#allocation2 + $0xb0] sm:$0xff] %v2593
    %2829 = vst [vmem:[#allocation2 + $0x178] sm:$0xff] %v2824
    %2830 = vst [vmem:[#allocation2 + $0x240] sm:$0xff] %v2595
    %2831 = vst [vmem:[#allocation2 + $0x308] sm:$0xff] %v2825
    %v2832 = vcombine.low %v2427, %v2507
    %v2833 = vcombine.low %v2431, %v2511
    %2836 = vst [vmem:[#allocation2 + $0xb8] sm:$0xff] %v2605
    %2837 = vst [vmem:[#allocation2 + $0x180] sm:$0xff] %v2832
    %2838 = vst [vmem:[#allocation2 + $0x248] sm:$0xff] %v2607
    %2839 = vst [vmem:[#allocation2 + $0x310] sm:$0xff] %v2833
    %v2840 = vcombine.low %v2435, %v2515
    %v2841 = vcombine.low %v2439, %v2519
    %2844 = vst [vmem:[#allocation2 + $0xc0] sm:$0xff] %v2617
    %2845 = vst [vmem:[#allocation2 + $0x188] sm:$0xff] %v2840
    %2846 = vst [vmem:[#allocation2 + $0x250] sm:$0xff] %v2619
    %2847 = vst [vmem:[#allocation2 + $0x318] sm:$0xff] %v2841
    %2848 = vst [vmem:[#allocation2 + $0x320] sm:$0xff] %v2580
    %2849 = vst [vmem:[#allocation2 + $0x3e8] sm:$0xff] %v2581
    %2850 = vst [vmem:[#allocation2 + $0x4b0] sm:$0xff] %v2582
    %2851 = vst [vmem:[#allocation2 + $0x578] sm:$0xff] %v2583
    %2852 = vst [vmem:[#allocation2 + $0x328] sm:$0xff] %v2592
    %2853 = vst [vmem:[#allocation2 + $0x3f0] sm:$0xff] %v2593
    %2854 = vst [vmem:[#allocation2 + $0x4b8] sm:$0xff] %v2594
    %2855 = vst [vmem:[#allocation2 + $0x580] sm:$0xff] %v2595
    %2856 = vst [vmem:[#allocation2 + $0x330] sm:$0xff] %v2604
    %2857 = vst [vmem:[#allocation2 + $0x3f8] sm:$0xff] %v2605
    %2858 = vst [vmem:[#allocation2 + $0x4c0] sm:$0xff] %v2606
    %2859 = vst [vmem:[#allocation2 + $0x588] sm:$0xff] %v2607
    %2860 = vst [vmem:[#allocation2 + $0x338] sm:$0xff] %v2616
    %2861 = vst [vmem:[#allocation2 + $0x400] sm:$0xff] %v2617
    %2862 = vst [vmem:[#allocation2 + $0x4c8] sm:$0xff] %v2618
    %2863 = vst [vmem:[#allocation2 + $0x590] sm:$0xff] %v2619
    %v2864 = vcombine.low %v2219, %v2223
    %v2865 = vcombine.low %v2227, %v2231
    %v2866 = vcombine.low %v2235, %v2239
    %v2867 = vcombine.low %v2243, %v2247
    %2872 = vst [vmem:[#allocation2 + $0x340] sm:$0xff] %v2864
    %2873 = vst [vmem:[#allocation2 + $0x408] sm:$0xff] %v2865
    %2874 = vst [vmem:[#allocation2 + $0x4d0] sm:$0xff] %v2866
    %2875 = vst [vmem:[#allocation2 + $0x598] sm:$0xff] %v2867
    %2876 = vst [vmem:[#allocation2 + $0x348] sm:$0xff] %v2640
    %2877 = vst [vmem:[#allocation2 + $0x410] sm:$0xff] %v2641
    %2878 = vst [vmem:[#allocation2 + $0x4d8] sm:$0xff] %v2642
    %2879 = vst [vmem:[#allocation2 + $0x5a0] sm:$0xff] %v2643
    %2880 = vst [vmem:[#allocation2 + $0x350] sm:$0xff] %v2652
    %2881 = vst [vmem:[#allocation2 + $0x418] sm:$0xff] %v2653
    %2882 = vst [vmem:[#allocation2 + $0x4e0] sm:$0xff] %v2654
    %2883 = vst [vmem:[#allocation2 + $0x5a8] sm:$0xff] %v2655
    %2884 = vst [vmem:[#allocation2 + $0x358] sm:$0xff] %v2664
    %2885 = vst [vmem:[#allocation2 + $0x420] sm:$0xff] %v2665
    %2886 = vst [vmem:[#allocation2 + $0x4e8] sm:$0xff] %v2666
    %2887 = vst [vmem:[#allocation2 + $0x5b0] sm:$0xff] %v2667
    %2888 = vst [vmem:[#allocation2 + $0x360] sm:$0xff] %v2676
    %2889 = vst [vmem:[#allocation2 + $0x428] sm:$0xff] %v2677
    %2890 = vst [vmem:[#allocation2 + $0x4f0] sm:$0xff] %v2678
    %2891 = vst [vmem:[#allocation2 + $0x5b8] sm:$0xff] %v2679
    %v2892 = vcombine.low %v2379, %v2383
    %v2893 = vcombine.low %v2387, %v2391
    %v2894 = vcombine.low %v2395, %v2399
    %v2895 = vcombine.low %v2403, %v2407
    %2900 = vst [vmem:[#allocation2 + $0x368] sm:$0xff] %v2892
    %2901 = vst [vmem:[#allocation2 + $0x430] sm:$0xff] %v2893
    %2902 = vst [vmem:[#allocation2 + $0x4f8] sm:$0xff] %v2894
    %2903 = vst [vmem:[#allocation2 + $0x5c0] sm:$0xff] %v2895
    %2904 = vst [vmem:[#allocation2 + $0x370] sm:$0xff] %v2700
    %2905 = vst [vmem:[#allocation2 + $0x438] sm:$0xff] %v2701
    %2906 = vst [vmem:[#allocation2 + $0x500] sm:$0xff] %v2702
    %2907 = vst [vmem:[#allocation2 + $0x5c8] sm:$0xff] %v2703
    %2908 = vst [vmem:[#allocation2 + $0x378] sm:$0xff] %v2712
    %2909 = vst [vmem:[#allocation2 + $0x440] sm:$0xff] %v2713
    %2910 = vst [vmem:[#allocation2 + $0x508] sm:$0xff] %v2714
    %2911 = vst [vmem:[#allocation2 + $0x5d0] sm:$0xff] %v2715
    %2912 = vst [vmem:[#allocation2 + $0x380] sm:$0xff] %v2724
    %2913 = vst [vmem:[#allocation2 + $0x448] sm:$0xff] %v2725
    %2914 = vst [vmem:[#allocation2 + $0x510] sm:$0xff] %v2726
    %2915 = vst [vmem:[#allocation2 + $0x5d8] sm:$0xff] %v2727
    %2916 = vst [vmem:[#allocation2 + $0x388] sm:$0xff] %v2736
    %2917 = vst [vmem:[#allocation2 + $0x450] sm:$0xff] %v2737
    %2918 = vst [vmem:[#allocation2 + $0x518] sm:$0xff] %v2738
    %2919 = vst [vmem:[#allocation2 + $0x5e0] sm:$0xff] %v2739
    %v2920 = vcombine.low %v2223, %v2227
    %v2921 = vcombine.low %v2231, %v2443
    %v2922 = vcombine.low %v2239, %v2243
    %v2923 = vcombine.low %v2247, %v2447
    %2928 = vst [vmem:[#allocation2 + $0x390] sm:$0xff] %v2920
    %2929 = vst [vmem:[#allocation2 + $0x458] sm:$0xff] %v2921
    %2930 = vst [vmem:[#allocation2 + $0x520] sm:$0xff] %v2922
    %2931 = vst [vmem:[#allocation2 + $0x5e8] sm:$0xff] %v2923
    %2932 = vst [vmem:[#allocation2 + $0x398] sm:$0xff] %v2760
    %2933 = vst [vmem:[#allocation2 + $0x460] sm:$0xff] %v2761
    %2934 = vst [vmem:[#allocation2 + $0x528] sm:$0xff] %v2762
    %2935 = vst [vmem:[#allocation2 + $0x5f0] sm:$0xff] %v2763
    %2936 = vst [vmem:[#allocation2 + $0x3a0] sm:$0xff] %v2772
    %2937 = vst [vmem:[#allocation2 + $0x468] sm:$0xff] %v2773
    %2938 = vst [vmem:[#allocation2 + $0x530] sm:$0xff] %v2774
    %2939 = vst [vmem:[#allocation2 + $0x5f8] sm:$0xff] %v2775
    %2940 = vst [vmem:[#allocation2 + $0x3a8] sm:$0xff] %v2784
    %2941 = vst [vmem:[#allocation2 + $0x470] sm:$0xff] %v2785
    %2942 = vst [vmem:[#allocation2 + $0x538] sm:$0xff] %v2786
    %2943 = vst [vmem:[#allocation2 + $0x600] sm:$0xff] %v2787
    %2944 = vst [vmem:[#allocation2 + $0x3b0] sm:$0xff] %v2796
    %2945 = vst [vmem:[#allocation2 + $0x478] sm:$0xff] %v2797
    %2946 = vst [vmem:[#allocation2 + $0x540] sm:$0xff] %v2798
    %2947 = vst [vmem:[#allocation2 + $0x608] sm:$0xff] %v2799
    %v2948 = vcombine.low %v2383, %v2387
    %v2949 = vcombine.low %v2391, %v2483
    %v2950 = vcombine.low %v2399, %v2403
    %v2951 = vcombine.low %v2407, %v2487
    %2956 = vst [vmem:[#allocation2 + $0x3b8] sm:$0xff] %v2948
    %2957 = vst [vmem:[#allocation2 + $0x480] sm:$0xff] %v2949
    %2958 = vst [vmem:[#allocation2 + $0x548] sm:$0xff] %v2950
    %2959 = vst [vmem:[#allocation2 + $0x610] sm:$0xff] %v2951
    %2960 = vst [vmem:[#allocation2 + $0x3c0] sm:$0xff] %v2581
    %2961 = vst [vmem:[#allocation2 + $0x488] sm:$0xff] %v2816
    %2962 = vst [vmem:[#allocation2 + $0x550] sm:$0xff] %v2583
    %2963 = vst [vmem:[#allocation2 + $0x618] sm:$0xff] %v2817
    %2964 = vst [vmem:[#allocation2 + $0x3c8] sm:$0xff] %v2593
    %2965 = vst [vmem:[#allocation2 + $0x490] sm:$0xff] %v2824
    %2966 = vst [vmem:[#allocation2 + $0x558] sm:$0xff] %v2595
    %2967 = vst [vmem:[#allocation2 + $0x620] sm:$0xff] %v2825
    %2968 = vst [vmem:[#allocation2 + $0x3d0] sm:$0xff] %v2605
    %2969 = vst [vmem:[#allocation2 + $0x498] sm:$0xff] %v2832
    %2970 = vst [vmem:[#allocation2 + $0x560] sm:$0xff] %v2607
    %2971 = vst [vmem:[#allocation2 + $0x628] sm:$0xff] %v2833
    %2972 = vst [vmem:[#allocation2 + $0x3d8] sm:$0xff] %v2617
    %2973 = vst [vmem:[#allocation2 + $0x4a0] sm:$0xff] %v2840
    %2974 = vst [vmem:[#allocation2 + $0x568] sm:$0xff] %v2619
    %2975 = vst [vmem:[#allocation2 + $0x630] sm:$0xff] %v2841
    %v2976 = vcombine.low %v2443, %v2523
    %v2977 = vcombine.low %v2447, %v2527
    %2980 = vst [vmem:[#allocation2 + $0x3e0] sm:$0xff] %v2865
    %2981 = vst [vmem:[#allocation2 + $0x4a8] sm:$0xff] %v2976
    %2982 = vst [vmem:[#allocation2 + $0x570] sm:$0xff] %v2867
    %2983 = vst [vmem:[#allocation2 + $0x638] sm:$0xff] %v2977
    %2984 = vst [vmem:[#allocation2 + $0x640] sm:$0xff] %v2628
    %2985 = vst [vmem:[#allocation2 + $0x708] sm:$0xff] %v2629
    %2986 = vst [vmem:[#allocation2 + $0x7d0] sm:$0xff] %v2630
    %2987 = vst [vmem:[#allocation2 + $0x898] sm:$0xff] %v2631
    %2988 = vst [vmem:[#allocation2 + $0x648] sm:$0xff] %v2640
    %2989 = vst [vmem:[#allocation2 + $0x710] sm:$0xff] %v2641
    %2990 = vst [vmem:[#allocation2 + $0x7d8] sm:$0xff] %v2642
    %2991 = vst [vmem:[#allocation2 + $0x8a0] sm:$0xff] %v2643
    %2992 = vst [vmem:[#allocation2 + $0x650] sm:$0xff] %v2652
    %2993 = vst [vmem:[#allocation2 + $0x718] sm:$0xff] %v2653
    %2994 = vst [vmem:[#allocation2 + $0x7e0] sm:$0xff] %v2654
    %2995 = vst [vmem:[#allocation2 + $0x8a8] sm:$0xff] %v2655
    %2996 = vst [vmem:[#allocation2 + $0x658] sm:$0xff] %v2664
    %2997 = vst [vmem:[#allocation2 + $0x720] sm:$0xff] %v2665
    %2998 = vst [vmem:[#allocation2 + $0x7e8] sm:$0xff] %v2666
    %2999 = vst [vmem:[#allocation2 + $0x8b0] sm:$0xff] %v2667
    %3000 = vst [vmem:[#allocation2 + $0x660] sm:$0xff] %v2676
    %3001 = vst [vmem:[#allocation2 + $0x728] sm:$0xff] %v2677
    %3002 = vst [vmem:[#allocation2 + $0x7f0] sm:$0xff] %v2678
    %3003 = vst [vmem:[#allocation2 + $0x8b8] sm:$0xff] %v2679
    %3004 = vst [vmem:[#allocation2 + $0x668] sm:$0xff] %v2688
    %3005 = vst [vmem:[#allocation2 + $0x730] sm:$0xff] %v2689
    %3006 = vst [vmem:[#allocation2 + $0x7f8] sm:$0xff] %v2690
    %3007 = vst [vmem:[#allocation2 + $0x8c0] sm:$0xff] %v2691
    %3008 = vst [vmem:[#allocation2 + $0x670] sm:$0xff] %v2700
    %3009 = vst [vmem:[#allocation2 + $0x738] sm:$0xff] %v2701
    %3010 = vst [vmem:[#allocation2 + $0x800] sm:$0xff] %v2702
    %3011 = vst [vmem:[#allocation2 + $0x8c8] sm:$0xff] %v2703
    %3012 = vst [vmem:[#allocation2 + $0x678] sm:$0xff] %v2712
    %3013 = vst [vmem:[#allocation2 + $0x740] sm:$0xff] %v2713
    %3014 = vst [vmem:[#allocation2 + $0x808] sm:$0xff] %v2714
    %3015 = vst [vmem:[#allocation2 + $0x8d0] sm:$0xff] %v2715
    %3016 = vst [vmem:[#allocation2 + $0x680] sm:$0xff] %v2724
    %3017 = vst [vmem:[#allocation2 + $0x748] sm:$0xff] %v2725
    %3018 = vst [vmem:[#allocation2 + $0x810] sm:$0xff] %v2726
    %3019 = vst [vmem:[#allocation2 + $0x8d8] sm:$0xff] %v2727
    %3020 = vst [vmem:[#allocation2 + $0x688] sm:$0xff] %v2736
    %3021 = vst [vmem:[#allocation2 + $0x750] sm:$0xff] %v2737
    %3022 = vst [vmem:[#allocation2 + $0x818] sm:$0xff] %v2738
    %3023 = vst [vmem:[#allocation2 + $0x8e0] sm:$0xff] %v2739
    %3024 = vst [vmem:[#allocation2 + $0x690] sm:$0xff] %v2748
    %3025 = vst [vmem:[#allocation2 + $0x758] sm:$0xff] %v2749
    %3026 = vst [vmem:[#allocation2 + $0x820] sm:$0xff] %v2750
    %3027 = vst [vmem:[#allocation2 + $0x8e8] sm:$0xff] %v2751
    %3028 = vst [vmem:[#allocation2 + $0x698] sm:$0xff] %v2760
    %3029 = vst [vmem:[#allocation2 + $0x760] sm:$0xff] %v2761
    %3030 = vst [vmem:[#allocation2 + $0x828] sm:$0xff] %v2762
    %3031 = vst [vmem:[#allocation2 + $0x8f0] sm:$0xff] %v2763
    %3032 = vst [vmem:[#allocation2 + $0x6a0] sm:$0xff] %v2772
    %3033 = vst [vmem:[#allocation2 + $0x768] sm:$0xff] %v2773
    %3034 = vst [vmem:[#allocation2 + $0x830] sm:$0xff] %v2774
    %3035 = vst [vmem:[#allocation2 + $0x8f8] sm:$0xff] %v2775
    %3036 = vst [vmem:[#allocation2 + $0x6a8] sm:$0xff] %v2784
    %3037 = vst [vmem:[#allocation2 + $0x770] sm:$0xff] %v2785
    %3038 = vst [vmem:[#allocation2 + $0x838] sm:$0xff] %v2786
    %3039 = vst [vmem:[#allocation2 + $0x900] sm:$0xff] %v2787
    %3040 = vst [vmem:[#allocation2 + $0x6b0] sm:$0xff] %v2796
    %3041 = vst [vmem:[#allocation2 + $0x778] sm:$0xff] %v2797
    %3042 = vst [vmem:[#allocation2 + $0x840] sm:$0xff] %v2798
    %3043 = vst [vmem:[#allocation2 + $0x908] sm:$0xff] %v2799
    %3044 = vst [vmem:[#allocation2 + $0x6b8] sm:$0xff] %v2569
    %3045 = vst [vmem:[#allocation2 + $0x780] sm:$0xff] %v2808
    %3046 = vst [vmem:[#allocation2 + $0x848] sm:$0xff] %v2571
    %3047 = vst [vmem:[#allocation2 + $0x910] sm:$0xff] %v2809
    %3048 = vst [vmem:[#allocation2 + $0x6c0] sm:$0xff] %v2581
    %3049 = vst [vmem:[#allocation2 + $0x788] sm:$0xff] %v2816
    %3050 = vst [vmem:[#allocation2 + $0x850] sm:$0xff] %v2583
    %3051 = vst [vmem:[#allocation2 + $0x918] sm:$0xff] %v2817
    %3052 = vst [vmem:[#allocation2 + $0x6c8] sm:$0xff] %v2593
    %3053 = vst [vmem:[#allocation2 + $0x790] sm:$0xff] %v2824
    %3054 = vst [vmem:[#allocation2 + $0x858] sm:$0xff] %v2595
    %3055 = vst [vmem:[#allocation2 + $0x920] sm:$0xff] %v2825
    %3056 = vst [vmem:[#allocation2 + $0x6d0] sm:$0xff] %v2605
    %3057 = vst [vmem:[#allocation2 + $0x798] sm:$0xff] %v2832
    %3058 = vst [vmem:[#allocation2 + $0x860] sm:$0xff] %v2607
    %3059 = vst [vmem:[#allocation2 + $0x928] sm:$0xff] %v2833
    %3060 = vst [vmem:[#allocation2 + $0x6d8] sm:$0xff] %v2617
    %3061 = vst [vmem:[#allocation2 + $0x7a0] sm:$0xff] %v2840
    %3062 = vst [vmem:[#allocation2 + $0x868] sm:$0xff] %v2619
    %3063 = vst [vmem:[#allocation2 + $0x930] sm:$0xff] %v2841
    %v3064 = vcombine.low %v2050, %v2051
    %v3065 = vcombine.low %v2074, %v2075
    %3068 = vst [vmem:[#allocation2 + $0x6e0] sm:$0xff] %v2629
    %3069 = vst [vmem:[#allocation2 + $0x7a8] sm:$0xff] %v3064
    %3070 = vst [vmem:[#allocation2 + $0x870] sm:$0xff] %v2631
    %3071 = vst [vmem:[#allocation2 + $0x938] sm:$0xff] %v3065
    %v3072 = vcombine.low %v2056, %v2057
    %v3073 = vcombine.low %v2080, %v2081
    %3076 = vst [vmem:[#allocation2 + $0x6e8] sm:$0xff] %v2641
    %3077 = vst [vmem:[#allocation2 + $0x7b0] sm:$0xff] %v3072
    %3078 = vst [vmem:[#allocation2 + $0x878] sm:$0xff] %v2643
    %3079 = vst [vmem:[#allocation2 + $0x940] sm:$0xff] %v3073
    %v3080 = vcombine.low %v2455, %v2535
    %v3081 = vcombine.low %v2459, %v2539
    %3084 = vst [vmem:[#allocation2 + $0x6f0] sm:$0xff] %v2653
    %3085 = vst [vmem:[#allocation2 + $0x7b8] sm:$0xff] %v3080
    %3086 = vst [vmem:[#allocation2 + $0x880] sm:$0xff] %v2655
    %3087 = vst [vmem:[#allocation2 + $0x948] sm:$0xff] %v3081
    %v3088 = vcombine.low %v2467, %v2547
    %v3089 = vcombine.low %v2471, %v2551
    %3092 = vst [vmem:[#allocation2 + $0x6f8] sm:$0xff] %v2665
    %3093 = vst [vmem:[#allocation2 + $0x7c0] sm:$0xff] %v3088
    %3094 = vst [vmem:[#allocation2 + $0x888] sm:$0xff] %v2667
    %3095 = vst [vmem:[#allocation2 + $0x950] sm:$0xff] %v3089
    %v3096 = vcombine.low %v2475, %v2555
    %v3097 = vcombine.low %v2479, %v2559
    %3100 = vst [vmem:[#allocation2 + $0x700] sm:$0xff] %v2677
    %3101 = vst [vmem:[#allocation2 + $0x7c8] sm:$0xff] %v3096
    %3102 = vst [vmem:[#allocation2 + $0x890] sm:$0xff] %v2679
    %3103 = vst [vmem:[#allocation2 + $0x958] sm:$0xff] %v3097
    %3104 = vst [vmem:[#allocation2 + $0x960] sm:$0xff] %v2640
    %3105 = vst [vmem:[#allocation2 + $0xa28] sm:$0xff] %v2641
    %3106 = vst [vmem:[#allocation2 + $0xaf0] sm:$0xff] %v2642
    %3107 = vst [vmem:[#allocation2 + $0xbb8] sm:$0xff] %v2643
    %3108 = vst [vmem:[#allocation2 + $0x968] sm:$0xff] %v2652
    %3109 = vst [vmem:[#allocation2 + $0xa30] sm:$0xff] %v2653
    %3110 = vst [vmem:[#allocation2 + $0xaf8] sm:$0xff] %v2654
    %3111 = vst [vmem:[#allocation2 + $0xbc0] sm:$0xff] %v2655
    %3112 = vst [vmem:[#allocation2 + $0x970] sm:$0xff] %v2664
    %3113 = vst [vmem:[#allocation2 + $0xa38] sm:$0xff] %v2665
    %3114 = vst [vmem:[#allocation2 + $0xb00] sm:$0xff] %v2666
    %3115 = vst [vmem:[#allocation2 + $0xbc8] sm:$0xff] %v2667
    %3116 = vst [vmem:[#allocation2 + $0x978] sm:$0xff] %v2676
    %3117 = vst [vmem:[#allocation2 + $0xa40] sm:$0xff] %v2677
    %3118 = vst [vmem:[#allocation2 + $0xb08] sm:$0xff] %v2678
    %3119 = vst [vmem:[#allocation2 + $0xbd0] sm:$0xff] %v2679
    %3120 = vst [vmem:[#allocation2 + $0x980] sm:$0xff] %v2892
    %3121 = vst [vmem:[#allocation2 + $0xa48] sm:$0xff] %v2893
    %3122 = vst [vmem:[#allocation2 + $0xb10] sm:$0xff] %v2894
    %3123 = vst [vmem:[#allocation2 + $0xbd8] sm:$0xff] %v2895
    %3124 = vst [vmem:[#allocation2 + $0x988] sm:$0xff] %v2700
    %3125 = vst [vmem:[#allocation2 + $0xa50] sm:$0xff] %v2701
    %3126 = vst [vmem:[#allocation2 + $0xb18] sm:$0xff] %v2702
    %3127 = vst [vmem:[#allocation2 + $0xbe0] sm:$0xff] %v2703
    %3128 = vst [vmem:[#allocation2 + $0x990] sm:$0xff] %v2712
    %3129 = vst [vmem:[#allocation2 + $0xa58] sm:$0xff] %v2713
    %3130 = vst [vmem:[#allocation2 + $0xb20] sm:$0xff] %v2714
    %3131 = vst [vmem:[#allocation2 + $0xbe8] sm:$0xff] %v2715
    %3132 = vst [vmem:[#allocation2 + $0x998] sm:$0xff] %v2724
    %3133 = vst [vmem:[#allocation2 + $0xa60] sm:$0xff] %v2725
    %3134 = vst [vmem:[#allocation2 + $0xb28] sm:$0xff] %v2726
    %3135 = vst [vmem:[#allocation2 + $0xbf0] sm:$0xff] %v2727
    %3136 = vst [vmem:[#allocation2 + $0x9a0] sm:$0xff] %v2736
    %3137 = vst [vmem:[#allocation2 + $0xa68] sm:$0xff] %v2737
    %3138 = vst [vmem:[#allocation2 + $0xb30] sm:$0xff] %v2738
    %3139 = vst [vmem:[#allocation2 + $0xbf8] sm:$0xff] %v2739
    %3140 = vst [vmem:[#allocation2 + $0x9a8] sm:$0xff] %v2920
    %3141 = vst [vmem:[#allocation2 + $0xa70] sm:$0xff] %v2921
    %3142 = vst [vmem:[#allocation2 + $0xb38] sm:$0xff] %v2922
    %3143 = vst [vmem:[#allocation2 + $0xc00] sm:$0xff] %v2923
    %3144 = vst [vmem:[#allocation2 + $0x9b0] sm:$0xff] %v2760
    %3145 = vst [vmem:[#allocation2 + $0xa78] sm:$0xff] %v2761
    %3146 = vst [vmem:[#allocation2 + $0xb40] sm:$0xff] %v2762
    %3147 = vst [vmem:[#allocation2 + $0xc08] sm:$0xff] %v2763
    %3148 = vst [vmem:[#allocation2 + $0x9b8] sm:$0xff] %v2772
    %3149 = vst [vmem:[#allocation2 + $0xa80] sm:$0xff] %v2773
    %3150 = vst [vmem:[#allocation2 + $0xb48] sm:$0xff] %v2774
    %3151 = vst [vmem:[#allocation2 + $0xc10] sm:$0xff] %v2775
    %3152 = vst [vmem:[#allocation2 + $0x9c0] sm:$0xff] %v2784
    %3153 = vst [vmem:[#allocation2 + $0xa88] sm:$0xff] %v2785
    %3154 = vst [vmem:[#allocation2 + $0xb50] sm:$0xff] %v2786
    %3155 = vst [vmem:[#allocation2 + $0xc18] sm:$0xff] %v2787
    %3156 = vst [vmem:[#allocation2 + $0x9c8] sm:$0xff] %v2796
    %3157 = vst [vmem:[#allocation2 + $0xa90] sm:$0xff] %v2797
    %3158 = vst [vmem:[#allocation2 + $0xb58] sm:$0xff] %v2798
    %3159 = vst [vmem:[#allocation2 + $0xc20] sm:$0xff] %v2799
    %3160 = vst [vmem:[#allocation2 + $0x9d0] sm:$0xff] %v2948
    %3161 = vst [vmem:[#allocation2 + $0xa98] sm:$0xff] %v2949
    %3162 = vst [vmem:[#allocation2 + $0xb60] sm:$0xff] %v2950
    %3163 = vst [vmem:[#allocation2 + $0xc28] sm:$0xff] %v2951
    %3164 = vst [vmem:[#allocation2 + $0x9d8] sm:$0xff] %v2581
    %3165 = vst [vmem:[#allocation2 + $0xaa0] sm:$0xff] %v2816
    %3166 = vst [vmem:[#allocation2 + $0xb68] sm:$0xff] %v2583
    %3167 = vst [vmem:[#allocation2 + $0xc30] sm:$0xff] %v2817
    %3168 = vst [vmem:[#allocation2 + $0x9e0] sm:$0xff] %v2593
    %3169 = vst [vmem:[#allocation2 + $0xaa8] sm:$0xff] %v2824
    %3170 = vst [vmem:[#allocation2 + $0xb70] sm:$0xff] %v2595
    %3171 = vst [vmem:[#allocation2 + $0xc38] sm:$0xff] %v2825
    %3172 = vst [vmem:[#allocation2 + $0x9e8] sm:$0xff] %v2605
    %3173 = vst [vmem:[#allocation2 + $0xab0] sm:$0xff] %v2832
    %3174 = vst [vmem:[#allocation2 + $0xb78] sm:$0xff] %v2607
    %3175 = vst [vmem:[#allocation2 + $0xc40] sm:$0xff] %v2833
    %3176 = vst [vmem:[#allocation2 + $0x9f0] sm:$0xff] %v2617
    %3177 = vst [vmem:[#allocation2 + $0xab8] sm:$0xff] %v2840
    %3178 = vst [vmem:[#allocation2 + $0xb80] sm:$0xff] %v2619
    %3179 = vst [vmem:[#allocation2 + $0xc48] sm:$0xff] %v2841
    %3180 = vst [vmem:[#allocation2 + $0x9f8] sm:$0xff] %v2865
    %3181 = vst [vmem:[#allocation2 + $0xac0] sm:$0xff] %v2976
    %3182 = vst [vmem:[#allocation2 + $0xb88] sm:$0xff] %v2867
    %3183 = vst [vmem:[#allocation2 + $0xc50] sm:$0xff] %v2977
    %3184 = vst [vmem:[#allocation2 + $0xa00] sm:$0xff] %v2641
    %3185 = vst [vmem:[#allocation2 + $0xac8] sm:$0xff] %v3072
    %3186 = vst [vmem:[#allocation2 + $0xb90] sm:$0xff] %v2643
    %3187 = vst [vmem:[#allocation2 + $0xc58] sm:$0xff] %v3073
    %3188 = vst [vmem:[#allocation2 + $0xa08] sm:$0xff] %v2653
    %3189 = vst [vmem:[#allocation2 + $0xad0] sm:$0xff] %v3080
    %3190 = vst [vmem:[#allocation2 + $0xb98] sm:$0xff] %v2655
    %3191 = vst [vmem:[#allocation2 + $0xc60] sm:$0xff] %v3081
    %3192 = vst [vmem:[#allocation2 + $0xa10] sm:$0xff] %v2665
    %3193 = vst [vmem:[#allocation2 + $0xad8] sm:$0xff] %v3088
    %3194 = vst [vmem:[#allocation2 + $0xba0] sm:$0xff] %v2667
    %3195 = vst [vmem:[#allocation2 + $0xc68] sm:$0xff] %v3089
    %3196 = vst [vmem:[#allocation2 + $0xa18] sm:$0xff] %v2677
    %3197 = vst [vmem:[#allocation2 + $0xae0] sm:$0xff] %v3096
    %3198 = vst [vmem:[#allocation2 + $0xba8] sm:$0xff] %v2679
    %3199 = vst [vmem:[#allocation2 + $0xc70] sm:$0xff] %v3097
    %v3200 = vcombine.low %v2483, %v2563
    %v3201 = vcombine.low %v2487, %v2567
    %3204 = vst [vmem:[#allocation2 + $0xa20] sm:$0xff] %v2893
    %3205 = vst [vmem:[#allocation2 + $0xae8] sm:$0xff] %v3200
    %3206 = vst [vmem:[#allocation2 + $0xbb0] sm:$0xff] %v2895
    %3207 = vst [vmem:[#allocation2 + $0xc78] sm:$0xff] %v3201
    %v3208 = vld [vmem:[#allocation2] sm:$0xff]
    %v3209 = vld [vmem:[#allocation2 + $0x8] sm:$0xff]
    %v3210 = vld [vmem:[#allocation2 + $0x10] sm:$0xff]
    %v3211 = vld [vmem:[#allocation2 + $0x18] sm:$0xff]
    %v3212 = vld [vmem:[#allocation2 + $0x20] sm:$0xff]
    %v3213 = vld [vmem:[#allocation2 + $0x28] sm:$0xff]
    %v3214 = vld [vmem:[#allocation2 + $0x30] sm:$0xff]
    %v3215 = vld [vmem:[#allocation2 + $0x38] sm:$0xff]
    %v3216 = vld [vmem:[#allocation2 + $0x40] sm:$0xff]
    %v3217 = vld [vmem:[#allocation2 + $0x48] sm:$0xff]
    %v3218 = vld [vmem:[#allocation2 + $0x50] sm:$0xff]
    %v3219 = vld [vmem:[#allocation2 + $0x58] sm:$0xff]
    %v3220 = vld [vmem:[#allocation2 + $0x60] sm:$0xff]
    %v3221 = vld [vmem:[#allocation2 + $0x68] sm:$0xff]
    %v3222 = vld [vmem:[#allocation2 + $0x70] sm:$0xff]
    %v3223 = vld [vmem:[#allocation2 + $0x78] sm:$0xff]
    %v3224 = vld [vmem:[#allocation2 + $0x80] sm:$0xff]
    %v3225 = vld [vmem:[#allocation2 + $0x88] sm:$0xff]
    %v3226 = vld [vmem:[#allocation2 + $0x90] sm:$0xff]
    %v3227 = vld [vmem:[#allocation2 + $0x98] sm:$0xff]
    %v3228 = vld [vmem:[#allocation2 + $0xa0] sm:$0xff]
    %v3229 = vld [vmem:[#allocation2 + $0xa8] sm:$0xff]
    %v3230 = vld [vmem:[#allocation2 + $0xb0] sm:$0xff]
    %v3231 = vld [vmem:[#allocation2 + $0xb8] sm:$0xff]
    %v3232 = vld [vmem:[#allocation2 + $0xc0] sm:$0xff]
    %v3233 = vld [vmem:[#allocation2 + $0xc8] sm:$0xff]
    %v3234 = vld [vmem:[#allocation2 + $0xd0] sm:$0xff]
    %v3235 = vld [vmem:[#allocation2 + $0xd8] sm:$0xff]
    %v3236 = vld [vmem:[#allocation2 + $0xe0] sm:$0xff]
    %v3237 = vld [vmem:[#allocation2 + $0xe8] sm:$0xff]
    %v3238 = vld [vmem:[#allocation2 + $0xf0] sm:$0xff]
    %v3239 = vld [vmem:[#allocation2 + $0xf8] sm:$0xff]
    %v3240 = vld [vmem:[#allocation2 + $0x100] sm:$0xff]
    %v3241 = vld [vmem:[#allocation2 + $0x108] sm:$0xff]
    %v3242 = vld [vmem:[#allocation2 + $0x110] sm:$0xff]
    %v3243 = vld [vmem:[#allocation2 + $0x118] sm:$0xff]
    %v3244 = vld [vmem:[#allocation2 + $0x120] sm:$0xff]
    %v3245 = vld [vmem:[#allocation2 + $0x128] sm:$0xff]
    %v3246 = vld [vmem:[#allocation2 + $0x130] sm:$0xff]
    %v3247 = vld [vmem:[#allocation2 + $0x138] sm:$0xff]
    %v3248 = vld [vmem:[#allocation2 + $0x140] sm:$0xff]
    %v3249 = vld [vmem:[#allocation2 + $0x148] sm:$0xff]
    %v3250 = vld [vmem:[#allocation2 + $0x150] sm:$0xff]
    %v3251 = vld [vmem:[#allocation2 + $0x158] sm:$0xff]
    %v3252 = vld [vmem:[#allocation2 + $0x160] sm:$0xff]
    %v3253 = vld [vmem:[#allocation2 + $0x168] sm:$0xff]
    %v3254 = vld [vmem:[#allocation2 + $0x170] sm:$0xff]
    %v3255 = vld [vmem:[#allocation2 + $0x178] sm:$0xff]
    %v3256 = vld [vmem:[#allocation2 + $0x180] sm:$0xff]
    %v3257 = vld [vmem:[#allocation2 + $0x188] sm:$0xff]
    %v3258 = vld [vmem:[#allocation2 + $0x190] sm:$0xff]
    %v3259 = vld [vmem:[#allocation2 + $0x198] sm:$0xff]
    %v3260 = vld [vmem:[#allocation2 + $0x1a0] sm:$0xff]
    %v3261 = vld [vmem:[#allocation2 + $0x1a8] sm:$0xff]
    %v3262 = vld [vmem:[#allocation2 + $0x1b0] sm:$0xff]
    %v3263 = vld [vmem:[#allocation2 + $0x1b8] sm:$0xff]
    %v3264 = vld [vmem:[#allocation2 + $0x1c0] sm:$0xff]
    %v3265 = vld [vmem:[#allocation2 + $0x1c8] sm:$0xff]
    %v3266 = vld [vmem:[#allocation2 + $0x1d0] sm:$0xff]
    %v3267 = vld [vmem:[#allocation2 + $0x1d8] sm:$0xff]
    %v3268 = vld [vmem:[#allocation2 + $0x1e0] sm:$0xff]
    %v3269 = vld [vmem:[#allocation2 + $0x1e8] sm:$0xff]
    %v3270 = vld [vmem:[#allocation2 + $0x1f0] sm:$0xff]
    %v3271 = vld [vmem:[#allocation2 + $0x1f8] sm:$0xff]
    %v3272 = vld [vmem:[#allocation2 + $0x200] sm:$0xff]
    %v3273 = vld [vmem:[#allocation2 + $0x208] sm:$0xff]
    %v3274 = vld [vmem:[#allocation2 + $0x210] sm:$0xff]
    %v3275 = vld [vmem:[#allocation2 + $0x218] sm:$0xff]
    %v3276 = vld [vmem:[#allocation2 + $0x220] sm:$0xff]
    %v3277 = vld [vmem:[#allocation2 + $0x228] sm:$0xff]
    %v3278 = vld [vmem:[#allocation2 + $0x230] sm:$0xff]
    %v3279 = vld [vmem:[#allocation2 + $0x238] sm:$0xff]
    %v3280 = vld [vmem:[#allocation2 + $0x240] sm:$0xff]
    %v3281 = vld [vmem:[#allocation2 + $0x248] sm:$0xff]
    %v3282 = vld [vmem:[#allocation2 + $0x250] sm:$0xff]
    %v3283 = vld [vmem:[#allocation2 + $0x258] sm:$0xff]
    %v3284 = vld [vmem:[#allocation2 + $0x260] sm:$0xff]
    %v3285 = vld [vmem:[#allocation2 + $0x268] sm:$0xff]
    %v3286 = vld [vmem:[#allocation2 + $0x270] sm:$0xff]
    %v3287 = vld [vmem:[#allocation2 + $0x278] sm:$0xff]
    %v3288 = vld [vmem:[#allocation2 + $0x280] sm:$0xff]
    %v3289 = vld [vmem:[#allocation2 + $0x288] sm:$0xff]
    %v3290 = vld [vmem:[#allocation2 + $0x290] sm:$0xff]
    %v3291 = vld [vmem:[#allocation2 + $0x298] sm:$0xff]
    %v3292 = vld [vmem:[#allocation2 + $0x2a0] sm:$0xff]
    %v3293 = vld [vmem:[#allocation2 + $0x2a8] sm:$0xff]
    %v3294 = vld [vmem:[#allocation2 + $0x2b0] sm:$0xff]
    %v3295 = vld [vmem:[#allocation2 + $0x2b8] sm:$0xff]
    %v3296 = vld [vmem:[#allocation2 + $0x2c0] sm:$0xff]
    %v3297 = vld [vmem:[#allocation2 + $0x2c8] sm:$0xff]
    %v3298 = vld [vmem:[#allocation2 + $0x2d0] sm:$0xff]
    %v3299 = vld [vmem:[#allocation2 + $0x2d8] sm:$0xff]
    %v3300 = vld [vmem:[#allocation2 + $0x2e0] sm:$0xff]
    %v3301 = vld [vmem:[#allocation2 + $0x2e8] sm:$0xff]
    %v3302 = vld [vmem:[#allocation2 + $0x2f0] sm:$0xff]
    %v3303 = vld [vmem:[#allocation2 + $0x2f8] sm:$0xff]
    %v3304 = vld [vmem:[#allocation2 + $0x300] sm:$0xff]
    %v3305 = vld [vmem:[#allocation2 + $0x308] sm:$0xff]
    %v3306 = vld [vmem:[#allocation2 + $0x310] sm:$0xff]
    %v3307 = vld [vmem:[#allocation2 + $0x318] sm:$0xff]
    %v3308 = vld [vmem:[#allocation2 + $0x320] sm:$0xff]
    %v3309 = vld [vmem:[#allocation2 + $0x328] sm:$0xff]
    %v3310 = vld [vmem:[#allocation2 + $0x330] sm:$0xff]
    %v3311 = vld [vmem:[#allocation2 + $0x338] sm:$0xff]
    %v3312 = vld [vmem:[#allocation2 + $0x340] sm:$0xff]
    %v3313 = vld [vmem:[#allocation2 + $0x348] sm:$0xff]
    %v3314 = vld [vmem:[#allocation2 + $0x350] sm:$0xff]
    %v3315 = vld [vmem:[#allocation2 + $0x358] sm:$0xff]
    %v3316 = vld [vmem:[#allocation2 + $0x360] sm:$0xff]
    %v3317 = vld [vmem:[#allocation2 + $0x368] sm:$0xff]
    %v3318 = vld [vmem:[#allocation2 + $0x370] sm:$0xff]
    %v3319 = vld [vmem:[#allocation2 + $0x378] sm:$0xff]
    %v3320 = vld [vmem:[#allocation2 + $0x380] sm:$0xff]
    %v3321 = vld [vmem:[#allocation2 + $0x388] sm:$0xff]
    %v3322 = vld [vmem:[#allocation2 + $0x390] sm:$0xff]
    %v3323 = vld [vmem:[#allocation2 + $0x398] sm:$0xff]
    %v3324 = vld [vmem:[#allocation2 + $0x3a0] sm:$0xff]
    %v3325 = vld [vmem:[#allocation2 + $0x3a8] sm:$0xff]
    %v3326 = vld [vmem:[#allocation2 + $0x3b0] sm:$0xff]
    %v3327 = vld [vmem:[#allocation2 + $0x3b8] sm:$0xff]
    %v3328 = vld [vmem:[#allocation2 + $0x3c0] sm:$0xff]
    %v3329 = vld [vmem:[#allocation2 + $0x3c8] sm:$0xff]
    %v3330 = vld [vmem:[#allocation2 + $0x3d0] sm:$0xff]
    %v3331 = vld [vmem:[#allocation2 + $0x3d8] sm:$0xff]
    %v3332 = vld [vmem:[#allocation2 + $0x3e0] sm:$0xff]
    %v3333 = vld [vmem:[#allocation2 + $0x3e8] sm:$0xff]
    %v3334 = vld [vmem:[#allocation2 + $0x3f0] sm:$0xff]
    %v3335 = vld [vmem:[#allocation2 + $0x3f8] sm:$0xff]
    %v3336 = vld [vmem:[#allocation2 + $0x400] sm:$0xff]
    %v3337 = vld [vmem:[#allocation2 + $0x408] sm:$0xff]
    %v3338 = vld [vmem:[#allocation2 + $0x410] sm:$0xff]
    %v3339 = vld [vmem:[#allocation2 + $0x418] sm:$0xff]
    %v3340 = vld [vmem:[#allocation2 + $0x420] sm:$0xff]
    %v3341 = vld [vmem:[#allocation2 + $0x428] sm:$0xff]
    %v3342 = vld [vmem:[#allocation2 + $0x430] sm:$0xff]
    %v3343 = vld [vmem:[#allocation2 + $0x438] sm:$0xff]
    %v3344 = vld [vmem:[#allocation2 + $0x440] sm:$0xff]
    %v3345 = vld [vmem:[#allocation2 + $0x448] sm:$0xff]
    %v3346 = vld [vmem:[#allocation2 + $0x450] sm:$0xff]
    %v3347 = vld [vmem:[#allocation2 + $0x458] sm:$0xff]
    %v3348 = vld [vmem:[#allocation2 + $0x460] sm:$0xff]
    %v3349 = vld [vmem:[#allocation2 + $0x468] sm:$0xff]
    %v3350 = vld [vmem:[#allocation2 + $0x470] sm:$0xff]
    %v3351 = vld [vmem:[#allocation2 + $0x478] sm:$0xff]
    %v3352 = vld [vmem:[#allocation2 + $0x480] sm:$0xff]
    %v3353 = vld [vmem:[#allocation2 + $0x488] sm:$0xff]
    %v3354 = vld [vmem:[#allocation2 + $0x490] sm:$0xff]
    %v3355 = vld [vmem:[#allocation2 + $0x498] sm:$0xff]
    %v3356 = vld [vmem:[#allocation2 + $0x4a0] sm:$0xff]
    %v3357 = vld [vmem:[#allocation2 + $0x4a8] sm:$0xff]
    %v3358 = vld [vmem:[#allocation2 + $0x4b0] sm:$0xff]
    %v3359 = vld [vmem:[#allocation2 + $0x4b8] sm:$0xff]
    %v3360 = vld [vmem:[#allocation2 + $0x4c0] sm:$0xff]
    %v3361 = vld [vmem:[#allocation2 + $0x4c8] sm:$0xff]
    %v3362 = vld [vmem:[#allocation2 + $0x4d0] sm:$0xff]
    %v3363 = vld [vmem:[#allocation2 + $0x4d8] sm:$0xff]
    %v3364 = vld [vmem:[#allocation2 + $0x4e0] sm:$0xff]
    %v3365 = vld [vmem:[#allocation2 + $0x4e8] sm:$0xff]
    %v3366 = vld [vmem:[#allocation2 + $0x4f0] sm:$0xff]
    %v3367 = vld [vmem:[#allocation2 + $0x4f8] sm:$0xff]
    %v3368 = vld [vmem:[#allocation2 + $0x500] sm:$0xff]
    %v3369 = vld [vmem:[#allocation2 + $0x508] sm:$0xff]
    %v3370 = vld [vmem:[#allocation2 + $0x510] sm:$0xff]
    %v3371 = vld [vmem:[#allocation2 + $0x518] sm:$0xff]
    %v3372 = vld [vmem:[#allocation2 + $0x520] sm:$0xff]
    %v3373 = vld [vmem:[#allocation2 + $0x528] sm:$0xff]
    %v3374 = vld [vmem:[#allocation2 + $0x530] sm:$0xff]
    %v3375 = vld [vmem:[#allocation2 + $0x538] sm:$0xff]
    %v3376 = vld [vmem:[#allocation2 + $0x540] sm:$0xff]
    %v3377 = vld [vmem:[#allocation2 + $0x548] sm:$0xff]
    %v3378 = vld [vmem:[#allocation2 + $0x550] sm:$0xff]
    %v3379 = vld [vmem:[#allocation2 + $0x558] sm:$0xff]
    %v3380 = vld [vmem:[#allocation2 + $0x560] sm:$0xff]
    %v3381 = vld [vmem:[#allocation2 + $0x568] sm:$0xff]
    %v3382 = vld [vmem:[#allocation2 + $0x570] sm:$0xff]
    %v3383 = vld [vmem:[#allocation2 + $0x578] sm:$0xff]
    %v3384 = vld [vmem:[#allocation2 + $0x580] sm:$0xff]
    %v3385 = vld [vmem:[#allocation2 + $0x588] sm:$0xff]
    %v3386 = vld [vmem:[#allocation2 + $0x590] sm:$0xff]
    %v3387 = vld [vmem:[#allocation2 + $0x598] sm:$0xff]
    %v3388 = vld [vmem:[#allocation2 + $0x5a0] sm:$0xff]
    %v3389 = vld [vmem:[#allocation2 + $0x5a8] sm:$0xff]
    %v3390 = vld [vmem:[#allocation2 + $0x5b0] sm:$0xff]
    %v3391 = vld [vmem:[#allocation2 + $0x5b8] sm:$0xff]
    %v3392 = vld [vmem:[#allocation2 + $0x5c0] sm:$0xff]
    %v3393 = vld [vmem:[#allocation2 + $0x5c8] sm:$0xff]
    %v3394 = vld [vmem:[#allocation2 + $0x5d0] sm:$0xff]
    %v3395 = vld [vmem:[#allocation2 + $0x5d8] sm:$0xff]
    %v3396 = vld [vmem:[#allocation2 + $0x5e0] sm:$0xff]
    %v3397 = vld [vmem:[#allocation2 + $0x5e8] sm:$0xff]
    %v3398 = vld [vmem:[#allocation2 + $0x5f0] sm:$0xff]
    %v3399 = vld [vmem:[#allocation2 + $0x5f8] sm:$0xff]
    %v3400 = vld [vmem:[#allocation2 + $0x600] sm:$0xff]
    %v3401 = vld [vmem:[#allocation2 + $0x608] sm:$0xff]
    %v3402 = vld [vmem:[#allocation2 + $0x610] sm:$0xff]
    %v3403 = vld [vmem:[#allocation2 + $0x618] sm:$0xff]
    %v3404 = vld [vmem:[#allocation2 + $0x620] sm:$0xff]
    %v3405 = vld [vmem:[#allocation2 + $0x628] sm:$0xff]
    %v3406 = vld [vmem:[#allocation2 + $0x630] sm:$0xff]
    %v3407 = vld [vmem:[#allocation2 + $0x638] sm:$0xff]
    %v3408 = vld [vmem:[#allocation2 + $0x640] sm:$0xff]
    %v3409 = vld [vmem:[#allocation2 + $0x648] sm:$0xff]
    %v3410 = vld [vmem:[#allocation2 + $0x650] sm:$0xff]
    %v3411 = vld [vmem:[#allocation2 + $0x658] sm:$0xff]
    %v3412 = vld [vmem:[#allocation2 + $0x660] sm:$0xff]
    %v3413 = vld [vmem:[#allocation2 + $0x668] sm:$0xff]
    %v3414 = vld [vmem:[#allocation2 + $0x670] sm:$0xff]
    %v3415 = vld [vmem:[#allocation2 + $0x678] sm:$0xff]
    %v3416 = vld [vmem:[#allocation2 + $0x680] sm:$0xff]
    %v3417 = vld [vmem:[#allocation2 + $0x688] sm:$0xff]
    %v3418 = vld [vmem:[#allocation2 + $0x690] sm:$0xff]
    %v3419 = vld [vmem:[#allocation2 + $0x698] sm:$0xff]
    %v3420 = vld [vmem:[#allocation2 + $0x6a0] sm:$0xff]
    %v3421 = vld [vmem:[#allocation2 + $0x6a8] sm:$0xff]
    %v3422 = vld [vmem:[#allocation2 + $0x6b0] sm:$0xff]
    %v3423 = vld [vmem:[#allocation2 + $0x6b8] sm:$0xff]
    %v3424 = vld [vmem:[#allocation2 + $0x6c0] sm:$0xff]
    %v3425 = vld [vmem:[#allocation2 + $0x6c8] sm:$0xff]
    %v3426 = vld [vmem:[#allocation2 + $0x6d0] sm:$0xff]
    %v3427 = vld [vmem:[#allocation2 + $0x6d8] sm:$0xff]
    %v3428 = vld [vmem:[#allocation2 + $0x6e0] sm:$0xff]
    %v3429 = vld [vmem:[#allocation2 + $0x6e8] sm:$0xff]
    %v3430 = vld [vmem:[#allocation2 + $0x6f0] sm:$0xff]
    %v3431 = vld [vmem:[#allocation2 + $0x6f8] sm:$0xff]
    %v3432 = vld [vmem:[#allocation2 + $0x700] sm:$0xff]
    %v3433 = vld [vmem:[#allocation2 + $0x708] sm:$0xff]
    %v3434 = vld [vmem:[#allocation2 + $0x710] sm:$0xff]
    %v3435 = vld [vmem:[#allocation2 + $0x718] sm:$0xff]
    %v3436 = vld [vmem:[#allocation2 + $0x720] sm:$0xff]
    %v3437 = vld [vmem:[#allocation2 + $0x728] sm:$0xff]
    %v3438 = vld [vmem:[#allocation2 + $0x730] sm:$0xff]
    %v3439 = vld [vmem:[#allocation2 + $0x738] sm:$0xff]
    %v3440 = vld [vmem:[#allocation2 + $0x740] sm:$0xff]
    %v3441 = vld [vmem:[#allocation2 + $0x748] sm:$0xff]
    %v3442 = vld [vmem:[#allocation2 + $0x750] sm:$0xff]
    %v3443 = vld [vmem:[#allocation2 + $0x758] sm:$0xff]
    %v3444 = vld [vmem:[#allocation2 + $0x760] sm:$0xff]
    %v3445 = vld [vmem:[#allocation2 + $0x768] sm:$0xff]
    %v3446 = vld [vmem:[#allocation2 + $0x770] sm:$0xff]
    %v3447 = vld [vmem:[#allocation2 + $0x778] sm:$0xff]
    %v3448 = vld [vmem:[#allocation2 + $0x780] sm:$0xff]
    %v3449 = vld [vmem:[#allocation2 + $0x788] sm:$0xff]
    %v3450 = vld [vmem:[#allocation2 + $0x790] sm:$0xff]
    %v3451 = vld [vmem:[#allocation2 + $0x798] sm:$0xff]
    %v3452 = vld [vmem:[#allocation2 + $0x7a0] sm:$0xff]
    %v3453 = vld [vmem:[#allocation2 + $0x7a8] sm:$0xff]
    %v3454 = vld [vmem:[#allocation2 + $0x7b0] sm:$0xff]
    %v3455 = vld [vmem:[#allocation2 + $0x7b8] sm:$0xff]
    %v3456 = vld [vmem:[#allocation2 + $0x7c0] sm:$0xff]
    %v3457 = vld [vmem:[#allocation2 + $0x7c8] sm:$0xff]
    %v3458 = vld [vmem:[#allocation2 + $0x7d0] sm:$0xff]
    %v3459 = vld [vmem:[#allocation2 + $0x7d8] sm:$0xff]
    %v3460 = vld [vmem:[#allocation2 + $0x7e0] sm:$0xff]
    %v3461 = vld [vmem:[#allocation2 + $0x7e8] sm:$0xff]
    %v3462 = vld [vmem:[#allocation2 + $0x7f0] sm:$0xff]
    %v3463 = vld [vmem:[#allocation2 + $0x7f8] sm:$0xff]
    %v3464 = vld [vmem:[#allocation2 + $0x800] sm:$0xff]
    %v3465 = vld [vmem:[#allocation2 + $0x808] sm:$0xff]
    %v3466 = vld [vmem:[#allocation2 + $0x810] sm:$0xff]
    %v3467 = vld [vmem:[#allocation2 + $0x818] sm:$0xff]
    %v3468 = vld [vmem:[#allocation2 + $0x820] sm:$0xff]
    %v3469 = vld [vmem:[#allocation2 + $0x828] sm:$0xff]
    %v3470 = vld [vmem:[#allocation2 + $0x830] sm:$0xff]
    %v3471 = vld [vmem:[#allocation2 + $0x838] sm:$0xff]
    %v3472 = vld [vmem:[#allocation2 + $0x840] sm:$0xff]
    %v3473 = vld [vmem:[#allocation2 + $0x848] sm:$0xff]
    %v3474 = vld [vmem:[#allocation2 + $0x850] sm:$0xff]
    %v3475 = vld [vmem:[#allocation2 + $0x858] sm:$0xff]
    %v3476 = vld [vmem:[#allocation2 + $0x860] sm:$0xff]
    %v3477 = vld [vmem:[#allocation2 + $0x868] sm:$0xff]
    %v3478 = vld [vmem:[#allocation2 + $0x870] sm:$0xff]
    %v3479 = vld [vmem:[#allocation2 + $0x878] sm:$0xff]
    %v3480 = vld [vmem:[#allocation2 + $0x880] sm:$0xff]
    %v3481 = vld [vmem:[#allocation2 + $0x888] sm:$0xff]
    %v3482 = vld [vmem:[#allocation2 + $0x890] sm:$0xff]
    %v3483 = vld [vmem:[#allocation2 + $0x898] sm:$0xff]
    %v3484 = vld [vmem:[#allocation2 + $0x8a0] sm:$0xff]
    %v3485 = vld [vmem:[#allocation2 + $0x8a8] sm:$0xff]
    %v3486 = vld [vmem:[#allocation2 + $0x8b0] sm:$0xff]
    %v3487 = vld [vmem:[#allocation2 + $0x8b8] sm:$0xff]
    %v3488 = vld [vmem:[#allocation2 + $0x8c0] sm:$0xff]
    %v3489 = vld [vmem:[#allocation2 + $0x8c8] sm:$0xff]
    %v3490 = vld [vmem:[#allocation2 + $0x8d0] sm:$0xff]
    %v3491 = vld [vmem:[#allocation2 + $0x8d8] sm:$0xff]
    %v3492 = vld [vmem:[#allocation2 + $0x8e0] sm:$0xff]
    %v3493 = vld [vmem:[#allocation2 + $0x8e8] sm:$0xff]
    %v3494 = vld [vmem:[#allocation2 + $0x8f0] sm:$0xff]
    %v3495 = vld [vmem:[#allocation2 + $0x8f8] sm:$0xff]
    %v3496 = vld [vmem:[#allocation2 + $0x900] sm:$0xff]
    %v3497 = vld [vmem:[#allocation2 + $0x908] sm:$0xff]
    %v3498 = vld [vmem:[#allocation2 + $0x910] sm:$0xff]
    %v3499 = vld [vmem:[#allocation2 + $0x918] sm:$0xff]
    %v3500 = vld [vmem:[#allocation2 + $0x920] sm:$0xff]
    %v3501 = vld [vmem:[#allocation2 + $0x928] sm:$0xff]
    %v3502 = vld [vmem:[#allocation2 + $0x930] sm:$0xff]
    %v3503 = vld [vmem:[#allocation2 + $0x938] sm:$0xff]
    %v3504 = vld [vmem:[#allocation2 + $0x940] sm:$0xff]
    %v3505 = vld [vmem:[#allocation2 + $0x948] sm:$0xff]
    %v3506 = vld [vmem:[#allocation2 + $0x950] sm:$0xff]
    %v3507 = vld [vmem:[#allocation2 + $0x958] sm:$0xff]
    %v3508 = vld [vmem:[#allocation2 + $0x960] sm:$0xff]
    %v3509 = vld [vmem:[#allocation2 + $0x968] sm:$0xff]
    %v3510 = vld [vmem:[#allocation2 + $0x970] sm:$0xff]
    %v3511 = vld [vmem:[#allocation2 + $0x978] sm:$0xff]
    %v3512 = vld [vmem:[#allocation2 + $0x980] sm:$0xff]
    %v3513 = vld [vmem:[#allocation2 + $0x988] sm:$0xff]
    %v3514 = vld [vmem:[#allocation2 + $0x990] sm:$0xff]
    %v3515 = vld [vmem:[#allocation2 + $0x998] sm:$0xff]
    %v3516 = vld [vmem:[#allocation2 + $0x9a0] sm:$0xff]
    %v3517 = vld [vmem:[#allocation2 + $0x9a8] sm:$0xff]
    %v3518 = vld [vmem:[#allocation2 + $0x9b0] sm:$0xff]
    %v3519 = vld [vmem:[#allocation2 + $0x9b8] sm:$0xff]
    %v3520 = vld [vmem:[#allocation2 + $0x9c0] sm:$0xff]
    %v3521 = vld [vmem:[#allocation2 + $0x9c8] sm:$0xff]
    %v3522 = vld [vmem:[#allocation2 + $0x9d0] sm:$0xff]
    %v3523 = vld [vmem:[#allocation2 + $0x9d8] sm:$0xff]
    %v3524 = vld [vmem:[#allocation2 + $0x9e0] sm:$0xff]
    %v3525 = vld [vmem:[#allocation2 + $0x9e8] sm:$0xff]
    %v3526 = vld [vmem:[#allocation2 + $0x9f0] sm:$0xff]
    %v3527 = vld [vmem:[#allocation2 + $0x9f8] sm:$0xff]
    %v3528 = vld [vmem:[#allocation2 + $0xa00] sm:$0xff]
    %v3529 = vld [vmem:[#allocation2 + $0xa08] sm:$0xff]
    %v3530 = vld [vmem:[#allocation2 + $0xa10] sm:$0xff]
    %v3531 = vld [vmem:[#allocation2 + $0xa18] sm:$0xff]
    %v3532 = vld [vmem:[#allocation2 + $0xa20] sm:$0xff]
    %v3533 = vld [vmem:[#allocation2 + $0xa28] sm:$0xff]
    %v3534 = vld [vmem:[#allocation2 + $0xa30] sm:$0xff]
    %v3535 = vld [vmem:[#allocation2 + $0xa38] sm:$0xff]
    %v3536 = vld [vmem:[#allocation2 + $0xa40] sm:$0xff]
    %v3537 = vld [vmem:[#allocation2 + $0xa48] sm:$0xff]
    %v3538 = vld [vmem:[#allocation2 + $0xa50] sm:$0xff]
    %v3539 = vld [vmem:[#allocation2 + $0xa58] sm:$0xff]
    %v3540 = vld [vmem:[#allocation2 + $0xa60] sm:$0xff]
    %v3541 = vld [vmem:[#allocation2 + $0xa68] sm:$0xff]
    %v3542 = vld [vmem:[#allocation2 + $0xa70] sm:$0xff]
    %v3543 = vld [vmem:[#allocation2 + $0xa78] sm:$0xff]
    %v3544 = vld [vmem:[#allocation2 + $0xa80] sm:$0xff]
    %v3545 = vld [vmem:[#allocation2 + $0xa88] sm:$0xff]
    %v3546 = vld [vmem:[#allocation2 + $0xa90] sm:$0xff]
    %v3547 = vld [vmem:[#allocation2 + $0xa98] sm:$0xff]
    %v3548 = vld [vmem:[#allocation2 + $0xaa0] sm:$0xff]
    %v3549 = vld [vmem:[#allocation2 + $0xaa8] sm:$0xff]
    %v3550 = vld [vmem:[#allocation2 + $0xab0] sm:$0xff]
    %v3551 = vld [vmem:[#allocation2 + $0xab8] sm:$0xff]
    %v3552 = vld [vmem:[#allocation2 + $0xac0] sm:$0xff]
    %v3553 = vld [vmem:[#allocation2 + $0xac8] sm:$0xff]
    %v3554 = vld [vmem:[#allocation2 + $0xad0] sm:$0xff]
    %v3555 = vld [vmem:[#allocation2 + $0xad8] sm:$0xff]
    %v3556 = vld [vmem:[#allocation2 + $0xae0] sm:$0xff]
    %v3557 = vld [vmem:[#allocation2 + $0xae8] sm:$0xff]
    %v3558 = vld [vmem:[#allocation2 + $0xaf0] sm:$0xff]
    %v3559 = vld [vmem:[#allocation2 + $0xaf8] sm:$0xff]
    %v3560 = vld [vmem:[#allocation2 + $0xb00] sm:$0xff]
    %v3561 = vld [vmem:[#allocation2 + $0xb08] sm:$0xff]
    %v3562 = vld [vmem:[#allocation2 + $0xb10] sm:$0xff]
    %v3563 = vld [vmem:[#allocation2 + $0xb18] sm:$0xff]
    %v3564 = vld [vmem:[#allocation2 + $0xb20] sm:$0xff]
    %v3565 = vld [vmem:[#allocation2 + $0xb28] sm:$0xff]
    %v3566 = vld [vmem:[#allocation2 + $0xb30] sm:$0xff]
    %v3567 = vld [vmem:[#allocation2 + $0xb38] sm:$0xff]
    %v3568 = vld [vmem:[#allocation2 + $0xb40] sm:$0xff]
    %v3569 = vld [vmem:[#allocation2 + $0xb48] sm:$0xff]
    %v3570 = vld [vmem:[#allocation2 + $0xb50] sm:$0xff]
    %v3571 = vld [vmem:[#allocation2 + $0xb58] sm:$0xff]
    %v3572 = vld [vmem:[#allocation2 + $0xb60] sm:$0xff]
    %v3573 = vld [vmem:[#allocation2 + $0xb68] sm:$0xff]
    %v3574 = vld [vmem:[#allocation2 + $0xb70] sm:$0xff]
    %v3575 = vld [vmem:[#allocation2 + $0xb78] sm:$0xff]
    %v3576 = vld [vmem:[#allocation2 + $0xb80] sm:$0xff]
    %v3577 = vld [vmem:[#allocation2 + $0xb88] sm:$0xff]
    %v3578 = vld [vmem:[#allocation2 + $0xb90] sm:$0xff]
    %v3579 = vld [vmem:[#allocation2 + $0xb98] sm:$0xff]
    %v3580 = vld [vmem:[#allocation2 + $0xba0] sm:$0xff]
    %v3581 = vld [vmem:[#allocation2 + $0xba8] sm:$0xff]
    %v3582 = vld [vmem:[#allocation2 + $0xbb0] sm:$0xff]
    %v3583 = vld [vmem:[#allocation2 + $0xbb8] sm:$0xff]
    %v3584 = vld [vmem:[#allocation2 + $0xbc0] sm:$0xff]
    %v3585 = vld [vmem:[#allocation2 + $0xbc8] sm:$0xff]
    %v3586 = vld [vmem:[#allocation2 + $0xbd0] sm:$0xff]
    %v3587 = vld [vmem:[#allocation2 + $0xbd8] sm:$0xff]
    %v3588 = vld [vmem:[#allocation2 + $0xbe0] sm:$0xff]
    %v3589 = vld [vmem:[#allocation2 + $0xbe8] sm:$0xff]
    %v3590 = vld [vmem:[#allocation2 + $0xbf0] sm:$0xff]
    %v3591 = vld [vmem:[#allocation2 + $0xbf8] sm:$0xff]
    %v3592 = vld [vmem:[#allocation2 + $0xc00] sm:$0xff]
    %v3593 = vld [vmem:[#allocation2 + $0xc08] sm:$0xff]
    %v3594 = vld [vmem:[#allocation2 + $0xc10] sm:$0xff]
    %v3595 = vld [vmem:[#allocation2 + $0xc18] sm:$0xff]
    %v3596 = vld [vmem:[#allocation2 + $0xc20] sm:$0xff]
    %v3597 = vld [vmem:[#allocation2 + $0xc28] sm:$0xff]
    %v3598 = vld [vmem:[#allocation2 + $0xc30] sm:$0xff]
    %v3599 = vld [vmem:[#allocation2 + $0xc38] sm:$0xff]
    %v3600 = vld [vmem:[#allocation2 + $0xc40] sm:$0xff]
    %v3601 = vld [vmem:[#allocation2 + $0xc48] sm:$0xff]
    %v3602 = vld [vmem:[#allocation2 + $0xc50] sm:$0xff]
    %v3603 = vld [vmem:[#allocation2 + $0xc58] sm:$0xff]
    %v3604 = vld [vmem:[#allocation2 + $0xc60] sm:$0xff]
    %v3605 = vld [vmem:[#allocation2 + $0xc68] sm:$0xff]
    %v3606 = vld [vmem:[#allocation2 + $0xc70] sm:$0xff]
    %v3607 = vld [vmem:[#allocation2 + $0xc78] sm:$0xff]
    %v3608 = vld [vmem:[%s3] sm:$0xff]
    %v3609 = vld [vmem:[%s3 + $0x8] sm:$0xff]
    %v3610 = vld [vmem:[%s3 + $0x10] sm:$0xff]
    %v3611 = vld [vmem:[%s3 + $0x18] sm:$0xff]
    %v3612 = vld [vmem:[%s3 + $0x20] sm:$0xff]
    %v3613 = vld [vmem:[%s3 + $0x28] sm:$0xff]
    %v3614 = vld [vmem:[%s3 + $0x30] sm:$0xff]
    %v3615 = vld [vmem:[%s3 + $0x38] sm:$0xff]
    %v3616 = vld [vmem:[%s3 + $0x40] sm:$0xff]
    %v3617 = vld [vmem:[%s3 + $0x48] sm:$0xff]
    %v3618 = vld [vmem:[%s3 + $0x50] sm:$0xff]
    %v3619 = vld [vmem:[%s3 + $0x58] sm:$0xff]
    %v3620 = vld [vmem:[%s3 + $0x60] sm:$0xff]
    %v3621 = vld [vmem:[%s3 + $0x68] sm:$0xff]
    %v3622 = vld [vmem:[%s3 + $0x70] sm:$0xff]
    %v3623 = vld [vmem:[%s3 + $0x78] sm:$0xff]
    %v3624 = vld [vmem:[%s3 + $0x80] sm:$0xff]
    %v3625 = vld [vmem:[%s3 + $0x88] sm:$0xff]
    %v3626 = vld [vmem:[%s3 + $0x90] sm:$0xff]
    %v3627 = vld [vmem:[%s3 + $0x98] sm:$0xff]
    %v3628 = vld [vmem:[%s3 + $0xa0] sm:$0xff]
    %v3629 = vld [vmem:[%s3 + $0xa8] sm:$0xff]
    %v3630 = vld [vmem:[%s3 + $0xb0] sm:$0xff]
    %v3631 = vld [vmem:[%s3 + $0xb8] sm:$0xff]
    %v3632 = vld [vmem:[%s3 + $0xc0] sm:$0xff]
    %v3633 = vld [vmem:[%s3 + $0xc8] sm:$0xff]
    %v3634 = vld [vmem:[%s3 + $0xd0] sm:$0xff]
    %v3635 = vld [vmem:[%s3 + $0xd8] sm:$0xff]
    %v3636 = vld [vmem:[%s3 + $0xe0] sm:$0xff]
    %v3637 = vld [vmem:[%s3 + $0xe8] sm:$0xff]
    %v3638 = vld [vmem:[%s3 + $0xf0] sm:$0xff]
    %v3639 = vld [vmem:[%s3 + $0xf8] sm:$0xff]
    %v3640 = vld [vmem:[%s3 + $0x100] sm:$0xff]
    %v3641 = vld [vmem:[%s3 + $0x108] sm:$0xff]
    %v3642 = vld [vmem:[%s3 + $0x110] sm:$0xff]
    %v3643 = vld [vmem:[%s3 + $0x118] sm:$0xff]
    %v3644 = vld [vmem:[%s3 + $0x120] sm:$0xff]
    %v3645 = vld [vmem:[%s3 + $0x128] sm:$0xff]
    %v3646 = vld [vmem:[%s3 + $0x130] sm:$0xff]
    %v3647 = vld [vmem:[%s3 + $0x138] sm:$0xff]
    %v3648 = vld [vmem:[%s3 + $0x140] sm:$0xff]
    %v3649 = vld [vmem:[%s3 + $0x148] sm:$0xff]
    %v3650 = vld [vmem:[%s3 + $0x150] sm:$0xff]
    %v3651 = vld [vmem:[%s3 + $0x158] sm:$0xff]
    %v3652 = vld [vmem:[%s3 + $0x160] sm:$0xff]
    %v3653 = vld [vmem:[%s3 + $0x168] sm:$0xff]
    %v3654 = vld [vmem:[%s3 + $0x170] sm:$0xff]
    %v3655 = vld [vmem:[%s3 + $0x178] sm:$0xff]
    %v3656 = vld [vmem:[%s3 + $0x180] sm:$0xff]
    %v3657 = vld [vmem:[%s3 + $0x188] sm:$0xff]
    %v3658 = vld [vmem:[%s3 + $0x190] sm:$0xff]
    %v3659 = vld [vmem:[%s3 + $0x198] sm:$0xff]
    %v3660 = vld [vmem:[%s3 + $0x1a0] sm:$0xff]
    %v3661 = vld [vmem:[%s3 + $0x1a8] sm:$0xff]
    %v3662 = vld [vmem:[%s3 + $0x1b0] sm:$0xff]
    %v3663 = vld [vmem:[%s3 + $0x1b8] sm:$0xff]
    %v3664 = vld [vmem:[%s3 + $0x1c0] sm:$0xff]
    %v3665 = vld [vmem:[%s3 + $0x1c8] sm:$0xff]
    %v3666 = vld [vmem:[%s3 + $0x1d0] sm:$0xff]
    %v3667 = vld [vmem:[%s3 + $0x1d8] sm:$0xff]
    %v3668 = vld [vmem:[%s3 + $0x1e0] sm:$0xff]
    %v3669 = vld [vmem:[%s3 + $0x1e8] sm:$0xff]
    %v3670 = vld [vmem:[%s3 + $0x1f0] sm:$0xff]
    %v3671 = vld [vmem:[%s3 + $0x1f8] sm:$0xff]
    %v3672 = vld [vmem:[%s3 + $0x200] sm:$0xff]
    %v3673 = vld [vmem:[%s3 + $0x208] sm:$0xff]
    %v3674 = vld [vmem:[%s3 + $0x210] sm:$0xff]
    %v3675 = vld [vmem:[%s3 + $0x218] sm:$0xff]
    %v3676 = vld [vmem:[%s3 + $0x220] sm:$0xff]
    %v3677 = vld [vmem:[%s3 + $0x228] sm:$0xff]
    %v3678 = vld [vmem:[%s3 + $0x230] sm:$0xff]
    %v3679 = vld [vmem:[%s3 + $0x238] sm:$0xff]
    %v3680 = vld [vmem:[%s3 + $0x240] sm:$0xff]
    %v3681 = vld [vmem:[%s3 + $0x248] sm:$0xff]
    %v3682 = vld [vmem:[%s3 + $0x250] sm:$0xff]
    %v3683 = vld [vmem:[%s3 + $0x258] sm:$0xff]
    %v3684 = vld [vmem:[%s3 + $0x260] sm:$0xff]
    %v3685 = vld [vmem:[%s3 + $0x268] sm:$0xff]
    %v3686 = vld [vmem:[%s3 + $0x270] sm:$0xff]
    %v3687 = vld [vmem:[%s3 + $0x278] sm:$0xff]
    %v3688 = vld [vmem:[%s3 + $0x280] sm:$0xff]
    %v3689 = vld [vmem:[%s3 + $0x288] sm:$0xff]
    %v3690 = vld [vmem:[%s3 + $0x290] sm:$0xff]
    %v3691 = vld [vmem:[%s3 + $0x298] sm:$0xff]
    %v3692 = vld [vmem:[%s3 + $0x2a0] sm:$0xff]
    %v3693 = vld [vmem:[%s3 + $0x2a8] sm:$0xff]
    %v3694 = vld [vmem:[%s3 + $0x2b0] sm:$0xff]
    %v3695 = vld [vmem:[%s3 + $0x2b8] sm:$0xff]
    %v3696 = vld [vmem:[%s3 + $0x2c0] sm:$0xff]
    %v3697 = vld [vmem:[%s3 + $0x2c8] sm:$0xff]
    %v3698 = vld [vmem:[%s3 + $0x2d0] sm:$0xff]
    %v3699 = vld [vmem:[%s3 + $0x2d8] sm:$0xff]
    %v3700 = vld [vmem:[%s3 + $0x2e0] sm:$0xff]
    %v3701 = vld [vmem:[%s3 + $0x2e8] sm:$0xff]
    %v3702 = vld [vmem:[%s3 + $0x2f0] sm:$0xff]
    %v3703 = vld [vmem:[%s3 + $0x2f8] sm:$0xff]
    %v3704 = vld [vmem:[%s3 + $0x300] sm:$0xff]
    %v3705 = vld [vmem:[%s3 + $0x308] sm:$0xff]
    %v3706 = vld [vmem:[%s3 + $0x310] sm:$0xff]
    %v3707 = vld [vmem:[%s3 + $0x318] sm:$0xff]
    %v3708 = vld [vmem:[%s3 + $0x320] sm:$0xff]
    %v3709 = vld [vmem:[%s3 + $0x328] sm:$0xff]
    %v3710 = vld [vmem:[%s3 + $0x330] sm:$0xff]
    %v3711 = vld [vmem:[%s3 + $0x338] sm:$0xff]
    %v3712 = vld [vmem:[%s3 + $0x340] sm:$0xff]
    %v3713 = vld [vmem:[%s3 + $0x348] sm:$0xff]
    %v3714 = vld [vmem:[%s3 + $0x350] sm:$0xff]
    %v3715 = vld [vmem:[%s3 + $0x358] sm:$0xff]
    %v3716 = vld [vmem:[%s3 + $0x360] sm:$0xff]
    %v3717 = vld [vmem:[%s3 + $0x368] sm:$0xff]
    %v3718 = vld [vmem:[%s3 + $0x370] sm:$0xff]
    %v3719 = vld [vmem:[%s3 + $0x378] sm:$0xff]
    %v3720 = vld [vmem:[%s3 + $0x380] sm:$0xff]
    %v3721 = vld [vmem:[%s3 + $0x388] sm:$0xff]
    %v3722 = vld [vmem:[%s3 + $0x390] sm:$0xff]
    %v3723 = vld [vmem:[%s3 + $0x398] sm:$0xff]
    %v3724 = vld [vmem:[%s3 + $0x3a0] sm:$0xff]
    %v3725 = vld [vmem:[%s3 + $0x3a8] sm:$0xff]
    %v3726 = vld [vmem:[%s3 + $0x3b0] sm:$0xff]
    %v3727 = vld [vmem:[%s3 + $0x3b8] sm:$0xff]
    %v3728 = vld [vmem:[%s3 + $0x3c0] sm:$0xff]
    %v3729 = vld [vmem:[%s3 + $0x3c8] sm:$0xff]
    %v3730 = vld [vmem:[%s3 + $0x3d0] sm:$0xff]
    %v3731 = vld [vmem:[%s3 + $0x3d8] sm:$0xff]
    %v3732 = vld [vmem:[%s3 + $0x3e0] sm:$0xff]
    %v3733 = vld [vmem:[%s3 + $0x3e8] sm:$0xff]
    %v3734 = vld [vmem:[%s3 + $0x3f0] sm:$0xff]
    %v3735 = vld [vmem:[%s3 + $0x3f8] sm:$0xff]
    %v3736 = vld [vmem:[%s3 + $0x400] sm:$0xff]
    %v3737 = vld [vmem:[%s3 + $0x408] sm:$0xff]
    %v3738 = vld [vmem:[%s3 + $0x410] sm:$0xff]
    %v3739 = vld [vmem:[%s3 + $0x418] sm:$0xff]
    %v3740 = vld [vmem:[%s3 + $0x420] sm:$0xff]
    %v3741 = vld [vmem:[%s3 + $0x428] sm:$0xff]
    %v3742 = vld [vmem:[%s3 + $0x430] sm:$0xff]
    %v3743 = vld [vmem:[%s3 + $0x438] sm:$0xff]
    %v3744 = vld [vmem:[%s3 + $0x440] sm:$0xff]
    %v3745 = vld [vmem:[%s3 + $0x448] sm:$0xff]
    %v3746 = vld [vmem:[%s3 + $0x450] sm:$0xff]
    %v3747 = vld [vmem:[%s3 + $0x458] sm:$0xff]
    %v3748 = vld [vmem:[%s3 + $0x460] sm:$0xff]
    %v3749 = vld [vmem:[%s3 + $0x468] sm:$0xff]
    %v3750 = vld [vmem:[%s3 + $0x470] sm:$0xff]
    %v3751 = vld [vmem:[%s3 + $0x478] sm:$0xff]
    %v3752 = vld [vmem:[%s3 + $0x480] sm:$0xff]
    %v3753 = vld [vmem:[%s3 + $0x488] sm:$0xff]
    %v3754 = vld [vmem:[%s3 + $0x490] sm:$0xff]
    %v3755 = vld [vmem:[%s3 + $0x498] sm:$0xff]
    %v3756 = vld [vmem:[%s3 + $0x4a0] sm:$0xff]
    %v3757 = vld [vmem:[%s3 + $0x4a8] sm:$0xff]
    %v3758 = vld [vmem:[%s3 + $0x4b0] sm:$0xff]
    %v3759 = vld [vmem:[%s3 + $0x4b8] sm:$0xff]
    %v3760 = vld [vmem:[%s3 + $0x4c0] sm:$0xff]
    %v3761 = vld [vmem:[%s3 + $0x4c8] sm:$0xff]
    %v3762 = vld [vmem:[%s3 + $0x4d0] sm:$0xff]
    %v3763 = vld [vmem:[%s3 + $0x4d8] sm:$0xff]
    %v3764 = vld [vmem:[%s3 + $0x4e0] sm:$0xff]
    %v3765 = vld [vmem:[%s3 + $0x4e8] sm:$0xff]
    %v3766 = vld [vmem:[%s3 + $0x4f0] sm:$0xff]
    %v3767 = vld [vmem:[%s3 + $0x4f8] sm:$0xff]
    %v3768 = vld [vmem:[%s3 + $0x500] sm:$0xff]
    %v3769 = vld [vmem:[%s3 + $0x508] sm:$0xff]
    %v3770 = vld [vmem:[%s3 + $0x510] sm:$0xff]
    %v3771 = vld [vmem:[%s3 + $0x518] sm:$0xff]
    %v3772 = vld [vmem:[%s3 + $0x520] sm:$0xff]
    %v3773 = vld [vmem:[%s3 + $0x528] sm:$0xff]
    %v3774 = vld [vmem:[%s3 + $0x530] sm:$0xff]
    %v3775 = vld [vmem:[%s3 + $0x538] sm:$0xff]
    %v3776 = vld [vmem:[%s3 + $0x540] sm:$0xff]
    %v3777 = vld [vmem:[%s3 + $0x548] sm:$0xff]
    %v3778 = vld [vmem:[%s3 + $0x550] sm:$0xff]
    %v3779 = vld [vmem:[%s3 + $0x558] sm:$0xff]
    %v3780 = vld [vmem:[%s3 + $0x560] sm:$0xff]
    %v3781 = vld [vmem:[%s3 + $0x568] sm:$0xff]
    %v3782 = vld [vmem:[%s3 + $0x570] sm:$0xff]
    %v3783 = vld [vmem:[%s3 + $0x578] sm:$0xff]
    %v3784 = vld [vmem:[%s3 + $0x580] sm:$0xff]
    %v3785 = vld [vmem:[%s3 + $0x588] sm:$0xff]
    %v3786 = vld [vmem:[%s3 + $0x590] sm:$0xff]
    %v3787 = vld [vmem:[%s3 + $0x598] sm:$0xff]
    %v3788 = vld [vmem:[%s3 + $0x5a0] sm:$0xff]
    %v3789 = vld [vmem:[%s3 + $0x5a8] sm:$0xff]
    %v3790 = vld [vmem:[%s3 + $0x5b0] sm:$0xff]
    %v3791 = vld [vmem:[%s3 + $0x5b8] sm:$0xff]
    %v3792 = vld [vmem:[%s3 + $0x5c0] sm:$0xff]
    %v3793 = vld [vmem:[%s3 + $0x5c8] sm:$0xff]
    %v3794 = vld [vmem:[%s3 + $0x5d0] sm:$0xff]
    %v3795 = vld [vmem:[%s3 + $0x5d8] sm:$0xff]
    %v3796 = vld [vmem:[%s3 + $0x5e0] sm:$0xff]
    %v3797 = vld [vmem:[%s3 + $0x5e8] sm:$0xff]
    %v3798 = vld [vmem:[%s3 + $0x5f0] sm:$0xff]
    %v3799 = vld [vmem:[%s3 + $0x5f8] sm:$0xff]
    %v3800 = vld [vmem:[%s3 + $0x600] sm:$0xff]
    %v3801 = vld [vmem:[%s3 + $0x608] sm:$0xff]
    %v3802 = vld [vmem:[%s3 + $0x610] sm:$0xff]
    %v3803 = vld [vmem:[%s3 + $0x618] sm:$0xff]
    %v3804 = vld [vmem:[%s3 + $0x620] sm:$0xff]
    %v3805 = vld [vmem:[%s3 + $0x628] sm:$0xff]
    %v3806 = vld [vmem:[%s3 + $0x630] sm:$0xff]
    %v3807 = vld [vmem:[%s3 + $0x638] sm:$0xff]
    %v3808 = vld [vmem:[%s3 + $0x640] sm:$0xff]
    %v3809 = vld [vmem:[%s3 + $0x648] sm:$0xff]
    %v3810 = vld [vmem:[%s3 + $0x650] sm:$0xff]
    %v3811 = vld [vmem:[%s3 + $0x658] sm:$0xff]
    %v3812 = vld [vmem:[%s3 + $0x660] sm:$0xff]
    %v3813 = vld [vmem:[%s3 + $0x668] sm:$0xff]
    %v3814 = vld [vmem:[%s3 + $0x670] sm:$0xff]
    %v3815 = vld [vmem:[%s3 + $0x678] sm:$0xff]
    %v3816 = vld [vmem:[%s3 + $0x680] sm:$0xff]
    %v3817 = vld [vmem:[%s3 + $0x688] sm:$0xff]
    %v3818 = vld [vmem:[%s3 + $0x690] sm:$0xff]
    %v3819 = vld [vmem:[%s3 + $0x698] sm:$0xff]
    %v3820 = vld [vmem:[%s3 + $0x6a0] sm:$0xff]
    %v3821 = vld [vmem:[%s3 + $0x6a8] sm:$0xff]
    %v3822 = vld [vmem:[%s3 + $0x6b0] sm:$0xff]
    %v3823 = vld [vmem:[%s3 + $0x6b8] sm:$0xff]
    %v3824 = vld [vmem:[%s3 + $0x6c0] sm:$0xff]
    %v3825 = vld [vmem:[%s3 + $0x6c8] sm:$0xff]
    %v3826 = vld [vmem:[%s3 + $0x6d0] sm:$0xff]
    %v3827 = vld [vmem:[%s3 + $0x6d8] sm:$0xff]
    %v3828 = vld [vmem:[%s3 + $0x6e0] sm:$0xff]
    %v3829 = vld [vmem:[%s3 + $0x6e8] sm:$0xff]
    %v3830 = vld [vmem:[%s3 + $0x6f0] sm:$0xff]
    %v3831 = vld [vmem:[%s3 + $0x6f8] sm:$0xff]
    %v3832 = vld [vmem:[%s3 + $0x700] sm:$0xff]
    %v3833 = vld [vmem:[%s3 + $0x708] sm:$0xff]
    %v3834 = vld [vmem:[%s3 + $0x710] sm:$0xff]
    %v3835 = vld [vmem:[%s3 + $0x718] sm:$0xff]
    %v3836 = vld [vmem:[%s3 + $0x720] sm:$0xff]
    %v3837 = vld [vmem:[%s3 + $0x728] sm:$0xff]
    %v3838 = vld [vmem:[%s3 + $0x730] sm:$0xff]
    %v3839 = vld [vmem:[%s3 + $0x738] sm:$0xff]
    %v3840 = vld [vmem:[%s3 + $0x740] sm:$0xff]
    %v3841 = vld [vmem:[%s3 + $0x748] sm:$0xff]
    %v3842 = vld [vmem:[%s3 + $0x750] sm:$0xff]
    %v3843 = vld [vmem:[%s3 + $0x758] sm:$0xff]
    %v3844 = vld [vmem:[%s3 + $0x760] sm:$0xff]
    %v3845 = vld [vmem:[%s3 + $0x768] sm:$0xff]
    %v3846 = vld [vmem:[%s3 + $0x770] sm:$0xff]
    %v3847 = vld [vmem:[%s3 + $0x778] sm:$0xff]
    %v3848 = vld [vmem:[%s3 + $0x780] sm:$0xff]
    %v3849 = vld [vmem:[%s3 + $0x788] sm:$0xff]
    %v3850 = vld [vmem:[%s3 + $0x790] sm:$0xff]
    %v3851 = vld [vmem:[%s3 + $0x798] sm:$0xff]
    %v3852 = vld [vmem:[%s3 + $0x7a0] sm:$0xff]
    %v3853 = vld [vmem:[%s3 + $0x7a8] sm:$0xff]
    %v3854 = vld [vmem:[%s3 + $0x7b0] sm:$0xff]
    %v3855 = vld [vmem:[%s3 + $0x7b8] sm:$0xff]
    %v3856 = vld [vmem:[%s3 + $0x7c0] sm:$0xff]
    %v3857 = vld [vmem:[%s3 + $0x7c8] sm:$0xff]
    %v3858 = vld [vmem:[%s3 + $0x7d0] sm:$0xff]
    %v3859 = vld [vmem:[%s3 + $0x7d8] sm:$0xff]
    %v3860 = vld [vmem:[%s3 + $0x7e0] sm:$0xff]
    %v3861 = vld [vmem:[%s3 + $0x7e8] sm:$0xff]
    %v3862 = vld [vmem:[%s3 + $0x7f0] sm:$0xff]
    %v3863 = vld [vmem:[%s3 + $0x7f8] sm:$0xff]
    %v3864 = vld [vmem:[%s3 + $0x800] sm:$0xff]
    %v3865 = vld [vmem:[%s3 + $0x808] sm:$0xff]
    %v3866 = vld [vmem:[%s3 + $0x810] sm:$0xff]
    %v3867 = vld [vmem:[%s3 + $0x818] sm:$0xff]
    %v3868 = vld [vmem:[%s3 + $0x820] sm:$0xff]
    %v3869 = vld [vmem:[%s3 + $0x828] sm:$0xff]
    %v3870 = vld [vmem:[%s3 + $0x830] sm:$0xff]
    %v3871 = vld [vmem:[%s3 + $0x838] sm:$0xff]
    %v3872 = vld [vmem:[%s3 + $0x840] sm:$0xff]
    %v3873 = vld [vmem:[%s3 + $0x848] sm:$0xff]
    %v3874 = vld [vmem:[%s3 + $0x850] sm:$0xff]
    %v3875 = vld [vmem:[%s3 + $0x858] sm:$0xff]
    %v3876 = vld [vmem:[%s3 + $0x860] sm:$0xff]
    %v3877 = vld [vmem:[%s3 + $0x868] sm:$0xff]
    %v3878 = vld [vmem:[%s3 + $0x870] sm:$0xff]
    %v3879 = vld [vmem:[%s3 + $0x878] sm:$0xff]
    %v3880 = vld [vmem:[%s3 + $0x880] sm:$0xff]
    %v3881 = vld [vmem:[%s3 + $0x888] sm:$0xff]
    %v3882 = vld [vmem:[%s3 + $0x890] sm:$0xff]
    %v3883 = vld [vmem:[%s3 + $0x898] sm:$0xff]
    %v3884 = vld [vmem:[%s3 + $0x8a0] sm:$0xff]
    %v3885 = vld [vmem:[%s3 + $0x8a8] sm:$0xff]
    %v3886 = vld [vmem:[%s3 + $0x8b0] sm:$0xff]
    %v3887 = vld [vmem:[%s3 + $0x8b8] sm:$0xff]
    %v3888 = vld [vmem:[%s3 + $0x8c0] sm:$0xff]
    %v3889 = vld [vmem:[%s3 + $0x8c8] sm:$0xff]
    %v3890 = vld [vmem:[%s3 + $0x8d0] sm:$0xff]
    %v3891 = vld [vmem:[%s3 + $0x8d8] sm:$0xff]
    %v3892 = vld [vmem:[%s3 + $0x8e0] sm:$0xff]
    %v3893 = vld [vmem:[%s3 + $0x8e8] sm:$0xff]
    %v3894 = vld [vmem:[%s3 + $0x8f0] sm:$0xff]
    %v3895 = vld [vmem:[%s3 + $0x8f8] sm:$0xff]
    %v3896 = vld [vmem:[%s3 + $0x900] sm:$0xff]
    %v3897 = vld [vmem:[%s3 + $0x908] sm:$0xff]
    %v3898 = vld [vmem:[%s3 + $0x910] sm:$0xff]
    %v3899 = vld [vmem:[%s3 + $0x918] sm:$0xff]
    %v3900 = vld [vmem:[%s3 + $0x920] sm:$0xff]
    %v3901 = vld [vmem:[%s3 + $0x928] sm:$0xff]
    %v3902 = vld [vmem:[%s3 + $0x930] sm:$0xff]
    %v3903 = vld [vmem:[%s3 + $0x938] sm:$0xff]
    %v3904 = vld [vmem:[%s3 + $0x940] sm:$0xff]
    %v3905 = vld [vmem:[%s3 + $0x948] sm:$0xff]
    %v3906 = vld [vmem:[%s3 + $0x950] sm:$0xff]
    %v3907 = vld [vmem:[%s3 + $0x958] sm:$0xff]
    %v3908 = vld [vmem:[%s3 + $0x960] sm:$0xff]
    %v3909 = vld [vmem:[%s3 + $0x968] sm:$0xff]
    %v3910 = vld [vmem:[%s3 + $0x970] sm:$0xff]
    %v3911 = vld [vmem:[%s3 + $0x978] sm:$0xff]
    %v3912 = vld [vmem:[%s3 + $0x980] sm:$0xff]
    %v3913 = vld [vmem:[%s3 + $0x988] sm:$0xff]
    %v3914 = vld [vmem:[%s3 + $0x990] sm:$0xff]
    %v3915 = vld [vmem:[%s3 + $0x998] sm:$0xff]
    %v3916 = vld [vmem:[%s3 + $0x9a0] sm:$0xff]
    %v3917 = vld [vmem:[%s3 + $0x9a8] sm:$0xff]
    %v3918 = vld [vmem:[%s3 + $0x9b0] sm:$0xff]
    %v3919 = vld [vmem:[%s3 + $0x9b8] sm:$0xff]
    %v3920 = vld [vmem:[%s3 + $0x9c0] sm:$0xff]
    %v3921 = vld [vmem:[%s3 + $0x9c8] sm:$0xff]
    %v3922 = vld [vmem:[%s3 + $0x9d0] sm:$0xff]
    %v3923 = vld [vmem:[%s3 + $0x9d8] sm:$0xff]
    %v3924 = vld [vmem:[%s3 + $0x9e0] sm:$0xff]
    %v3925 = vld [vmem:[%s3 + $0x9e8] sm:$0xff]
    %v3926 = vld [vmem:[%s3 + $0x9f0] sm:$0xff]
    %v3927 = vld [vmem:[%s3 + $0x9f8] sm:$0xff]
    %v3928 = vld [vmem:[%s3 + $0xa00] sm:$0xff]
    %v3929 = vld [vmem:[%s3 + $0xa08] sm:$0xff]
    %v3930 = vld [vmem:[%s3 + $0xa10] sm:$0xff]
    %v3931 = vld [vmem:[%s3 + $0xa18] sm:$0xff]
    %v3932 = vld [vmem:[%s3 + $0xa20] sm:$0xff]
    %v3933 = vld [vmem:[%s3 + $0xa28] sm:$0xff]
    %v3934 = vld [vmem:[%s3 + $0xa30] sm:$0xff]
    %v3935 = vld [vmem:[%s3 + $0xa38] sm:$0xff]
    %v3936 = vld [vmem:[%s3 + $0xa40] sm:$0xff]
    %v3937 = vld [vmem:[%s3 + $0xa48] sm:$0xff]
    %v3938 = vld [vmem:[%s3 + $0xa50] sm:$0xff]
    %v3939 = vld [vmem:[%s3 + $0xa58] sm:$0xff]
    %v3940 = vld [vmem:[%s3 + $0xa60] sm:$0xff]
    %v3941 = vld [vmem:[%s3 + $0xa68] sm:$0xff]
    %v3942 = vld [vmem:[%s3 + $0xa70] sm:$0xff]
    %v3943 = vld [vmem:[%s3 + $0xa78] sm:$0xff]
    %v3944 = vld [vmem:[%s3 + $0xa80] sm:$0xff]
    %v3945 = vld [vmem:[%s3 + $0xa88] sm:$0xff]
    %v3946 = vld [vmem:[%s3 + $0xa90] sm:$0xff]
    %v3947 = vld [vmem:[%s3 + $0xa98] sm:$0xff]
    %v3948 = vld [vmem:[%s3 + $0xaa0] sm:$0xff]
    %v3949 = vld [vmem:[%s3 + $0xaa8] sm:$0xff]
    %v3950 = vld [vmem:[%s3 + $0xab0] sm:$0xff]
    %v3951 = vld [vmem:[%s3 + $0xab8] sm:$0xff]
    %v3952 = vld [vmem:[%s3 + $0xac0] sm:$0xff]
    %v3953 = vld [vmem:[%s3 + $0xac8] sm:$0xff]
    %v3954 = vld [vmem:[%s3 + $0xad0] sm:$0xff]
    %v3955 = vld [vmem:[%s3 + $0xad8] sm:$0xff]
    %v3956 = vld [vmem:[%s3 + $0xae0] sm:$0xff]
    %v3957 = vld [vmem:[%s3 + $0xae8] sm:$0xff]
    %v3958 = vld [vmem:[%s3 + $0xaf0] sm:$0xff]
    %v3959 = vld [vmem:[%s3 + $0xaf8] sm:$0xff]
    %v3960 = vld [vmem:[%s3 + $0xb00] sm:$0xff]
    %v3961 = vld [vmem:[%s3 + $0xb08] sm:$0xff]
    %v3962 = vld [vmem:[%s3 + $0xb10] sm:$0xff]
    %v3963 = vld [vmem:[%s3 + $0xb18] sm:$0xff]
    %v3964 = vld [vmem:[%s3 + $0xb20] sm:$0xff]
    %v3965 = vld [vmem:[%s3 + $0xb28] sm:$0xff]
    %v3966 = vld [vmem:[%s3 + $0xb30] sm:$0xff]
    %v3967 = vld [vmem:[%s3 + $0xb38] sm:$0xff]
    %v3968 = vld [vmem:[%s3 + $0xb40] sm:$0xff]
    %v3969 = vld [vmem:[%s3 + $0xb48] sm:$0xff]
    %v3970 = vld [vmem:[%s3 + $0xb50] sm:$0xff]
    %v3971 = vld [vmem:[%s3 + $0xb58] sm:$0xff]
    %v3972 = vld [vmem:[%s3 + $0xb60] sm:$0xff]
    %v3973 = vld [vmem:[%s3 + $0xb68] sm:$0xff]
    %v3974 = vld [vmem:[%s3 + $0xb70] sm:$0xff]
    %v3975 = vld [vmem:[%s3 + $0xb78] sm:$0xff]
    %v3976 = vld [vmem:[%s3 + $0xb80] sm:$0xff]
    %v3977 = vld [vmem:[%s3 + $0xb88] sm:$0xff]
    %v3978 = vld [vmem:[%s3 + $0xb90] sm:$0xff]
    %v3979 = vld [vmem:[%s3 + $0xb98] sm:$0xff]
    %v3980 = vld [vmem:[%s3 + $0xba0] sm:$0xff]
    %v3981 = vld [vmem:[%s3 + $0xba8] sm:$0xff]
    %v3982 = vld [vmem:[%s3 + $0xbb0] sm:$0xff]
    %v3983 = vld [vmem:[%s3 + $0xbb8] sm:$0xff]
    %v3984 = vld [vmem:[%s3 + $0xbc0] sm:$0xff]
    %v3985 = vld [vmem:[%s3 + $0xbc8] sm:$0xff]
    %v3986 = vld [vmem:[%s3 + $0xbd0] sm:$0xff]
    %v3987 = vld [vmem:[%s3 + $0xbd8] sm:$0xff]
    %v3988 = vld [vmem:[%s3 + $0xbe0] sm:$0xff]
    %v3989 = vld [vmem:[%s3 + $0xbe8] sm:$0xff]
    %v3990 = vld [vmem:[%s3 + $0xbf0] sm:$0xff]
    %v3991 = vld [vmem:[%s3 + $0xbf8] sm:$0xff]
    %v3992 = vld [vmem:[%s3 + $0xc00] sm:$0xff]
    %v3993 = vld [vmem:[%s3 + $0xc08] sm:$0xff]
    %v3994 = vld [vmem:[%s3 + $0xc10] sm:$0xff]
    %v3995 = vld [vmem:[%s3 + $0xc18] sm:$0xff]
    %v3996 = vld [vmem:[%s3 + $0xc20] sm:$0xff]
    %v3997 = vld [vmem:[%s3 + $0xc28] sm:$0xff]
    %v3998 = vld [vmem:[%s3 + $0xc30] sm:$0xff]
    %v3999 = vld [vmem:[%s3 + $0xc38] sm:$0xff]
    %v4000 = vld [vmem:[%s3 + $0xc40] sm:$0xff]
    %v4001 = vld [vmem:[%s3 + $0xc48] sm:$0xff]
    %v4002 = vld [vmem:[%s3 + $0xc50] sm:$0xff]
    %v4003 = vld [vmem:[%s3 + $0xc58] sm:$0xff]
    %v4004 = vld [vmem:[%s3 + $0xc60] sm:$0xff]
    %v4005 = vld [vmem:[%s3 + $0xc68] sm:$0xff]
    %v4006 = vld [vmem:[%s3 + $0xc70] sm:$0xff]
    %v4007 = vld [vmem:[%s3 + $0xc78] sm:$0xff]
    %4008 = vmatprep.subr.mxu0 0.0
    %4009 = vmatpush1.msra.mxu0 %v3608
    %4010 = vmatprep.subr.mxu0 0.0
    %4011 = vmatpush1.msra.mxu0 %v3609
    %4012 = vmatprep.subr.mxu0 0.0
    %4013 = vmatpush1.msra.mxu0 %v3610
    %4014 = vmatprep.subr.mxu0 0.0
    %4015 = vmatpush1.msra.mxu0 %v3611
    %4016 = vmatprep.subr.mxu0 0.0
    %4017 = vmatpush1.msra.mxu0 %v3612
    %4018 = vmatprep.subr.mxu0 0.0
    %4019 = vmatpush1.msra.mxu0 %v3613
    %4020 = vmatprep.subr.mxu0 0.0
    %4021 = vmatpush1.msra.mxu0 %v3614
    %4022 = vmatprep.subr.mxu0 0.0
    %4023 = vmatpush1.msra.mxu0 %v3615
    %4024 = vmatprep.subr.mxu0 0.0
    %4025 = vmatpush1.msra.mxu0 %v3616
    %4026 = vmatprep.subr.mxu0 0.0
    %4027 = vmatpush1.msra.mxu0 %v3617
    %4028 = vmatprep.subr.mxu0 0.0
    %4029 = vmatpush1.msra.mxu0 %v3618
    %4030 = vmatprep.subr.mxu0 0.0
    %4031 = vmatpush1.msra.mxu0 %v3619
    %4032 = vmatprep.subr.mxu0 0.0
    %4033 = vmatpush1.msra.mxu0 %v3620
    %4034 = vmatprep.subr.mxu0 0.0
    %4035 = vmatpush1.msra.mxu0 %v3621
    %4036 = vmatprep.subr.mxu0 0.0
    %4037 = vmatpush1.msra.mxu0 %v3622
    %4038 = vmatprep.subr.mxu0 0.0
    %4039 = vmatpush1.msra.mxu0 %v3623
    %4040 = vmatprep.subr.mxu0 0.0
    %4041 = vmatpush1.msra.mxu0 %v3624
    %4042 = vmatprep.subr.mxu0 0.0
    %4043 = vmatpush1.msra.mxu0 %v3625
    %4044 = vmatprep.subr.mxu0 0.0
    %4045 = vmatpush1.msra.mxu0 %v3626
    %4046 = vmatprep.subr.mxu0 0.0
    %4047 = vmatpush1.msra.mxu0 %v3627
    %4048 = vmatprep.subr.mxu0 0.0
    %4049 = vmatpush1.msra.mxu0 %v3628
    %4050 = vmatprep.subr.mxu0 0.0
    %4051 = vmatpush1.msra.mxu0 %v3629
    %4052 = vmatprep.subr.mxu0 0.0
    %4053 = vmatpush1.msra.mxu0 %v3630
    %4054 = vmatprep.subr.mxu0 0.0
    %4055 = vmatpush1.msra.mxu0 %v3631
    %4056 = vmatprep.subr.mxu0 0.0
    %4057 = vmatpush1.msra.mxu0 %v3632
    %4058 = vmatprep.subr.mxu0 0.0
    %4059 = vmatpush1.msra.mxu0 %v3633
    %4060 = vmatprep.subr.mxu0 0.0
    %4061 = vmatpush1.msra.mxu0 %v3634
    %4062 = vmatprep.subr.mxu0 0.0
    %4063 = vmatpush1.msra.mxu0 %v3635
    %4064 = vmatprep.subr.mxu0 0.0
    %4065 = vmatpush1.msra.mxu0 %v3636
    %4066 = vmatprep.subr.mxu0 0.0
    %4067 = vmatpush1.msra.mxu0 %v3637
    %4068 = vmatprep.subr.mxu0 0.0
    %4069 = vmatpush1.msra.mxu0 %v3638
    %4070 = vmatprep.subr.mxu0 0.0
    %4071 = vmatpush1.msra.mxu0 %v3639
    %4072 = vmatprep.mubr.f32.mxu0 %v3209
    %4073 = vmatmul.mubr.f32.gmra.mrb[0].mxu0 %v3208
    %v4074 = vpop.f32.mrb[0].mxu0
    %v4075 = vadd.f32 0.0, %v4074
    %v4076 = vpop.f32.mrb[0].mxu0
    %4077 = vmatprep.mubr.f32.mxu0 %v3234
    %4078 = vmatmul.mubr.f32.gmra.mrb[0].mxu0 %v3233
    %v4079 = vpop.f32.mrb[0].mxu0
    %v4080 = vadd.f32 0.0, %v4079
    %v4081 = vpop.f32.mrb[0].mxu0
    %4082 = vmatprep.mubr.f32.mxu0 %v3259
    %4083 = vmatmul.mubr.f32.gmra.mrb[0].mxu0 %v3258
    %v4084 = vpop.f32.mrb[0].mxu0
    %v4085 = vadd.f32 0.0, %v4084
    %v4086 = vpop.f32.mrb[0].mxu0
    %4087 = vmatprep.mubr.f32.mxu0 %v3284
    %4088 = vmatmul.mubr.f32.gmra.mrb[0].mxu0 %v3283
    %v4089 = vpop.f32.mrb[0].mxu0
    %v4090 = vadd.f32 0.0, %v4089
    %v4091 = vpop.f32.mrb[0].mxu0
    %4092 = vmatprep.mubr.f32.mxu0 %v3309
    %4093 = vmatmul.mubr.f32.gmra.mrb[0].mxu0 %v3308
    %v4094 = vpop.f32.mrb[0].mxu0
    %v4095 = vadd.f32 0.0, %v4094
    %v4096 = vpop.f32.mrb[0].mxu0
    %4097 = vmatprep.mubr.f32.mxu0 %v3334
    %4098 = vmatmul.mubr.f32.gmra.mrb[0].mxu0 %v3333
    %v4099 = vpop.f32.mrb[0].mxu0
    %v4100 = vadd.f32 0.0, %v4099
    %v4101 = vpop.f32.mrb[0].mxu0
    %4102 = vmatprep.mubr.f32.mxu0 %v3359
    %4103 = vmatmul.mubr.f32.gmra.mrb[0].mxu0 %v3358
    %v4104 = vpop.f32.mrb[0].mxu0
    %v4105 = vadd.f32 0.0, %v4104
    %v4106 = vpop.f32.mrb[0].mxu0
    %4107 = vmatprep.mubr.f32.mxu0 %v3384
    %4108 = vmatmul.mubr.f32.gmra.mrb[0].mxu0 %v3383
    %v4109 = vpop.f32.mrb[0].mxu0
    %v4110 = vadd.f32 0.0, %v4109
    %v4111 = vpop.f32.mrb[0].mxu0
    %4112 = vmatprep.mubr.f32.mxu0 %v3409
    %4113 = vmatmul.mubr.f32.gmra.mrb[0].mxu0 %v3408
    %v4114 = vpop.f32.mrb[0].mxu0
    %v4115 = vadd.f32 0.0, %v4114
    %v4116 = vpop.f32.mrb[0].mxu0
    %4117 = vmatprep.mubr.f32.mxu0 %v3434
    %4118 = vmatmul.mubr.f32.gmra.mrb[0].mxu0 %v3433
    %v4119 = vpop.f32.mrb[0].mxu0
    %v4120 = vadd.f32 0.0, %v4119
    %v4121 = vpop.f32.mrb[0].mxu0
    %4122 = vmatprep.mubr.f32.mxu0 %v3459
    %4123 = vmatmul.mubr.f32.gmra.mrb[0].mxu0 %v3458
    %v4124 = vpop.f32.mrb[0].mxu0
    %v4125 = vadd.f32 0.0, %v4124
    %v4126 = vpop.f32.mrb[0].mxu0
    %4127 = vmatprep.mubr.f32.mxu0 %v3484
    %4128 = vmatmul.mubr.f32.gmra.mrb[0].mxu0 %v3483
    %v4129 = vpop.f32.mrb[0].mxu0
    %v4130 = vadd.f32 0.0, %v4129
    %v4131 = vpop.f32.mrb[0].mxu0
    %4132 = vmatprep.mubr.f32.mxu0 %v3509
    %4133 = vmatmul.mubr.f32.gmra.mrb[0].mxu0 %v3508
    %v4134 = vpop.f32.mrb[0].mxu0
    %v4135 = vadd.f32 0.0, %v4134
    %v4136 = vpop.f32.mrb[0].mxu0
    %4137 = vmatprep.mubr.f32.mxu0 %v3534
    %4138 = vmatmul.mubr.f32.gmra.mrb[0].mxu0 %v3533
    %v4139 = vpop.f32.mrb[0].mxu0
    %v4140 = vadd.f32 0.0, %v4139
    %v4141 = vpop.f32.mrb[0].mxu0
    %4142 = vmatprep.mubr.f32.mxu0 %v3559
    %4143 = vmatmul.mubr.f32.gmra.mrb[0].mxu0 %v3558
    %v4144 = vpop.f32.mrb[0].mxu0
    %v4145 = vadd.f32 0.0, %v4144
    %v4146 = vpop.f32.mrb[0].mxu0
    %4147 = vmatprep.mubr.f32.mxu0 %v3584
    %4148 = vmatmul.mubr.f32.gmra.mrb[0].mxu0 %v3583
    %v4149 = vpop.f32.mrb[0].mxu0
    %v4150 = vadd.f32 0.0, %v4149
    %v4151 = vpop.f32.mrb[0].mxu0
    %4152 = vdwg.mxu0
    %4153 = vmatprep.subr.mxu0 0.0
    %4154 = vmatpush1.msra.mxu0 %v3640
    %4155 = vmatprep.subr.mxu0 0.0
    %4156 = vmatpush1.msra.mxu0 %v3641
    %4157 = vmatprep.subr.mxu0 0.0
    %4158 = vmatpush1.msra.mxu0 %v3642
    %4159 = vmatprep.subr.mxu0 0.0
    %4160 = vmatpush1.msra.mxu0 %v3643
    %4161 = vmatprep.subr.mxu0 0.0
    %4162 = vmatpush1.msra.mxu0 %v3644
    %4163 = vmatprep.subr.mxu0 0.0
    %4164 = vmatpush1.msra.mxu0 %v3645
    %4165 = vmatprep.subr.mxu0 0.0
    %4166 = vmatpush1.msra.mxu0 %v3646
    %4167 = vmatprep.subr.mxu0 0.0
    %4168 = vmatpush1.msra.mxu0 %v3647
    %4169 = vmatprep.subr.mxu0 0.0
    %4170 = vmatpush1.msra.mxu0 %v3648
    %4171 = vmatprep.subr.mxu0 0.0
    %4172 = vmatpush1.msra.mxu0 %v3649
    %4173 = vmatprep.subr.mxu0 0.0
    %4174 = vmatpush1.msra.mxu0 %v3650
    %4175 = vmatprep.subr.mxu0 0.0
    %4176 = vmatpush1.msra.mxu0 %v3651
    %4177 = vmatprep.subr.mxu0 0.0
    %4178 = vmatpush1.msra.mxu0 %v3652
    %4179 = vmatprep.subr.mxu0 0.0
    %4180 = vmatpush1.msra.mxu0 %v3653
    %4181 = vmatprep.subr.mxu0 0.0
    %4182 = vmatpush1.msra.mxu0 %v3654
    %4183 = vmatprep.subr.mxu0 0.0
    %4184 = vmatpush1.msra.mxu0 %v3655
    %4185 = vmatprep.subr.mxu0 0.0
    %4186 = vmatpush1.msra.mxu0 %v3656
    %4187 = vmatprep.subr.mxu0 0.0
    %4188 = vmatpush1.msra.mxu0 %v3657
    %4189 = vmatprep.subr.mxu0 0.0
    %4190 = vmatpush1.msra.mxu0 %v3658
    %4191 = vmatprep.subr.mxu0 0.0
    %4192 = vmatpush1.msra.mxu0 %v3659
    %4193 = vmatprep.subr.mxu0 0.0
    %4194 = vmatpush1.msra.mxu0 %v3660
    %4195 = vmatprep.subr.mxu0 0.0
    %4196 = vmatpush1.msra.mxu0 %v3661
    %4197 = vmatprep.subr.mxu0 0.0
    %4198 = vmatpush1.msra.mxu0 %v3662
    %4199 = vmatprep.subr.mxu0 0.0
    %4200 = vmatpush1.msra.mxu0 %v3663
    %4201 = vmatprep.subr.mxu0 0.0
    %4202 = vmatpush1.msra.mxu0 %v3664
    %4203 = vmatprep.subr.mxu0 0.0
    %4204 = vmatpush1.msra.mxu0 %v3665
    %4205 = vmatprep.subr.mxu0 0.0
    %4206 = vmatpush1.msra.mxu0 %v3666
    %4207 = vmatprep.subr.mxu0 0.0
    %4208 = vmatpush1.msra.mxu0 %v3667
    %4209 = vmatprep.subr.mxu0 0.0
    %4210 = vmatpush1.msra.mxu0 %v3668
    %4211 = vmatprep.subr.mxu0 0.0
    %4212 = vmatpush1.msra.mxu0 %v3669
    %4213 = vmatprep.subr.mxu0 0.0
    %4214 = vmatpush1.msra.mxu0 %v3670
    %4215 = vmatprep.subr.mxu0 0.0
    %4216 = vmatpush1.msra.mxu0 %v3671
    %4217 = vmatprep.mubr.f32.mxu0 %v3211
    %4218 = vmatmul.mubr.f32.gmra.mrb[0].mxu0 %v3210
    %v4219 = vpop.f32.mrb[0].mxu0
    %v4220 = vadd.f32 %v4075, %v4219
    %v4221 = vpop.f32.mrb[0].mxu0
    %4222 = vmatprep.mubr.f32.mxu0 %v3236
    %4223 = vmatmul.mubr.f32.gmra.mrb[0].mxu0 %v3235
    %v4224 = vpop.f32.mrb[0].mxu0
    %v4225 = vadd.f32 %v4080, %v4224
    %v4226 = vpop.f32.mrb[0].mxu0
    %4227 = vmatprep.mubr.f32.mxu0 %v3261
    %4228 = vmatmul.mubr.f32.gmra.mrb[0].mxu0 %v3260
    %v4229 = vpop.f32.mrb[0].mxu0
    %v4230 = vadd.f32 %v4085, %v4229
    %v4231 = vpop.f32.mrb[0].mxu0
    %4232 = vmatprep.mubr.f32.mxu0 %v3286
    %4233 = vmatmul.mubr.f32.gmra.mrb[0].mxu0 %v3285
    %v4234 = vpop.f32.mrb[0].mxu0
    %v4235 = vadd.f32 %v4090, %v4234
    %v4236 = vpop.f32.mrb[0].mxu0
    %4237 = vmatprep.mubr.f32.mxu0 %v3311
    %4238 = vmatmul.mubr.f32.gmra.mrb[0].mxu0 %v3310
    %v4239 = vpop.f32.mrb[0].mxu0
    %v4240 = vadd.f32 %v4095, %v4239
    %v4241 = vpop.f32.mrb[0].mxu0
    %4242 = vmatprep.mubr.f32.mxu0 %v3336
    %4243 = vmatmul.mubr.f32.gmra.mrb[0].mxu0 %v3335
    %v4244 = vpop.f32.mrb[0].mxu0
    %v4245 = vadd.f32 %v4100, %v4244
    %v4246 = vpop.f32.mrb[0].mxu0
    %4247 = vmatprep.mubr.f32.mxu0 %v3361
    %4248 = vmatmul.mubr.f32.gmra.mrb[0].mxu0 %v3360
    %v4249 = vpop.f32.mrb[0].mxu0
    %v4250 = vadd.f32 %v4105, %v4249
    %v4251 = vpop.f32.mrb[0].mxu0
    %4252 = vmatprep.mubr.f32.mxu0 %v3386
    %4253 = vmatmul.mubr.f32.gmra.mrb[0].mxu0 %v3385
    %v4254 = vpop.f32.mrb[0].mxu0
    %v4255 = vadd.f32 %v4110, %v4254
    %v4256 = vpop.f32.mrb[0].mxu0
    %4257 = vmatprep.mubr.f32.mxu0 %v3411
    %4258 = vmatmul.mubr.f32.gmra.mrb[0].mxu0 %v3410
    %v4259 = vpop.f32.mrb[0].mxu0
    %v4260 = vadd.f32 %v4115, %v4259
    %v4261 = vpop.f32.mrb[0].mxu0
    %4262 = vmatprep.mubr.f32.mxu0 %v3436
    %4263 = vmatmul.mubr.f32.gmra.mrb[0].mxu0 %v3435
    %v4264 = vpop.f32.mrb[0].mxu0
    %v4265 = vadd.f32 %v4120, %v4264
    %v4266 = vpop.f32.mrb[0].mxu0
    %4267 = vmatprep.mubr.f32.mxu0 %v3461
    %4268 = vmatmul.mubr.f32.gmra.mrb[0].mxu0 %v3460
    %v4269 = vpop.f32.mrb[0].mxu0
    %v4270 = vadd.f32 %v4125, %v4269
    %v4271 = vpop.f32.mrb[0].mxu0
    %4272 = vmatprep.mubr.f32.mxu0 %v3486
    %4273 = vmatmul.mubr.f32.gmra.mrb[0].mxu0 %v3485
    %v4274 = vpop.f32.mrb[0].mxu0
    %v4275 = vadd.f32 %v4130, %v4274
    %v4276 = vpop.f32.mrb[0].mxu0
    %4277 = vmatprep.mubr.f32.mxu0 %v3511
    %4278 = vmatmul.mubr.f32.gmra.mrb[0].mxu0 %v3510
    %v4279 = vpop.f32.mrb[0].mxu0
    %v4280 = vadd.f32 %v4135, %v4279
    %v4281 = vpop.f32.mrb[0].mxu0
    %4282 = vmatprep.mubr.f32.mxu0 %v3536
    %4283 = vmatmul.mubr.f32.gmra.mrb[0].mxu0 %v3535
    %v4284 = vpop.f32.mrb[0].mxu0
    %v4285 = vadd.f32 %v4140, %v4284
    %v4286 = vpop.f32.mrb[0].mxu0
    %4287 = vmatprep.mubr.f32.mxu0 %v3561
    %4288 = vmatmul.mubr.f32.gmra.mrb[0].mxu0 %v3560
    %v4289 = vpop.f32.mrb[0].mxu0
    %v4290 = vadd.f32 %v4145, %v4289
    %v4291 = vpop.f32.mrb[0].mxu0
    %4292 = vmatprep.mubr.f32.mxu0 %v3586
    %4293 = vmatmul.mubr.f32.gmra.mrb[0].mxu0 %v3585
    %v4294 = vpop.f32.mrb[0].mxu0
    %v4295 = vadd.f32 %v4150, %v4294
    %v4296 = vpop.f32.mrb[0].mxu0
    %4297 = vdwg.mxu0
    %4298 = vmatprep.subr.mxu0 0.0
    %4299 = vmatpush1.msra.mxu0 %v3672
    %4300 = vmatprep.subr.mxu0 0.0
    %4301 = vmatpush1.msra.mxu0 %v3673
    %4302 = vmatprep.subr.mxu0 0.0
    %4303 = vmatpush1.msra.mxu0 %v3674
    %4304 = vmatprep.subr.mxu0 0.0
    %4305 = vmatpush1.msra.mxu0 %v3675
    %4306 = vmatprep.subr.mxu0 0.0
    %4307 = vmatpush1.msra.mxu0 %v3676
    %4308 = vmatprep.subr.mxu0 0.0
    %4309 = vmatpush1.msra.mxu0 %v3677
    %4310 = vmatprep.subr.mxu0 0.0
    %4311 = vmatpush1.msra.mxu0 %v3678
    %4312 = vmatprep.subr.mxu0 0.0
    %4313 = vmatpush1.msra.mxu0 %v3679
    %4314 = vmatprep.subr.mxu0 0.0
    %4315 = vmatpush1.msra.mxu0 %v3680
    %4316 = vmatprep.subr.mxu0 0.0
    %4317 = vmatpush1.msra.mxu0 %v3681
    %4318 = vmatprep.subr.mxu0 0.0
    %4319 = vmatpush1.msra.mxu0 %v3682
    %4320 = vmatprep.subr.mxu0 0.0
    %4321 = vmatpush1.msra.mxu0 %v3683
    %4322 = vmatprep.subr.mxu0 0.0
    %4323 = vmatpush1.msra.mxu0 %v3684
    %4324 = vmatprep.subr.mxu0 0.0
    %4325 = vmatpush1.msra.mxu0 %v3685
    %4326 = vmatprep.subr.mxu0 0.0
    %4327 = vmatpush1.msra.mxu0 %v3686
    %4328 = vmatprep.subr.mxu0 0.0
    %4329 = vmatpush1.msra.mxu0 %v3687
    %4330 = vmatprep.subr.mxu0 0.0
    %4331 = vmatpush1.msra.mxu0 %v3688
    %4332 = vmatprep.subr.mxu0 0.0
    %4333 = vmatpush1.msra.mxu0 %v3689
    %4334 = vmatprep.subr.mxu0 0.0
    %4335 = vmatpush1.msra.mxu0 %v3690
    %4336 = vmatprep.subr.mxu0 0.0
    %4337 = vmatpush1.msra.mxu0 %v3691
    %4338 = vmatprep.subr.mxu0 0.0
    %4339 = vmatpush1.msra.mxu0 %v3692
    %4340 = vmatprep.subr.mxu0 0.0
    %4341 = vmatpush1.msra.mxu0 %v3693
    %4342 = vmatprep.subr.mxu0 0.0
    %4343 = vmatpush1.msra.mxu0 %v3694
    %4344 = vmatprep.subr.mxu0 0.0
    %4345 = vmatpush1.msra.mxu0 %v3695
    %4346 = vmatprep.subr.mxu0 0.0
    %4347 = vmatpush1.msra.mxu0 %v3696
    %4348 = vmatprep.subr.mxu0 0.0
    %4349 = vmatpush1.msra.mxu0 %v3697
    %4350 = vmatprep.subr.mxu0 0.0
    %4351 = vmatpush1.msra.mxu0 %v3698
    %4352 = vmatprep.subr.mxu0 0.0
    %4353 = vmatpush1.msra.mxu0 %v3699
    %4354 = vmatprep.subr.mxu0 0.0
    %4355 = vmatpush1.msra.mxu0 %v3700
    %4356 = vmatprep.subr.mxu0 0.0
    %4357 = vmatpush1.msra.mxu0 %v3701
    %4358 = vmatprep.subr.mxu0 0.0
    %4359 = vmatpush1.msra.mxu0 %v3702
    %4360 = vmatprep.subr.mxu0 0.0
    %4361 = vmatpush1.msra.mxu0 %v3703
    %4362 = vmatprep.mubr.f32.mxu0 %v3213
    %4363 = vmatmul.mubr.f32.gmra.mrb[0].mxu0 %v3212
    %v4364 = vpop.f32.mrb[0].mxu0
    %v4365 = vadd.f32 %v4220, %v4364
    %v4366 = vpop.f32.mrb[0].mxu0
    %4367 = vmatprep.mubr.f32.mxu0 %v3238
    %4368 = vmatmul.mubr.f32.gmra.mrb[0].mxu0 %v3237
    %v4369 = vpop.f32.mrb[0].mxu0
    %v4370 = vadd.f32 %v4225, %v4369
    %v4371 = vpop.f32.mrb[0].mxu0
    %4372 = vmatprep.mubr.f32.mxu0 %v3263
    %4373 = vmatmul.mubr.f32.gmra.mrb[0].mxu0 %v3262
    %v4374 = vpop.f32.mrb[0].mxu0
    %v4375 = vadd.f32 %v4230, %v4374
    %v4376 = vpop.f32.mrb[0].mxu0
    %4377 = vmatprep.mubr.f32.mxu0 %v3288
    %4378 = vmatmul.mubr.f32.gmra.mrb[0].mxu0 %v3287
    %v4379 = vpop.f32.mrb[0].mxu0
    %v4380 = vadd.f32 %v4235, %v4379
    %v4381 = vpop.f32.mrb[0].mxu0
    %4382 = vmatprep.mubr.f32.mxu0 %v3313
    %4383 = vmatmul.mubr.f32.gmra.mrb[0].mxu0 %v3312
    %v4384 = vpop.f32.mrb[0].mxu0
    %v4385 = vadd.f32 %v4240, %v4384
    %v4386 = vpop.f32.mrb[0].mxu0
    %4387 = vmatprep.mubr.f32.mxu0 %v3338
    %4388 = vmatmul.mubr.f32.gmra.mrb[0].mxu0 %v3337
    %v4389 = vpop.f32.mrb[0].mxu0
    %v4390 = vadd.f32 %v4245, %v4389
    %v4391 = vpop.f32.mrb[0].mxu0
    %4392 = vmatprep.mubr.f32.mxu0 %v3363
    %4393 = vmatmul.mubr.f32.gmra.mrb[0].mxu0 %v3362
    %v4394 = vpop.f32.mrb[0].mxu0
    %v4395 = vadd.f32 %v4250, %v4394
    %v4396 = vpop.f32.mrb[0].mxu0
    %4397 = vmatprep.mubr.f32.mxu0 %v3388
    %4398 = vmatmul.mubr.f32.gmra.mrb[0].mxu0 %v3387
    %v4399 = vpop.f32.mrb[0].mxu0
    %v4400 = vadd.f32 %v4255, %v4399
    %v4401 = vpop.f32.mrb[0].mxu0
    %4402 = vmatprep.mubr.f32.mxu0 %v3413
    %4403 = vmatmul.mubr.f32.gmra.mrb[0].mxu0 %v3412
    %v4404 = vpop.f32.mrb[0].mxu0
    %v4405 = vadd.f32 %v4260, %v4404
    %v4406 = vpop.f32.mrb[0].mxu0
    %4407 = vmatprep.mubr.f32.mxu0 %v3438
    %4408 = vmatmul.mubr.f32.gmra.mrb[0].mxu0 %v3437
    %v4409 = vpop.f32.mrb[0].mxu0
    %v4410 = vadd.f32 %v4265, %v4409
    %v4411 = vpop.f32.mrb[0].mxu0
    %4412 = vmatprep.mubr.f32.mxu0 %v3463
    %4413 = vmatmul.mubr.f32.gmra.mrb[0].mxu0 %v3462
    %v4414 = vpop.f32.mrb[0].mxu0
    %v4415 = vadd.f32 %v4270, %v4414
    %v4416 = vpop.f32.mrb[0].mxu0
    %4417 = vmatprep.mubr.f32.mxu0 %v3488
    %4418 = vmatmul.mubr.f32.gmra.mrb[0].mxu0 %v3487
    %v4419 = vpop.f32.mrb[0].mxu0
    %v4420 = vadd.f32 %v4275, %v4419
    %v4421 = vpop.f32.mrb[0].mxu0
    %4422 = vmatprep.mubr.f32.mxu0 %v3513
    %4423 = vmatmul.mubr.f32.gmra.mrb[0].mxu0 %v3512
    %v4424 = vpop.f32.mrb[0].mxu0
    %v4425 = vadd.f32 %v4280, %v4424
    %v4426 = vpop.f32.mrb[0].mxu0
    %4427 = vmatprep.mubr.f32.mxu0 %v3538
    %4428 = vmatmul.mubr.f32.gmra.mrb[0].mxu0 %v3537
    %v4429 = vpop.f32.mrb[0].mxu0
    %v4430 = vadd.f32 %v4285, %v4429
    %v4431 = vpop.f32.mrb[0].mxu0
    %4432 = vmatprep.mubr.f32.mxu0 %v3563
    %4433 = vmatmul.mubr.f32.gmra.mrb[0].mxu0 %v3562
    %v4434 = vpop.f32.mrb[0].mxu0
    %v4435 = vadd.f32 %v4290, %v4434
    %v4436 = vpop.f32.mrb[0].mxu0
    %4437 = vmatprep.mubr.f32.mxu0 %v3588
    %4438 = vmatmul.mubr.f32.gmra.mrb[0].mxu0 %v3587
    %v4439 = vpop.f32.mrb[0].mxu0
    %v4440 = vadd.f32 %v4295, %v4439
    %v4441 = vpop.f32.mrb[0].mxu0
    %4442 = vdwg.mxu0
    %4443 = vmatprep.subr.mxu0 0.0
    %4444 = vmatpush1.msra.mxu0 %v3704
    %4445 = vmatprep.subr.mxu0 0.0
    %4446 = vmatpush1.msra.mxu0 %v3705
    %4447 = vmatprep.subr.mxu0 0.0
    %4448 = vmatpush1.msra.mxu0 %v3706
    %4449 = vmatprep.subr.mxu0 0.0
    %4450 = vmatpush1.msra.mxu0 %v3707
    %4451 = vmatprep.subr.mxu0 0.0
    %4452 = vmatpush1.msra.mxu0 %v3708
    %4453 = vmatprep.subr.mxu0 0.0
    %4454 = vmatpush1.msra.mxu0 %v3709
    %4455 = vmatprep.subr.mxu0 0.0
    %4456 = vmatpush1.msra.mxu0 %v3710
    %4457 = vmatprep.subr.mxu0 0.0
    %4458 = vmatpush1.msra.mxu0 %v3711
    %4459 = vmatprep.subr.mxu0 0.0
    %4460 = vmatpush1.msra.mxu0 %v3712
    %4461 = vmatprep.subr.mxu0 0.0
    %4462 = vmatpush1.msra.mxu0 %v3713
    %4463 = vmatprep.subr.mxu0 0.0
    %4464 = vmatpush1.msra.mxu0 %v3714
    %4465 = vmatprep.subr.mxu0 0.0
    %4466 = vmatpush1.msra.mxu0 %v3715
    %4467 = vmatprep.subr.mxu0 0.0
    %4468 = vmatpush1.msra.mxu0 %v3716
    %4469 = vmatprep.subr.mxu0 0.0
    %4470 = vmatpush1.msra.mxu0 %v3717
    %4471 = vmatprep.subr.mxu0 0.0
    %4472 = vmatpush1.msra.mxu0 %v3718
    %4473 = vmatprep.subr.mxu0 0.0
    %4474 = vmatpush1.msra.mxu0 %v3719
    %4475 = vmatprep.subr.mxu0 0.0
    %4476 = vmatpush1.msra.mxu0 %v3720
    %4477 = vmatprep.subr.mxu0 0.0
    %4478 = vmatpush1.msra.mxu0 %v3721
    %4479 = vmatprep.subr.mxu0 0.0
    %4480 = vmatpush1.msra.mxu0 %v3722
    %4481 = vmatprep.subr.mxu0 0.0
    %4482 = vmatpush1.msra.mxu0 %v3723
    %4483 = vmatprep.subr.mxu0 0.0
    %4484 = vmatpush1.msra.mxu0 %v3724
    %4485 = vmatprep.subr.mxu0 0.0
    %4486 = vmatpush1.msra.mxu0 %v3725
    %4487 = vmatprep.subr.mxu0 0.0
    %4488 = vmatpush1.msra.mxu0 %v3726
    %4489 = vmatprep.subr.mxu0 0.0
    %4490 = vmatpush1.msra.mxu0 %v3727
    %4491 = vmatprep.subr.mxu0 0.0
    %4492 = vmatpush1.msra.mxu0 %v3728
    %4493 = vmatprep.subr.mxu0 0.0
    %4494 = vmatpush1.msra.mxu0 %v3729
    %4495 = vmatprep.subr.mxu0 0.0
    %4496 = vmatpush1.msra.mxu0 %v3730
    %4497 = vmatprep.subr.mxu0 0.0
    %4498 = vmatpush1.msra.mxu0 %v3731
    %4499 = vmatprep.subr.mxu0 0.0
    %4500 = vmatpush1.msra.mxu0 %v3732
    %4501 = vmatprep.subr.mxu0 0.0
    %4502 = vmatpush1.msra.mxu0 %v3733
    %4503 = vmatprep.subr.mxu0 0.0
    %4504 = vmatpush1.msra.mxu0 %v3734
    %4505 = vmatprep.subr.mxu0 0.0
    %4506 = vmatpush1.msra.mxu0 %v3735
    %4507 = vmatprep.mubr.f32.mxu0 %v3215
    %4508 = vmatmul.mubr.f32.gmra.mrb[0].mxu0 %v3214
    %v4509 = vpop.f32.mrb[0].mxu0
    %v4510 = vadd.f32 %v4365, %v4509
    %v4511 = vpop.f32.mrb[0].mxu0
    %4512 = vmatprep.mubr.f32.mxu0 %v3240
    %4513 = vmatmul.mubr.f32.gmra.mrb[0].mxu0 %v3239
    %v4514 = vpop.f32.mrb[0].mxu0
    %v4515 = vadd.f32 %v4370, %v4514
    %v4516 = vpop.f32.mrb[0].mxu0
    %4517 = vmatprep.mubr.f32.mxu0 %v3265
    %4518 = vmatmul.mubr.f32.gmra.mrb[0].mxu0 %v3264
    %v4519 = vpop.f32.mrb[0].mxu0
    %v4520 = vadd.f32 %v4375, %v4519
    %v4521 = vpop.f32.mrb[0].mxu0
    %4522 = vmatprep.mubr.f32.mxu0 %v3290
    %4523 = vmatmul.mubr.f32.gmra.mrb[0].mxu0 %v3289
    %v4524 = vpop.f32.mrb[0].mxu0
    %v4525 = vadd.f32 %v4380, %v4524
    %v4526 = vpop.f32.mrb[0].mxu0
    %4527 = vmatprep.mubr.f32.mxu0 %v3315
    %4528 = vmatmul.mubr.f32.gmra.mrb[0].mxu0 %v3314
    %v4529 = vpop.f32.mrb[0].mxu0
    %v4530 = vadd.f32 %v4385, %v4529
    %v4531 = vpop.f32.mrb[0].mxu0
    %4532 = vmatprep.mubr.f32.mxu0 %v3340
    %4533 = vmatmul.mubr.f32.gmra.mrb[0].mxu0 %v3339
    %v4534 = vpop.f32.mrb[0].mxu0
    %v4535 = vadd.f32 %v4390, %v4534
    %v4536 = vpop.f32.mrb[0].mxu0
    %4537 = vmatprep.mubr.f32.mxu0 %v3365
    %4538 = vmatmul.mubr.f32.gmra.mrb[0].mxu0 %v3364
    %v4539 = vpop.f32.mrb[0].mxu0
    %v4540 = vadd.f32 %v4395, %v4539
    %v4541 = vpop.f32.mrb[0].mxu0
    %4542 = vmatprep.mubr.f32.mxu0 %v3390
    %4543 = vmatmul.mubr.f32.gmra.mrb[0].mxu0 %v3389
    %v4544 = vpop.f32.mrb[0].mxu0
    %v4545 = vadd.f32 %v4400, %v4544
    %v4546 = vpop.f32.mrb[0].mxu0
    %4547 = vmatprep.mubr.f32.mxu0 %v3415
    %4548 = vmatmul.mubr.f32.gmra.mrb[0].mxu0 %v3414
    %v4549 = vpop.f32.mrb[0].mxu0
    %v4550 = vadd.f32 %v4405, %v4549
    %v4551 = vpop.f32.mrb[0].mxu0
    %4552 = vmatprep.mubr.f32.mxu0 %v3440
    %4553 = vmatmul.mubr.f32.gmra.mrb[0].mxu0 %v3439
    %v4554 = vpop.f32.mrb[0].mxu0
    %v4555 = vadd.f32 %v4410, %v4554
    %v4556 = vpop.f32.mrb[0].mxu0
    %4557 = vmatprep.mubr.f32.mxu0 %v3465
    %4558 = vmatmul.mubr.f32.gmra.mrb[0].mxu0 %v3464
    %v4559 = vpop.f32.mrb[0].mxu0
    %v4560 = vadd.f32 %v4415, %v4559
    %v4561 = vpop.f32.mrb[0].mxu0
    %4562 = vmatprep.mubr.f32.mxu0 %v3490
    %4563 = vmatmul.mubr.f32.gmra.mrb[0].mxu0 %v3489
    %v4564 = vpop.f32.mrb[0].mxu0
    %v4565 = vadd.f32 %v4420, %v4564
    %v4566 = vpop.f32.mrb[0].mxu0
    %4567 = vmatprep.mubr.f32.mxu0 %v3515
    %4568 = vmatmul.mubr.f32.gmra.mrb[0].mxu0 %v3514
    %v4569 = vpop.f32.mrb[0].mxu0
    %v4570 = vadd.f32 %v4425, %v4569
    %v4571 = vpop.f32.mrb[0].mxu0
    %4572 = vmatprep.mubr.f32.mxu0 %v3540
    %4573 = vmatmul.mubr.f32.gmra.mrb[0].mxu0 %v3539
    %v4574 = vpop.f32.mrb[0].mxu0
    %v4575 = vadd.f32 %v4430, %v4574
    %v4576 = vpop.f32.mrb[0].mxu0
    %4577 = vmatprep.mubr.f32.mxu0 %v3565
    %4578 = vmatmul.mubr.f32.gmra.mrb[0].mxu0 %v3564
    %v4579 = vpop.f32.mrb[0].mxu0
    %v4580 = vadd.f32 %v4435, %v4579
    %v4581 = vpop.f32.mrb[0].mxu0
    %4582 = vmatprep.mubr.f32.mxu0 %v3590
    %4583 = vmatmul.mubr.f32.gmra.mrb[0].mxu0 %v3589
    %v4584 = vpop.f32.mrb[0].mxu0
    %v4585 = vadd.f32 %v4440, %v4584
    %v4586 = vpop.f32.mrb[0].mxu0
    %4587 = vdwg.mxu0
    %4588 = vmatprep.subr.mxu0 0.0
    %4589 = vmatpush1.msra.mxu0 %v3736
    %4590 = vmatprep.subr.mxu0 0.0
    %4591 = vmatpush1.msra.mxu0 %v3737
    %4592 = vmatprep.subr.mxu0 0.0
    %4593 = vmatpush1.msra.mxu0 %v3738
    %4594 = vmatprep.subr.mxu0 0.0
    %4595 = vmatpush1.msra.mxu0 %v3739
    %4596 = vmatprep.subr.mxu0 0.0
    %4597 = vmatpush1.msra.mxu0 %v3740
    %4598 = vmatprep.subr.mxu0 0.0
    %4599 = vmatpush1.msra.mxu0 %v3741
    %4600 = vmatprep.subr.mxu0 0.0
    %4601 = vmatpush1.msra.mxu0 %v3742
    %4602 = vmatprep.subr.mxu0 0.0
    %4603 = vmatpush1.msra.mxu0 %v3743
    %4604 = vmatprep.subr.mxu0 0.0
    %4605 = vmatpush1.msra.mxu0 %v3744
    %4606 = vmatprep.subr.mxu0 0.0
    %4607 = vmatpush1.msra.mxu0 %v3745
    %4608 = vmatprep.subr.mxu0 0.0
    %4609 = vmatpush1.msra.mxu0 %v3746
    %4610 = vmatprep.subr.mxu0 0.0
    %4611 = vmatpush1.msra.mxu0 %v3747
    %4612 = vmatprep.subr.mxu0 0.0
    %4613 = vmatpush1.msra.mxu0 %v3748
    %4614 = vmatprep.subr.mxu0 0.0
    %4615 = vmatpush1.msra.mxu0 %v3749
    %4616 = vmatprep.subr.mxu0 0.0
    %4617 = vmatpush1.msra.mxu0 %v3750
    %4618 = vmatprep.subr.mxu0 0.0
    %4619 = vmatpush1.msra.mxu0 %v3751
    %4620 = vmatprep.subr.mxu0 0.0
    %4621 = vmatpush1.msra.mxu0 %v3752
    %4622 = vmatprep.subr.mxu0 0.0
    %4623 = vmatpush1.msra.mxu0 %v3753
    %4624 = vmatprep.subr.mxu0 0.0
    %4625 = vmatpush1.msra.mxu0 %v3754
    %4626 = vmatprep.subr.mxu0 0.0
    %4627 = vmatpush1.msra.mxu0 %v3755
    %4628 = vmatprep.subr.mxu0 0.0
    %4629 = vmatpush1.msra.mxu0 %v3756
    %4630 = vmatprep.subr.mxu0 0.0
    %4631 = vmatpush1.msra.mxu0 %v3757
    %4632 = vmatprep.subr.mxu0 0.0
    %4633 = vmatpush1.msra.mxu0 %v3758
    %4634 = vmatprep.subr.mxu0 0.0
    %4635 = vmatpush1.msra.mxu0 %v3759
    %4636 = vmatprep.subr.mxu0 0.0
    %4637 = vmatpush1.msra.mxu0 %v3760
    %4638 = vmatprep.subr.mxu0 0.0
    %4639 = vmatpush1.msra.mxu0 %v3761
    %4640 = vmatprep.subr.mxu0 0.0
    %4641 = vmatpush1.msra.mxu0 %v3762
    %4642 = vmatprep.subr.mxu0 0.0
    %4643 = vmatpush1.msra.mxu0 %v3763
    %4644 = vmatprep.subr.mxu0 0.0
    %4645 = vmatpush1.msra.mxu0 %v3764
    %4646 = vmatprep.subr.mxu0 0.0
    %4647 = vmatpush1.msra.mxu0 %v3765
    %4648 = vmatprep.subr.mxu0 0.0
    %4649 = vmatpush1.msra.mxu0 %v3766
    %4650 = vmatprep.subr.mxu0 0.0
    %4651 = vmatpush1.msra.mxu0 %v3767
    %4652 = vmatprep.mubr.f32.mxu0 %v3217
    %4653 = vmatmul.mubr.f32.gmra.mrb[0].mxu0 %v3216
    %v4654 = vpop.f32.mrb[0].mxu0
    %v4655 = vadd.f32 %v4510, %v4654
    %v4656 = vpop.f32.mrb[0].mxu0
    %4657 = vmatprep.mubr.f32.mxu0 %v3242
    %4658 = vmatmul.mubr.f32.gmra.mrb[0].mxu0 %v3241
    %v4659 = vpop.f32.mrb[0].mxu0
    %v4660 = vadd.f32 %v4515, %v4659
    %v4661 = vpop.f32.mrb[0].mxu0
    %4662 = vmatprep.mubr.f32.mxu0 %v3267
    %4663 = vmatmul.mubr.f32.gmra.mrb[0].mxu0 %v3266
    %v4664 = vpop.f32.mrb[0].mxu0
    %v4665 = vadd.f32 %v4520, %v4664
    %v4666 = vpop.f32.mrb[0].mxu0
    %4667 = vmatprep.mubr.f32.mxu0 %v3292
    %4668 = vmatmul.mubr.f32.gmra.mrb[0].mxu0 %v3291
    %v4669 = vpop.f32.mrb[0].mxu0
    %v4670 = vadd.f32 %v4525, %v4669
    %v4671 = vpop.f32.mrb[0].mxu0
    %4672 = vmatprep.mubr.f32.mxu0 %v3317
    %4673 = vmatmul.mubr.f32.gmra.mrb[0].mxu0 %v3316
    %v4674 = vpop.f32.mrb[0].mxu0
    %v4675 = vadd.f32 %v4530, %v4674
    %v4676 = vpop.f32.mrb[0].mxu0
    %4677 = vmatprep.mubr.f32.mxu0 %v3342
    %4678 = vmatmul.mubr.f32.gmra.mrb[0].mxu0 %v3341
    %v4679 = vpop.f32.mrb[0].mxu0
    %v4680 = vadd.f32 %v4535, %v4679
    %v4681 = vpop.f32.mrb[0].mxu0
    %4682 = vmatprep.mubr.f32.mxu0 %v3367
    %4683 = vmatmul.mubr.f32.gmra.mrb[0].mxu0 %v3366
    %v4684 = vpop.f32.mrb[0].mxu0
    %v4685 = vadd.f32 %v4540, %v4684
    %v4686 = vpop.f32.mrb[0].mxu0
    %4687 = vmatprep.mubr.f32.mxu0 %v3392
    %4688 = vmatmul.mubr.f32.gmra.mrb[0].mxu0 %v3391
    %v4689 = vpop.f32.mrb[0].mxu0
    %v4690 = vadd.f32 %v4545, %v4689
    %v4691 = vpop.f32.mrb[0].mxu0
    %4692 = vmatprep.mubr.f32.mxu0 %v3417
    %4693 = vmatmul.mubr.f32.gmra.mrb[0].mxu0 %v3416
    %v4694 = vpop.f32.mrb[0].mxu0
    %v4695 = vadd.f32 %v4550, %v4694
    %v4696 = vpop.f32.mrb[0].mxu0
    %4697 = vmatprep.mubr.f32.mxu0 %v3442
    %4698 = vmatmul.mubr.f32.gmra.mrb[0].mxu0 %v3441
    %v4699 = vpop.f32.mrb[0].mxu0
    %v4700 = vadd.f32 %v4555, %v4699
    %v4701 = vpop.f32.mrb[0].mxu0
    %4702 = vmatprep.mubr.f32.mxu0 %v3467
    %4703 = vmatmul.mubr.f32.gmra.mrb[0].mxu0 %v3466
    %v4704 = vpop.f32.mrb[0].mxu0
    %v4705 = vadd.f32 %v4560, %v4704
    %v4706 = vpop.f32.mrb[0].mxu0
    %4707 = vmatprep.mubr.f32.mxu0 %v3492
    %4708 = vmatmul.mubr.f32.gmra.mrb[0].mxu0 %v3491
    %v4709 = vpop.f32.mrb[0].mxu0
    %v4710 = vadd.f32 %v4565, %v4709
    %v4711 = vpop.f32.mrb[0].mxu0
    %4712 = vmatprep.mubr.f32.mxu0 %v3517
    %4713 = vmatmul.mubr.f32.gmra.mrb[0].mxu0 %v3516
    %v4714 = vpop.f32.mrb[0].mxu0
    %v4715 = vadd.f32 %v4570, %v4714
    %v4716 = vpop.f32.mrb[0].mxu0
    %4717 = vmatprep.mubr.f32.mxu0 %v3542
    %4718 = vmatmul.mubr.f32.gmra.mrb[0].mxu0 %v3541
    %v4719 = vpop.f32.mrb[0].mxu0
    %v4720 = vadd.f32 %v4575, %v4719
    %v4721 = vpop.f32.mrb[0].mxu0
    %4722 = vmatprep.mubr.f32.mxu0 %v3567
    %4723 = vmatmul.mubr.f32.gmra.mrb[0].mxu0 %v3566
    %v4724 = vpop.f32.mrb[0].mxu0
    %v4725 = vadd.f32 %v4580, %v4724
    %v4726 = vpop.f32.mrb[0].mxu0
    %4727 = vmatprep.mubr.f32.mxu0 %v3592
    %4728 = vmatmul.mubr.f32.gmra.mrb[0].mxu0 %v3591
    %v4729 = vpop.f32.mrb[0].mxu0
    %v4730 = vadd.f32 %v4585, %v4729
    %v4731 = vpop.f32.mrb[0].mxu0
    %4732 = vdwg.mxu0
    %4733 = vmatprep.subr.mxu0 0.0
    %4734 = vmatpush1.msra.mxu0 %v3768
    %4735 = vmatprep.subr.mxu0 0.0
    %4736 = vmatpush1.msra.mxu0 %v3769
    %4737 = vmatprep.subr.mxu0 0.0
    %4738 = vmatpush1.msra.mxu0 %v3770
    %4739 = vmatprep.subr.mxu0 0.0
    %4740 = vmatpush1.msra.mxu0 %v3771
    %4741 = vmatprep.subr.mxu0 0.0
    %4742 = vmatpush1.msra.mxu0 %v3772
    %4743 = vmatprep.subr.mxu0 0.0
    %4744 = vmatpush1.msra.mxu0 %v3773
    %4745 = vmatprep.subr.mxu0 0.0
    %4746 = vmatpush1.msra.mxu0 %v3774
    %4747 = vmatprep.subr.mxu0 0.0
    %4748 = vmatpush1.msra.mxu0 %v3775
    %4749 = vmatprep.subr.mxu0 0.0
    %4750 = vmatpush1.msra.mxu0 %v3776
    %4751 = vmatprep.subr.mxu0 0.0
    %4752 = vmatpush1.msra.mxu0 %v3777
    %4753 = vmatprep.subr.mxu0 0.0
    %4754 = vmatpush1.msra.mxu0 %v3778
    %4755 = vmatprep.subr.mxu0 0.0
    %4756 = vmatpush1.msra.mxu0 %v3779
    %4757 = vmatprep.subr.mxu0 0.0
    %4758 = vmatpush1.msra.mxu0 %v3780
    %4759 = vmatprep.subr.mxu0 0.0
    %4760 = vmatpush1.msra.mxu0 %v3781
    %4761 = vmatprep.subr.mxu0 0.0
    %4762 = vmatpush1.msra.mxu0 %v3782
    %4763 = vmatprep.subr.mxu0 0.0
    %4764 = vmatpush1.msra.mxu0 %v3783
    %4765 = vmatprep.subr.mxu0 0.0
    %4766 = vmatpush1.msra.mxu0 %v3784
    %4767 = vmatprep.subr.mxu0 0.0
    %4768 = vmatpush1.msra.mxu0 %v3785
    %4769 = vmatprep.subr.mxu0 0.0
    %4770 = vmatpush1.msra.mxu0 %v3786
    %4771 = vmatprep.subr.mxu0 0.0
    %4772 = vmatpush1.msra.mxu0 %v3787
    %4773 = vmatprep.subr.mxu0 0.0
    %4774 = vmatpush1.msra.mxu0 %v3788
    %4775 = vmatprep.subr.mxu0 0.0
    %4776 = vmatpush1.msra.mxu0 %v3789
    %4777 = vmatprep.subr.mxu0 0.0
    %4778 = vmatpush1.msra.mxu0 %v3790
    %4779 = vmatprep.subr.mxu0 0.0
    %4780 = vmatpush1.msra.mxu0 %v3791
    %4781 = vmatprep.subr.mxu0 0.0
    %4782 = vmatpush1.msra.mxu0 %v3792
    %4783 = vmatprep.subr.mxu0 0.0
    %4784 = vmatpush1.msra.mxu0 %v3793
    %4785 = vmatprep.subr.mxu0 0.0
    %4786 = vmatpush1.msra.mxu0 %v3794
    %4787 = vmatprep.subr.mxu0 0.0
    %4788 = vmatpush1.msra.mxu0 %v3795
    %4789 = vmatprep.subr.mxu0 0.0
    %4790 = vmatpush1.msra.mxu0 %v3796
    %4791 = vmatprep.subr.mxu0 0.0
    %4792 = vmatpush1.msra.mxu0 %v3797
    %4793 = vmatprep.subr.mxu0 0.0
    %4794 = vmatpush1.msra.mxu0 %v3798
    %4795 = vmatprep.subr.mxu0 0.0
    %4796 = vmatpush1.msra.mxu0 %v3799
    %4797 = vmatprep.mubr.f32.mxu0 %v3219
    %4798 = vmatmul.mubr.f32.gmra.mrb[0].mxu0 %v3218
    %v4799 = vpop.f32.mrb[0].mxu0
    %v4800 = vadd.f32 %v4655, %v4799
    %v4801 = vpop.f32.mrb[0].mxu0
    %4802 = vmatprep.mubr.f32.mxu0 %v3244
    %4803 = vmatmul.mubr.f32.gmra.mrb[0].mxu0 %v3243
    %v4804 = vpop.f32.mrb[0].mxu0
    %v4805 = vadd.f32 %v4660, %v4804
    %v4806 = vpop.f32.mrb[0].mxu0
    %4807 = vmatprep.mubr.f32.mxu0 %v3269
    %4808 = vmatmul.mubr.f32.gmra.mrb[0].mxu0 %v3268
    %v4809 = vpop.f32.mrb[0].mxu0
    %v4810 = vadd.f32 %v4665, %v4809
    %v4811 = vpop.f32.mrb[0].mxu0
    %4812 = vmatprep.mubr.f32.mxu0 %v3294
    %4813 = vmatmul.mubr.f32.gmra.mrb[0].mxu0 %v3293
    %v4814 = vpop.f32.mrb[0].mxu0
    %v4815 = vadd.f32 %v4670, %v4814
    %v4816 = vpop.f32.mrb[0].mxu0
    %4817 = vmatprep.mubr.f32.mxu0 %v3319
    %4818 = vmatmul.mubr.f32.gmra.mrb[0].mxu0 %v3318
    %v4819 = vpop.f32.mrb[0].mxu0
    %v4820 = vadd.f32 %v4675, %v4819
    %v4821 = vpop.f32.mrb[0].mxu0
    %4822 = vmatprep.mubr.f32.mxu0 %v3344
    %4823 = vmatmul.mubr.f32.gmra.mrb[0].mxu0 %v3343
    %v4824 = vpop.f32.mrb[0].mxu0
    %v4825 = vadd.f32 %v4680, %v4824
    %v4826 = vpop.f32.mrb[0].mxu0
    %4827 = vmatprep.mubr.f32.mxu0 %v3369
    %4828 = vmatmul.mubr.f32.gmra.mrb[0].mxu0 %v3368
    %v4829 = vpop.f32.mrb[0].mxu0
    %v4830 = vadd.f32 %v4685, %v4829
    %v4831 = vpop.f32.mrb[0].mxu0
    %4832 = vmatprep.mubr.f32.mxu0 %v3394
    %4833 = vmatmul.mubr.f32.gmra.mrb[0].mxu0 %v3393
    %v4834 = vpop.f32.mrb[0].mxu0
    %v4835 = vadd.f32 %v4690, %v4834
    %v4836 = vpop.f32.mrb[0].mxu0
    %4837 = vmatprep.mubr.f32.mxu0 %v3419
    %4838 = vmatmul.mubr.f32.gmra.mrb[0].mxu0 %v3418
    %v4839 = vpop.f32.mrb[0].mxu0
    %v4840 = vadd.f32 %v4695, %v4839
    %v4841 = vpop.f32.mrb[0].mxu0
    %4842 = vmatprep.mubr.f32.mxu0 %v3444
    %4843 = vmatmul.mubr.f32.gmra.mrb[0].mxu0 %v3443
    %v4844 = vpop.f32.mrb[0].mxu0
    %v4845 = vadd.f32 %v4700, %v4844
    %v4846 = vpop.f32.mrb[0].mxu0
    %4847 = vmatprep.mubr.f32.mxu0 %v3469
    %4848 = vmatmul.mubr.f32.gmra.mrb[0].mxu0 %v3468
    %v4849 = vpop.f32.mrb[0].mxu0
    %v4850 = vadd.f32 %v4705, %v4849
    %v4851 = vpop.f32.mrb[0].mxu0
    %4852 = vmatprep.mubr.f32.mxu0 %v3494
    %4853 = vmatmul.mubr.f32.gmra.mrb[0].mxu0 %v3493
    %v4854 = vpop.f32.mrb[0].mxu0
    %v4855 = vadd.f32 %v4710, %v4854
    %v4856 = vpop.f32.mrb[0].mxu0
    %4857 = vmatprep.mubr.f32.mxu0 %v3519
    %4858 = vmatmul.mubr.f32.gmra.mrb[0].mxu0 %v3518
    %v4859 = vpop.f32.mrb[0].mxu0
    %v4860 = vadd.f32 %v4715, %v4859
    %v4861 = vpop.f32.mrb[0].mxu0
    %4862 = vmatprep.mubr.f32.mxu0 %v3544
    %4863 = vmatmul.mubr.f32.gmra.mrb[0].mxu0 %v3543
    %v4864 = vpop.f32.mrb[0].mxu0
    %v4865 = vadd.f32 %v4720, %v4864
    %v4866 = vpop.f32.mrb[0].mxu0
    %4867 = vmatprep.mubr.f32.mxu0 %v3569
    %4868 = vmatmul.mubr.f32.gmra.mrb[0].mxu0 %v3568
    %v4869 = vpop.f32.mrb[0].mxu0
    %v4870 = vadd.f32 %v4725, %v4869
    %v4871 = vpop.f32.mrb[0].mxu0
    %4872 = vmatprep.mubr.f32.mxu0 %v3594
    %4873 = vmatmul.mubr.f32.gmra.mrb[0].mxu0 %v3593
    %v4874 = vpop.f32.mrb[0].mxu0
    %v4875 = vadd.f32 %v4730, %v4874
    %v4876 = vpop.f32.mrb[0].mxu0
    %4877 = vdwg.mxu0
    %4878 = vmatprep.subr.mxu0 0.0
    %4879 = vmatpush1.msra.mxu0 %v3800
    %4880 = vmatprep.subr.mxu0 0.0
    %4881 = vmatpush1.msra.mxu0 %v3801
    %4882 = vmatprep.subr.mxu0 0.0
    %4883 = vmatpush1.msra.mxu0 %v3802
    %4884 = vmatprep.subr.mxu0 0.0
    %4885 = vmatpush1.msra.mxu0 %v3803
    %4886 = vmatprep.subr.mxu0 0.0
    %4887 = vmatpush1.msra.mxu0 %v3804
    %4888 = vmatprep.subr.mxu0 0.0
    %4889 = vmatpush1.msra.mxu0 %v3805
    %4890 = vmatprep.subr.mxu0 0.0
    %4891 = vmatpush1.msra.mxu0 %v3806
    %4892 = vmatprep.subr.mxu0 0.0
    %4893 = vmatpush1.msra.mxu0 %v3807
    %4894 = vmatprep.subr.mxu0 0.0
    %4895 = vmatpush1.msra.mxu0 %v3808
    %4896 = vmatprep.subr.mxu0 0.0
    %4897 = vmatpush1.msra.mxu0 %v3809
    %4898 = vmatprep.subr.mxu0 0.0
    %4899 = vmatpush1.msra.mxu0 %v3810
    %4900 = vmatprep.subr.mxu0 0.0
    %4901 = vmatpush1.msra.mxu0 %v3811
    %4902 = vmatprep.subr.mxu0 0.0
    %4903 = vmatpush1.msra.mxu0 %v3812
    %4904 = vmatprep.subr.mxu0 0.0
    %4905 = vmatpush1.msra.mxu0 %v3813
    %4906 = vmatprep.subr.mxu0 0.0
    %4907 = vmatpush1.msra.mxu0 %v3814
    %4908 = vmatprep.subr.mxu0 0.0
    %4909 = vmatpush1.msra.mxu0 %v3815
    %4910 = vmatprep.subr.mxu0 0.0
    %4911 = vmatpush1.msra.mxu0 %v3816
    %4912 = vmatprep.subr.mxu0 0.0
    %4913 = vmatpush1.msra.mxu0 %v3817
    %4914 = vmatprep.subr.mxu0 0.0
    %4915 = vmatpush1.msra.mxu0 %v3818
    %4916 = vmatprep.subr.mxu0 0.0
    %4917 = vmatpush1.msra.mxu0 %v3819
    %4918 = vmatprep.subr.mxu0 0.0
    %4919 = vmatpush1.msra.mxu0 %v3820
    %4920 = vmatprep.subr.mxu0 0.0
    %4921 = vmatpush1.msra.mxu0 %v3821
    %4922 = vmatprep.subr.mxu0 0.0
    %4923 = vmatpush1.msra.mxu0 %v3822
    %4924 = vmatprep.subr.mxu0 0.0
    %4925 = vmatpush1.msra.mxu0 %v3823
    %4926 = vmatprep.subr.mxu0 0.0
    %4927 = vmatpush1.msra.mxu0 %v3824
    %4928 = vmatprep.subr.mxu0 0.0
    %4929 = vmatpush1.msra.mxu0 %v3825
    %4930 = vmatprep.subr.mxu0 0.0
    %4931 = vmatpush1.msra.mxu0 %v3826
    %4932 = vmatprep.subr.mxu0 0.0
    %4933 = vmatpush1.msra.mxu0 %v3827
    %4934 = vmatprep.subr.mxu0 0.0
    %4935 = vmatpush1.msra.mxu0 %v3828
    %4936 = vmatprep.subr.mxu0 0.0
    %4937 = vmatpush1.msra.mxu0 %v3829
    %4938 = vmatprep.subr.mxu0 0.0
    %4939 = vmatpush1.msra.mxu0 %v3830
    %4940 = vmatprep.subr.mxu0 0.0
    %4941 = vmatpush1.msra.mxu0 %v3831
    %4942 = vmatprep.mubr.f32.mxu0 %v3221
    %4943 = vmatmul.mubr.f32.gmra.mrb[0].mxu0 %v3220
    %v4944 = vpop.f32.mrb[0].mxu0
    %v4945 = vadd.f32 %v4800, %v4944
    %v4946 = vpop.f32.mrb[0].mxu0
    %4947 = vmatprep.mubr.f32.mxu0 %v3246
    %4948 = vmatmul.mubr.f32.gmra.mrb[0].mxu0 %v3245
    %v4949 = vpop.f32.mrb[0].mxu0
    %v4950 = vadd.f32 %v4805, %v4949
    %v4951 = vpop.f32.mrb[0].mxu0
    %4952 = vmatprep.mubr.f32.mxu0 %v3271
    %4953 = vmatmul.mubr.f32.gmra.mrb[0].mxu0 %v3270
    %v4954 = vpop.f32.mrb[0].mxu0
    %v4955 = vadd.f32 %v4810, %v4954
    %v4956 = vpop.f32.mrb[0].mxu0
    %4957 = vmatprep.mubr.f32.mxu0 %v3296
    %4958 = vmatmul.mubr.f32.gmra.mrb[0].mxu0 %v3295
    %v4959 = vpop.f32.mrb[0].mxu0
    %v4960 = vadd.f32 %v4815, %v4959
    %v4961 = vpop.f32.mrb[0].mxu0
    %4962 = vmatprep.mubr.f32.mxu0 %v3321
    %4963 = vmatmul.mubr.f32.gmra.mrb[0].mxu0 %v3320
    %v4964 = vpop.f32.mrb[0].mxu0
    %v4965 = vadd.f32 %v4820, %v4964
    %v4966 = vpop.f32.mrb[0].mxu0
    %4967 = vmatprep.mubr.f32.mxu0 %v3346
    %4968 = vmatmul.mubr.f32.gmra.mrb[0].mxu0 %v3345
    %v4969 = vpop.f32.mrb[0].mxu0
    %v4970 = vadd.f32 %v4825, %v4969
    %v4971 = vpop.f32.mrb[0].mxu0
    %4972 = vmatprep.mubr.f32.mxu0 %v3371
    %4973 = vmatmul.mubr.f32.gmra.mrb[0].mxu0 %v3370
    %v4974 = vpop.f32.mrb[0].mxu0
    %v4975 = vadd.f32 %v4830, %v4974
    %v4976 = vpop.f32.mrb[0].mxu0
    %4977 = vmatprep.mubr.f32.mxu0 %v3396
    %4978 = vmatmul.mubr.f32.gmra.mrb[0].mxu0 %v3395
    %v4979 = vpop.f32.mrb[0].mxu0
    %v4980 = vadd.f32 %v4835, %v4979
    %v4981 = vpop.f32.mrb[0].mxu0
    %4982 = vmatprep.mubr.f32.mxu0 %v3421
    %4983 = vmatmul.mubr.f32.gmra.mrb[0].mxu0 %v3420
    %v4984 = vpop.f32.mrb[0].mxu0
    %v4985 = vadd.f32 %v4840, %v4984
    %v4986 = vpop.f32.mrb[0].mxu0
    %4987 = vmatprep.mubr.f32.mxu0 %v3446
    %4988 = vmatmul.mubr.f32.gmra.mrb[0].mxu0 %v3445
    %v4989 = vpop.f32.mrb[0].mxu0
    %v4990 = vadd.f32 %v4845, %v4989
    %v4991 = vpop.f32.mrb[0].mxu0
    %4992 = vmatprep.mubr.f32.mxu0 %v3471
    %4993 = vmatmul.mubr.f32.gmra.mrb[0].mxu0 %v3470
    %v4994 = vpop.f32.mrb[0].mxu0
    %v4995 = vadd.f32 %v4850, %v4994
    %v4996 = vpop.f32.mrb[0].mxu0
    %4997 = vmatprep.mubr.f32.mxu0 %v3496
    %4998 = vmatmul.mubr.f32.gmra.mrb[0].mxu0 %v3495
    %v4999 = vpop.f32.mrb[0].mxu0
    %v5000 = vadd.f32 %v4855, %v4999
    %v5001 = vpop.f32.mrb[0].mxu0
    %5002 = vmatprep.mubr.f32.mxu0 %v3521
    %5003 = vmatmul.mubr.f32.gmra.mrb[0].mxu0 %v3520
    %v5004 = vpop.f32.mrb[0].mxu0
    %v5005 = vadd.f32 %v4860, %v5004
    %v5006 = vpop.f32.mrb[0].mxu0
    %5007 = vmatprep.mubr.f32.mxu0 %v3546
    %5008 = vmatmul.mubr.f32.gmra.mrb[0].mxu0 %v3545
    %v5009 = vpop.f32.mrb[0].mxu0
    %v5010 = vadd.f32 %v4865, %v5009
    %v5011 = vpop.f32.mrb[0].mxu0
    %5012 = vmatprep.mubr.f32.mxu0 %v3571
    %5013 = vmatmul.mubr.f32.gmra.mrb[0].mxu0 %v3570
    %v5014 = vpop.f32.mrb[0].mxu0
    %v5015 = vadd.f32 %v4870, %v5014
    %v5016 = vpop.f32.mrb[0].mxu0
    %5017 = vmatprep.mubr.f32.mxu0 %v3596
    %5018 = vmatmul.mubr.f32.gmra.mrb[0].mxu0 %v3595
    %v5019 = vpop.f32.mrb[0].mxu0
    %v5020 = vadd.f32 %v4875, %v5019
    %v5021 = vpop.f32.mrb[0].mxu0
    %5022 = vdwg.mxu0
    %5023 = vmatprep.subr.mxu0 0.0
    %5024 = vmatpush1.msra.mxu0 %v3832
    %5025 = vmatprep.subr.mxu0 0.0
    %5026 = vmatpush1.msra.mxu0 %v3833
    %5027 = vmatprep.subr.mxu0 0.0
    %5028 = vmatpush1.msra.mxu0 %v3834
    %5029 = vmatprep.subr.mxu0 0.0
    %5030 = vmatpush1.msra.mxu0 %v3835
    %5031 = vmatprep.subr.mxu0 0.0
    %5032 = vmatpush1.msra.mxu0 %v3836
    %5033 = vmatprep.subr.mxu0 0.0
    %5034 = vmatpush1.msra.mxu0 %v3837
    %5035 = vmatprep.subr.mxu0 0.0
    %5036 = vmatpush1.msra.mxu0 %v3838
    %5037 = vmatprep.subr.mxu0 0.0
    %5038 = vmatpush1.msra.mxu0 %v3839
    %5039 = vmatprep.subr.mxu0 0.0
    %5040 = vmatpush1.msra.mxu0 %v3840
    %5041 = vmatprep.subr.mxu0 0.0
    %5042 = vmatpush1.msra.mxu0 %v3841
    %5043 = vmatprep.subr.mxu0 0.0
    %5044 = vmatpush1.msra.mxu0 %v3842
    %5045 = vmatprep.subr.mxu0 0.0
    %5046 = vmatpush1.msra.mxu0 %v3843
    %5047 = vmatprep.subr.mxu0 0.0
    %5048 = vmatpush1.msra.mxu0 %v3844
    %5049 = vmatprep.subr.mxu0 0.0
    %5050 = vmatpush1.msra.mxu0 %v3845
    %5051 = vmatprep.subr.mxu0 0.0
    %5052 = vmatpush1.msra.mxu0 %v3846
    %5053 = vmatprep.subr.mxu0 0.0
    %5054 = vmatpush1.msra.mxu0 %v3847
    %5055 = vmatprep.subr.mxu0 0.0
    %5056 = vmatpush1.msra.mxu0 %v3848
    %5057 = vmatprep.subr.mxu0 0.0
    %5058 = vmatpush1.msra.mxu0 %v3849
    %5059 = vmatprep.subr.mxu0 0.0
    %5060 = vmatpush1.msra.mxu0 %v3850
    %5061 = vmatprep.subr.mxu0 0.0
    %5062 = vmatpush1.msra.mxu0 %v3851
    %5063 = vmatprep.subr.mxu0 0.0
    %5064 = vmatpush1.msra.mxu0 %v3852
    %5065 = vmatprep.subr.mxu0 0.0
    %5066 = vmatpush1.msra.mxu0 %v3853
    %5067 = vmatprep.subr.mxu0 0.0
    %5068 = vmatpush1.msra.mxu0 %v3854
    %5069 = vmatprep.subr.mxu0 0.0
    %5070 = vmatpush1.msra.mxu0 %v3855
    %5071 = vmatprep.subr.mxu0 0.0
    %5072 = vmatpush1.msra.mxu0 %v3856
    %5073 = vmatprep.subr.mxu0 0.0
    %5074 = vmatpush1.msra.mxu0 %v3857
    %5075 = vmatprep.subr.mxu0 0.0
    %5076 = vmatpush1.msra.mxu0 %v3858
    %5077 = vmatprep.subr.mxu0 0.0
    %5078 = vmatpush1.msra.mxu0 %v3859
    %5079 = vmatprep.subr.mxu0 0.0
    %5080 = vmatpush1.msra.mxu0 %v3860
    %5081 = vmatprep.subr.mxu0 0.0
    %5082 = vmatpush1.msra.mxu0 %v3861
    %5083 = vmatprep.subr.mxu0 0.0
    %5084 = vmatpush1.msra.mxu0 %v3862
    %5085 = vmatprep.subr.mxu0 0.0
    %5086 = vmatpush1.msra.mxu0 %v3863
    %5087 = vmatprep.mubr.f32.mxu0 %v3223
    %5088 = vmatmul.mubr.f32.gmra.mrb[0].mxu0 %v3222
    %v5089 = vpop.f32.mrb[0].mxu0
    %v5090 = vadd.f32 %v4945, %v5089
    %v5091 = vpop.f32.mrb[0].mxu0
    %5092 = vmatprep.mubr.f32.mxu0 %v3248
    %5093 = vmatmul.mubr.f32.gmra.mrb[0].mxu0 %v3247
    %v5094 = vpop.f32.mrb[0].mxu0
    %v5095 = vadd.f32 %v4950, %v5094
    %v5096 = vpop.f32.mrb[0].mxu0
    %5097 = vmatprep.mubr.f32.mxu0 %v3273
    %5098 = vmatmul.mubr.f32.gmra.mrb[0].mxu0 %v3272
    %v5099 = vpop.f32.mrb[0].mxu0
    %v5100 = vadd.f32 %v4955, %v5099
    %v5101 = vpop.f32.mrb[0].mxu0
    %5102 = vmatprep.mubr.f32.mxu0 %v3298
    %5103 = vmatmul.mubr.f32.gmra.mrb[0].mxu0 %v3297
    %v5104 = vpop.f32.mrb[0].mxu0
    %v5105 = vadd.f32 %v4960, %v5104
    %v5106 = vpop.f32.mrb[0].mxu0
    %5107 = vmatprep.mubr.f32.mxu0 %v3323
    %5108 = vmatmul.mubr.f32.gmra.mrb[0].mxu0 %v3322
    %v5109 = vpop.f32.mrb[0].mxu0
    %v5110 = vadd.f32 %v4965, %v5109
    %v5111 = vpop.f32.mrb[0].mxu0
    %5112 = vmatprep.mubr.f32.mxu0 %v3348
    %5113 = vmatmul.mubr.f32.gmra.mrb[0].mxu0 %v3347
    %v5114 = vpop.f32.mrb[0].mxu0
    %v5115 = vadd.f32 %v4970, %v5114
    %v5116 = vpop.f32.mrb[0].mxu0
    %5117 = vmatprep.mubr.f32.mxu0 %v3373
    %5118 = vmatmul.mubr.f32.gmra.mrb[0].mxu0 %v3372
    %v5119 = vpop.f32.mrb[0].mxu0
    %v5120 = vadd.f32 %v4975, %v5119
    %v5121 = vpop.f32.mrb[0].mxu0
    %5122 = vmatprep.mubr.f32.mxu0 %v3398
    %5123 = vmatmul.mubr.f32.gmra.mrb[0].mxu0 %v3397
    %v5124 = vpop.f32.mrb[0].mxu0
    %v5125 = vadd.f32 %v4980, %v5124
    %v5126 = vpop.f32.mrb[0].mxu0
    %5127 = vmatprep.mubr.f32.mxu0 %v3423
    %5128 = vmatmul.mubr.f32.gmra.mrb[0].mxu0 %v3422
    %v5129 = vpop.f32.mrb[0].mxu0
    %v5130 = vadd.f32 %v4985, %v5129
    %v5131 = vpop.f32.mrb[0].mxu0
    %5132 = vmatprep.mubr.f32.mxu0 %v3448
    %5133 = vmatmul.mubr.f32.gmra.mrb[0].mxu0 %v3447
    %v5134 = vpop.f32.mrb[0].mxu0
    %v5135 = vadd.f32 %v4990, %v5134
    %v5136 = vpop.f32.mrb[0].mxu0
    %5137 = vmatprep.mubr.f32.mxu0 %v3473
    %5138 = vmatmul.mubr.f32.gmra.mrb[0].mxu0 %v3472
    %v5139 = vpop.f32.mrb[0].mxu0
    %v5140 = vadd.f32 %v4995, %v5139
    %v5141 = vpop.f32.mrb[0].mxu0
    %5142 = vmatprep.mubr.f32.mxu0 %v3498
    %5143 = vmatmul.mubr.f32.gmra.mrb[0].mxu0 %v3497
    %v5144 = vpop.f32.mrb[0].mxu0
    %v5145 = vadd.f32 %v5000, %v5144
    %v5146 = vpop.f32.mrb[0].mxu0
    %5147 = vmatprep.mubr.f32.mxu0 %v3523
    %5148 = vmatmul.mubr.f32.gmra.mrb[0].mxu0 %v3522
    %v5149 = vpop.f32.mrb[0].mxu0
    %v5150 = vadd.f32 %v5005, %v5149
    %v5151 = vpop.f32.mrb[0].mxu0
    %5152 = vmatprep.mubr.f32.mxu0 %v3548
    %5153 = vmatmul.mubr.f32.gmra.mrb[0].mxu0 %v3547
    %v5154 = vpop.f32.mrb[0].mxu0
    %v5155 = vadd.f32 %v5010, %v5154
    %v5156 = vpop.f32.mrb[0].mxu0
    %5157 = vmatprep.mubr.f32.mxu0 %v3573
    %5158 = vmatmul.mubr.f32.gmra.mrb[0].mxu0 %v3572
    %v5159 = vpop.f32.mrb[0].mxu0
    %v5160 = vadd.f32 %v5015, %v5159
    %v5161 = vpop.f32.mrb[0].mxu0
    %5162 = vmatprep.mubr.f32.mxu0 %v3598
    %5163 = vmatmul.mubr.f32.gmra.mrb[0].mxu0 %v3597
    %v5164 = vpop.f32.mrb[0].mxu0
    %v5165 = vadd.f32 %v5020, %v5164
    %v5166 = vpop.f32.mrb[0].mxu0
    %5167 = vdwg.mxu0
    %5168 = vmatprep.subr.mxu0 0.0
    %5169 = vmatpush1.msra.mxu0 %v3864
    %5170 = vmatprep.subr.mxu0 0.0
    %5171 = vmatpush1.msra.mxu0 %v3865
    %5172 = vmatprep.subr.mxu0 0.0
    %5173 = vmatpush1.msra.mxu0 %v3866
    %5174 = vmatprep.subr.mxu0 0.0
    %5175 = vmatpush1.msra.mxu0 %v3867
    %5176 = vmatprep.subr.mxu0 0.0
    %5177 = vmatpush1.msra.mxu0 %v3868
    %5178 = vmatprep.subr.mxu0 0.0
    %5179 = vmatpush1.msra.mxu0 %v3869
    %5180 = vmatprep.subr.mxu0 0.0
    %5181 = vmatpush1.msra.mxu0 %v3870
    %5182 = vmatprep.subr.mxu0 0.0
    %5183 = vmatpush1.msra.mxu0 %v3871
    %5184 = vmatprep.subr.mxu0 0.0
    %5185 = vmatpush1.msra.mxu0 %v3872
    %5186 = vmatprep.subr.mxu0 0.0
    %5187 = vmatpush1.msra.mxu0 %v3873
    %5188 = vmatprep.subr.mxu0 0.0
    %5189 = vmatpush1.msra.mxu0 %v3874
    %5190 = vmatprep.subr.mxu0 0.0
    %5191 = vmatpush1.msra.mxu0 %v3875
    %5192 = vmatprep.subr.mxu0 0.0
    %5193 = vmatpush1.msra.mxu0 %v3876
    %5194 = vmatprep.subr.mxu0 0.0
    %5195 = vmatpush1.msra.mxu0 %v3877
    %5196 = vmatprep.subr.mxu0 0.0
    %5197 = vmatpush1.msra.mxu0 %v3878
    %5198 = vmatprep.subr.mxu0 0.0
    %5199 = vmatpush1.msra.mxu0 %v3879
    %5200 = vmatprep.subr.mxu0 0.0
    %5201 = vmatpush1.msra.mxu0 %v3880
    %5202 = vmatprep.subr.mxu0 0.0
    %5203 = vmatpush1.msra.mxu0 %v3881
    %5204 = vmatprep.subr.mxu0 0.0
    %5205 = vmatpush1.msra.mxu0 %v3882
    %5206 = vmatprep.subr.mxu0 0.0
    %5207 = vmatpush1.msra.mxu0 %v3883
    %5208 = vmatprep.subr.mxu0 0.0
    %5209 = vmatpush1.msra.mxu0 %v3884
    %5210 = vmatprep.subr.mxu0 0.0
    %5211 = vmatpush1.msra.mxu0 %v3885
    %5212 = vmatprep.subr.mxu0 0.0
    %5213 = vmatpush1.msra.mxu0 %v3886
    %5214 = vmatprep.subr.mxu0 0.0
    %5215 = vmatpush1.msra.mxu0 %v3887
    %5216 = vmatprep.subr.mxu0 0.0
    %5217 = vmatpush1.msra.mxu0 %v3888
    %5218 = vmatprep.subr.mxu0 0.0
    %5219 = vmatpush1.msra.mxu0 %v3889
    %5220 = vmatprep.subr.mxu0 0.0
    %5221 = vmatpush1.msra.mxu0 %v3890
    %5222 = vmatprep.subr.mxu0 0.0
    %5223 = vmatpush1.msra.mxu0 %v3891
    %5224 = vmatprep.subr.mxu0 0.0
    %5225 = vmatpush1.msra.mxu0 %v3892
    %5226 = vmatprep.subr.mxu0 0.0
    %5227 = vmatpush1.msra.mxu0 %v3893
    %5228 = vmatprep.subr.mxu0 0.0
    %5229 = vmatpush1.msra.mxu0 %v3894
    %5230 = vmatprep.subr.mxu0 0.0
    %5231 = vmatpush1.msra.mxu0 %v3895
    %5232 = vmatprep.mubr.f32.mxu0 %v3225
    %5233 = vmatmul.mubr.f32.gmra.mrb[0].mxu0 %v3224
    %v5234 = vpop.f32.mrb[0].mxu0
    %v5235 = vadd.f32 %v5090, %v5234
    %v5236 = vpop.f32.mrb[0].mxu0
    %5237 = vmatprep.mubr.f32.mxu0 %v3250
    %5238 = vmatmul.mubr.f32.gmra.mrb[0].mxu0 %v3249
    %v5239 = vpop.f32.mrb[0].mxu0
    %v5240 = vadd.f32 %v5095, %v5239
    %v5241 = vpop.f32.mrb[0].mxu0
    %5242 = vmatprep.mubr.f32.mxu0 %v3275
    %5243 = vmatmul.mubr.f32.gmra.mrb[0].mxu0 %v3274
    %v5244 = vpop.f32.mrb[0].mxu0
    %v5245 = vadd.f32 %v5100, %v5244
    %v5246 = vpop.f32.mrb[0].mxu0
    %5247 = vmatprep.mubr.f32.mxu0 %v3300
    %5248 = vmatmul.mubr.f32.gmra.mrb[0].mxu0 %v3299
    %v5249 = vpop.f32.mrb[0].mxu0
    %v5250 = vadd.f32 %v5105, %v5249
    %v5251 = vpop.f32.mrb[0].mxu0
    %5252 = vmatprep.mubr.f32.mxu0 %v3325
    %5253 = vmatmul.mubr.f32.gmra.mrb[0].mxu0 %v3324
    %v5254 = vpop.f32.mrb[0].mxu0
    %v5255 = vadd.f32 %v5110, %v5254
    %v5256 = vpop.f32.mrb[0].mxu0
    %5257 = vmatprep.mubr.f32.mxu0 %v3350
    %5258 = vmatmul.mubr.f32.gmra.mrb[0].mxu0 %v3349
    %v5259 = vpop.f32.mrb[0].mxu0
    %v5260 = vadd.f32 %v5115, %v5259
    %v5261 = vpop.f32.mrb[0].mxu0
    %5262 = vmatprep.mubr.f32.mxu0 %v3375
    %5263 = vmatmul.mubr.f32.gmra.mrb[0].mxu0 %v3374
    %v5264 = vpop.f32.mrb[0].mxu0
    %v5265 = vadd.f32 %v5120, %v5264
    %v5266 = vpop.f32.mrb[0].mxu0
    %5267 = vmatprep.mubr.f32.mxu0 %v3400
    %5268 = vmatmul.mubr.f32.gmra.mrb[0].mxu0 %v3399
    %v5269 = vpop.f32.mrb[0].mxu0
    %v5270 = vadd.f32 %v5125, %v5269
    %v5271 = vpop.f32.mrb[0].mxu0
    %5272 = vmatprep.mubr.f32.mxu0 %v3425
    %5273 = vmatmul.mubr.f32.gmra.mrb[0].mxu0 %v3424
    %v5274 = vpop.f32.mrb[0].mxu0
    %v5275 = vadd.f32 %v5130, %v5274
    %v5276 = vpop.f32.mrb[0].mxu0
    %5277 = vmatprep.mubr.f32.mxu0 %v3450
    %5278 = vmatmul.mubr.f32.gmra.mrb[0].mxu0 %v3449
    %v5279 = vpop.f32.mrb[0].mxu0
    %v5280 = vadd.f32 %v5135, %v5279
    %v5281 = vpop.f32.mrb[0].mxu0
    %5282 = vmatprep.mubr.f32.mxu0 %v3475
    %5283 = vmatmul.mubr.f32.gmra.mrb[0].mxu0 %v3474
    %v5284 = vpop.f32.mrb[0].mxu0
    %v5285 = vadd.f32 %v5140, %v5284
    %v5286 = vpop.f32.mrb[0].mxu0
    %5287 = vmatprep.mubr.f32.mxu0 %v3500
    %5288 = vmatmul.mubr.f32.gmra.mrb[0].mxu0 %v3499
    %v5289 = vpop.f32.mrb[0].mxu0
    %v5290 = vadd.f32 %v5145, %v5289
    %v5291 = vpop.f32.mrb[0].mxu0
    %5292 = vmatprep.mubr.f32.mxu0 %v3525
    %5293 = vmatmul.mubr.f32.gmra.mrb[0].mxu0 %v3524
    %v5294 = vpop.f32.mrb[0].mxu0
    %v5295 = vadd.f32 %v5150, %v5294
    %v5296 = vpop.f32.mrb[0].mxu0
    %5297 = vmatprep.mubr.f32.mxu0 %v3550
    %5298 = vmatmul.mubr.f32.gmra.mrb[0].mxu0 %v3549
    %v5299 = vpop.f32.mrb[0].mxu0
    %v5300 = vadd.f32 %v5155, %v5299
    %v5301 = vpop.f32.mrb[0].mxu0
    %5302 = vmatprep.mubr.f32.mxu0 %v3575
    %5303 = vmatmul.mubr.f32.gmra.mrb[0].mxu0 %v3574
    %v5304 = vpop.f32.mrb[0].mxu0
    %v5305 = vadd.f32 %v5160, %v5304
    %v5306 = vpop.f32.mrb[0].mxu0
    %5307 = vmatprep.mubr.f32.mxu0 %v3600
    %5308 = vmatmul.mubr.f32.gmra.mrb[0].mxu0 %v3599
    %v5309 = vpop.f32.mrb[0].mxu0
    %v5310 = vadd.f32 %v5165, %v5309
    %v5311 = vpop.f32.mrb[0].mxu0
    %5312 = vdwg.mxu0
    %5313 = vmatprep.subr.mxu0 0.0
    %5314 = vmatpush1.msra.mxu0 %v3896
    %5315 = vmatprep.subr.mxu0 0.0
    %5316 = vmatpush1.msra.mxu0 %v3897
    %5317 = vmatprep.subr.mxu0 0.0
    %5318 = vmatpush1.msra.mxu0 %v3898
    %5319 = vmatprep.subr.mxu0 0.0
    %5320 = vmatpush1.msra.mxu0 %v3899
    %5321 = vmatprep.subr.mxu0 0.0
    %5322 = vmatpush1.msra.mxu0 %v3900
    %5323 = vmatprep.subr.mxu0 0.0
    %5324 = vmatpush1.msra.mxu0 %v3901
    %5325 = vmatprep.subr.mxu0 0.0
    %5326 = vmatpush1.msra.mxu0 %v3902
    %5327 = vmatprep.subr.mxu0 0.0
    %5328 = vmatpush1.msra.mxu0 %v3903
    %5329 = vmatprep.subr.mxu0 0.0
    %5330 = vmatpush1.msra.mxu0 %v3904
    %5331 = vmatprep.subr.mxu0 0.0
    %5332 = vmatpush1.msra.mxu0 %v3905
    %5333 = vmatprep.subr.mxu0 0.0
    %5334 = vmatpush1.msra.mxu0 %v3906
    %5335 = vmatprep.subr.mxu0 0.0
    %5336 = vmatpush1.msra.mxu0 %v3907
    %5337 = vmatprep.subr.mxu0 0.0
    %5338 = vmatpush1.msra.mxu0 %v3908
    %5339 = vmatprep.subr.mxu0 0.0
    %5340 = vmatpush1.msra.mxu0 %v3909
    %5341 = vmatprep.subr.mxu0 0.0
    %5342 = vmatpush1.msra.mxu0 %v3910
    %5343 = vmatprep.subr.mxu0 0.0
    %5344 = vmatpush1.msra.mxu0 %v3911
    %5345 = vmatprep.subr.mxu0 0.0
    %5346 = vmatpush1.msra.mxu0 %v3912
    %5347 = vmatprep.subr.mxu0 0.0
    %5348 = vmatpush1.msra.mxu0 %v3913
    %5349 = vmatprep.subr.mxu0 0.0
    %5350 = vmatpush1.msra.mxu0 %v3914
    %5351 = vmatprep.subr.mxu0 0.0
    %5352 = vmatpush1.msra.mxu0 %v3915
    %5353 = vmatprep.subr.mxu0 0.0
    %5354 = vmatpush1.msra.mxu0 %v3916
    %5355 = vmatprep.subr.mxu0 0.0
    %5356 = vmatpush1.msra.mxu0 %v3917
    %5357 = vmatprep.subr.mxu0 0.0
    %5358 = vmatpush1.msra.mxu0 %v3918
    %5359 = vmatprep.subr.mxu0 0.0
    %5360 = vmatpush1.msra.mxu0 %v3919
    %5361 = vmatprep.subr.mxu0 0.0
    %5362 = vmatpush1.msra.mxu0 %v3920
    %5363 = vmatprep.subr.mxu0 0.0
    %5364 = vmatpush1.msra.mxu0 %v3921
    %5365 = vmatprep.subr.mxu0 0.0
    %5366 = vmatpush1.msra.mxu0 %v3922
    %5367 = vmatprep.subr.mxu0 0.0
    %5368 = vmatpush1.msra.mxu0 %v3923
    %5369 = vmatprep.subr.mxu0 0.0
    %5370 = vmatpush1.msra.mxu0 %v3924
    %5371 = vmatprep.subr.mxu0 0.0
    %5372 = vmatpush1.msra.mxu0 %v3925
    %5373 = vmatprep.subr.mxu0 0.0
    %5374 = vmatpush1.msra.mxu0 %v3926
    %5375 = vmatprep.subr.mxu0 0.0
    %5376 = vmatpush1.msra.mxu0 %v3927
    %5377 = vmatprep.mubr.f32.mxu0 %v3227
    %5378 = vmatmul.mubr.f32.gmra.mrb[0].mxu0 %v3226
    %v5379 = vpop.f32.mrb[0].mxu0
    %v5380 = vadd.f32 %v5235, %v5379
    %v5381 = vpop.f32.mrb[0].mxu0
    %5382 = vmatprep.mubr.f32.mxu0 %v3252
    %5383 = vmatmul.mubr.f32.gmra.mrb[0].mxu0 %v3251
    %v5384 = vpop.f32.mrb[0].mxu0
    %v5385 = vadd.f32 %v5240, %v5384
    %v5386 = vpop.f32.mrb[0].mxu0
    %5387 = vmatprep.mubr.f32.mxu0 %v3277
    %5388 = vmatmul.mubr.f32.gmra.mrb[0].mxu0 %v3276
    %v5389 = vpop.f32.mrb[0].mxu0
    %v5390 = vadd.f32 %v5245, %v5389
    %v5391 = vpop.f32.mrb[0].mxu0
    %5392 = vmatprep.mubr.f32.mxu0 %v3302
    %5393 = vmatmul.mubr.f32.gmra.mrb[0].mxu0 %v3301
    %v5394 = vpop.f32.mrb[0].mxu0
    %v5395 = vadd.f32 %v5250, %v5394
    %v5396 = vpop.f32.mrb[0].mxu0
    %5397 = vmatprep.mubr.f32.mxu0 %v3327
    %5398 = vmatmul.mubr.f32.gmra.mrb[0].mxu0 %v3326
    %v5399 = vpop.f32.mrb[0].mxu0
    %v5400 = vadd.f32 %v5255, %v5399
    %v5401 = vpop.f32.mrb[0].mxu0
    %5402 = vmatprep.mubr.f32.mxu0 %v3352
    %5403 = vmatmul.mubr.f32.gmra.mrb[0].mxu0 %v3351
    %v5404 = vpop.f32.mrb[0].mxu0
    %v5405 = vadd.f32 %v5260, %v5404
    %v5406 = vpop.f32.mrb[0].mxu0
    %5407 = vmatprep.mubr.f32.mxu0 %v3377
    %5408 = vmatmul.mubr.f32.gmra.mrb[0].mxu0 %v3376
    %v5409 = vpop.f32.mrb[0].mxu0
    %v5410 = vadd.f32 %v5265, %v5409
    %v5411 = vpop.f32.mrb[0].mxu0
    %5412 = vmatprep.mubr.f32.mxu0 %v3402
    %5413 = vmatmul.mubr.f32.gmra.mrb[0].mxu0 %v3401
    %v5414 = vpop.f32.mrb[0].mxu0
    %v5415 = vadd.f32 %v5270, %v5414
    %v5416 = vpop.f32.mrb[0].mxu0
    %5417 = vmatprep.mubr.f32.mxu0 %v3427
    %5418 = vmatmul.mubr.f32.gmra.mrb[0].mxu0 %v3426
    %v5419 = vpop.f32.mrb[0].mxu0
    %v5420 = vadd.f32 %v5275, %v5419
    %v5421 = vpop.f32.mrb[0].mxu0
    %5422 = vmatprep.mubr.f32.mxu0 %v3452
    %5423 = vmatmul.mubr.f32.gmra.mrb[0].mxu0 %v3451
    %v5424 = vpop.f32.mrb[0].mxu0
    %v5425 = vadd.f32 %v5280, %v5424
    %v5426 = vpop.f32.mrb[0].mxu0
    %5427 = vmatprep.mubr.f32.mxu0 %v3477
    %5428 = vmatmul.mubr.f32.gmra.mrb[0].mxu0 %v3476
    %v5429 = vpop.f32.mrb[0].mxu0
    %v5430 = vadd.f32 %v5285, %v5429
    %v5431 = vpop.f32.mrb[0].mxu0
    %5432 = vmatprep.mubr.f32.mxu0 %v3502
    %5433 = vmatmul.mubr.f32.gmra.mrb[0].mxu0 %v3501
    %v5434 = vpop.f32.mrb[0].mxu0
    %v5435 = vadd.f32 %v5290, %v5434
    %v5436 = vpop.f32.mrb[0].mxu0
    %5437 = vmatprep.mubr.f32.mxu0 %v3527
    %5438 = vmatmul.mubr.f32.gmra.mrb[0].mxu0 %v3526
    %v5439 = vpop.f32.mrb[0].mxu0
    %v5440 = vadd.f32 %v5295, %v5439
    %v5441 = vpop.f32.mrb[0].mxu0
    %5442 = vmatprep.mubr.f32.mxu0 %v3552
    %5443 = vmatmul.mubr.f32.gmra.mrb[0].mxu0 %v3551
    %v5444 = vpop.f32.mrb[0].mxu0
    %v5445 = vadd.f32 %v5300, %v5444
    %v5446 = vpop.f32.mrb[0].mxu0
    %5447 = vmatprep.mubr.f32.mxu0 %v3577
    %5448 = vmatmul.mubr.f32.gmra.mrb[0].mxu0 %v3576
    %v5449 = vpop.f32.mrb[0].mxu0
    %v5450 = vadd.f32 %v5305, %v5449
    %v5451 = vpop.f32.mrb[0].mxu0
    %5452 = vmatprep.mubr.f32.mxu0 %v3602
    %5453 = vmatmul.mubr.f32.gmra.mrb[0].mxu0 %v3601
    %v5454 = vpop.f32.mrb[0].mxu0
    %v5455 = vadd.f32 %v5310, %v5454
    %v5456 = vpop.f32.mrb[0].mxu0
    %5457 = vdwg.mxu0
    %5458 = vmatprep.subr.mxu0 0.0
    %5459 = vmatpush1.msra.mxu0 %v3928
    %5460 = vmatprep.subr.mxu0 0.0
    %5461 = vmatpush1.msra.mxu0 %v3929
    %5462 = vmatprep.subr.mxu0 0.0
    %5463 = vmatpush1.msra.mxu0 %v3930
    %5464 = vmatprep.subr.mxu0 0.0
    %5465 = vmatpush1.msra.mxu0 %v3931
    %5466 = vmatprep.subr.mxu0 0.0
    %5467 = vmatpush1.msra.mxu0 %v3932
    %5468 = vmatprep.subr.mxu0 0.0
    %5469 = vmatpush1.msra.mxu0 %v3933
    %5470 = vmatprep.subr.mxu0 0.0
    %5471 = vmatpush1.msra.mxu0 %v3934
    %5472 = vmatprep.subr.mxu0 0.0
    %5473 = vmatpush1.msra.mxu0 %v3935
    %5474 = vmatprep.subr.mxu0 0.0
    %5475 = vmatpush1.msra.mxu0 %v3936
    %5476 = vmatprep.subr.mxu0 0.0
    %5477 = vmatpush1.msra.mxu0 %v3937
    %5478 = vmatprep.subr.mxu0 0.0
    %5479 = vmatpush1.msra.mxu0 %v3938
    %5480 = vmatprep.subr.mxu0 0.0
    %5481 = vmatpush1.msra.mxu0 %v3939
    %5482 = vmatprep.subr.mxu0 0.0
    %5483 = vmatpush1.msra.mxu0 %v3940
    %5484 = vmatprep.subr.mxu0 0.0
    %5485 = vmatpush1.msra.mxu0 %v3941
    %5486 = vmatprep.subr.mxu0 0.0
    %5487 = vmatpush1.msra.mxu0 %v3942
    %5488 = vmatprep.subr.mxu0 0.0
    %5489 = vmatpush1.msra.mxu0 %v3943
    %5490 = vmatprep.subr.mxu0 0.0
    %5491 = vmatpush1.msra.mxu0 %v3944
    %5492 = vmatprep.subr.mxu0 0.0
    %5493 = vmatpush1.msra.mxu0 %v3945
    %5494 = vmatprep.subr.mxu0 0.0
    %5495 = vmatpush1.msra.mxu0 %v3946
    %5496 = vmatprep.subr.mxu0 0.0
    %5497 = vmatpush1.msra.mxu0 %v3947
    %5498 = vmatprep.subr.mxu0 0.0
    %5499 = vmatpush1.msra.mxu0 %v3948
    %5500 = vmatprep.subr.mxu0 0.0
    %5501 = vmatpush1.msra.mxu0 %v3949
    %5502 = vmatprep.subr.mxu0 0.0
    %5503 = vmatpush1.msra.mxu0 %v3950
    %5504 = vmatprep.subr.mxu0 0.0
    %5505 = vmatpush1.msra.mxu0 %v3951
    %5506 = vmatprep.subr.mxu0 0.0
    %5507 = vmatpush1.msra.mxu0 %v3952
    %5508 = vmatprep.subr.mxu0 0.0
    %5509 = vmatpush1.msra.mxu0 %v3953
    %5510 = vmatprep.subr.mxu0 0.0
    %5511 = vmatpush1.msra.mxu0 %v3954
    %5512 = vmatprep.subr.mxu0 0.0
    %5513 = vmatpush1.msra.mxu0 %v3955
    %5514 = vmatprep.subr.mxu0 0.0
    %5515 = vmatpush1.msra.mxu0 %v3956
    %5516 = vmatprep.subr.mxu0 0.0
    %5517 = vmatpush1.msra.mxu0 %v3957
    %5518 = vmatprep.subr.mxu0 0.0
    %5519 = vmatpush1.msra.mxu0 %v3958
    %5520 = vmatprep.subr.mxu0 0.0
    %5521 = vmatpush1.msra.mxu0 %v3959
    %5522 = vmatprep.mubr.f32.mxu0 %v3229
    %5523 = vmatmul.mubr.f32.gmra.mrb[0].mxu0 %v3228
    %v5524 = vpop.f32.mrb[0].mxu0
    %v5525 = vadd.f32 %v5380, %v5524
    %v5526 = vpop.f32.mrb[0].mxu0
    %5527 = vmatprep.mubr.f32.mxu0 %v3254
    %5528 = vmatmul.mubr.f32.gmra.mrb[0].mxu0 %v3253
    %v5529 = vpop.f32.mrb[0].mxu0
    %v5530 = vadd.f32 %v5385, %v5529
    %v5531 = vpop.f32.mrb[0].mxu0
    %5532 = vmatprep.mubr.f32.mxu0 %v3279
    %5533 = vmatmul.mubr.f32.gmra.mrb[0].mxu0 %v3278
    %v5534 = vpop.f32.mrb[0].mxu0
    %v5535 = vadd.f32 %v5390, %v5534
    %v5536 = vpop.f32.mrb[0].mxu0
    %5537 = vmatprep.mubr.f32.mxu0 %v3304
    %5538 = vmatmul.mubr.f32.gmra.mrb[0].mxu0 %v3303
    %v5539 = vpop.f32.mrb[0].mxu0
    %v5540 = vadd.f32 %v5395, %v5539
    %v5541 = vpop.f32.mrb[0].mxu0
    %5542 = vmatprep.mubr.f32.mxu0 %v3329
    %5543 = vmatmul.mubr.f32.gmra.mrb[0].mxu0 %v3328
    %v5544 = vpop.f32.mrb[0].mxu0
    %v5545 = vadd.f32 %v5400, %v5544
    %v5546 = vpop.f32.mrb[0].mxu0
    %5547 = vmatprep.mubr.f32.mxu0 %v3354
    %5548 = vmatmul.mubr.f32.gmra.mrb[0].mxu0 %v3353
    %v5549 = vpop.f32.mrb[0].mxu0
    %v5550 = vadd.f32 %v5405, %v5549
    %v5551 = vpop.f32.mrb[0].mxu0
    %5552 = vmatprep.mubr.f32.mxu0 %v3379
    %5553 = vmatmul.mubr.f32.gmra.mrb[0].mxu0 %v3378
    %v5554 = vpop.f32.mrb[0].mxu0
    %v5555 = vadd.f32 %v5410, %v5554
    %v5556 = vpop.f32.mrb[0].mxu0
    %5557 = vmatprep.mubr.f32.mxu0 %v3404
    %5558 = vmatmul.mubr.f32.gmra.mrb[0].mxu0 %v3403
    %v5559 = vpop.f32.mrb[0].mxu0
    %v5560 = vadd.f32 %v5415, %v5559
    %v5561 = vpop.f32.mrb[0].mxu0
    %5562 = vmatprep.mubr.f32.mxu0 %v3429
    %5563 = vmatmul.mubr.f32.gmra.mrb[0].mxu0 %v3428
    %v5564 = vpop.f32.mrb[0].mxu0
    %v5565 = vadd.f32 %v5420, %v5564
    %v5566 = vpop.f32.mrb[0].mxu0
    %5567 = vmatprep.mubr.f32.mxu0 %v3454
    %5568 = vmatmul.mubr.f32.gmra.mrb[0].mxu0 %v3453
    %v5569 = vpop.f32.mrb[0].mxu0
    %v5570 = vadd.f32 %v5425, %v5569
    %v5571 = vpop.f32.mrb[0].mxu0
    %5572 = vmatprep.mubr.f32.mxu0 %v3479
    %5573 = vmatmul.mubr.f32.gmra.mrb[0].mxu0 %v3478
    %v5574 = vpop.f32.mrb[0].mxu0
    %v5575 = vadd.f32 %v5430, %v5574
    %v5576 = vpop.f32.mrb[0].mxu0
    %5577 = vmatprep.mubr.f32.mxu0 %v3504
    %5578 = vmatmul.mubr.f32.gmra.mrb[0].mxu0 %v3503
    %v5579 = vpop.f32.mrb[0].mxu0
    %v5580 = vadd.f32 %v5435, %v5579
    %v5581 = vpop.f32.mrb[0].mxu0
    %5582 = vmatprep.mubr.f32.mxu0 %v3529
    %5583 = vmatmul.mubr.f32.gmra.mrb[0].mxu0 %v3528
    %v5584 = vpop.f32.mrb[0].mxu0
    %v5585 = vadd.f32 %v5440, %v5584
    %v5586 = vpop.f32.mrb[0].mxu0
    %5587 = vmatprep.mubr.f32.mxu0 %v3554
    %5588 = vmatmul.mubr.f32.gmra.mrb[0].mxu0 %v3553
    %v5589 = vpop.f32.mrb[0].mxu0
    %v5590 = vadd.f32 %v5445, %v5589
    %v5591 = vpop.f32.mrb[0].mxu0
    %5592 = vmatprep.mubr.f32.mxu0 %v3579
    %5593 = vmatmul.mubr.f32.gmra.mrb[0].mxu0 %v3578
    %v5594 = vpop.f32.mrb[0].mxu0
    %v5595 = vadd.f32 %v5450, %v5594
    %v5596 = vpop.f32.mrb[0].mxu0
    %5597 = vmatprep.mubr.f32.mxu0 %v3604
    %5598 = vmatmul.mubr.f32.gmra.mrb[0].mxu0 %v3603
    %v5599 = vpop.f32.mrb[0].mxu0
    %v5600 = vadd.f32 %v5455, %v5599
    %v5601 = vpop.f32.mrb[0].mxu0
    %5602 = vdwg.mxu0
    %5603 = vmatprep.subr.mxu0 0.0
    %5604 = vmatpush1.msra.mxu0 %v3960
    %5605 = vmatprep.subr.mxu0 0.0
    %5606 = vmatpush1.msra.mxu0 %v3961
    %5607 = vmatprep.subr.mxu0 0.0
    %5608 = vmatpush1.msra.mxu0 %v3962
    %5609 = vmatprep.subr.mxu0 0.0
    %5610 = vmatpush1.msra.mxu0 %v3963
    %5611 = vmatprep.subr.mxu0 0.0
    %5612 = vmatpush1.msra.mxu0 %v3964
    %5613 = vmatprep.subr.mxu0 0.0
    %5614 = vmatpush1.msra.mxu0 %v3965
    %5615 = vmatprep.subr.mxu0 0.0
    %5616 = vmatpush1.msra.mxu0 %v3966
    %5617 = vmatprep.subr.mxu0 0.0
    %5618 = vmatpush1.msra.mxu0 %v3967
    %5619 = vmatprep.subr.mxu0 0.0
    %5620 = vmatpush1.msra.mxu0 %v3968
    %5621 = vmatprep.subr.mxu0 0.0
    %5622 = vmatpush1.msra.mxu0 %v3969
    %5623 = vmatprep.subr.mxu0 0.0
    %5624 = vmatpush1.msra.mxu0 %v3970
    %5625 = vmatprep.subr.mxu0 0.0
    %5626 = vmatpush1.msra.mxu0 %v3971
    %5627 = vmatprep.subr.mxu0 0.0
    %5628 = vmatpush1.msra.mxu0 %v3972
    %5629 = vmatprep.subr.mxu0 0.0
    %5630 = vmatpush1.msra.mxu0 %v3973
    %5631 = vmatprep.subr.mxu0 0.0
    %5632 = vmatpush1.msra.mxu0 %v3974
    %5633 = vmatprep.subr.mxu0 0.0
    %5634 = vmatpush1.msra.mxu0 %v3975
    %5635 = vmatprep.subr.mxu0 0.0
    %5636 = vmatpush1.msra.mxu0 %v3976
    %5637 = vmatprep.subr.mxu0 0.0
    %5638 = vmatpush1.msra.mxu0 %v3977
    %5639 = vmatprep.subr.mxu0 0.0
    %5640 = vmatpush1.msra.mxu0 %v3978
    %5641 = vmatprep.subr.mxu0 0.0
    %5642 = vmatpush1.msra.mxu0 %v3979
    %5643 = vmatprep.subr.mxu0 0.0
    %5644 = vmatpush1.msra.mxu0 %v3980
    %5645 = vmatprep.subr.mxu0 0.0
    %5646 = vmatpush1.msra.mxu0 %v3981
    %5647 = vmatprep.subr.mxu0 0.0
    %5648 = vmatpush1.msra.mxu0 %v3982
    %5649 = vmatprep.subr.mxu0 0.0
    %5650 = vmatpush1.msra.mxu0 %v3983
    %5651 = vmatprep.subr.mxu0 0.0
    %5652 = vmatpush1.msra.mxu0 %v3984
    %5653 = vmatprep.subr.mxu0 0.0
    %5654 = vmatpush1.msra.mxu0 %v3985
    %5655 = vmatprep.subr.mxu0 0.0
    %5656 = vmatpush1.msra.mxu0 %v3986
    %5657 = vmatprep.subr.mxu0 0.0
    %5658 = vmatpush1.msra.mxu0 %v3987
    %5659 = vmatprep.subr.mxu0 0.0
    %5660 = vmatpush1.msra.mxu0 %v3988
    %5661 = vmatprep.subr.mxu0 0.0
    %5662 = vmatpush1.msra.mxu0 %v3989
    %5663 = vmatprep.subr.mxu0 0.0
    %5664 = vmatpush1.msra.mxu0 %v3990
    %5665 = vmatprep.subr.mxu0 0.0
    %5666 = vmatpush1.msra.mxu0 %v3991
    %5667 = vmatprep.mubr.f32.mxu0 %v3231
    %5668 = vmatmul.mubr.f32.gmra.mrb[0].mxu0 %v3230
    %v5669 = vpop.f32.mrb[0].mxu0
    %v5670 = vadd.f32 %v5525, %v5669
    %v5671 = vpop.f32.mrb[0].mxu0
    %5672 = vmatprep.mubr.f32.mxu0 %v3256
    %5673 = vmatmul.mubr.f32.gmra.mrb[0].mxu0 %v3255
    %v5674 = vpop.f32.mrb[0].mxu0
    %v5675 = vadd.f32 %v5530, %v5674
    %v5676 = vpop.f32.mrb[0].mxu0
    %5677 = vmatprep.mubr.f32.mxu0 %v3281
    %5678 = vmatmul.mubr.f32.gmra.mrb[0].mxu0 %v3280
    %v5679 = vpop.f32.mrb[0].mxu0
    %v5680 = vadd.f32 %v5535, %v5679
    %v5681 = vpop.f32.mrb[0].mxu0
    %5682 = vmatprep.mubr.f32.mxu0 %v3306
    %5683 = vmatmul.mubr.f32.gmra.mrb[0].mxu0 %v3305
    %v5684 = vpop.f32.mrb[0].mxu0
    %v5685 = vadd.f32 %v5540, %v5684
    %v5686 = vpop.f32.mrb[0].mxu0
    %5687 = vmatprep.mubr.f32.mxu0 %v3331
    %5688 = vmatmul.mubr.f32.gmra.mrb[0].mxu0 %v3330
    %v5689 = vpop.f32.mrb[0].mxu0
    %v5690 = vadd.f32 %v5545, %v5689
    %v5691 = vpop.f32.mrb[0].mxu0
    %5692 = vmatprep.mubr.f32.mxu0 %v3356
    %5693 = vmatmul.mubr.f32.gmra.mrb[0].mxu0 %v3355
    %v5694 = vpop.f32.mrb[0].mxu0
    %v5695 = vadd.f32 %v5550, %v5694
    %v5696 = vpop.f32.mrb[0].mxu0
    %5697 = vmatprep.mubr.f32.mxu0 %v3381
    %5698 = vmatmul.mubr.f32.gmra.mrb[0].mxu0 %v3380
    %v5699 = vpop.f32.mrb[0].mxu0
    %v5700 = vadd.f32 %v5555, %v5699
    %v5701 = vpop.f32.mrb[0].mxu0
    %5702 = vmatprep.mubr.f32.mxu0 %v3406
    %5703 = vmatmul.mubr.f32.gmra.mrb[0].mxu0 %v3405
    %v5704 = vpop.f32.mrb[0].mxu0
    %v5705 = vadd.f32 %v5560, %v5704
    %v5706 = vpop.f32.mrb[0].mxu0
    %5707 = vmatprep.mubr.f32.mxu0 %v3431
    %5708 = vmatmul.mubr.f32.gmra.mrb[0].mxu0 %v3430
    %v5709 = vpop.f32.mrb[0].mxu0
    %v5710 = vadd.f32 %v5565, %v5709
    %v5711 = vpop.f32.mrb[0].mxu0
    %5712 = vmatprep.mubr.f32.mxu0 %v3456
    %5713 = vmatmul.mubr.f32.gmra.mrb[0].mxu0 %v3455
    %v5714 = vpop.f32.mrb[0].mxu0
    %v5715 = vadd.f32 %v5570, %v5714
    %v5716 = vpop.f32.mrb[0].mxu0
    %5717 = vmatprep.mubr.f32.mxu0 %v3481
    %5718 = vmatmul.mubr.f32.gmra.mrb[0].mxu0 %v3480
    %v5719 = vpop.f32.mrb[0].mxu0
    %v5720 = vadd.f32 %v5575, %v5719
    %v5721 = vpop.f32.mrb[0].mxu0
    %5722 = vmatprep.mubr.f32.mxu0 %v3506
    %5723 = vmatmul.mubr.f32.gmra.mrb[0].mxu0 %v3505
    %v5724 = vpop.f32.mrb[0].mxu0
    %v5725 = vadd.f32 %v5580, %v5724
    %v5726 = vpop.f32.mrb[0].mxu0
    %5727 = vmatprep.mubr.f32.mxu0 %v3531
    %5728 = vmatmul.mubr.f32.gmra.mrb[0].mxu0 %v3530
    %v5729 = vpop.f32.mrb[0].mxu0
    %v5730 = vadd.f32 %v5585, %v5729
    %v5731 = vpop.f32.mrb[0].mxu0
    %5732 = vmatprep.mubr.f32.mxu0 %v3556
    %5733 = vmatmul.mubr.f32.gmra.mrb[0].mxu0 %v3555
    %v5734 = vpop.f32.mrb[0].mxu0
    %v5735 = vadd.f32 %v5590, %v5734
    %v5736 = vpop.f32.mrb[0].mxu0
    %5737 = vmatprep.mubr.f32.mxu0 %v3581
    %5738 = vmatmul.mubr.f32.gmra.mrb[0].mxu0 %v3580
    %v5739 = vpop.f32.mrb[0].mxu0
    %v5740 = vadd.f32 %v5595, %v5739
    %v5741 = vpop.f32.mrb[0].mxu0
    %5742 = vmatprep.mubr.f32.mxu0 %v3606
    %5743 = vmatmul.mubr.f32.gmra.mrb[0].mxu0 %v3605
    %v5744 = vpop.f32.mrb[0].mxu0
    %v5745 = vadd.f32 %v5600, %v5744
    %v5746 = vpop.f32.mrb[0].mxu0
    %5747 = vdwg.mxu0
    %5748 = vmatprep.subr.mxu0 0.0
    %5749 = vmatpush1.msra.mxu0 %v3992
    %5750 = vmatprep.subr.mxu0 0.0
    %5751 = vmatpush1.msra.mxu0 %v3993
    %5752 = vmatprep.subr.mxu0 0.0
    %5753 = vmatpush1.msra.mxu0 %v3994
    %5754 = vmatprep.subr.mxu0 0.0
    %5755 = vmatpush1.msra.mxu0 %v3995
    %5756 = vmatprep.subr.mxu0 0.0
    %5757 = vmatpush1.msra.mxu0 %v3996
    %5758 = vmatprep.subr.mxu0 0.0
    %5759 = vmatpush1.msra.mxu0 %v3997
    %5760 = vmatprep.subr.mxu0 0.0
    %5761 = vmatpush1.msra.mxu0 %v3998
    %5762 = vmatprep.subr.mxu0 0.0
    %5763 = vmatpush1.msra.mxu0 %v3999
    %5764 = vmatprep.subr.mxu0 0.0
    %5765 = vmatpush1.msra.mxu0 %v4000
    %5766 = vmatprep.subr.mxu0 0.0
    %5767 = vmatpush1.msra.mxu0 %v4001
    %5768 = vmatprep.subr.mxu0 0.0
    %5769 = vmatpush1.msra.mxu0 %v4002
    %5770 = vmatprep.subr.mxu0 0.0
    %5771 = vmatpush1.msra.mxu0 %v4003
    %5772 = vmatprep.subr.mxu0 0.0
    %5773 = vmatpush1.msra.mxu0 %v4004
    %5774 = vmatprep.subr.mxu0 0.0
    %5775 = vmatpush1.msra.mxu0 %v4005
    %5776 = vmatprep.subr.mxu0 0.0
    %5777 = vmatpush1.msra.mxu0 %v4006
    %5778 = vmatprep.subr.mxu0 0.0
    %5779 = vmatpush1.msra.mxu0 %v4007
    %5780 = vmatprep.subr.mxu0 0.0
    %5781 = vmatpush1.msra.mxu0 0.0
    %5782 = vmatprep.subr.mxu0 0.0
    %5783 = vmatpush1.msra.mxu0 0.0
    %5784 = vmatprep.subr.mxu0 0.0
    %5785 = vmatpush1.msra.mxu0 0.0
    %5786 = vmatprep.subr.mxu0 0.0
    %5787 = vmatpush1.msra.mxu0 0.0
    %5788 = vmatprep.subr.mxu0 0.0
    %5789 = vmatpush1.msra.mxu0 0.0
    %5790 = vmatprep.subr.mxu0 0.0
    %5791 = vmatpush1.msra.mxu0 0.0
    %5792 = vmatprep.subr.mxu0 0.0
    %5793 = vmatpush1.msra.mxu0 0.0
    %5794 = vmatprep.subr.mxu0 0.0
    %5795 = vmatpush1.msra.mxu0 0.0
    %5796 = vmatprep.subr.mxu0 0.0
    %5797 = vmatpush1.msra.mxu0 0.0
    %5798 = vmatprep.subr.mxu0 0.0
    %5799 = vmatpush1.msra.mxu0 0.0
    %5800 = vmatprep.subr.mxu0 0.0
    %5801 = vmatpush1.msra.mxu0 0.0
    %5802 = vmatprep.subr.mxu0 0.0
    %5803 = vmatpush1.msra.mxu0 0.0
    %5804 = vmatprep.subr.mxu0 0.0
    %5805 = vmatpush1.msra.mxu0 0.0
    %5806 = vmatprep.subr.mxu0 0.0
    %5807 = vmatpush1.msra.mxu0 0.0
    %5808 = vmatprep.subr.mxu0 0.0
    %5809 = vmatpush1.msra.mxu0 0.0
    %5810 = vmatprep.subr.mxu0 0.0
    %5811 = vmatpush1.msra.mxu0 0.0
    %5812 = vmatprep.mubr.f32.mxu0 0.0
    %5813 = vmatmul.mubr.f32.gmra.mrb[0].mxu0 %v3232
    %v5814 = vpop.f32.mrb[0].mxu0
    %v5815 = vadd.f32 %v5670, %v5814
    %v5816 = vpop.f32.mrb[0].mxu0
    %5817 = vmatprep.mubr.f32.mxu0 0.0
    %5818 = vmatmul.mubr.f32.gmra.mrb[0].mxu0 %v3257
    %v5819 = vpop.f32.mrb[0].mxu0
    %v5820 = vadd.f32 %v5675, %v5819
    %v5821 = vpop.f32.mrb[0].mxu0
    %5822 = vmatprep.mubr.f32.mxu0 0.0
    %5823 = vmatmul.mubr.f32.gmra.mrb[0].mxu0 %v3282
    %v5824 = vpop.f32.mrb[0].mxu0
    %v5825 = vadd.f32 %v5680, %v5824
    %v5826 = vpop.f32.mrb[0].mxu0
    %5827 = vmatprep.mubr.f32.mxu0 0.0
    %5828 = vmatmul.mubr.f32.gmra.mrb[0].mxu0 %v3307
    %v5829 = vpop.f32.mrb[0].mxu0
    %v5830 = vadd.f32 %v5685, %v5829
    %v5831 = vpop.f32.mrb[0].mxu0
    %5832 = vmatprep.mubr.f32.mxu0 0.0
    %5833 = vmatmul.mubr.f32.gmra.mrb[0].mxu0 %v3332
    %v5834 = vpop.f32.mrb[0].mxu0
    %v5835 = vadd.f32 %v5690, %v5834
    %v5836 = vpop.f32.mrb[0].mxu0
    %5837 = vmatprep.mubr.f32.mxu0 0.0
    %5838 = vmatmul.mubr.f32.gmra.mrb[0].mxu0 %v3357
    %v5839 = vpop.f32.mrb[0].mxu0
    %v5840 = vadd.f32 %v5695, %v5839
    %v5841 = vpop.f32.mrb[0].mxu0
    %5842 = vmatprep.mubr.f32.mxu0 0.0
    %5843 = vmatmul.mubr.f32.gmra.mrb[0].mxu0 %v3382
    %v5844 = vpop.f32.mrb[0].mxu0
    %v5845 = vadd.f32 %v5700, %v5844
    %v5846 = vpop.f32.mrb[0].mxu0
    %5847 = vmatprep.mubr.f32.mxu0 0.0
    %5848 = vmatmul.mubr.f32.gmra.mrb[0].mxu0 %v3407
    %v5849 = vpop.f32.mrb[0].mxu0
    %v5850 = vadd.f32 %v5705, %v5849
    %v5851 = vpop.f32.mrb[0].mxu0
    %5852 = vmatprep.mubr.f32.mxu0 0.0
    %5853 = vmatmul.mubr.f32.gmra.mrb[0].mxu0 %v3432
    %v5854 = vpop.f32.mrb[0].mxu0
    %v5855 = vadd.f32 %v5710, %v5854
    %v5856 = vpop.f32.mrb[0].mxu0
    %5857 = vmatprep.mubr.f32.mxu0 0.0
    %5858 = vmatmul.mubr.f32.gmra.mrb[0].mxu0 %v3457
    %v5859 = vpop.f32.mrb[0].mxu0
    %v5860 = vadd.f32 %v5715, %v5859
    %v5861 = vpop.f32.mrb[0].mxu0
    %5862 = vmatprep.mubr.f32.mxu0 0.0
    %5863 = vmatmul.mubr.f32.gmra.mrb[0].mxu0 %v3482
    %v5864 = vpop.f32.mrb[0].mxu0
    %v5865 = vadd.f32 %v5720, %v5864
    %v5866 = vpop.f32.mrb[0].mxu0
    %5867 = vmatprep.mubr.f32.mxu0 0.0
    %5868 = vmatmul.mubr.f32.gmra.mrb[0].mxu0 %v3507
    %v5869 = vpop.f32.mrb[0].mxu0
    %v5870 = vadd.f32 %v5725, %v5869
    %v5871 = vpop.f32.mrb[0].mxu0
    %5872 = vmatprep.mubr.f32.mxu0 0.0
    %5873 = vmatmul.mubr.f32.gmra.mrb[0].mxu0 %v3532
    %v5874 = vpop.f32.mrb[0].mxu0
    %v5875 = vadd.f32 %v5730, %v5874
    %v5876 = vpop.f32.mrb[0].mxu0
    %5877 = vmatprep.mubr.f32.mxu0 0.0
    %5878 = vmatmul.mubr.f32.gmra.mrb[0].mxu0 %v3557
    %v5879 = vpop.f32.mrb[0].mxu0
    %v5880 = vadd.f32 %v5735, %v5879
    %v5881 = vpop.f32.mrb[0].mxu0
    %5882 = vmatprep.mubr.f32.mxu0 0.0
    %5883 = vmatmul.mubr.f32.gmra.mrb[0].mxu0 %v3582
    %v5884 = vpop.f32.mrb[0].mxu0
    %v5885 = vadd.f32 %v5740, %v5884
    %v5886 = vpop.f32.mrb[0].mxu0
    %5887 = vmatprep.mubr.f32.mxu0 0.0
    %5888 = vmatmul.mubr.f32.gmra.mrb[0].mxu0 %v3607
    %v5889 = vpop.f32.mrb[0].mxu0
    %v5890 = vadd.f32 %v5745, %v5889
    %v5891 = vpop.f32.mrb[0].mxu0
    %5892 = vdwg.mxu0
    %v5893 = vmax.f32 %v5815, %v5835
    %v5894 = vmax.f32 %v5893, %v5855
    %v5895 = vmax.f32 %v5894, %v5875
    %v5896 = vmax.f32 %v5820, %v5840
    %v5897 = vmax.f32 %v5896, %v5860
    %v5898 = vmax.f32 %v5897, %v5880
    %v5899 = vmax.f32 %v5825, %v5845
    %v5900 = vmax.f32 %v5899, %v5865
    %v5901 = vmax.f32 %v5900, %v5885
    %v5902 = vmax.f32 %v5830, %v5850
    %v5903 = vmax.f32 %v5902, %v5870
    %v5904 = vmax.f32 %v5903, %v5890
    %v5905 = vld [vmem:[%s4] sm:$0x1]
    %v5907 = vlaneseq
    %v5908 = vshrl.u32 %v5907, 7
    %v5909 = vsub.s32 0, %v5908
    %v5910 = vrot.slane %v5905, %v5909
    %v5912 = vadd.f32 %v5895, %v5910
    %v5913 = vadd.f32 %v5898, %v5910
    %v5914 = vadd.f32 %v5901, %v5910
    %v5915 = vadd.f32 %v5904, %v5910
    %v5916 = vmax.f32 %v5912, 0.0
    %v5917 = vmax.f32 %v5913, 0.0
    %v5918 = vmax.f32 %v5914, 0.0
    %v5919 = vmax.f32 %v5915, 0.0
    %v5923 = vunpack.c.l.s4 1983009808
    %v5924 = vunpack.c.0.s8 %v5923
    %v5925 = vlaneseq
    %v5926 = vshrl.u32 %v5925, 7
    %v5927 = vsub.s32 %v5924, %v5926
    %v5928 = vrot.slane %v5916, %v5927
    %v5930 = vunpack.c.l.s4 1983009808
    %v5931 = vunpack.c.0.s8 %v5930
    %v5932 = vlaneseq
    %v5933 = vshrl.u32 %v5932, 7
    %v5934 = vsub.s32 %v5931, %v5933
    %v5935 = vrot.slane %v5918, %v5934
    %vm5936 = vcmask 1044484
    %v5937 = vsel %vm5936, %v5928, %v5928
    %vm5938 = vcmask 1046534
    %v5939 = vsel %vm5938, %v5928, %v5937
    %v5940 = vrot.slane %v5935, 7
    %vm5941 = vcmask 1041409
    %v5942 = vsel %vm5941, %v5940, %v5939
    %vm5943 = vcmask 1043459
    %v5944 = vsel %vm5943, %v5940, %v5942
    %vm5945 = vcmask 1045509
    %v5946 = vsel %vm5945, %v5940, %v5944
    %vm5947 = vcmask 1047559
    %v5948 = vsel %vm5947, %v5940, %v5946
    %5950 = vst [vmem:[#allocation3] sm:$0x3] %v5948
    %v5951 = vrot.slane %v5928, 1
    %v5952 = vsel %vm5936, %v5951, %v5951
    %v5953 = vsel %vm5938, %v5951, %v5952
    %v5954 = vsel %vm5941, %v5935, %v5953
    %v5955 = vsel %vm5943, %v5935, %v5954
    %v5956 = vsel %vm5945, %v5935, %v5955
    %v5957 = vsel %vm5947, %v5935, %v5956
    %5959 = vst [vmem:[#allocation3 + $0x2] sm:$0x3] %v5957
    %v5960 = vcombine.high %v5928, %v5928
    %v5961 = vcombine.high %v5935, %v5935
    %v5962 = vsel %vm5936, %v5960, %v5960
    %v5963 = vsel %vm5938, %v5960, %v5962
    %v5964 = vrot.slane %v5961, 7
    %v5965 = vsel %vm5941, %v5964, %v5963
    %v5966 = vsel %vm5943, %v5964, %v5965
    %v5967 = vsel %vm5945, %v5964, %v5966
    %v5968 = vsel %vm5947, %v5964, %v5967
    %5970 = vst [vmem:[#allocation3 + $0x4] sm:$0x3] %v5968
    %v5971 = vrot.slane %v5960, 1
    %v5972 = vsel %vm5936, %v5971, %v5971
    %v5973 = vsel %vm5938, %v5971, %v5972
    %v5974 = vsel %vm5941, %v5961, %v5973
    %v5975 = vsel %vm5943, %v5961, %v5974
    %v5976 = vsel %vm5945, %v5961, %v5975
    %v5977 = vsel %vm5947, %v5961, %v5976
    %5979 = vst [vmem:[#allocation3 + $0x6] sm:$0x3] %v5977
    %v5980 = vcombine.high %v5916, %v5916
    %v5982 = vunpack.c.l.s4 1983009808
    %v5983 = vunpack.c.0.s8 %v5982
    %v5984 = vlaneseq
    %v5985 = vshrl.u32 %v5984, 7
    %v5986 = vsub.s32 %v5983, %v5985
    %v5987 = vrot.slane %v5980, %v5986
    %v5988 = vcombine.high %v5918, %v5918
    %v5990 = vunpack.c.l.s4 1983009808
    %v5991 = vunpack.c.0.s8 %v5990
    %v5992 = vlaneseq
    %v5993 = vshrl.u32 %v5992, 7
    %v5994 = vsub.s32 %v5991, %v5993
    %v5995 = vrot.slane %v5988, %v5994
    %v5996 = vsel %vm5936, %v5987, %v5987
    %v5997 = vsel %vm5938, %v5987, %v5996
    %v5998 = vrot.slane %v5995, 7
    %v5999 = vsel %vm5941, %v5998, %v5997
    %v6000 = vsel %vm5943, %v5998, %v5999
    %v6001 = vsel %vm5945, %v5998, %v6000
    %v6002 = vsel %vm5947, %v5998, %v6001
    %6004 = vst [vmem:[#allocation3 + $0x8] sm:$0x3] %v6002
    %v6005 = vrot.slane %v5987, 1
    %v6006 = vsel %vm5936, %v6005, %v6005
    %v6007 = vsel %vm5938, %v6005, %v6006
    %v6008 = vsel %vm5941, %v5995, %v6007
    %v6009 = vsel %vm5943, %v5995, %v6008
    %v6010 = vsel %vm5945, %v5995, %v6009
    %v6011 = vsel %vm5947, %v5995, %v6010
    %6013 = vst [vmem:[#allocation3 + $0xa] sm:$0x3] %v6011
    %v6014 = vcombine.high %v5987, %v5987
    %v6015 = vcombine.high %v5995, %v5995
    %v6016 = vsel %vm5936, %v6014, %v6014
    %v6017 = vsel %vm5938, %v6014, %v6016
    %v6018 = vrot.slane %v6015, 7
    %v6019 = vsel %vm5941, %v6018, %v6017
    %v6020 = vsel %vm5943, %v6018, %v6019
    %v6021 = vsel %vm5945, %v6018, %v6020
    %v6022 = vsel %vm5947, %v6018, %v6021
    %6024 = vst [vmem:[#allocation3 + $0xc] sm:$0x3] %v6022
    %v6025 = vrot.slane %v6014, 1
    %v6026 = vsel %vm5936, %v6025, %v6025
    %v6027 = vsel %vm5938, %v6025, %v6026
    %v6028 = vsel %vm5941, %v6015, %v6027
    %v6029 = vsel %vm5943, %v6015, %v6028
    %v6030 = vsel %vm5945, %v6015, %v6029
    %v6031 = vsel %vm5947, %v6015, %v6030
    %6033 = vst [vmem:[#allocation3 + $0xe] sm:$0x3] %v6031
    %v6037 = vunpack.c.l.s4 1983009808
    %v6038 = vunpack.c.0.s8 %v6037
    %v6039 = vlaneseq
    %v6040 = vshrl.u32 %v6039, 7
    %v6041 = vsub.s32 %v6038, %v6040
    %v6042 = vrot.slane %v5917, %v6041
    %v6044 = vunpack.c.l.s4 1983009808
    %v6045 = vunpack.c.0.s8 %v6044
    %v6046 = vlaneseq
    %v6047 = vshrl.u32 %v6046, 7
    %v6048 = vsub.s32 %v6045, %v6047
    %v6049 = vrot.slane %v5919, %v6048
    %v6050 = vsel %vm5936, %v6042, %v6042
    %v6051 = vsel %vm5938, %v6042, %v6050
    %v6052 = vrot.slane %v6049, 7
    %v6053 = vsel %vm5941, %v6052, %v6051
    %v6054 = vsel %vm5943, %v6052, %v6053
    %v6055 = vsel %vm5945, %v6052, %v6054
    %v6056 = vsel %vm5947, %v6052, %v6055
    %6058 = vst [vmem:[#allocation3 + $0x10] sm:$0x3] %v6056
    %v6059 = vrot.slane %v6042, 1
    %v6060 = vsel %vm5936, %v6059, %v6059
    %v6061 = vsel %vm5938, %v6059, %v6060
    %v6062 = vsel %vm5941, %v6049, %v6061
    %v6063 = vsel %vm5943, %v6049, %v6062
    %v6064 = vsel %vm5945, %v6049, %v6063
    %v6065 = vsel %vm5947, %v6049, %v6064
    %6067 = vst [vmem:[#allocation3 + $0x12] sm:$0x3] %v6065
    %v6068 = vcombine.high %v6042, %v6042
    %v6069 = vcombine.high %v6049, %v6049
    %v6070 = vsel %vm5936, %v6068, %v6068
    %v6071 = vsel %vm5938, %v6068, %v6070
    %v6072 = vrot.slane %v6069, 7
    %v6073 = vsel %vm5941, %v6072, %v6071
    %v6074 = vsel %vm5943, %v6072, %v6073
    %v6075 = vsel %vm5945, %v6072, %v6074
    %v6076 = vsel %vm5947, %v6072, %v6075
    %6078 = vst [vmem:[#allocation3 + $0x14] sm:$0x3] %v6076
    %v6079 = vrot.slane %v6068, 1
    %v6080 = vsel %vm5936, %v6079, %v6079
    %v6081 = vsel %vm5938, %v6079, %v6080
    %v6082 = vsel %vm5941, %v6069, %v6081
    %v6083 = vsel %vm5943, %v6069, %v6082
    %v6084 = vsel %vm5945, %v6069, %v6083
    %v6085 = vsel %vm5947, %v6069, %v6084
    %6087 = vst [vmem:[#allocation3 + $0x16] sm:$0x3] %v6085
    %v6088 = vcombine.high %v5917, %v5917
    %v6090 = vunpack.c.l.s4 1983009808
    %v6091 = vunpack.c.0.s8 %v6090
    %v6092 = vlaneseq
    %v6093 = vshrl.u32 %v6092, 7
    %v6094 = vsub.s32 %v6091, %v6093
    %v6095 = vrot.slane %v6088, %v6094
    %v6096 = vcombine.high %v5919, %v5919
    %v6098 = vunpack.c.l.s4 1983009808
    %v6099 = vunpack.c.0.s8 %v6098
    %v6100 = vlaneseq
    %v6101 = vshrl.u32 %v6100, 7
    %v6102 = vsub.s32 %v6099, %v6101
    %v6103 = vrot.slane %v6096, %v6102
    %v6104 = vsel %vm5936, %v6095, %v6095
    %v6105 = vsel %vm5938, %v6095, %v6104
    %v6106 = vrot.slane %v6103, 7
    %v6107 = vsel %vm5941, %v6106, %v6105
    %v6108 = vsel %vm5943, %v6106, %v6107
    %v6109 = vsel %vm5945, %v6106, %v6108
    %v6110 = vsel %vm5947, %v6106, %v6109
    %6112 = vst [vmem:[#allocation3 + $0x18] sm:$0x3] %v6110
    %v6113 = vrot.slane %v6095, 1
    %v6114 = vsel %vm5936, %v6113, %v6113
    %v6115 = vsel %vm5938, %v6113, %v6114
    %v6116 = vsel %vm5941, %v6103, %v6115
    %v6117 = vsel %vm5943, %v6103, %v6116
    %v6118 = vsel %vm5945, %v6103, %v6117
    %v6119 = vsel %vm5947, %v6103, %v6118
    %6121 = vst [vmem:[#allocation3 + $0x1a] sm:$0x3] %v6119
    %v6122 = vcombine.high %v6095, %v6095
    %v6123 = vcombine.high %v6103, %v6103
    %v6124 = vsel %vm5936, %v6122, %v6122
    %v6125 = vsel %vm5938, %v6122, %v6124
    %v6126 = vrot.slane %v6123, 7
    %v6127 = vsel %vm5941, %v6126, %v6125
    %v6128 = vsel %vm5943, %v6126, %v6127
    %v6129 = vsel %vm5945, %v6126, %v6128
    %v6130 = vsel %vm5947, %v6126, %v6129
    %6132 = vst [vmem:[#allocation3 + $0x1c] sm:$0x3] %v6130
    %v6133 = vrot.slane %v6122, 1
    %v6134 = vsel %vm5936, %v6133, %v6133
    %v6135 = vsel %vm5938, %v6133, %v6134
    %v6136 = vsel %vm5941, %v6123, %v6135
    %v6137 = vsel %vm5943, %v6123, %v6136
    %v6138 = vsel %vm5945, %v6123, %v6137
    %v6139 = vsel %vm5947, %v6123, %v6138
    %6141 = vst [vmem:[#allocation3 + $0x1e] sm:$0x3] %v6139
    %v6142 = vld [vmem:[#allocation3] sm:$0xff]
    %v6143 = vld [vmem:[#allocation3 + $0x8] sm:$0xff]
    %v6144 = vld [vmem:[#allocation3 + $0x10] sm:$0xff]
    %v6145 = vld [vmem:[#allocation3 + $0x18] sm:$0xff]
    %v6146 = vld [vmem:[%s5] sm:$0xff]
    %v6147 = vld [vmem:[%s5 + $0x8] sm:$0xff]
    %v6148 = vld [vmem:[%s5 + $0x10] sm:$0xff]
    %v6149 = vld [vmem:[%s5 + $0x18] sm:$0xff]
    %v6150 = vld [vmem:[%s5 + $0x20] sm:$0xff]
    %v6151 = vld [vmem:[%s5 + $0x28] sm:$0xff]
    %v6152 = vld [vmem:[%s5 + $0x30] sm:$0xff]
    %v6153 = vld [vmem:[%s5 + $0x38] sm:$0xff]
    %v6154 = vld [vmem:[%s5 + $0x40] sm:$0xff]
    %v6155 = vld [vmem:[%s5 + $0x48] sm:$0xff]
    %v6156 = vld [vmem:[%s5 + $0x50] sm:$0xff]
    %v6157 = vld [vmem:[%s5 + $0x58] sm:$0xff]
    %v6158 = vld [vmem:[%s5 + $0x60] sm:$0xff]
    %v6159 = vld [vmem:[%s5 + $0x68] sm:$0xff]
    %v6160 = vld [vmem:[%s5 + $0x70] sm:$0xff]
    %v6161 = vld [vmem:[%s5 + $0x78] sm:$0xff]
    %v6162 = vld [vmem:[%s5 + $0x80] sm:$0xff]
    %v6163 = vld [vmem:[%s5 + $0x88] sm:$0xff]
    %v6164 = vld [vmem:[%s5 + $0x90] sm:$0xff]
    %v6165 = vld [vmem:[%s5 + $0x98] sm:$0xff]
    %v6166 = vld [vmem:[%s5 + $0xa0] sm:$0xff]
    %v6167 = vld [vmem:[%s5 + $0xa8] sm:$0xff]
    %v6168 = vld [vmem:[%s5 + $0xb0] sm:$0xff]
    %v6169 = vld [vmem:[%s5 + $0xb8] sm:$0xff]
    %v6170 = vld [vmem:[%s5 + $0xc0] sm:$0xff]
    %v6171 = vld [vmem:[%s5 + $0xc8] sm:$0xff]
    %v6172 = vld [vmem:[%s5 + $0xd0] sm:$0xff]
    %v6173 = vld [vmem:[%s5 + $0xd8] sm:$0xff]
    %v6174 = vld [vmem:[%s5 + $0xe0] sm:$0xff]
    %v6175 = vld [vmem:[%s5 + $0xe8] sm:$0xff]
    %v6176 = vld [vmem:[%s5 + $0xf0] sm:$0xff]
    %v6177 = vld [vmem:[%s5 + $0xf8] sm:$0xff]
    %v6178 = vld [vmem:[%s5 + $0x100] sm:$0xff]
    %v6179 = vld [vmem:[%s5 + $0x108] sm:$0xff]
    %v6180 = vld [vmem:[%s5 + $0x110] sm:$0xff]
    %v6181 = vld [vmem:[%s5 + $0x118] sm:$0xff]
    %v6182 = vld [vmem:[%s5 + $0x120] sm:$0xff]
    %v6183 = vld [vmem:[%s5 + $0x128] sm:$0xff]
    %v6184 = vld [vmem:[%s5 + $0x130] sm:$0xff]
    %v6185 = vld [vmem:[%s5 + $0x138] sm:$0xff]
    %v6186 = vld [vmem:[%s5 + $0x140] sm:$0xff]
    %v6187 = vld [vmem:[%s5 + $0x148] sm:$0xff]
    %v6188 = vld [vmem:[%s5 + $0x150] sm:$0xff]
    %v6189 = vld [vmem:[%s5 + $0x158] sm:$0xff]
    %v6190 = vld [vmem:[%s5 + $0x160] sm:$0xff]
    %v6191 = vld [vmem:[%s5 + $0x168] sm:$0xff]
    %v6192 = vld [vmem:[%s5 + $0x170] sm:$0xff]
    %v6193 = vld [vmem:[%s5 + $0x178] sm:$0xff]
    %v6194 = vld [vmem:[%s5 + $0x180] sm:$0xff]
    %v6195 = vld [vmem:[%s5 + $0x188] sm:$0xff]
    %v6196 = vld [vmem:[%s5 + $0x190] sm:$0xff]
    %v6197 = vld [vmem:[%s5 + $0x198] sm:$0xff]
    %v6198 = vld [vmem:[%s5 + $0x1a0] sm:$0xff]
    %v6199 = vld [vmem:[%s5 + $0x1a8] sm:$0xff]
    %v6200 = vld [vmem:[%s5 + $0x1b0] sm:$0xff]
    %v6201 = vld [vmem:[%s5 + $0x1b8] sm:$0xff]
    %v6202 = vld [vmem:[%s5 + $0x1c0] sm:$0xff]
    %v6203 = vld [vmem:[%s5 + $0x1c8] sm:$0xff]
    %v6204 = vld [vmem:[%s5 + $0x1d0] sm:$0xff]
    %v6205 = vld [vmem:[%s5 + $0x1d8] sm:$0xff]
    %v6206 = vld [vmem:[%s5 + $0x1e0] sm:$0xff]
    %v6207 = vld [vmem:[%s5 + $0x1e8] sm:$0xff]
    %v6208 = vld [vmem:[%s5 + $0x1f0] sm:$0xff]
    %v6209 = vld [vmem:[%s5 + $0x1f8] sm:$0xff]
    %v6210 = vld [vmem:[%s5 + $0x200] sm:$0xff]
    %v6211 = vld [vmem:[%s5 + $0x208] sm:$0xff]
    %v6212 = vld [vmem:[%s5 + $0x210] sm:$0xff]
    %v6213 = vld [vmem:[%s5 + $0x218] sm:$0xff]
    %v6214 = vld [vmem:[%s5 + $0x220] sm:$0xff]
    %v6215 = vld [vmem:[%s5 + $0x228] sm:$0xff]
    %v6216 = vld [vmem:[%s5 + $0x230] sm:$0xff]
    %v6217 = vld [vmem:[%s5 + $0x238] sm:$0xff]
    %v6218 = vld [vmem:[%s5 + $0x240] sm:$0xff]
    %v6219 = vld [vmem:[%s5 + $0x248] sm:$0xff]
    %v6220 = vld [vmem:[%s5 + $0x250] sm:$0xff]
    %v6221 = vld [vmem:[%s5 + $0x258] sm:$0xff]
    %v6222 = vld [vmem:[%s5 + $0x260] sm:$0xff]
    %v6223 = vld [vmem:[%s5 + $0x268] sm:$0xff]
    %v6224 = vld [vmem:[%s5 + $0x270] sm:$0xff]
    %v6225 = vld [vmem:[%s5 + $0x278] sm:$0xff]
    %v6226 = vld [vmem:[%s5 + $0x280] sm:$0xff]
    %v6227 = vld [vmem:[%s5 + $0x288] sm:$0xff]
    %v6228 = vld [vmem:[%s5 + $0x290] sm:$0xff]
    %v6229 = vld [vmem:[%s5 + $0x298] sm:$0xff]
    %v6230 = vld [vmem:[%s5 + $0x2a0] sm:$0xff]
    %v6231 = vld [vmem:[%s5 + $0x2a8] sm:$0xff]
    %v6232 = vld [vmem:[%s5 + $0x2b0] sm:$0xff]
    %v6233 = vld [vmem:[%s5 + $0x2b8] sm:$0xff]
    %v6234 = vld [vmem:[%s5 + $0x2c0] sm:$0xff]
    %v6235 = vld [vmem:[%s5 + $0x2c8] sm:$0xff]
    %v6236 = vld [vmem:[%s5 + $0x2d0] sm:$0xff]
    %v6237 = vld [vmem:[%s5 + $0x2d8] sm:$0xff]
    %v6238 = vld [vmem:[%s5 + $0x2e0] sm:$0xff]
    %v6239 = vld [vmem:[%s5 + $0x2e8] sm:$0xff]
    %v6240 = vld [vmem:[%s5 + $0x2f0] sm:$0xff]
    %v6241 = vld [vmem:[%s5 + $0x2f8] sm:$0xff]
    %v6242 = vld [vmem:[%s5 + $0x300] sm:$0xff]
    %v6243 = vld [vmem:[%s5 + $0x308] sm:$0xff]
    %v6244 = vld [vmem:[%s5 + $0x310] sm:$0xff]
    %v6245 = vld [vmem:[%s5 + $0x318] sm:$0xff]
    %v6246 = vld [vmem:[%s5 + $0x320] sm:$0xff]
    %v6247 = vld [vmem:[%s5 + $0x328] sm:$0xff]
    %v6248 = vld [vmem:[%s5 + $0x330] sm:$0xff]
    %v6249 = vld [vmem:[%s5 + $0x338] sm:$0xff]
    %v6250 = vld [vmem:[%s5 + $0x340] sm:$0xff]
    %v6251 = vld [vmem:[%s5 + $0x348] sm:$0xff]
    %v6252 = vld [vmem:[%s5 + $0x350] sm:$0xff]
    %v6253 = vld [vmem:[%s5 + $0x358] sm:$0xff]
    %v6254 = vld [vmem:[%s5 + $0x360] sm:$0xff]
    %v6255 = vld [vmem:[%s5 + $0x368] sm:$0xff]
    %v6256 = vld [vmem:[%s5 + $0x370] sm:$0xff]
    %v6257 = vld [vmem:[%s5 + $0x378] sm:$0xff]
    %v6258 = vld [vmem:[%s5 + $0x380] sm:$0xff]
    %v6259 = vld [vmem:[%s5 + $0x388] sm:$0xff]
    %v6260 = vld [vmem:[%s5 + $0x390] sm:$0xff]
    %v6261 = vld [vmem:[%s5 + $0x398] sm:$0xff]
    %v6262 = vld [vmem:[%s5 + $0x3a0] sm:$0xff]
    %v6263 = vld [vmem:[%s5 + $0x3a8] sm:$0xff]
    %v6264 = vld [vmem:[%s5 + $0x3b0] sm:$0xff]
    %v6265 = vld [vmem:[%s5 + $0x3b8] sm:$0xff]
    %v6266 = vld [vmem:[%s5 + $0x3c0] sm:$0xff]
    %v6267 = vld [vmem:[%s5 + $0x3c8] sm:$0xff]
    %v6268 = vld [vmem:[%s5 + $0x3d0] sm:$0xff]
    %v6269 = vld [vmem:[%s5 + $0x3d8] sm:$0xff]
    %v6270 = vld [vmem:[%s5 + $0x3e0] sm:$0xff]
    %v6271 = vld [vmem:[%s5 + $0x3e8] sm:$0xff]
    %v6272 = vld [vmem:[%s5 + $0x3f0] sm:$0xff]
    %v6273 = vld [vmem:[%s5 + $0x3f8] sm:$0xff]
    %v6274 = vld [vmem:[%s5 + $0x400] sm:$0xff]
    %v6275 = vld [vmem:[%s5 + $0x408] sm:$0xff]
    %v6276 = vld [vmem:[%s5 + $0x410] sm:$0xff]
    %v6277 = vld [vmem:[%s5 + $0x418] sm:$0xff]
    %v6278 = vld [vmem:[%s5 + $0x420] sm:$0xff]
    %v6279 = vld [vmem:[%s5 + $0x428] sm:$0xff]
    %v6280 = vld [vmem:[%s5 + $0x430] sm:$0xff]
    %v6281 = vld [vmem:[%s5 + $0x438] sm:$0xff]
    %v6282 = vld [vmem:[%s5 + $0x440] sm:$0xff]
    %v6283 = vld [vmem:[%s5 + $0x448] sm:$0xff]
    %v6284 = vld [vmem:[%s5 + $0x450] sm:$0xff]
    %v6285 = vld [vmem:[%s5 + $0x458] sm:$0xff]
    %v6286 = vld [vmem:[%s5 + $0x460] sm:$0xff]
    %v6287 = vld [vmem:[%s5 + $0x468] sm:$0xff]
    %v6288 = vld [vmem:[%s5 + $0x470] sm:$0xff]
    %v6289 = vld [vmem:[%s5 + $0x478] sm:$0xff]
    %v6290 = vld [vmem:[%s5 + $0x480] sm:$0xff]
    %v6291 = vld [vmem:[%s5 + $0x488] sm:$0xff]
    %v6292 = vld [vmem:[%s5 + $0x490] sm:$0xff]
    %v6293 = vld [vmem:[%s5 + $0x498] sm:$0xff]
    %v6294 = vld [vmem:[%s5 + $0x4a0] sm:$0xff]
    %v6295 = vld [vmem:[%s5 + $0x4a8] sm:$0xff]
    %v6296 = vld [vmem:[%s5 + $0x4b0] sm:$0xff]
    %v6297 = vld [vmem:[%s5 + $0x4b8] sm:$0xff]
    %v6298 = vld [vmem:[%s5 + $0x4c0] sm:$0xff]
    %v6299 = vld [vmem:[%s5 + $0x4c8] sm:$0xff]
    %v6300 = vld [vmem:[%s5 + $0x4d0] sm:$0xff]
    %v6301 = vld [vmem:[%s5 + $0x4d8] sm:$0xff]
    %v6302 = vld [vmem:[%s5 + $0x4e0] sm:$0xff]
    %v6303 = vld [vmem:[%s5 + $0x4e8] sm:$0xff]
    %v6304 = vld [vmem:[%s5 + $0x4f0] sm:$0xff]
    %v6305 = vld [vmem:[%s5 + $0x4f8] sm:$0xff]
    %v6306 = vld [vmem:[%s5 + $0x500] sm:$0xff]
    %v6307 = vld [vmem:[%s5 + $0x508] sm:$0xff]
    %v6308 = vld [vmem:[%s5 + $0x510] sm:$0xff]
    %v6309 = vld [vmem:[%s5 + $0x518] sm:$0xff]
    %v6310 = vld [vmem:[%s5 + $0x520] sm:$0xff]
    %v6311 = vld [vmem:[%s5 + $0x528] sm:$0xff]
    %v6312 = vld [vmem:[%s5 + $0x530] sm:$0xff]
    %v6313 = vld [vmem:[%s5 + $0x538] sm:$0xff]
    %v6314 = vld [vmem:[%s5 + $0x540] sm:$0xff]
    %v6315 = vld [vmem:[%s5 + $0x548] sm:$0xff]
    %v6316 = vld [vmem:[%s5 + $0x550] sm:$0xff]
    %v6317 = vld [vmem:[%s5 + $0x558] sm:$0xff]
    %v6318 = vld [vmem:[%s5 + $0x560] sm:$0xff]
    %v6319 = vld [vmem:[%s5 + $0x568] sm:$0xff]
    %v6320 = vld [vmem:[%s5 + $0x570] sm:$0xff]
    %v6321 = vld [vmem:[%s5 + $0x578] sm:$0xff]
    %v6322 = vld [vmem:[%s5 + $0x580] sm:$0xff]
    %v6323 = vld [vmem:[%s5 + $0x588] sm:$0xff]
    %v6324 = vld [vmem:[%s5 + $0x590] sm:$0xff]
    %v6325 = vld [vmem:[%s5 + $0x598] sm:$0xff]
    %v6326 = vld [vmem:[%s5 + $0x5a0] sm:$0xff]
    %v6327 = vld [vmem:[%s5 + $0x5a8] sm:$0xff]
    %v6328 = vld [vmem:[%s5 + $0x5b0] sm:$0xff]
    %v6329 = vld [vmem:[%s5 + $0x5b8] sm:$0xff]
    %v6330 = vld [vmem:[%s5 + $0x5c0] sm:$0xff]
    %v6331 = vld [vmem:[%s5 + $0x5c8] sm:$0xff]
    %v6332 = vld [vmem:[%s5 + $0x5d0] sm:$0xff]
    %v6333 = vld [vmem:[%s5 + $0x5d8] sm:$0xff]
    %v6334 = vld [vmem:[%s5 + $0x5e0] sm:$0xff]
    %v6335 = vld [vmem:[%s5 + $0x5e8] sm:$0xff]
    %v6336 = vld [vmem:[%s5 + $0x5f0] sm:$0xff]
    %v6337 = vld [vmem:[%s5 + $0x5f8] sm:$0xff]
    %v6338 = vld [vmem:[%s5 + $0x600] sm:$0xff]
    %v6339 = vld [vmem:[%s5 + $0x608] sm:$0xff]
    %v6340 = vld [vmem:[%s5 + $0x610] sm:$0xff]
    %v6341 = vld [vmem:[%s5 + $0x618] sm:$0xff]
    %v6342 = vld [vmem:[%s5 + $0x620] sm:$0xff]
    %v6343 = vld [vmem:[%s5 + $0x628] sm:$0xff]
    %v6344 = vld [vmem:[%s5 + $0x630] sm:$0xff]
    %v6345 = vld [vmem:[%s5 + $0x638] sm:$0xff]
    %v6346 = vld [vmem:[%s5 + $0x640] sm:$0xff]
    %v6347 = vld [vmem:[%s5 + $0x648] sm:$0xff]
    %v6348 = vld [vmem:[%s5 + $0x650] sm:$0xff]
    %v6349 = vld [vmem:[%s5 + $0x658] sm:$0xff]
    %v6350 = vld [vmem:[%s5 + $0x660] sm:$0xff]
    %v6351 = vld [vmem:[%s5 + $0x668] sm:$0xff]
    %v6352 = vld [vmem:[%s5 + $0x670] sm:$0xff]
    %v6353 = vld [vmem:[%s5 + $0x678] sm:$0xff]
    %v6354 = vld [vmem:[%s5 + $0x680] sm:$0xff]
    %v6355 = vld [vmem:[%s5 + $0x688] sm:$0xff]
    %v6356 = vld [vmem:[%s5 + $0x690] sm:$0xff]
    %v6357 = vld [vmem:[%s5 + $0x698] sm:$0xff]
    %v6358 = vld [vmem:[%s5 + $0x6a0] sm:$0xff]
    %v6359 = vld [vmem:[%s5 + $0x6a8] sm:$0xff]
    %v6360 = vld [vmem:[%s5 + $0x6b0] sm:$0xff]
    %v6361 = vld [vmem:[%s5 + $0x6b8] sm:$0xff]
    %v6362 = vld [vmem:[%s5 + $0x6c0] sm:$0xff]
    %v6363 = vld [vmem:[%s5 + $0x6c8] sm:$0xff]
    %v6364 = vld [vmem:[%s5 + $0x6d0] sm:$0xff]
    %v6365 = vld [vmem:[%s5 + $0x6d8] sm:$0xff]
    %v6366 = vld [vmem:[%s5 + $0x6e0] sm:$0xff]
    %v6367 = vld [vmem:[%s5 + $0x6e8] sm:$0xff]
    %v6368 = vld [vmem:[%s5 + $0x6f0] sm:$0xff]
    %v6369 = vld [vmem:[%s5 + $0x6f8] sm:$0xff]
    %v6370 = vld [vmem:[%s5 + $0x700] sm:$0xff]
    %v6371 = vld [vmem:[%s5 + $0x708] sm:$0xff]
    %v6372 = vld [vmem:[%s5 + $0x710] sm:$0xff]
    %v6373 = vld [vmem:[%s5 + $0x718] sm:$0xff]
    %v6374 = vld [vmem:[%s5 + $0x720] sm:$0xff]
    %v6375 = vld [vmem:[%s5 + $0x728] sm:$0xff]
    %v6376 = vld [vmem:[%s5 + $0x730] sm:$0xff]
    %v6377 = vld [vmem:[%s5 + $0x738] sm:$0xff]
    %v6378 = vld [vmem:[%s5 + $0x740] sm:$0xff]
    %v6379 = vld [vmem:[%s5 + $0x748] sm:$0xff]
    %v6380 = vld [vmem:[%s5 + $0x750] sm:$0xff]
    %v6381 = vld [vmem:[%s5 + $0x758] sm:$0xff]
    %v6382 = vld [vmem:[%s5 + $0x760] sm:$0xff]
    %v6383 = vld [vmem:[%s5 + $0x768] sm:$0xff]
    %v6384 = vld [vmem:[%s5 + $0x770] sm:$0xff]
    %v6385 = vld [vmem:[%s5 + $0x778] sm:$0xff]
    %v6386 = vld [vmem:[%s5 + $0x780] sm:$0xff]
    %v6387 = vld [vmem:[%s5 + $0x788] sm:$0xff]
    %v6388 = vld [vmem:[%s5 + $0x790] sm:$0xff]
    %v6389 = vld [vmem:[%s5 + $0x798] sm:$0xff]
    %v6390 = vld [vmem:[%s5 + $0x7a0] sm:$0xff]
    %v6391 = vld [vmem:[%s5 + $0x7a8] sm:$0xff]
    %v6392 = vld [vmem:[%s5 + $0x7b0] sm:$0xff]
    %v6393 = vld [vmem:[%s5 + $0x7b8] sm:$0xff]
    %v6394 = vld [vmem:[%s5 + $0x7c0] sm:$0xff]
    %v6395 = vld [vmem:[%s5 + $0x7c8] sm:$0xff]
    %v6396 = vld [vmem:[%s5 + $0x7d0] sm:$0xff]
    %v6397 = vld [vmem:[%s5 + $0x7d8] sm:$0xff]
    %v6398 = vld [vmem:[%s5 + $0x7e0] sm:$0xff]
    %v6399 = vld [vmem:[%s5 + $0x7e8] sm:$0xff]
    %v6400 = vld [vmem:[%s5 + $0x7f0] sm:$0xff]
    %v6401 = vld [vmem:[%s5 + $0x7f8] sm:$0xff]
    %v6402 = vld [vmem:[%s6] sm:$0x1]
    %v6404 = vlaneseq
    %v6405 = vshrl.u32 %v6404, 7
    %v6406 = vsub.s32 0, %v6405
    %v6407 = vrot.slane %v6402, %v6406
    %v6413 = vcombine.high %v6142, %v6142
    %v6415 = vunpack.c.l.s4 1983009808
    %v6416 = vunpack.c.0.s8 %v6415
    %v6417 = vlaneseq
    %v6418 = vshrl.u32 %v6417, 7
    %v6419 = vsub.s32 %v6416, %v6418
    %v6420 = vrot.slane %v6142, %v6419
    %v6422 = vunpack.c.l.s4 1983009808
    %v6423 = vunpack.c.0.s8 %v6422
    %v6424 = vlaneseq
    %v6425 = vshrl.u32 %v6424, 7
    %v6426 = vsub.s32 %v6423, %v6425
    %v6427 = vrot.slane %v6413, %v6426
    %v6428 = vcombine.high %v6420, %v6420
    %v6429 = vcombine.high %v6427, %v6427
    %v6430 = vcombine.high %v6143, %v6143
    %v6432 = vunpack.c.l.s4 1983009808
    %v6433 = vunpack.c.0.s8 %v6432
    %v6434 = vlaneseq
    %v6435 = vshrl.u32 %v6434, 7
    %v6436 = vsub.s32 %v6433, %v6435
    %v6437 = vrot.slane %v6143, %v6436
    %v6439 = vunpack.c.l.s4 1983009808
    %v6440 = vunpack.c.0.s8 %v6439
    %v6441 = vlaneseq
    %v6442 = vshrl.u32 %v6441, 7
    %v6443 = vsub.s32 %v6440, %v6442
    %v6444 = vrot.slane %v6430, %v6443
    %v6445 = vcombine.high %v6437, %v6437
    %v6446 = vcombine.high %v6444, %v6444
    %v6447 = vcombine.high %v6144, %v6144
    %v6449 = vunpack.c.l.s4 1983009808
    %v6450 = vunpack.c.0.s8 %v6449
    %v6451 = vlaneseq
    %v6452 = vshrl.u32 %v6451, 7
    %v6453 = vsub.s32 %v6450, %v6452
    %v6454 = vrot.slane %v6144, %v6453
    %v6456 = vunpack.c.l.s4 1983009808
    %v6457 = vunpack.c.0.s8 %v6456
    %v6458 = vlaneseq
    %v6459 = vshrl.u32 %v6458, 7
    %v6460 = vsub.s32 %v6457, %v6459
    %v6461 = vrot.slane %v6447, %v6460
    %v6462 = vcombine.high %v6454, %v6454
    %v6463 = vcombine.high %v6461, %v6461
    %v6464 = vcombine.high %v6145, %v6145
    %v6466 = vunpack.c.l.s4 1983009808
    %v6467 = vunpack.c.0.s8 %v6466
    %v6468 = vlaneseq
    %v6469 = vshrl.u32 %v6468, 7
    %v6470 = vsub.s32 %v6467, %v6469
    %v6471 = vrot.slane %v6145, %v6470
    %v6473 = vunpack.c.l.s4 1983009808
    %v6474 = vunpack.c.0.s8 %v6473
    %v6475 = vlaneseq
    %v6476 = vshrl.u32 %v6475, 7
    %v6477 = vsub.s32 %v6474, %v6476
    %v6478 = vrot.slane %v6464, %v6477
    %v6479 = vcombine.high %v6471, %v6471
    %v6480 = vcombine.high %v6478, %v6478
    %6497 = vmatprep.subr.mxu0 0.0
    %6498 = vmatpush1.msra.mxu0 %v6146
    %6499 = vmatprep.subr.mxu0 0.0
    %6500 = vmatpush1.msra.mxu0 %v6147
    %6501 = vmatprep.subr.mxu0 0.0
    %6502 = vmatpush1.msra.mxu0 %v6148
    %6503 = vmatprep.subr.mxu0 0.0
    %6504 = vmatpush1.msra.mxu0 %v6149
    %6505 = vmatprep.subr.mxu0 0.0
    %6506 = vmatpush1.msra.mxu0 %v6150
    %6507 = vmatprep.subr.mxu0 0.0
    %6508 = vmatpush1.msra.mxu0 %v6151
    %6509 = vmatprep.subr.mxu0 0.0
    %6510 = vmatpush1.msra.mxu0 %v6152
    %6511 = vmatprep.subr.mxu0 0.0
    %6512 = vmatpush1.msra.mxu0 %v6153
    %6513 = vmatprep.subr.mxu0 0.0
    %6514 = vmatpush1.msra.mxu0 %v6154
    %6515 = vmatprep.subr.mxu0 0.0
    %6516 = vmatpush1.msra.mxu0 %v6155
    %6517 = vmatprep.subr.mxu0 0.0
    %6518 = vmatpush1.msra.mxu0 %v6156
    %6519 = vmatprep.subr.mxu0 0.0
    %6520 = vmatpush1.msra.mxu0 %v6157
    %6521 = vmatprep.subr.mxu0 0.0
    %6522 = vmatpush1.msra.mxu0 %v6158
    %6523 = vmatprep.subr.mxu0 0.0
    %6524 = vmatpush1.msra.mxu0 %v6159
    %6525 = vmatprep.subr.mxu0 0.0
    %6526 = vmatpush1.msra.mxu0 %v6160
    %6527 = vmatprep.subr.mxu0 0.0
    %6528 = vmatpush1.msra.mxu0 %v6161
    %6529 = vmatprep.subr.mxu0 0.0
    %6530 = vmatpush1.msra.mxu0 %v6162
    %6531 = vmatprep.subr.mxu0 0.0
    %6532 = vmatpush1.msra.mxu0 %v6163
    %6533 = vmatprep.subr.mxu0 0.0
    %6534 = vmatpush1.msra.mxu0 %v6164
    %6535 = vmatprep.subr.mxu0 0.0
    %6536 = vmatpush1.msra.mxu0 %v6165
    %6537 = vmatprep.subr.mxu0 0.0
    %6538 = vmatpush1.msra.mxu0 %v6166
    %6539 = vmatprep.subr.mxu0 0.0
    %6540 = vmatpush1.msra.mxu0 %v6167
    %6541 = vmatprep.subr.mxu0 0.0
    %6542 = vmatpush1.msra.mxu0 %v6168
    %6543 = vmatprep.subr.mxu0 0.0
    %6544 = vmatpush1.msra.mxu0 %v6169
    %6545 = vmatprep.subr.mxu0 0.0
    %6546 = vmatpush1.msra.mxu0 %v6170
    %6547 = vmatprep.subr.mxu0 0.0
    %6548 = vmatpush1.msra.mxu0 %v6171
    %6549 = vmatprep.subr.mxu0 0.0
    %6550 = vmatpush1.msra.mxu0 %v6172
    %6551 = vmatprep.subr.mxu0 0.0
    %6552 = vmatpush1.msra.mxu0 %v6173
    %6553 = vmatprep.subr.mxu0 0.0
    %6554 = vmatpush1.msra.mxu0 %v6174
    %6555 = vmatprep.subr.mxu0 0.0
    %6556 = vmatpush1.msra.mxu0 %v6175
    %6557 = vmatprep.subr.mxu0 0.0
    %6558 = vmatpush1.msra.mxu0 %v6176
    %6559 = vmatprep.subr.mxu0 0.0
    %6560 = vmatpush1.msra.mxu0 %v6177
    %6561 = vmatprep.mubr.f32.mxu0 %v6428
    %6562 = vmatmul.mubr.f32.gmra.mrb[0].mxu0 %v6420
    %v6563 = vpop.f32.mrb[0].mxu0
    %v6564 = vadd.f32 %v6407, %v6563
    %v6565 = vpop.f32.mrb[0].mxu0
    %6566 = vdwg.mxu0
    %6567 = vmatprep.subr.mxu0 0.0
    %6568 = vmatpush1.msra.mxu0 %v6178
    %6569 = vmatprep.subr.mxu0 0.0
    %6570 = vmatpush1.msra.mxu0 %v6179
    %6571 = vmatprep.subr.mxu0 0.0
    %6572 = vmatpush1.msra.mxu0 %v6180
    %6573 = vmatprep.subr.mxu0 0.0
    %6574 = vmatpush1.msra.mxu0 %v6181
    %6575 = vmatprep.subr.mxu0 0.0
    %6576 = vmatpush1.msra.mxu0 %v6182
    %6577 = vmatprep.subr.mxu0 0.0
    %6578 = vmatpush1.msra.mxu0 %v6183
    %6579 = vmatprep.subr.mxu0 0.0
    %6580 = vmatpush1.msra.mxu0 %v6184
    %6581 = vmatprep.subr.mxu0 0.0
    %6582 = vmatpush1.msra.mxu0 %v6185
    %6583 = vmatprep.subr.mxu0 0.0
    %6584 = vmatpush1.msra.mxu0 %v6186
    %6585 = vmatprep.subr.mxu0 0.0
    %6586 = vmatpush1.msra.mxu0 %v6187
    %6587 = vmatprep.subr.mxu0 0.0
    %6588 = vmatpush1.msra.mxu0 %v6188
    %6589 = vmatprep.subr.mxu0 0.0
    %6590 = vmatpush1.msra.mxu0 %v6189
    %6591 = vmatprep.subr.mxu0 0.0
    %6592 = vmatpush1.msra.mxu0 %v6190
    %6593 = vmatprep.subr.mxu0 0.0
    %6594 = vmatpush1.msra.mxu0 %v6191
    %6595 = vmatprep.subr.mxu0 0.0
    %6596 = vmatpush1.msra.mxu0 %v6192
    %6597 = vmatprep.subr.mxu0 0.0
    %6598 = vmatpush1.msra.mxu0 %v6193
    %6599 = vmatprep.subr.mxu0 0.0
    %6600 = vmatpush1.msra.mxu0 %v6194
    %6601 = vmatprep.subr.mxu0 0.0
    %6602 = vmatpush1.msra.mxu0 %v6195
    %6603 = vmatprep.subr.mxu0 0.0
    %6604 = vmatpush1.msra.mxu0 %v6196
    %6605 = vmatprep.subr.mxu0 0.0
    %6606 = vmatpush1.msra.mxu0 %v6197
    %6607 = vmatprep.subr.mxu0 0.0
    %6608 = vmatpush1.msra.mxu0 %v6198
    %6609 = vmatprep.subr.mxu0 0.0
    %6610 = vmatpush1.msra.mxu0 %v6199
    %6611 = vmatprep.subr.mxu0 0.0
    %6612 = vmatpush1.msra.mxu0 %v6200
    %6613 = vmatprep.subr.mxu0 0.0
    %6614 = vmatpush1.msra.mxu0 %v6201
    %6615 = vmatprep.subr.mxu0 0.0
    %6616 = vmatpush1.msra.mxu0 %v6202
    %6617 = vmatprep.subr.mxu0 0.0
    %6618 = vmatpush1.msra.mxu0 %v6203
    %6619 = vmatprep.subr.mxu0 0.0
    %6620 = vmatpush1.msra.mxu0 %v6204
    %6621 = vmatprep.subr.mxu0 0.0
    %6622 = vmatpush1.msra.mxu0 %v6205
    %6623 = vmatprep.subr.mxu0 0.0
    %6624 = vmatpush1.msra.mxu0 %v6206
    %6625 = vmatprep.subr.mxu0 0.0
    %6626 = vmatpush1.msra.mxu0 %v6207
    %6627 = vmatprep.subr.mxu0 0.0
    %6628 = vmatpush1.msra.mxu0 %v6208
    %6629 = vmatprep.subr.mxu0 0.0
    %6630 = vmatpush1.msra.mxu0 %v6209
    %6631 = vmatprep.mubr.f32.mxu0 %v6429
    %6632 = vmatmul.mubr.f32.gmra.mrb[0].mxu0 %v6427
    %v6633 = vpop.f32.mrb[0].mxu0
    %v6634 = vadd.f32 %v6564, %v6633
    %v6635 = vpop.f32.mrb[0].mxu0
    %6636 = vdwg.mxu0
    %6637 = vmatprep.subr.mxu0 0.0
    %6638 = vmatpush1.msra.mxu0 %v6210
    %6639 = vmatprep.subr.mxu0 0.0
    %6640 = vmatpush1.msra.mxu0 %v6211
    %6641 = vmatprep.subr.mxu0 0.0
    %6642 = vmatpush1.msra.mxu0 %v6212
    %6643 = vmatprep.subr.mxu0 0.0
    %6644 = vmatpush1.msra.mxu0 %v6213
    %6645 = vmatprep.subr.mxu0 0.0
    %6646 = vmatpush1.msra.mxu0 %v6214
    %6647 = vmatprep.subr.mxu0 0.0
    %6648 = vmatpush1.msra.mxu0 %v6215
    %6649 = vmatprep.subr.mxu0 0.0
    %6650 = vmatpush1.msra.mxu0 %v6216
    %6651 = vmatprep.subr.mxu0 0.0
    %6652 = vmatpush1.msra.mxu0 %v6217
    %6653 = vmatprep.subr.mxu0 0.0
    %6654 = vmatpush1.msra.mxu0 %v6218
    %6655 = vmatprep.subr.mxu0 0.0
    %6656 = vmatpush1.msra.mxu0 %v6219
    %6657 = vmatprep.subr.mxu0 0.0
    %6658 = vmatpush1.msra.mxu0 %v6220
    %6659 = vmatprep.subr.mxu0 0.0
    %6660 = vmatpush1.msra.mxu0 %v6221
    %6661 = vmatprep.subr.mxu0 0.0
    %6662 = vmatpush1.msra.mxu0 %v6222
    %6663 = vmatprep.subr.mxu0 0.0
    %6664 = vmatpush1.msra.mxu0 %v6223
    %6665 = vmatprep.subr.mxu0 0.0
    %6666 = vmatpush1.msra.mxu0 %v6224
    %6667 = vmatprep.subr.mxu0 0.0
    %6668 = vmatpush1.msra.mxu0 %v6225
    %6669 = vmatprep.subr.mxu0 0.0
    %6670 = vmatpush1.msra.mxu0 %v6226
    %6671 = vmatprep.subr.mxu0 0.0
    %6672 = vmatpush1.msra.mxu0 %v6227
    %6673 = vmatprep.subr.mxu0 0.0
    %6674 = vmatpush1.msra.mxu0 %v6228
    %6675 = vmatprep.subr.mxu0 0.0
    %6676 = vmatpush1.msra.mxu0 %v6229
    %6677 = vmatprep.subr.mxu0 0.0
    %6678 = vmatpush1.msra.mxu0 %v6230
    %6679 = vmatprep.subr.mxu0 0.0
    %6680 = vmatpush1.msra.mxu0 %v6231
    %6681 = vmatprep.subr.mxu0 0.0
    %6682 = vmatpush1.msra.mxu0 %v6232
    %6683 = vmatprep.subr.mxu0 0.0
    %6684 = vmatpush1.msra.mxu0 %v6233
    %6685 = vmatprep.subr.mxu0 0.0
    %6686 = vmatpush1.msra.mxu0 %v6234
    %6687 = vmatprep.subr.mxu0 0.0
    %6688 = vmatpush1.msra.mxu0 %v6235
    %6689 = vmatprep.subr.mxu0 0.0
    %6690 = vmatpush1.msra.mxu0 %v6236
    %6691 = vmatprep.subr.mxu0 0.0
    %6692 = vmatpush1.msra.mxu0 %v6237
    %6693 = vmatprep.subr.mxu0 0.0
    %6694 = vmatpush1.msra.mxu0 %v6238
    %6695 = vmatprep.subr.mxu0 0.0
    %6696 = vmatpush1.msra.mxu0 %v6239
    %6697 = vmatprep.subr.mxu0 0.0
    %6698 = vmatpush1.msra.mxu0 %v6240
    %6699 = vmatprep.subr.mxu0 0.0
    %6700 = vmatpush1.msra.mxu0 %v6241
    %6701 = vmatprep.mubr.f32.mxu0 %v6445
    %6702 = vmatmul.mubr.f32.gmra.mrb[0].mxu0 %v6437
    %v6703 = vpop.f32.mrb[0].mxu0
    %v6704 = vadd.f32 %v6634, %v6703
    %v6705 = vpop.f32.mrb[0].mxu0
    %6706 = vdwg.mxu0
    %6707 = vmatprep.subr.mxu0 0.0
    %6708 = vmatpush1.msra.mxu0 %v6242
    %6709 = vmatprep.subr.mxu0 0.0
    %6710 = vmatpush1.msra.mxu0 %v6243
    %6711 = vmatprep.subr.mxu0 0.0
    %6712 = vmatpush1.msra.mxu0 %v6244
    %6713 = vmatprep.subr.mxu0 0.0
    %6714 = vmatpush1.msra.mxu0 %v6245
    %6715 = vmatprep.subr.mxu0 0.0
    %6716 = vmatpush1.msra.mxu0 %v6246
    %6717 = vmatprep.subr.mxu0 0.0
    %6718 = vmatpush1.msra.mxu0 %v6247
    %6719 = vmatprep.subr.mxu0 0.0
    %6720 = vmatpush1.msra.mxu0 %v6248
    %6721 = vmatprep.subr.mxu0 0.0
    %6722 = vmatpush1.msra.mxu0 %v6249
    %6723 = vmatprep.subr.mxu0 0.0
    %6724 = vmatpush1.msra.mxu0 %v6250
    %6725 = vmatprep.subr.mxu0 0.0
    %6726 = vmatpush1.msra.mxu0 %v6251
    %6727 = vmatprep.subr.mxu0 0.0
    %6728 = vmatpush1.msra.mxu0 %v6252
    %6729 = vmatprep.subr.mxu0 0.0
    %6730 = vmatpush1.msra.mxu0 %v6253
    %6731 = vmatprep.subr.mxu0 0.0
    %6732 = vmatpush1.msra.mxu0 %v6254
    %6733 = vmatprep.subr.mxu0 0.0
    %6734 = vmatpush1.msra.mxu0 %v6255
    %6735 = vmatprep.subr.mxu0 0.0
    %6736 = vmatpush1.msra.mxu0 %v6256
    %6737 = vmatprep.subr.mxu0 0.0
    %6738 = vmatpush1.msra.mxu0 %v6257
    %6739 = vmatprep.subr.mxu0 0.0
    %6740 = vmatpush1.msra.mxu0 %v6258
    %6741 = vmatprep.subr.mxu0 0.0
    %6742 = vmatpush1.msra.mxu0 %v6259
    %6743 = vmatprep.subr.mxu0 0.0
    %6744 = vmatpush1.msra.mxu0 %v6260
    %6745 = vmatprep.subr.mxu0 0.0
    %6746 = vmatpush1.msra.mxu0 %v6261
    %6747 = vmatprep.subr.mxu0 0.0
    %6748 = vmatpush1.msra.mxu0 %v6262
    %6749 = vmatprep.subr.mxu0 0.0
    %6750 = vmatpush1.msra.mxu0 %v6263
    %6751 = vmatprep.subr.mxu0 0.0
    %6752 = vmatpush1.msra.mxu0 %v6264
    %6753 = vmatprep.subr.mxu0 0.0
    %6754 = vmatpush1.msra.mxu0 %v6265
    %6755 = vmatprep.subr.mxu0 0.0
    %6756 = vmatpush1.msra.mxu0 %v6266
    %6757 = vmatprep.subr.mxu0 0.0
    %6758 = vmatpush1.msra.mxu0 %v6267
    %6759 = vmatprep.subr.mxu0 0.0
    %6760 = vmatpush1.msra.mxu0 %v6268
    %6761 = vmatprep.subr.mxu0 0.0
    %6762 = vmatpush1.msra.mxu0 %v6269
    %6763 = vmatprep.subr.mxu0 0.0
    %6764 = vmatpush1.msra.mxu0 %v6270
    %6765 = vmatprep.subr.mxu0 0.0
    %6766 = vmatpush1.msra.mxu0 %v6271
    %6767 = vmatprep.subr.mxu0 0.0
    %6768 = vmatpush1.msra.mxu0 %v6272
    %6769 = vmatprep.subr.mxu0 0.0
    %6770 = vmatpush1.msra.mxu0 %v6273
    %6771 = vmatprep.mubr.f32.mxu0 %v6446
    %6772 = vmatmul.mubr.f32.gmra.mrb[0].mxu0 %v6444
    %v6773 = vpop.f32.mrb[0].mxu0
    %v6774 = vadd.f32 %v6704, %v6773
    %v6775 = vpop.f32.mrb[0].mxu0
    %6776 = vdwg.mxu0
    %6777 = vmatprep.subr.mxu0 0.0
    %6778 = vmatpush1.msra.mxu0 %v6274
    %6779 = vmatprep.subr.mxu0 0.0
    %6780 = vmatpush1.msra.mxu0 %v6275
    %6781 = vmatprep.subr.mxu0 0.0
    %6782 = vmatpush1.msra.mxu0 %v6276
    %6783 = vmatprep.subr.mxu0 0.0
    %6784 = vmatpush1.msra.mxu0 %v6277
    %6785 = vmatprep.subr.mxu0 0.0
    %6786 = vmatpush1.msra.mxu0 %v6278
    %6787 = vmatprep.subr.mxu0 0.0
    %6788 = vmatpush1.msra.mxu0 %v6279
    %6789 = vmatprep.subr.mxu0 0.0
    %6790 = vmatpush1.msra.mxu0 %v6280
    %6791 = vmatprep.subr.mxu0 0.0
    %6792 = vmatpush1.msra.mxu0 %v6281
    %6793 = vmatprep.subr.mxu0 0.0
    %6794 = vmatpush1.msra.mxu0 %v6282
    %6795 = vmatprep.subr.mxu0 0.0
    %6796 = vmatpush1.msra.mxu0 %v6283
    %6797 = vmatprep.subr.mxu0 0.0
    %6798 = vmatpush1.msra.mxu0 %v6284
    %6799 = vmatprep.subr.mxu0 0.0
    %6800 = vmatpush1.msra.mxu0 %v6285
    %6801 = vmatprep.subr.mxu0 0.0
    %6802 = vmatpush1.msra.mxu0 %v6286
    %6803 = vmatprep.subr.mxu0 0.0
    %6804 = vmatpush1.msra.mxu0 %v6287
    %6805 = vmatprep.subr.mxu0 0.0
    %6806 = vmatpush1.msra.mxu0 %v6288
    %6807 = vmatprep.subr.mxu0 0.0
    %6808 = vmatpush1.msra.mxu0 %v6289
    %6809 = vmatprep.subr.mxu0 0.0
    %6810 = vmatpush1.msra.mxu0 %v6290
    %6811 = vmatprep.subr.mxu0 0.0
    %6812 = vmatpush1.msra.mxu0 %v6291
    %6813 = vmatprep.subr.mxu0 0.0
    %6814 = vmatpush1.msra.mxu0 %v6292
    %6815 = vmatprep.subr.mxu0 0.0
    %6816 = vmatpush1.msra.mxu0 %v6293
    %6817 = vmatprep.subr.mxu0 0.0
    %6818 = vmatpush1.msra.mxu0 %v6294
    %6819 = vmatprep.subr.mxu0 0.0
    %6820 = vmatpush1.msra.mxu0 %v6295
    %6821 = vmatprep.subr.mxu0 0.0
    %6822 = vmatpush1.msra.mxu0 %v6296
    %6823 = vmatprep.subr.mxu0 0.0
    %6824 = vmatpush1.msra.mxu0 %v6297
    %6825 = vmatprep.subr.mxu0 0.0
    %6826 = vmatpush1.msra.mxu0 %v6298
    %6827 = vmatprep.subr.mxu0 0.0
    %6828 = vmatpush1.msra.mxu0 %v6299
    %6829 = vmatprep.subr.mxu0 0.0
    %6830 = vmatpush1.msra.mxu0 %v6300
    %6831 = vmatprep.subr.mxu0 0.0
    %6832 = vmatpush1.msra.mxu0 %v6301
    %6833 = vmatprep.subr.mxu0 0.0
    %6834 = vmatpush1.msra.mxu0 %v6302
    %6835 = vmatprep.subr.mxu0 0.0
    %6836 = vmatpush1.msra.mxu0 %v6303
    %6837 = vmatprep.subr.mxu0 0.0
    %6838 = vmatpush1.msra.mxu0 %v6304
    %6839 = vmatprep.subr.mxu0 0.0
    %6840 = vmatpush1.msra.mxu0 %v6305
    %6841 = vmatprep.mubr.f32.mxu0 %v6462
    %6842 = vmatmul.mubr.f32.gmra.mrb[0].mxu0 %v6454
    %v6843 = vpop.f32.mrb[0].mxu0
    %v6844 = vadd.f32 %v6774, %v6843
    %v6845 = vpop.f32.mrb[0].mxu0
    %6846 = vdwg.mxu0
    %6847 = vmatprep.subr.mxu0 0.0
    %6848 = vmatpush1.msra.mxu0 %v6306
    %6849 = vmatprep.subr.mxu0 0.0
    %6850 = vmatpush1.msra.mxu0 %v6307
    %6851 = vmatprep.subr.mxu0 0.0
    %6852 = vmatpush1.msra.mxu0 %v6308
    %6853 = vmatprep.subr.mxu0 0.0
    %6854 = vmatpush1.msra.mxu0 %v6309
    %6855 = vmatprep.subr.mxu0 0.0
    %6856 = vmatpush1.msra.mxu0 %v6310
    %6857 = vmatprep.subr.mxu0 0.0
    %6858 = vmatpush1.msra.mxu0 %v6311
    %6859 = vmatprep.subr.mxu0 0.0
    %6860 = vmatpush1.msra.mxu0 %v6312
    %6861 = vmatprep.subr.mxu0 0.0
    %6862 = vmatpush1.msra.mxu0 %v6313
    %6863 = vmatprep.subr.mxu0 0.0
    %6864 = vmatpush1.msra.mxu0 %v6314
    %6865 = vmatprep.subr.mxu0 0.0
    %6866 = vmatpush1.msra.mxu0 %v6315
    %6867 = vmatprep.subr.mxu0 0.0
    %6868 = vmatpush1.msra.mxu0 %v6316
    %6869 = vmatprep.subr.mxu0 0.0
    %6870 = vmatpush1.msra.mxu0 %v6317
    %6871 = vmatprep.subr.mxu0 0.0
    %6872 = vmatpush1.msra.mxu0 %v6318
    %6873 = vmatprep.subr.mxu0 0.0
    %6874 = vmatpush1.msra.mxu0 %v6319
    %6875 = vmatprep.subr.mxu0 0.0
    %6876 = vmatpush1.msra.mxu0 %v6320
    %6877 = vmatprep.subr.mxu0 0.0
    %6878 = vmatpush1.msra.mxu0 %v6321
    %6879 = vmatprep.subr.mxu0 0.0
    %6880 = vmatpush1.msra.mxu0 %v6322
    %6881 = vmatprep.subr.mxu0 0.0
    %6882 = vmatpush1.msra.mxu0 %v6323
    %6883 = vmatprep.subr.mxu0 0.0
    %6884 = vmatpush1.msra.mxu0 %v6324
    %6885 = vmatprep.subr.mxu0 0.0
    %6886 = vmatpush1.msra.mxu0 %v6325
    %6887 = vmatprep.subr.mxu0 0.0
    %6888 = vmatpush1.msra.mxu0 %v6326
    %6889 = vmatprep.subr.mxu0 0.0
    %6890 = vmatpush1.msra.mxu0 %v6327
    %6891 = vmatprep.subr.mxu0 0.0
    %6892 = vmatpush1.msra.mxu0 %v6328
    %6893 = vmatprep.subr.mxu0 0.0
    %6894 = vmatpush1.msra.mxu0 %v6329
    %6895 = vmatprep.subr.mxu0 0.0
    %6896 = vmatpush1.msra.mxu0 %v6330
    %6897 = vmatprep.subr.mxu0 0.0
    %6898 = vmatpush1.msra.mxu0 %v6331
    %6899 = vmatprep.subr.mxu0 0.0
    %6900 = vmatpush1.msra.mxu0 %v6332
    %6901 = vmatprep.subr.mxu0 0.0
    %6902 = vmatpush1.msra.mxu0 %v6333
    %6903 = vmatprep.subr.mxu0 0.0
    %6904 = vmatpush1.msra.mxu0 %v6334
    %6905 = vmatprep.subr.mxu0 0.0
    %6906 = vmatpush1.msra.mxu0 %v6335
    %6907 = vmatprep.subr.mxu0 0.0
    %6908 = vmatpush1.msra.mxu0 %v6336
    %6909 = vmatprep.subr.mxu0 0.0
    %6910 = vmatpush1.msra.mxu0 %v6337
    %6911 = vmatprep.mubr.f32.mxu0 %v6463
    %6912 = vmatmul.mubr.f32.gmra.mrb[0].mxu0 %v6461
    %v6913 = vpop.f32.mrb[0].mxu0
    %v6914 = vadd.f32 %v6844, %v6913
    %v6915 = vpop.f32.mrb[0].mxu0
    %6916 = vdwg.mxu0
    %6917 = vmatprep.subr.mxu0 0.0
    %6918 = vmatpush1.msra.mxu0 %v6338
    %6919 = vmatprep.subr.mxu0 0.0
    %6920 = vmatpush1.msra.mxu0 %v6339
    %6921 = vmatprep.subr.mxu0 0.0
    %6922 = vmatpush1.msra.mxu0 %v6340
    %6923 = vmatprep.subr.mxu0 0.0
    %6924 = vmatpush1.msra.mxu0 %v6341
    %6925 = vmatprep.subr.mxu0 0.0
    %6926 = vmatpush1.msra.mxu0 %v6342
    %6927 = vmatprep.subr.mxu0 0.0
    %6928 = vmatpush1.msra.mxu0 %v6343
    %6929 = vmatprep.subr.mxu0 0.0
    %6930 = vmatpush1.msra.mxu0 %v6344
    %6931 = vmatprep.subr.mxu0 0.0
    %6932 = vmatpush1.msra.mxu0 %v6345
    %6933 = vmatprep.subr.mxu0 0.0
    %6934 = vmatpush1.msra.mxu0 %v6346
    %6935 = vmatprep.subr.mxu0 0.0
    %6936 = vmatpush1.msra.mxu0 %v6347
    %6937 = vmatprep.subr.mxu0 0.0
    %6938 = vmatpush1.msra.mxu0 %v6348
    %6939 = vmatprep.subr.mxu0 0.0
    %6940 = vmatpush1.msra.mxu0 %v6349
    %6941 = vmatprep.subr.mxu0 0.0
    %6942 = vmatpush1.msra.mxu0 %v6350
    %6943 = vmatprep.subr.mxu0 0.0
    %6944 = vmatpush1.msra.mxu0 %v6351
    %6945 = vmatprep.subr.mxu0 0.0
    %6946 = vmatpush1.msra.mxu0 %v6352
    %6947 = vmatprep.subr.mxu0 0.0
    %6948 = vmatpush1.msra.mxu0 %v6353
    %6949 = vmatprep.subr.mxu0 0.0
    %6950 = vmatpush1.msra.mxu0 %v6354
    %6951 = vmatprep.subr.mxu0 0.0
    %6952 = vmatpush1.msra.mxu0 %v6355
    %6953 = vmatprep.subr.mxu0 0.0
    %6954 = vmatpush1.msra.mxu0 %v6356
    %6955 = vmatprep.subr.mxu0 0.0
    %6956 = vmatpush1.msra.mxu0 %v6357
    %6957 = vmatprep.subr.mxu0 0.0
    %6958 = vmatpush1.msra.mxu0 %v6358
    %6959 = vmatprep.subr.mxu0 0.0
    %6960 = vmatpush1.msra.mxu0 %v6359
    %6961 = vmatprep.subr.mxu0 0.0
    %6962 = vmatpush1.msra.mxu0 %v6360
    %6963 = vmatprep.subr.mxu0 0.0
    %6964 = vmatpush1.msra.mxu0 %v6361
    %6965 = vmatprep.subr.mxu0 0.0
    %6966 = vmatpush1.msra.mxu0 %v6362
    %6967 = vmatprep.subr.mxu0 0.0
    %6968 = vmatpush1.msra.mxu0 %v6363
    %6969 = vmatprep.subr.mxu0 0.0
    %6970 = vmatpush1.msra.mxu0 %v6364
    %6971 = vmatprep.subr.mxu0 0.0
    %6972 = vmatpush1.msra.mxu0 %v6365
    %6973 = vmatprep.subr.mxu0 0.0
    %6974 = vmatpush1.msra.mxu0 %v6366
    %6975 = vmatprep.subr.mxu0 0.0
    %6976 = vmatpush1.msra.mxu0 %v6367
    %6977 = vmatprep.subr.mxu0 0.0
    %6978 = vmatpush1.msra.mxu0 %v6368
    %6979 = vmatprep.subr.mxu0 0.0
    %6980 = vmatpush1.msra.mxu0 %v6369
    %6981 = vmatprep.mubr.f32.mxu0 %v6479
    %6982 = vmatmul.mubr.f32.gmra.mrb[0].mxu0 %v6471
    %v6983 = vpop.f32.mrb[0].mxu0
    %v6984 = vadd.f32 %v6914, %v6983
    %v6985 = vpop.f32.mrb[0].mxu0
    %6986 = vdwg.mxu0
    %6987 = vmatprep.subr.mxu0 0.0
    %6988 = vmatpush1.msra.mxu0 %v6370
    %6989 = vmatprep.subr.mxu0 0.0
    %6990 = vmatpush1.msra.mxu0 %v6371
    %6991 = vmatprep.subr.mxu0 0.0
    %6992 = vmatpush1.msra.mxu0 %v6372
    %6993 = vmatprep.subr.mxu0 0.0
    %6994 = vmatpush1.msra.mxu0 %v6373
    %6995 = vmatprep.subr.mxu0 0.0
    %6996 = vmatpush1.msra.mxu0 %v6374
    %6997 = vmatprep.subr.mxu0 0.0
    %6998 = vmatpush1.msra.mxu0 %v6375
    %6999 = vmatprep.subr.mxu0 0.0
    %7000 = vmatpush1.msra.mxu0 %v6376
    %7001 = vmatprep.subr.mxu0 0.0
    %7002 = vmatpush1.msra.mxu0 %v6377
    %7003 = vmatprep.subr.mxu0 0.0
    %7004 = vmatpush1.msra.mxu0 %v6378
    %7005 = vmatprep.subr.mxu0 0.0
    %7006 = vmatpush1.msra.mxu0 %v6379
    %7007 = vmatprep.subr.mxu0 0.0
    %7008 = vmatpush1.msra.mxu0 %v6380
    %7009 = vmatprep.subr.mxu0 0.0
    %7010 = vmatpush1.msra.mxu0 %v6381
    %7011 = vmatprep.subr.mxu0 0.0
    %7012 = vmatpush1.msra.mxu0 %v6382
    %7013 = vmatprep.subr.mxu0 0.0
    %7014 = vmatpush1.msra.mxu0 %v6383
    %7015 = vmatprep.subr.mxu0 0.0
    %7016 = vmatpush1.msra.mxu0 %v6384
    %7017 = vmatprep.subr.mxu0 0.0
    %7018 = vmatpush1.msra.mxu0 %v6385
    %7019 = vmatprep.subr.mxu0 0.0
    %7020 = vmatpush1.msra.mxu0 %v6386
    %7021 = vmatprep.subr.mxu0 0.0
    %7022 = vmatpush1.msra.mxu0 %v6387
    %7023 = vmatprep.subr.mxu0 0.0
    %7024 = vmatpush1.msra.mxu0 %v6388
    %7025 = vmatprep.subr.mxu0 0.0
    %7026 = vmatpush1.msra.mxu0 %v6389
    %7027 = vmatprep.subr.mxu0 0.0
    %7028 = vmatpush1.msra.mxu0 %v6390
    %7029 = vmatprep.subr.mxu0 0.0
    %7030 = vmatpush1.msra.mxu0 %v6391
    %7031 = vmatprep.subr.mxu0 0.0
    %7032 = vmatpush1.msra.mxu0 %v6392
    %7033 = vmatprep.subr.mxu0 0.0
    %7034 = vmatpush1.msra.mxu0 %v6393
    %7035 = vmatprep.subr.mxu0 0.0
    %7036 = vmatpush1.msra.mxu0 %v6394
    %7037 = vmatprep.subr.mxu0 0.0
    %7038 = vmatpush1.msra.mxu0 %v6395
    %7039 = vmatprep.subr.mxu0 0.0
    %7040 = vmatpush1.msra.mxu0 %v6396
    %7041 = vmatprep.subr.mxu0 0.0
    %7042 = vmatpush1.msra.mxu0 %v6397
    %7043 = vmatprep.subr.mxu0 0.0
    %7044 = vmatpush1.msra.mxu0 %v6398
    %7045 = vmatprep.subr.mxu0 0.0
    %7046 = vmatpush1.msra.mxu0 %v6399
    %7047 = vmatprep.subr.mxu0 0.0
    %7048 = vmatpush1.msra.mxu0 %v6400
    %7049 = vmatprep.subr.mxu0 0.0
    %7050 = vmatpush1.msra.mxu0 %v6401
    %7051 = vmatprep.mubr.f32.mxu0 %v6480
    %7052 = vmatmul.mubr.f32.gmra.mrb[0].mxu0 %v6478
    %v7053 = vpop.f32.mrb[0].mxu0
    %v7054 = vadd.f32 %v6984, %v7053
    %v7055 = vpop.f32.mrb[0].mxu0
    %7056 = vdwg.mxu0
    %v7057 = vmax.f32 %v7054, 0.0
    %v7058 = vld [vmem:[%s7] sm:$0xff]
    %v7059 = vld [vmem:[%s7 + $0x8] sm:$0xff]
    %v7060 = vld [vmem:[%s7 + $0x10] sm:$0xff]
    %v7061 = vld [vmem:[%s7 + $0x18] sm:$0xff]
    %v7062 = vld [vmem:[%s7 + $0x20] sm:$0xff]
    %v7063 = vld [vmem:[%s7 + $0x28] sm:$0xff]
    %v7064 = vld [vmem:[%s7 + $0x30] sm:$0xff]
    %v7065 = vld [vmem:[%s7 + $0x38] sm:$0xff]
    %v7066 = vld [vmem:[%s7 + $0x40] sm:$0xff]
    %v7067 = vld [vmem:[%s7 + $0x48] sm:$0xff]
    %v7068 = vld [vmem:[%s7 + $0x50] sm:$0xff]
    %v7069 = vld [vmem:[%s7 + $0x58] sm:$0xff]
    %v7070 = vld [vmem:[%s7 + $0x60] sm:$0xff]
    %v7071 = vld [vmem:[%s7 + $0x68] sm:$0xff]
    %v7072 = vld [vmem:[%s7 + $0x70] sm:$0xff]
    %v7073 = vld [vmem:[%s7 + $0x78] sm:$0xff]
    %v7074 = vld [vmem:[%s8] sm:$0x1]
    %v7076 = vlaneseq
    %v7077 = vshrl.u32 %v7076, 7
    %v7078 = vsub.s32 0, %v7077
    %v7079 = vrot.slane %v7074, %v7078
    %7081 = vmatprep.subr.mxu0 0.0
    %7082 = vmatpush1.msra.mxu0 %v7058
    %7083 = vmatprep.subr.mxu0 0.0
    %7084 = vmatpush1.msra.mxu0 %v7059
    %7085 = vmatprep.subr.mxu0 0.0
    %7086 = vmatpush1.msra.mxu0 %v7060
    %7087 = vmatprep.subr.mxu0 0.0
    %7088 = vmatpush1.msra.mxu0 %v7061
    %7089 = vmatprep.subr.mxu0 0.0
    %7090 = vmatpush1.msra.mxu0 %v7062
    %7091 = vmatprep.subr.mxu0 0.0
    %7092 = vmatpush1.msra.mxu0 %v7063
    %7093 = vmatprep.subr.mxu0 0.0
    %7094 = vmatpush1.msra.mxu0 %v7064
    %7095 = vmatprep.subr.mxu0 0.0
    %7096 = vmatpush1.msra.mxu0 %v7065
    %7097 = vmatprep.subr.mxu0 0.0
    %7098 = vmatpush1.msra.mxu0 %v7066
    %7099 = vmatprep.subr.mxu0 0.0
    %7100 = vmatpush1.msra.mxu0 %v7067
    %7101 = vmatprep.subr.mxu0 0.0
    %7102 = vmatpush1.msra.mxu0 %v7068
    %7103 = vmatprep.subr.mxu0 0.0
    %7104 = vmatpush1.msra.mxu0 %v7069
    %7105 = vmatprep.subr.mxu0 0.0
    %7106 = vmatpush1.msra.mxu0 %v7070
    %7107 = vmatprep.subr.mxu0 0.0
    %7108 = vmatpush1.msra.mxu0 %v7071
    %7109 = vmatprep.subr.mxu0 0.0
    %7110 = vmatpush1.msra.mxu0 %v7072
    %7111 = vmatprep.subr.mxu0 0.0
    %7112 = vmatpush1.msra.mxu0 %v7073
    %7113 = vmatprep.subr.mxu0 0.0
    %7114 = vmatpush1.msra.mxu0 0.0
    %7115 = vmatprep.subr.mxu0 0.0
    %7116 = vmatpush1.msra.mxu0 0.0
    %7117 = vmatprep.subr.mxu0 0.0
    %7118 = vmatpush1.msra.mxu0 0.0
    %7119 = vmatprep.subr.mxu0 0.0
    %7120 = vmatpush1.msra.mxu0 0.0
    %7121 = vmatprep.subr.mxu0 0.0
    %7122 = vmatpush1.msra.mxu0 0.0
    %7123 = vmatprep.subr.mxu0 0.0
    %7124 = vmatpush1.msra.mxu0 0.0
    %7125 = vmatprep.subr.mxu0 0.0
    %7126 = vmatpush1.msra.mxu0 0.0
    %7127 = vmatprep.subr.mxu0 0.0
    %7128 = vmatpush1.msra.mxu0 0.0
    %7129 = vmatprep.subr.mxu0 0.0
    %7130 = vmatpush1.msra.mxu0 0.0
    %7131 = vmatprep.subr.mxu0 0.0
    %7132 = vmatpush1.msra.mxu0 0.0
    %7133 = vmatprep.subr.mxu0 0.0
    %7134 = vmatpush1.msra.mxu0 0.0
    %7135 = vmatprep.subr.mxu0 0.0
    %7136 = vmatpush1.msra.mxu0 0.0
    %7137 = vmatprep.subr.mxu0 0.0
    %7138 = vmatpush1.msra.mxu0 0.0
    %7139 = vmatprep.subr.mxu0 0.0
    %7140 = vmatpush1.msra.mxu0 0.0
    %7141 = vmatprep.subr.mxu0 0.0
    %7142 = vmatpush1.msra.mxu0 0.0
    %7143 = vmatprep.subr.mxu0 0.0
    %7144 = vmatpush1.msra.mxu0 0.0
    %7145 = vmatprep.mubr.f32.mxu0 0.0
    %7146 = vmatmul.mubr.f32.gmra.mrb[0].mxu0 %v7057
    %v7147 = vpop.f32.mrb[0].mxu0
    %v7148 = vadd.f32 %v7079, %v7147
    %v7149 = vpop.f32.mrb[0].mxu0
    %7150 = vdwg.mxu0
    %vm7151 = vcmask 74752
    %7152 = vst.msk [vmem:[#allocation4] sm:$0x3] %vm7151, %v7148
    // Predicated region
    $region38: #{_lambda_.1} parent=1 // pred_check
      _
    $region39: #{_lambda_.1} parent=1 // pred_check_branch
      %7154 = sbr.rel (0) target = $region41
    $region40: #{_lambda_.1} parent=1 // pred_region
      %s7156 = ssub.s32 32, 32
      %7157 = vsyncadd [#allocation5], %s7156
      %s7159 = sshll.u32 [#allocation4], 4
      %s7160 = int_to_ptr.vmem [resolvable:$true] %s7159
      %7162 = dma.vmem_to_hbm [thread:$0]  %s7160, 32, %s9, [#allocation5]
    $region41: #{_lambda_.1} parent=1 // pred_fallthru
      _
    // Predicated region
    $region42: #{_lambda_.1} parent=1 // pred_check
      _
    $region43: #{_lambda_.1} parent=1 // pred_check_branch
      %7164 = sbr.rel (0) target = $region45
    $region44: #{_lambda_.1} parent=1 // pred_region
      %7165 = dma.done [#allocation5], 32
    $region45: #{_lambda_.1} parent=1 // pred_fallthru
      _
    %7166 = vsyncpa [#allocation5], 1

</llo_original>
